<compile_context>
chip_gen: v7x
topology: tpu7x:2x2x1
jax: 0.10.0
libtpu: 0.0.40
codegen_flags: <defaults>
</compile_context>

<pallas_src>
import functools

import jax
import jax.numpy as jnp
from jax.experimental import pallas as pl
from jax.experimental.pallas import tpu as pltpu


def basic_block_kernel(x_ref, w1_ref, b1_ref, w2_ref, b2_ref, out_ref,
                       pad_ref, slab_ref=None, *, use_im2col):
    """One batch element per grid step (NHWC layout inside the kernel).

    x_ref   : (1, H, W, C)  bf16 input block (also read as the identity residual)
    w1_ref  : (9*C, C)      bf16 conv1 weights, BN1 scale folded in; row = (ky*3+kx)*C+cin
    b1_ref  : (1, C)        f32 folded BN1 bias
    w2_ref  : (9*C, C)      bf16 conv2 weights, BN2 scale folded in
    b2_ref  : (1, C)        f32 folded BN2 bias
    out_ref : (1, H, W, C)  bf16 output block
    pad_ref : (H+2, W+2, C) bf16 VMEM scratch, reused for the padded input AND the padded
              conv1 output.  INVARIANT: after the halo is zeroed only the interior
              [1:H+1, 1:W+1] is ever rewritten, so the zero halo stays valid for conv2.
    slab_ref: (H*W, 9*C)    bf16 VMEM im2col slab; only allocated when use_im2col=True.
    """
    _, H, W, C = x_ref.shape
    Hp, Wp = H + 2, W + 2

    # Zero the 1-pixel halo each grid step (4 thin border stores, cheap).  Needed because
    # with a "parallel" batch axis a core may start at program_id > 0.
    zrow = jnp.zeros((1, Wp, C), jnp.bfloat16)
    zcol = jnp.zeros((Hp, 1, C), jnp.bfloat16)
    pad_ref[0:1, :, :] = zrow
    pad_ref[H + 1:H + 2, :, :] = zrow
    pad_ref[:, 0:1, :] = zcol
    pad_ref[:, W + 1:W + 2, :] = zcol

    x = x_ref[0]                              # (H, W, C) bf16
    pad_ref[1:H + 1, 1:W + 1, :] = x          # interior-only write (keeps halo zero)

    def conv3x3_folded(w_ref):
        """3x3 SAME conv of the current pad_ref interior; f32 accumulation on the MXU.

        NOTE: the per-tap (H, W, C) -> (H*W, C) reshape only merges leading dims and is
        layout-clean while W is a multiple of 8; for 7x7 stages pad the spatial scratch
        to 8 rows/cols or rely on the direct 9-matmul path.
        """
        if use_im2col:
            # Small-C path: stage taps into one slab, then a single (H*W,9C)@(9C,C) push.
            for ky in range(3):
                for kx in range(3):
                    t = ky * 3 + kx
                    patch = pad_ref[ky:ky + H, kx:kx + W, :].reshape(H * W, C)
                    slab_ref[:, t * C:(t + 1) * C] = patch
            return jnp.dot(slab_ref[...], w_ref[...],
                           preferred_element_type=jnp.float32)
        # Production-C path (C >= 128): no slab — 9 direct matmuls accumulated in f32.
        acc = jnp.zeros((H * W, C), jnp.float32)
        for ky in range(3):
            for kx in range(3):
                t = ky * 3 + kx
                patch = pad_ref[ky:ky + H, kx:kx + W, :].reshape(H * W, C)
                acc += jnp.dot(patch, w_ref[t * C:(t + 1) * C, :],
                               preferred_element_type=jnp.float32)
        return acc

    # ---- conv1 + folded BN1 bias + ReLU (f32 epilogue; v5e VPU has no bf16) ----
    h1 = jnp.maximum(conv3x3_folded(w1_ref) + b1_ref[...], 0.0)      # (H*W, C) f32

    # Reuse pad_ref for the padded conv1 output (interior-only write; halo still zero;
    # the residual is taken from x_ref, so the input copy is no longer needed).
    pad_ref[1:H + 1, 1:W + 1, :] = h1.astype(jnp.bfloat16).reshape(H, W, C)

    # ---- conv2 + folded BN2 bias + identity residual + ReLU ----
    residual = x.reshape(H * W, C).astype(jnp.float32)
    out = jnp.maximum(conv3x3_folded(w2_ref) + b2_ref[...] + residual, 0.0)
    # TODO(synk): at toy widths (C=4) this store is lane-sparse (C of 128 lanes); packing
    # to a lane-dense block needs a lane-dim-changing relayout that Mosaic does not lower
    # reliably, so we keep NHWC (already lane-dense whenever C is a multiple of 128).
    out_ref[0] = out.astype(jnp.bfloat16).reshape(H, W, C)


def basic_block_nhwc(x_nhwc, w1_folded, b1, w2_folded, b2, *, use_im2col=None):
    """Chainable BasicBlock: bf16/NHWC in -> bf16/NHWC out (no per-block transposes)."""
    N, H, W, Cin = x_nhwc.shape
    C = w1_folded.shape[-1]
    # This kernel implements the stride=1, downsample=None BasicBlock (identity residual).
    assert w1_folded.shape == (3, 3, Cin, C) and w2_folded.shape == (3, 3, C, C)
    assert Cin == C, "identity residual requires inplanes == planes (stride=1, no downsample)"
    if use_im2col is None:
        use_im2col = C < 128   # slab only pays off when K=C would under-fill the MXU

    # im2col-flatten the weights: row index = (ky*3 + kx)*C + cin (matches both conv paths).
    w1r = w1_folded.reshape(9 * Cin, C).astype(jnp.bfloat16)
    w2r = w2_folded.reshape(9 * C, C).astype(jnp.bfloat16)
    b1r = b1.reshape(1, C).astype(jnp.float32)
    b2r = b2.reshape(1, C).astype(jnp.float32)

    scratch_shapes = [pltpu.VMEM((H + 2, W + 2, C), jnp.bfloat16)]   # padded activations
    if use_im2col:
        scratch_shapes.append(pltpu.VMEM((H * W, 9 * C), jnp.bfloat16))  # im2col slab

    return pl.pallas_call(
        functools.partial(basic_block_kernel, use_im2col=use_im2col),
        out_shape=jax.ShapeDtypeStruct((N, H, W, C), jnp.bfloat16),
        grid=(N,),
        in_specs=[
            pl.BlockSpec((1, H, W, Cin), lambda n: (n, 0, 0, 0)),
            pl.BlockSpec((9 * Cin, C), lambda n: (0, 0)),
            pl.BlockSpec((1, C), lambda n: (0, 0)),
            pl.BlockSpec((9 * C, C), lambda n: (0, 0)),
            pl.BlockSpec((1, C), lambda n: (0, 0)),
        ],
        out_specs=pl.BlockSpec((1, H, W, C), lambda n: (n, 0, 0, 0)),
        scratch_shapes=scratch_shapes,
        compiler_params=pltpu.CompilerParams(
            dimension_semantics=("parallel",),
            # v5e's default scoped-VMEM limit is 16 MiB; be explicit (still far below the
            # physical VMEM of v5e/v6e/v7x).  Re-budget when adding batch/row tiles.
            vmem_limit_bytes=32 * 1024 * 1024,
        ),
    )(x_nhwc.astype(jnp.bfloat16), w1r, b1r, w2r, b2r)


@functools.partial(jax.jit, static_argnames=("use_im2col",))
def basic_block_forward(x_nchw, w1_folded, b1, w2_folded, b2, use_im2col=None):
    """PyTorch-convention wrapper: (N, C, H, W) f32 -> (N, C, H, W) f32.

    For multi-block networks call `basic_block_nhwc` directly so activations stay
    bf16/NHWC between blocks and the NCHW<->NHWC transposes run once per network.
    """
    x_nhwc = jnp.transpose(x_nchw, (0, 2, 3, 1)).astype(jnp.bfloat16)
    y_nhwc = basic_block_nhwc(x_nhwc, w1_folded, b1, w2_folded, b2, use_im2col=use_im2col)
    return jnp.transpose(y_nhwc, (0, 3, 1, 2)).astype(jnp.float32)


def fold_bn_into_conv(w_hwio, gamma, beta, mean, var, eps=1e-5):
    """Fold inference-mode BatchNorm into the preceding conv: returns (w*scale, bias)."""
    scale = gamma / jnp.sqrt(var + eps)                  # (C,)
    w_folded = w_hwio * scale[None, None, None, :]       # (3, 3, Cin, C)
    bias = beta - mean * scale                           # (C,)
    return w_folded, bias


def _reference(x_nchw, w1_folded, b1, w2_folded, b2):
    """Pure-JAX f32 reference (lax conv) for a sanity check."""
    x = jnp.transpose(x_nchw, (0, 2, 3, 1))
    dn = ("NHWC", "HWIO", "NHWC")
    c1 = jax.lax.conv_general_dilated(x, w1_folded, (1, 1), "SAME", dimension_numbers=dn)
    h1 = jnp.maximum(c1 + b1.reshape(1, 1, 1, -1), 0.0)
    c2 = jax.lax.conv_general_dilated(h1, w2_folded, (1, 1), "SAME", dimension_numbers=dn)
    out = jnp.maximum(c2 + b2.reshape(1, 1, 1, -1) + x, 0.0)
    return jnp.transpose(out, (0, 3, 1, 2))


if __name__ == "__main__":
    # Small shapes consistent with the module: inplanes = planes = 4, stride = 1.
    N, Cin, H, W = 2, 4, 16, 16
    C = 4  # planes (expansion = 1, downsample = None requires Cin == C)

    key = jax.random.PRNGKey(0)
    keys = jax.random.split(key, 11)

    x = jax.random.normal(keys[0], (N, Cin, H, W), dtype=jnp.float32)

    # Deterministic synthetic parameters (HWIO conv weights, BN running stats).
    w1 = 0.1 * jax.random.normal(keys[1], (3, 3, Cin, C), dtype=jnp.float32)
    w2 = 0.1 * jax.random.normal(keys[2], (3, 3, C, C), dtype=jnp.float32)

    g1 = 1.0 + 0.1 * jax.random.normal(keys[3], (C,), dtype=jnp.float32)
    be1 = 0.1 * jax.random.normal(keys[4], (C,), dtype=jnp.float32)
    m1 = 0.05 * jax.random.normal(keys[5], (C,), dtype=jnp.float32)
    v1 = 1.0 + 0.1 * jax.random.uniform(keys[6], (C,), dtype=jnp.float32)

    g2 = 1.0 + 0.1 * jax.random.normal(keys[7], (C,), dtype=jnp.float32)
    be2 = 0.1 * jax.random.normal(keys[8], (C,), dtype=jnp.float32)
    m2 = 0.05 * jax.random.normal(keys[9], (C,), dtype=jnp.float32)
    v2 = 1.0 + 0.1 * jax.random.uniform(keys[10], (C,), dtype=jnp.float32)

    w1f, b1 = fold_bn_into_conv(w1, g1, be1, m1, v1)
    w2f, b2 = fold_bn_into_conv(w2, g2, be2, m2, v2)

    ref = _reference(x, w1f, b1, w2f, b2)

    # Default path at this width: one im2col matmul per conv.
    out_im2col = jax.block_until_ready(basic_block_forward(x, w1f, b1, w2f, b2))
    # Production-width path (no slab, 9 accumulated matmuls) — exercised for coverage.
    out_direct = jax.block_until_ready(
        basic_block_forward(x, w1f, b1, w2f, b2, use_im2col=False))

    assert out_im2col.shape == (N, C, H, W)
    assert out_direct.shape == (N, C, H, W)
    # bf16 MXU operands + bf16 activations/output -> ~1e-2 relative accuracy vs f32 ref.
    assert jnp.allclose(out_im2col, ref, atol=5e-2, rtol=5e-2), "im2col path mismatch vs reference"
    assert jnp.allclose(out_direct, ref, atol=5e-2, rtol=5e-2), "direct path mismatch vs reference"

    print("KERNEL_OK")
</pallas_src>

<mosaic_0001>
module attributes {stable_mosaic.version = 11 : i64} {
  func.func @basic_block_kernel(%arg0: i32, %arg1: memref<1x16x16x4xbf16, #tpu.memory_space<vmem>>, %arg2: memref<36x4xbf16, #tpu.memory_space<vmem>>, %arg3: memref<1x4xf32, #tpu.memory_space<vmem>>, %arg4: memref<36x4xbf16, #tpu.memory_space<vmem>>, %arg5: memref<1x4xf32, #tpu.memory_space<vmem>>, %arg6: memref<1x16x16x4xbf16, #tpu.memory_space<vmem>>, %arg7: memref<18x18x4xbf16, #tpu.memory_space<vmem>>, %arg8: memref<256x36xbf16, #tpu.memory_space<vmem>>) attributes {dimension_semantics = [#tpu.dimension_semantics<parallel>], iteration_bounds = array<i64: 2>, scalar_prefetch = 0 : i64, scratch_operands = 2 : i64, tpu.core_type = #tpu.core_type<tc>, window_params = [{transform_indices = @transform_0, window_bounds = array<i64: 1, 16, 16, 4>}, {pipeline_mode = #tpu.pipeline_mode<synchronous>, transform_indices = @transform_1, window_bounds = array<i64: 36, 4>}, {pipeline_mode = #tpu.pipeline_mode<synchronous>, transform_indices = @transform_2, window_bounds = array<i64: 1, 4>}, {pipeline_mode = #tpu.pipeline_mode<synchronous>, transform_indices = @transform_3, window_bounds = array<i64: 36, 4>}, {pipeline_mode = #tpu.pipeline_mode<synchronous>, transform_indices = @transform_4, window_bounds = array<i64: 1, 4>}, {transform_indices = @transform_5, window_bounds = array<i64: 1, 16, 16, 4>}]} {
    %cst = arith.constant 0.000000e+00 : bf16
    %0 = vector.broadcast %cst : bf16 to vector<1x18x4xbf16>
    %cst_0 = arith.constant 0.000000e+00 : bf16
    %1 = vector.broadcast %cst_0 : bf16 to vector<18x1x4xbf16>
    %c0 = arith.constant 0 : index
    %c0_1 = arith.constant 0 : index
    %c0_2 = arith.constant 0 : index
    %2 = vector.load %arg7[%c0, %c0_1, %c0_2] : memref<18x18x4xbf16, #tpu.memory_space<vmem>>, vector<1x18x4xbf16>
    tpu.vector_store %arg7[%c0, %c0_1, %c0_2], %0 {strides = array<i32>} : memref<18x18x4xbf16, #tpu.memory_space<vmem>>, vector<1x18x4xbf16>,
    %c17 = arith.constant 17 : index
    %c0_3 = arith.constant 0 : index
    %c0_4 = arith.constant 0 : index
    %3 = vector.load %arg7[%c17, %c0_3, %c0_4] : memref<18x18x4xbf16, #tpu.memory_space<vmem>>, vector<1x18x4xbf16>
    tpu.vector_store %arg7[%c17, %c0_3, %c0_4], %0 {strides = array<i32>} : memref<18x18x4xbf16, #tpu.memory_space<vmem>>, vector<1x18x4xbf16>,
    %c0_5 = arith.constant 0 : index
    %c0_6 = arith.constant 0 : index
    %c0_7 = arith.constant 0 : index
    %4 = vector.load %arg7[%c0_5, %c0_6, %c0_7] : memref<18x18x4xbf16, #tpu.memory_space<vmem>>, vector<18x1x4xbf16>
    tpu.vector_store %arg7[%c0_5, %c0_6, %c0_7], %1 {strides = array<i32>} : memref<18x18x4xbf16, #tpu.memory_space<vmem>>, vector<18x1x4xbf16>,
    %c0_8 = arith.constant 0 : index
    %c17_9 = arith.constant 17 : index
    %c0_10 = arith.constant 0 : index
    %5 = vector.load %arg7[%c0_8, %c17_9, %c0_10] : memref<18x18x4xbf16, #tpu.memory_space<vmem>>, vector<18x1x4xbf16>
    tpu.vector_store %arg7[%c0_8, %c17_9, %c0_10], %1 {strides = array<i32>} : memref<18x18x4xbf16, #tpu.memory_space<vmem>>, vector<18x1x4xbf16>,
    %c0_11 = arith.constant 0 : index
    %c0_12 = arith.constant 0 : index
    %c0_13 = arith.constant 0 : index
    %c0_14 = arith.constant 0 : index
    %6 = vector.load %arg1[%c0_11, %c0_12, %c0_13, %c0_14] : memref<1x16x16x4xbf16, #tpu.memory_space<vmem>>, vector<1x16x16x4xbf16>
    %7 = vector.shape_cast %6 : vector<1x16x16x4xbf16> to vector<16x16x4xbf16>
    %c1 = arith.constant 1 : index
    %c1_15 = arith.constant 1 : index
    %c0_16 = arith.constant 0 : index
    %8 = vector.load %arg7[%c1, %c1_15, %c0_16] : memref<18x18x4xbf16, #tpu.memory_space<vmem>>, vector<16x16x4xbf16>
    tpu.vector_store %arg7[%c1, %c1_15, %c0_16], %7 {strides = array<i32>} : memref<18x18x4xbf16, #tpu.memory_space<vmem>>, vector<16x16x4xbf16>,
    %c0_17 = arith.constant 0 : index
    %c0_18 = arith.constant 0 : index
    %c0_19 = arith.constant 0 : index
    %9 = vector.load %arg7[%c0_17, %c0_18, %c0_19] : memref<18x18x4xbf16, #tpu.memory_space<vmem>>, vector<16x16x4xbf16>
    %10 = vector.shape_cast %9 : vector<16x16x4xbf16> to vector<256x4xbf16>
    %c0_20 = arith.constant 0 : index
    %c0_21 = arith.constant 0 : index
    %11 = vector.load %arg8[%c0_20, %c0_21] : memref<256x36xbf16, #tpu.memory_space<vmem>>, vector<256x4xbf16>
    tpu.vector_store %arg8[%c0_20, %c0_21], %10 {strides = array<i32>} : memref<256x36xbf16, #tpu.memory_space<vmem>>, vector<256x4xbf16>,
    %c0_22 = arith.constant 0 : index
    %c1_23 = arith.constant 1 : index
    %c0_24 = arith.constant 0 : index
    %12 = vector.load %arg7[%c0_22, %c1_23, %c0_24] : memref<18x18x4xbf16, #tpu.memory_space<vmem>>, vector<16x16x4xbf16>
    %13 = vector.shape_cast %12 : vector<16x16x4xbf16> to vector<256x4xbf16>
    %c0_25 = arith.constant 0 : index
    %c4 = arith.constant 4 : index
    %14 = vector.load %arg8[%c0_25, %c4] : memref<256x36xbf16, #tpu.memory_space<vmem>>, vector<256x4xbf16>
    tpu.vector_store %arg8[%c0_25, %c4], %13 {strides = array<i32>} : memref<256x36xbf16, #tpu.memory_space<vmem>>, vector<256x4xbf16>,
    %c0_26 = arith.constant 0 : index
    %c2 = arith.constant 2 : index
    %c0_27 = arith.constant 0 : index
    %15 = vector.load %arg7[%c0_26, %c2, %c0_27] : memref<18x18x4xbf16, #tpu.memory_space<vmem>>, vector<16x16x4xbf16>
    %16 = vector.shape_cast %15 : vector<16x16x4xbf16> to vector<256x4xbf16>
    %c0_28 = arith.constant 0 : index
    %c8 = arith.constant 8 : index
    %17 = vector.load %arg8[%c0_28, %c8] : memref<256x36xbf16, #tpu.memory_space<vmem>>, vector<256x4xbf16>
    tpu.vector_store %arg8[%c0_28, %c8], %16 {strides = array<i32>} : memref<256x36xbf16, #tpu.memory_space<vmem>>, vector<256x4xbf16>,
    %c1_29 = arith.constant 1 : index
    %c0_30 = arith.constant 0 : index
    %c0_31 = arith.constant 0 : index
    %18 = vector.load %arg7[%c1_29, %c0_30, %c0_31] : memref<18x18x4xbf16, #tpu.memory_space<vmem>>, vector<16x16x4xbf16>
    %19 = vector.shape_cast %18 : vector<16x16x4xbf16> to vector<256x4xbf16>
    %c0_32 = arith.constant 0 : index
    %c12 = arith.constant 12 : index
    %20 = vector.load %arg8[%c0_32, %c12] : memref<256x36xbf16, #tpu.memory_space<vmem>>, vector<256x4xbf16>
    tpu.vector_store %arg8[%c0_32, %c12], %19 {strides = array<i32>} : memref<256x36xbf16, #tpu.memory_space<vmem>>, vector<256x4xbf16>,
    %c1_33 = arith.constant 1 : index
    %c1_34 = arith.constant 1 : index
    %c0_35 = arith.constant 0 : index
    %21 = vector.load %arg7[%c1_33, %c1_34, %c0_35] : memref<18x18x4xbf16, #tpu.memory_space<vmem>>, vector<16x16x4xbf16>
    %22 = vector.shape_cast %21 : vector<16x16x4xbf16> to vector<256x4xbf16>
    %c0_36 = arith.constant 0 : index
    %c16 = arith.constant 16 : index
    %23 = vector.load %arg8[%c0_36, %c16] : memref<256x36xbf16, #tpu.memory_space<vmem>>, vector<256x4xbf16>
    tpu.vector_store %arg8[%c0_36, %c16], %22 {strides = array<i32>} : memref<256x36xbf16, #tpu.memory_space<vmem>>, vector<256x4xbf16>,
    %c1_37 = arith.constant 1 : index
    %c2_38 = arith.constant 2 : index
    %c0_39 = arith.constant 0 : index
    %24 = vector.load %arg7[%c1_37, %c2_38, %c0_39] : memref<18x18x4xbf16, #tpu.memory_space<vmem>>, vector<16x16x4xbf16>
    %25 = vector.shape_cast %24 : vector<16x16x4xbf16> to vector<256x4xbf16>
    %c0_40 = arith.constant 0 : index
    %c20 = arith.constant 20 : index
    %26 = vector.load %arg8[%c0_40, %c20] : memref<256x36xbf16, #tpu.memory_space<vmem>>, vector<256x4xbf16>
    tpu.vector_store %arg8[%c0_40, %c20], %25 {strides = array<i32>} : memref<256x36xbf16, #tpu.memory_space<vmem>>, vector<256x4xbf16>,
    %c2_41 = arith.constant 2 : index
    %c0_42 = arith.constant 0 : index
    %c0_43 = arith.constant 0 : index
    %27 = vector.load %arg7[%c2_41, %c0_42, %c0_43] : memref<18x18x4xbf16, #tpu.memory_space<vmem>>, vector<16x16x4xbf16>
    %28 = vector.shape_cast %27 : vector<16x16x4xbf16> to vector<256x4xbf16>
    %c0_44 = arith.constant 0 : index
    %c24 = arith.constant 24 : index
    %29 = vector.load %arg8[%c0_44, %c24] : memref<256x36xbf16, #tpu.memory_space<vmem>>, vector<256x4xbf16>
    tpu.vector_store %arg8[%c0_44, %c24], %28 {strides = array<i32>} : memref<256x36xbf16, #tpu.memory_space<vmem>>, vector<256x4xbf16>,
    %c2_45 = arith.constant 2 : index
    %c1_46 = arith.constant 1 : index
    %c0_47 = arith.constant 0 : index
    %30 = vector.load %arg7[%c2_45, %c1_46, %c0_47] : memref<18x18x4xbf16, #tpu.memory_space<vmem>>, vector<16x16x4xbf16>
    %31 = vector.shape_cast %30 : vector<16x16x4xbf16> to vector<256x4xbf16>
    %c0_48 = arith.constant 0 : index
    %c28 = arith.constant 28 : index
    %32 = vector.load %arg8[%c0_48, %c28] : memref<256x36xbf16, #tpu.memory_space<vmem>>, vector<256x4xbf16>
    tpu.vector_store %arg8[%c0_48, %c28], %31 {strides = array<i32>} : memref<256x36xbf16, #tpu.memory_space<vmem>>, vector<256x4xbf16>,
    %c2_49 = arith.constant 2 : index
    %c2_50 = arith.constant 2 : index
    %c0_51 = arith.constant 0 : index
    %33 = vector.load %arg7[%c2_49, %c2_50, %c0_51] : memref<18x18x4xbf16, #tpu.memory_space<vmem>>, vector<16x16x4xbf16>
    %34 = vector.shape_cast %33 : vector<16x16x4xbf16> to vector<256x4xbf16>
    %c0_52 = arith.constant 0 : index
    %c32 = arith.constant 32 : index
    %35 = vector.load %arg8[%c0_52, %c32] : memref<256x36xbf16, #tpu.memory_space<vmem>>, vector<256x4xbf16>
    tpu.vector_store %arg8[%c0_52, %c32], %34 {strides = array<i32>} : memref<256x36xbf16, #tpu.memory_space<vmem>>, vector<256x4xbf16>,
    %c0_53 = arith.constant 0 : index
    %c0_54 = arith.constant 0 : index
    %36 = vector.load %arg8[%c0_53, %c0_54] : memref<256x36xbf16, #tpu.memory_space<vmem>>, vector<256x36xbf16>
    %c0_55 = arith.constant 0 : index
    %c0_56 = arith.constant 0 : index
    %37 = vector.load %arg2[%c0_55, %c0_56] : memref<36x4xbf16, #tpu.memory_space<vmem>>, vector<36x4xbf16>
    %cst_57 = arith.constant dense<0.000000e+00> : vector<256x4xf32>
    %38 = tpu.matmul %36, %37, %cst_57 {dimension_numbers = #tpu.dot_dimension_numbers<[1], [0], [0], [1], [0, 0, 1, 1], [], []>} : vector<256x36xbf16>, vector<36x4xbf16>, vector<256x4xf32> -> vector<256x4xf32>
    %c0_58 = arith.constant 0 : index
    %c0_59 = arith.constant 0 : index
    %39 = vector.load %arg3[%c0_58, %c0_59] : memref<1x4xf32, #tpu.memory_space<vmem>>, vector<1x4xf32>
    %40 = vector.broadcast %39 : vector<1x4xf32> to vector<256x4xf32>
    %41 = arith.addf %38, %40 : vector<256x4xf32>
    %cst_60 = arith.constant 0.000000e+00 : f32
    %42 = vector.broadcast %cst_60 : f32 to vector<256x4xf32>
    %43 = arith.maximumf %41, %42 : vector<256x4xf32>
    %44 = arith.truncf %43 : vector<256x4xf32> to vector<256x4xbf16>
    %45 = vector.shape_cast %44 : vector<256x4xbf16> to vector<16x16x4xbf16>
    %c1_61 = arith.constant 1 : index
    %c1_62 = arith.constant 1 : index
    %c0_63 = arith.constant 0 : index
    %46 = vector.load %arg7[%c1_61, %c1_62, %c0_63] : memref<18x18x4xbf16, #tpu.memory_space<vmem>>, vector<16x16x4xbf16>
    tpu.vector_store %arg7[%c1_61, %c1_62, %c0_63], %45 {strides = array<i32>} : memref<18x18x4xbf16, #tpu.memory_space<vmem>>, vector<16x16x4xbf16>,
    %47 = vector.shape_cast %7 : vector<16x16x4xbf16> to vector<256x4xbf16>
    %48 = arith.extf %47 : vector<256x4xbf16> to vector<256x4xf32>
    %c0_64 = arith.constant 0 : index
    %c0_65 = arith.constant 0 : index
    %c0_66 = arith.constant 0 : index
    %49 = vector.load %arg7[%c0_64, %c0_65, %c0_66] : memref<18x18x4xbf16, #tpu.memory_space<vmem>>, vector<16x16x4xbf16>
    %50 = vector.shape_cast %49 : vector<16x16x4xbf16> to vector<256x4xbf16>
    %c0_67 = arith.constant 0 : index
    %c0_68 = arith.constant 0 : index
    %51 = vector.load %arg8[%c0_67, %c0_68] : memref<256x36xbf16, #tpu.memory_space<vmem>>, vector<256x4xbf16>
    tpu.vector_store %arg8[%c0_67, %c0_68], %50 {strides = array<i32>} : memref<256x36xbf16, #tpu.memory_space<vmem>>, vector<256x4xbf16>,
    %c0_69 = arith.constant 0 : index
    %c1_70 = arith.constant 1 : index
    %c0_71 = arith.constant 0 : index
    %52 = vector.load %arg7[%c0_69, %c1_70, %c0_71] : memref<18x18x4xbf16, #tpu.memory_space<vmem>>, vector<16x16x4xbf16>
    %53 = vector.shape_cast %52 : vector<16x16x4xbf16> to vector<256x4xbf16>
    %c0_72 = arith.constant 0 : index
    %c4_73 = arith.constant 4 : index
    %54 = vector.load %arg8[%c0_72, %c4_73] : memref<256x36xbf16, #tpu.memory_space<vmem>>, vector<256x4xbf16>
    tpu.vector_store %arg8[%c0_72, %c4_73], %53 {strides = array<i32>} : memref<256x36xbf16, #tpu.memory_space<vmem>>, vector<256x4xbf16>,
    %c0_74 = arith.constant 0 : index
    %c2_75 = arith.constant 2 : index
    %c0_76 = arith.constant 0 : index
    %55 = vector.load %arg7[%c0_74, %c2_75, %c0_76] : memref<18x18x4xbf16, #tpu.memory_space<vmem>>, vector<16x16x4xbf16>
    %56 = vector.shape_cast %55 : vector<16x16x4xbf16> to vector<256x4xbf16>
    %c0_77 = arith.constant 0 : index
    %c8_78 = arith.constant 8 : index
    %57 = vector.load %arg8[%c0_77, %c8_78] : memref<256x36xbf16, #tpu.memory_space<vmem>>, vector<256x4xbf16>
    tpu.vector_store %arg8[%c0_77, %c8_78], %56 {strides = array<i32>} : memref<256x36xbf16, #tpu.memory_space<vmem>>, vector<256x4xbf16>,
    %c1_79 = arith.constant 1 : index
    %c0_80 = arith.constant 0 : index
    %c0_81 = arith.constant 0 : index
    %58 = vector.load %arg7[%c1_79, %c0_80, %c0_81] : memref<18x18x4xbf16, #tpu.memory_space<vmem>>, vector<16x16x4xbf16>
    %59 = vector.shape_cast %58 : vector<16x16x4xbf16> to vector<256x4xbf16>
    %c0_82 = arith.constant 0 : index
    %c12_83 = arith.constant 12 : index
    %60 = vector.load %arg8[%c0_82, %c12_83] : memref<256x36xbf16, #tpu.memory_space<vmem>>, vector<256x4xbf16>
    tpu.vector_store %arg8[%c0_82, %c12_83], %59 {strides = array<i32>} : memref<256x36xbf16, #tpu.memory_space<vmem>>, vector<256x4xbf16>,
    %c1_84 = arith.constant 1 : index
    %c1_85 = arith.constant 1 : index
    %c0_86 = arith.constant 0 : index
    %61 = vector.load %arg7[%c1_84, %c1_85, %c0_86] : memref<18x18x4xbf16, #tpu.memory_space<vmem>>, vector<16x16x4xbf16>
    %62 = vector.shape_cast %61 : vector<16x16x4xbf16> to vector<256x4xbf16>
    %c0_87 = arith.constant 0 : index
    %c16_88 = arith.constant 16 : index
    %63 = vector.load %arg8[%c0_87, %c16_88] : memref<256x36xbf16, #tpu.memory_space<vmem>>, vector<256x4xbf16>
    tpu.vector_store %arg8[%c0_87, %c16_88], %62 {strides = array<i32>} : memref<256x36xbf16, #tpu.memory_space<vmem>>, vector<256x4xbf16>,
    %c1_89 = arith.constant 1 : index
    %c2_90 = arith.constant 2 : index
    %c0_91 = arith.constant 0 : index
    %64 = vector.load %arg7[%c1_89, %c2_90, %c0_91] : memref<18x18x4xbf16, #tpu.memory_space<vmem>>, vector<16x16x4xbf16>
    %65 = vector.shape_cast %64 : vector<16x16x4xbf16> to vector<256x4xbf16>
    %c0_92 = arith.constant 0 : index
    %c20_93 = arith.constant 20 : index
    %66 = vector.load %arg8[%c0_92, %c20_93] : memref<256x36xbf16, #tpu.memory_space<vmem>>, vector<256x4xbf16>
    tpu.vector_store %arg8[%c0_92, %c20_93], %65 {strides = array<i32>} : memref<256x36xbf16, #tpu.memory_space<vmem>>, vector<256x4xbf16>,
    %c2_94 = arith.constant 2 : index
    %c0_95 = arith.constant 0 : index
    %c0_96 = arith.constant 0 : index
    %67 = vector.load %arg7[%c2_94, %c0_95, %c0_96] : memref<18x18x4xbf16, #tpu.memory_space<vmem>>, vector<16x16x4xbf16>
    %68 = vector.shape_cast %67 : vector<16x16x4xbf16> to vector<256x4xbf16>
    %c0_97 = arith.constant 0 : index
    %c24_98 = arith.constant 24 : index
    %69 = vector.load %arg8[%c0_97, %c24_98] : memref<256x36xbf16, #tpu.memory_space<vmem>>, vector<256x4xbf16>
    tpu.vector_store %arg8[%c0_97, %c24_98], %68 {strides = array<i32>} : memref<256x36xbf16, #tpu.memory_space<vmem>>, vector<256x4xbf16>,
    %c2_99 = arith.constant 2 : index
    %c1_100 = arith.constant 1 : index
    %c0_101 = arith.constant 0 : index
    %70 = vector.load %arg7[%c2_99, %c1_100, %c0_101] : memref<18x18x4xbf16, #tpu.memory_space<vmem>>, vector<16x16x4xbf16>
    %71 = vector.shape_cast %70 : vector<16x16x4xbf16> to vector<256x4xbf16>
    %c0_102 = arith.constant 0 : index
    %c28_103 = arith.constant 28 : index
    %72 = vector.load %arg8[%c0_102, %c28_103] : memref<256x36xbf16, #tpu.memory_space<vmem>>, vector<256x4xbf16>
    tpu.vector_store %arg8[%c0_102, %c28_103], %71 {strides = array<i32>} : memref<256x36xbf16, #tpu.memory_space<vmem>>, vector<256x4xbf16>,
    %c2_104 = arith.constant 2 : index
    %c2_105 = arith.constant 2 : index
    %c0_106 = arith.constant 0 : index
    %73 = vector.load %arg7[%c2_104, %c2_105, %c0_106] : memref<18x18x4xbf16, #tpu.memory_space<vmem>>, vector<16x16x4xbf16>
    %74 = vector.shape_cast %73 : vector<16x16x4xbf16> to vector<256x4xbf16>
    %c0_107 = arith.constant 0 : index
    %c32_108 = arith.constant 32 : index
    %75 = vector.load %arg8[%c0_107, %c32_108] : memref<256x36xbf16, #tpu.memory_space<vmem>>, vector<256x4xbf16>
    tpu.vector_store %arg8[%c0_107, %c32_108], %74 {strides = array<i32>} : memref<256x36xbf16, #tpu.memory_space<vmem>>, vector<256x4xbf16>,
    %c0_109 = arith.constant 0 : index
    %c0_110 = arith.constant 0 : index
    %76 = vector.load %arg8[%c0_109, %c0_110] : memref<256x36xbf16, #tpu.memory_space<vmem>>, vector<256x36xbf16>
    %c0_111 = arith.constant 0 : index
    %c0_112 = arith.constant 0 : index
    %77 = vector.load %arg4[%c0_111, %c0_112] : memref<36x4xbf16, #tpu.memory_space<vmem>>, vector<36x4xbf16>
    %cst_113 = arith.constant dense<0.000000e+00> : vector<256x4xf32>
    %78 = tpu.matmul %76, %77, %cst_113 {dimension_numbers = #tpu.dot_dimension_numbers<[1], [0], [0], [1], [0, 0, 1, 1], [], []>} : vector<256x36xbf16>, vector<36x4xbf16>, vector<256x4xf32> -> vector<256x4xf32>
    %c0_114 = arith.constant 0 : index
    %c0_115 = arith.constant 0 : index
    %79 = vector.load %arg5[%c0_114, %c0_115] : memref<1x4xf32, #tpu.memory_space<vmem>>, vector<1x4xf32>
    %80 = vector.broadcast %79 : vector<1x4xf32> to vector<256x4xf32>
    %81 = arith.addf %78, %80 : vector<256x4xf32>
    %82 = arith.addf %81, %48 : vector<256x4xf32>
    %cst_116 = arith.constant 0.000000e+00 : f32
    %83 = vector.broadcast %cst_116 : f32 to vector<256x4xf32>
    %84 = arith.maximumf %82, %83 : vector<256x4xf32>
    %85 = arith.truncf %84 : vector<256x4xf32> to vector<256x4xbf16>
    %86 = vector.shape_cast %85 : vector<256x4xbf16> to vector<16x16x4xbf16>
    %c0_117 = arith.constant 0 : index
    %c0_118 = arith.constant 0 : index
    %c0_119 = arith.constant 0 : index
    %c0_120 = arith.constant 0 : index
    %87 = vector.load %arg6[%c0_117, %c0_118, %c0_119, %c0_120] : memref<1x16x16x4xbf16, #tpu.memory_space<vmem>>, vector<1x16x16x4xbf16>
    %88 = vector.shape_cast %87 : vector<1x16x16x4xbf16> to vector<16x16x4xbf16>
    %89 = vector.shape_cast %86 : vector<16x16x4xbf16> to vector<1x16x16x4xbf16>
    tpu.vector_store %arg6[%c0_117, %c0_118, %c0_119, %c0_120], %89 {strides = array<i32>} : memref<1x16x16x4xbf16, #tpu.memory_space<vmem>>, vector<1x16x16x4xbf16>,
    return
  }
  func.func @transform_0(%arg0: i32) -> (i32, i32, i32, i32) {
    %c0_i32 = arith.constant 0 : i32
    %c0_i32_0 = arith.constant 0 : i32
    %c0_i32_1 = arith.constant 0 : i32
    %c0_i32_2 = arith.constant 0 : i32
    return %arg0, %c0_i32, %c0_i32_0, %c0_i32_1 : i32, i32, i32, i32
  }
  func.func @transform_1(%arg0: i32) -> (i32, i32) {
    %c0_i32 = arith.constant 0 : i32
    %c0_i32_0 = arith.constant 0 : i32
    %c0_i32_1 = arith.constant 0 : i32
    return %c0_i32, %c0_i32_0 : i32, i32
  }
  func.func @transform_2(%arg0: i32) -> (i32, i32) {
    %c0_i32 = arith.constant 0 : i32
    %c0_i32_0 = arith.constant 0 : i32
    %c0_i32_1 = arith.constant 0 : i32
    return %c0_i32, %c0_i32_0 : i32, i32
  }
  func.func @transform_3(%arg0: i32) -> (i32, i32) {
    %c0_i32 = arith.constant 0 : i32
    %c0_i32_0 = arith.constant 0 : i32
    %c0_i32_1 = arith.constant 0 : i32
    return %c0_i32, %c0_i32_0 : i32, i32
  }
  func.func @transform_4(%arg0: i32) -> (i32, i32) {
    %c0_i32 = arith.constant 0 : i32
    %c0_i32_0 = arith.constant 0 : i32
    %c0_i32_1 = arith.constant 0 : i32
    return %c0_i32, %c0_i32_0 : i32, i32
  }
  func.func @transform_5(%arg0: i32) -> (i32, i32, i32, i32) {
    %c0_i32 = arith.constant 0 : i32
    %c0_i32_0 = arith.constant 0 : i32
    %c0_i32_1 = arith.constant 0 : i32
    %c0_i32_2 = arith.constant 0 : i32
    return %arg0, %c0_i32, %c0_i32_0, %c0_i32_1 : i32, i32, i32, i32
  }
}

</mosaic_0001>

<llo_original>
// kernel: basic_block_forward.1
$region0: #{basic_block_forward.1}
  #allocation0 [shape = 'u32[]', space=smem, size = 0x4, offset = 0x4, fixed_abs, tag = 'smem constant byte address 0x4 - core index']
  #allocation1 [shape = 'u32[144,128]{1,0:T(1,128)}', space=vmem, size = 0x12000, scoped, tag = 'internal scratch']
  #allocation2 [shape = 'bf16[18,18,4]{2,1,0:T(8,128)(2,1)}', space=vmem, size = 0x1b000, scoped, tag = 'scratch operand']
  #allocation3 [shape = 'bf16[256,36]{1,0:T(16,128)(2,1)}', space=vmem, size = 0x10000, scoped, tag = 'scratch operand']
  %s0 = inlined_call_operand.vmem [shape: bf16[2,16,16,4], index: 0, kind: input, shape index: {}]
  %s1 = inlined_call_operand.vmem [shape: bf16[36,4], index: 1, kind: input, shape index: {}]
  %s2 = inlined_call_operand.vmem [shape: f32[1,4], index: 2, kind: input, shape index: {}]
  %s3 = inlined_call_operand.vmem [shape: bf16[36,4], index: 3, kind: input, shape index: {}]
  %s4 = inlined_call_operand.vmem [shape: f32[1,4], index: 4, kind: input, shape index: {}]
  %s5 = inlined_call_operand.vmem [shape: bf16[2,16,16,4], index: 5, kind: output, shape index: {}]
  %s6 = sld [smem:[#allocation0]]
  $region53: #{basic_block_forward.1} parent=0
    _
  %s8 = ssub.s32 1, %s6
  %s9 = scalar_select 0, %s8, %s6
  loop: start=0, step=1, limit=4
  $region2: #{basic_block_forward.1} parent=0 // loop_pre_header
    _
  $region3: #{basic_block_forward.1} parent=0 // loop_header
    %s11 = sphi 0, %s15
    %p12 = scmp.ge.s32.totalorder %s11, 4
    %s21 = sphi 0, %s23
    %s24 = sphi 0, %s21
    %s25 = sphi 0, %s24
    %s41 = sphi 0, %s25
    %s45 = sphi 0, %s45
    %s47 = sphi 0, %s45
    %s48 = sphi 0, %s47
    %s62 = sphi 0, %s48
    %s66 = sphi 0, %s66
    %s68 = sphi 0, %s66
    %s69 = sphi 0, %s68
    %s83 = sphi 0, %s69
    %s87 = sphi 0, %s87
    %s89 = sphi 0, %s87
    %s90 = sphi 0, %s89
    %s104 = sphi 0, %s90
    %s108 = sphi 0, %s108
    %s110 = sphi 0, %s108
    %s111 = sphi 0, %s110
    %s125 = sphi 0, %s111
    %s131 = sphi 0, %s133
    %s134 = sphi 0, %s131
    %s135 = sphi 0, %s134
    %s151 = sphi 0, %s135
  $region4: #{basic_block_forward.1} parent=0 // loop_header_branch
    %14 = sbr.rel (%p12) target = $region8
  $region5: #{basic_block_forward.1} parent=0 // loop_body
    %s16 = ssub.s32 %s11, 1
    %s17 = ssub.s32 %s11, 2
    %s18 = sadd.s32 %s11, 1
    %s19 = ssub.s32 %s11, %s18
    %p20 = scmp.eq.s32.totalorder %s19, 0
    %s22 = sadd.s32 %s21, 1
    %s23 = scalar_select %p20, %s21, %s22
    %p26 = pneg %p20
    %p27 = scmp.eq.s32.totalorder %s11, 1
    %p28 = por %p26, %p27
    %p29 = scmp.ne.s32.totalorder %s21, %s24
    %p30 = scmp.eq.s32.totalorder %s11, 0
    %p31 = por %p29, %p30
    %p32 = scmp.ne.s32.totalorder %s21, %s24
    %p33 = scmp.eq.s32.totalorder %s16, 1
    %p34 = por %p32, %p33
    %p35 = scmp.ne.s32.totalorder %s24, %s25
    %p36 = scmp.eq.s32.totalorder %s16, 0
    %p37 = por %p35, %p36
    %p38 = scmp.ne.s32.totalorder %s24, %s25
    %p39 = scmp.eq.s32.totalorder %s17, 1
    %p40 = por %p38, %p39
    %p42 = scmp.ne.s32.totalorder %s25, %s41
    %p43 = scmp.eq.s32.totalorder %s17, 0
    %p44 = por %p42, %p43
    %s46 = sadd.s32 %s45, 1
    %p49 = scmp.eq.s32.totalorder %s11, 1
    %p50 = scmp.ne.s32.totalorder %s45, %s47
    %p51 = scmp.eq.s32.totalorder %s11, 0
    %p52 = por %p50, %p51
    %p53 = scmp.ne.s32.totalorder %s45, %s47
    %p54 = scmp.eq.s32.totalorder %s16, 1
    %p55 = por %p53, %p54
    %p56 = scmp.ne.s32.totalorder %s47, %s48
    %p57 = scmp.eq.s32.totalorder %s16, 0
    %p58 = por %p56, %p57
    %p59 = scmp.ne.s32.totalorder %s47, %s48
    %p60 = scmp.eq.s32.totalorder %s17, 1
    %p61 = por %p59, %p60
    %p63 = scmp.ne.s32.totalorder %s48, %s62
    %p64 = scmp.eq.s32.totalorder %s17, 0
    %p65 = por %p63, %p64
    %s67 = sadd.s32 %s66, 1
    %p70 = scmp.eq.s32.totalorder %s11, 1
    %p71 = scmp.ne.s32.totalorder %s66, %s68
    %p72 = scmp.eq.s32.totalorder %s11, 0
    %p73 = por %p71, %p72
    %p74 = scmp.ne.s32.totalorder %s66, %s68
    %p75 = scmp.eq.s32.totalorder %s16, 1
    %p76 = por %p74, %p75
    %p77 = scmp.ne.s32.totalorder %s68, %s69
    %p78 = scmp.eq.s32.totalorder %s16, 0
    %p79 = por %p77, %p78
    %p80 = scmp.ne.s32.totalorder %s68, %s69
    %p81 = scmp.eq.s32.totalorder %s17, 1
    %p82 = por %p80, %p81
    %p84 = scmp.ne.s32.totalorder %s69, %s83
    %p85 = scmp.eq.s32.totalorder %s17, 0
    %p86 = por %p84, %p85
    %s88 = sadd.s32 %s87, 1
    %p91 = scmp.eq.s32.totalorder %s11, 1
    %p92 = scmp.ne.s32.totalorder %s87, %s89
    %p93 = scmp.eq.s32.totalorder %s11, 0
    %p94 = por %p92, %p93
    %p95 = scmp.ne.s32.totalorder %s87, %s89
    %p96 = scmp.eq.s32.totalorder %s16, 1
    %p97 = por %p95, %p96
    %p98 = scmp.ne.s32.totalorder %s89, %s90
    %p99 = scmp.eq.s32.totalorder %s16, 0
    %p100 = por %p98, %p99
    %p101 = scmp.ne.s32.totalorder %s89, %s90
    %p102 = scmp.eq.s32.totalorder %s17, 1
    %p103 = por %p101, %p102
    %p105 = scmp.ne.s32.totalorder %s90, %s104
    %p106 = scmp.eq.s32.totalorder %s17, 0
    %p107 = por %p105, %p106
    %s109 = sadd.s32 %s108, 1
    %p112 = scmp.eq.s32.totalorder %s11, 1
    %p113 = scmp.ne.s32.totalorder %s108, %s110
    %p114 = scmp.eq.s32.totalorder %s11, 0
    %p115 = por %p113, %p114
    %p116 = scmp.ne.s32.totalorder %s108, %s110
    %p117 = scmp.eq.s32.totalorder %s16, 1
    %p118 = por %p116, %p117
    %p119 = scmp.ne.s32.totalorder %s110, %s111
    %p120 = scmp.eq.s32.totalorder %s16, 0
    %p121 = por %p119, %p120
    %p122 = scmp.ne.s32.totalorder %s110, %s111
    %p123 = scmp.eq.s32.totalorder %s17, 1
    %p124 = por %p122, %p123
    %p126 = scmp.ne.s32.totalorder %s111, %s125
    %p127 = scmp.eq.s32.totalorder %s17, 0
    %p128 = por %p126, %p127
    %s129 = ssub.s32 %s11, %s18
    %p130 = scmp.eq.s32.totalorder %s129, 0
    %s132 = sadd.s32 %s131, 1
    %s133 = scalar_select %p130, %s131, %s132
    %p136 = pneg %p130
    %p137 = scmp.eq.s32.totalorder %s11, 1
    %p138 = por %p136, %p137
    %p139 = scmp.ne.s32.totalorder %s131, %s134
    %p140 = scmp.eq.s32.totalorder %s11, 0
    %p141 = por %p139, %p140
    %p142 = scmp.ne.s32.totalorder %s131, %s134
    %p143 = scmp.eq.s32.totalorder %s16, 1
    %p144 = por %p142, %p143
    %p145 = scmp.ne.s32.totalorder %s134, %s135
    %p146 = scmp.eq.s32.totalorder %s16, 0
    %p147 = por %p145, %p146
    %p148 = scmp.ne.s32.totalorder %s134, %s135
    %p149 = scmp.eq.s32.totalorder %s17, 1
    %p150 = por %p148, %p149
    %p152 = scmp.ne.s32.totalorder %s135, %s151
    %p153 = scmp.eq.s32.totalorder %s17, 0
    %p154 = por %p152, %p153
    %p155 = scmp.le.s32.totalorder 1, %s11
    %p156 = scmp.lt.s32.totalorder %s11, 3
    %p157 = pnand %p155, %p156
    %p158 = pneg %p157
    // Predicated region
    $region9: #{basic_block_forward.1} parent=5 // pred_check
      _
    $region10: #{basic_block_forward.1} parent=5 // pred_check_branch
      %160 = sbr.rel (%p157) target = $region12
    $region11: #{basic_block_forward.1} parent=5 // pred_region
      %s161 = ssub.s32 %s11, 1
      // Predicated region
      $region13: #{basic_block_forward.1} parent=11 // pred_check
        %p162 = pneg %p58
      $region14: #{basic_block_forward.1} parent=11 // pred_check_branch
        %164 = sbr.rel (%p162) target = $region16
      $region15: #{basic_block_forward.1} parent=11 // pred_region
        _
      $region16: #{basic_block_forward.1} parent=11 // pred_fallthru
        _
      // Predicated region
      $region17: #{basic_block_forward.1} parent=11 // pred_check
        %p165 = pneg %p79
      $region18: #{basic_block_forward.1} parent=11 // pred_check_branch
        %167 = sbr.rel (%p165) target = $region20
      $region19: #{basic_block_forward.1} parent=11 // pred_region
        _
      $region20: #{basic_block_forward.1} parent=11 // pred_fallthru
        _
      // Predicated region
      $region21: #{basic_block_forward.1} parent=11 // pred_check
        %p168 = pneg %p100
      $region22: #{basic_block_forward.1} parent=11 // pred_check_branch
        %170 = sbr.rel (%p168) target = $region24
      $region23: #{basic_block_forward.1} parent=11 // pred_region
        _
      $region24: #{basic_block_forward.1} parent=11 // pred_fallthru
        _
      // Predicated region
      $region25: #{basic_block_forward.1} parent=11 // pred_check
        %p171 = pneg %p121
      $region26: #{basic_block_forward.1} parent=11 // pred_check_branch
        %173 = sbr.rel (%p171) target = $region28
      $region27: #{basic_block_forward.1} parent=11 // pred_region
        _
      $region28: #{basic_block_forward.1} parent=11 // pred_fallthru
        _
    $region12: #{basic_block_forward.1} parent=5 // pred_fallthru
      _
    %p174 = scmp.lt.s32.totalorder %s11, 2
    // Predicated region
    $region29: #{basic_block_forward.1} parent=5 // pred_check
      %p175 = pneg %p174
    $region30: #{basic_block_forward.1} parent=5 // pred_check_branch
      %177 = sbr.rel (%p175) target = $region32
    $region31: #{basic_block_forward.1} parent=5 // pred_region
      // Predicated region
      $region33: #{basic_block_forward.1} parent=31 // pred_check
        %p178 = pneg %p31
      $region34: #{basic_block_forward.1} parent=31 // pred_check_branch
        %180 = sbr.rel (%p178) target = $region36
      $region35: #{basic_block_forward.1} parent=31 // pred_region
        %p181 = scmp.lt.s32.totalorder %s11, 1
        %s182 = scalar_select %p181, %s11, 1
        %s183 = smul.addr %s182, 32
        %s184 = smul.addr %s183, 4
        %s185 = scalar_lea.vmem %s0, %s184
      $region36: #{basic_block_forward.1} parent=31 // pred_fallthru
        _
    $region32: #{basic_block_forward.1} parent=5 // pred_fallthru
      _
    %p186 = scmp.le.s32.totalorder 1, %s11
    %p187 = scmp.lt.s32.totalorder %s11, 3
    %p188 = pnand %p186, %p187
    %p189 = pneg %p188
    // Predicated region
    $region37: #{basic_block_forward.1} parent=5 // pred_check
      _
    $region38: #{basic_block_forward.1} parent=5 // pred_check_branch
      %191 = sbr.rel (%p188) target = $region40
    $region39: #{basic_block_forward.1} parent=5 // pred_region
      %s192 = ssub.s32 %s11, 1
      %p193 = scmp.lt.s32.totalorder %s16, 1
      %s194 = scalar_select %p193, %s16, 1
      %s195 = smul.addr %s194, 32
      %s196 = smul.addr %s195, 4
      %s197 = scalar_lea.vmem %s0, %s196
      %p198 = pneg %p37
      %p199 = pneg %p34
      %p200 = pneg %p58
      %p201 = pneg %p55
      %p202 = pneg %p79
      %p203 = pneg %p76
      %p204 = pneg %p100
      %p205 = pneg %p97
      %p206 = pneg %p121
      %p207 = pneg %p118
      %p208 = pneg %p147
      %p209 = pneg %p144
      %p210 = scmp.lt.s32.totalorder %s16, 1
      %s211 = scalar_select %p210, %s16, 1
      %s212 = smul.addr %s211, 32
      %s213 = smul.addr %s212, 4
      %s214 = scalar_lea.vmem %s5, %s213
      %p215 = scmp.lt.s32.totalorder %s16, 1
      %s216 = scalar_select %p215, %s16, 1
      %s217 = smul.addr %s216, 32
      %s218 = smul.addr %s217, 4
      %s219 = scalar_lea.vmem %s0, %s218
      %p220 = scmp.lt.s32.totalorder %s16, 1
      %s221 = scalar_select %p220, %s16, 1
      %s222 = smul.addr %s221, 32
      %s223 = smul.addr %s222, 4
      %s224 = scalar_lea.vmem %s5, %s223
      %vm226 = vcmask 27648
      %227 = vst.msk [vmem:[#allocation2] sm:$0xf] %vm226, 0
      %228 = vst.msk [vmem:[#allocation2 + $0x4] sm:$0xf] %vm226, 0
      %vm229 = vcmask 24576
      %230 = vst.msk [vmem:[#allocation2 + $0x8] sm:$0x1] %vm229, 0
      %s231 = scalar_lea.vmem [#allocation2], 204
      %232 = vst.msk [vmem:[%s231] sm:$0xf] %vm226, 0
      %233 = vst.msk [vmem:[%s231 + $0x4] sm:$0xf] %vm226, 0
      %234 = vst.msk [vmem:[%s231 + $0x8] sm:$0x1] %vm229, 0
      %vm235 = vcmask 24576
      %vm236 = vsmask.f32 256
      %vm237 = vmand %vm235, %vm236
      %v238 = vld [vmem:[#allocation2] sm:$0x1]
      %v239 = vsel %vm237, 0, %v238
      %240 = vst [vmem:[#allocation2] sm:$0x1] %v239
      %v241 = vld [vmem:[#allocation2 + $0xc] sm:$0x1]
      %v242 = vsel %vm237, 0, %v241
      %243 = vst [vmem:[#allocation2 + $0xc] sm:$0x1] %v242
      %v244 = vld [vmem:[#allocation2 + $0x18] sm:$0x1]
      %v245 = vsel %vm237, 0, %v244
      %246 = vst [vmem:[#allocation2 + $0x18] sm:$0x1] %v245
      %v247 = vld [vmem:[#allocation2 + $0x24] sm:$0x1]
      %v248 = vsel %vm237, 0, %v247
      %249 = vst [vmem:[#allocation2 + $0x24] sm:$0x1] %v248
      %v250 = vld [vmem:[#allocation2 + $0x30] sm:$0x1]
      %v251 = vsel %vm237, 0, %v250
      %252 = vst [vmem:[#allocation2 + $0x30] sm:$0x1] %v251
      %v253 = vld [vmem:[#allocation2 + $0x3c] sm:$0x1]
      %v254 = vsel %vm237, 0, %v253
      %255 = vst [vmem:[#allocation2 + $0x3c] sm:$0x1] %v254
      %v256 = vld [vmem:[#allocation2 + $0x48] sm:$0x1]
      %v257 = vsel %vm237, 0, %v256
      %258 = vst [vmem:[#allocation2 + $0x48] sm:$0x1] %v257
      %v259 = vld [vmem:[#allocation2 + $0x54] sm:$0x1]
      %v260 = vsel %vm237, 0, %v259
      %261 = vst [vmem:[#allocation2 + $0x54] sm:$0x1] %v260
      %v262 = vld [vmem:[#allocation2 + $0x60] sm:$0x1]
      %v263 = vsel %vm237, 0, %v262
      %264 = vst [vmem:[#allocation2 + $0x60] sm:$0x1] %v263
      %v265 = vld [vmem:[#allocation2 + $0x6c] sm:$0x1]
      %v266 = vsel %vm237, 0, %v265
      %267 = vst [vmem:[#allocation2 + $0x6c] sm:$0x1] %v266
      %v268 = vld [vmem:[#allocation2 + $0x78] sm:$0x1]
      %v269 = vsel %vm237, 0, %v268
      %270 = vst [vmem:[#allocation2 + $0x78] sm:$0x1] %v269
      %v271 = vld [vmem:[#allocation2 + $0x84] sm:$0x1]
      %v272 = vsel %vm237, 0, %v271
      %273 = vst [vmem:[#allocation2 + $0x84] sm:$0x1] %v272
      %v274 = vld [vmem:[#allocation2 + $0x90] sm:$0x1]
      %v275 = vsel %vm237, 0, %v274
      %276 = vst [vmem:[#allocation2 + $0x90] sm:$0x1] %v275
      %v277 = vld [vmem:[#allocation2 + $0x9c] sm:$0x1]
      %v278 = vsel %vm237, 0, %v277
      %279 = vst [vmem:[#allocation2 + $0x9c] sm:$0x1] %v278
      %v280 = vld [vmem:[#allocation2 + $0xa8] sm:$0x1]
      %v281 = vsel %vm237, 0, %v280
      %282 = vst [vmem:[#allocation2 + $0xa8] sm:$0x1] %v281
      %v283 = vld [vmem:[#allocation2 + $0xb4] sm:$0x1]
      %v284 = vsel %vm237, 0, %v283
      %285 = vst [vmem:[#allocation2 + $0xb4] sm:$0x1] %v284
      %v286 = vld [vmem:[#allocation2 + $0xc0] sm:$0x1]
      %v287 = vsel %vm237, 0, %v286
      %288 = vst [vmem:[#allocation2 + $0xc0] sm:$0x1] %v287
      %v289 = vld [vmem:[#allocation2 + $0xcc] sm:$0x1]
      %v290 = vsel %vm237, 0, %v289
      %291 = vst [vmem:[#allocation2 + $0xcc] sm:$0x1] %v290
      %vm292 = vsmask.f32 7938
      %vm293 = vmand %vm235, %vm292
      %v294 = vld [vmem:[#allocation2 + $0x8] sm:$0x1]
      %v295 = vsel %vm293, 0, %v294
      %296 = vst [vmem:[#allocation2 + $0x8] sm:$0x1] %v295
      %v297 = vld [vmem:[#allocation2 + $0x14] sm:$0x1]
      %v298 = vsel %vm293, 0, %v297
      %299 = vst [vmem:[#allocation2 + $0x14] sm:$0x1] %v298
      %v300 = vld [vmem:[#allocation2 + $0x20] sm:$0x1]
      %v301 = vsel %vm293, 0, %v300
      %302 = vst [vmem:[#allocation2 + $0x20] sm:$0x1] %v301
      %v303 = vld [vmem:[#allocation2 + $0x2c] sm:$0x1]
      %v304 = vsel %vm293, 0, %v303
      %305 = vst [vmem:[#allocation2 + $0x2c] sm:$0x1] %v304
      %v306 = vld [vmem:[#allocation2 + $0x38] sm:$0x1]
      %v307 = vsel %vm293, 0, %v306
      %308 = vst [vmem:[#allocation2 + $0x38] sm:$0x1] %v307
      %v309 = vld [vmem:[#allocation2 + $0x44] sm:$0x1]
      %v310 = vsel %vm293, 0, %v309
      %311 = vst [vmem:[#allocation2 + $0x44] sm:$0x1] %v310
      %v312 = vld [vmem:[#allocation2 + $0x50] sm:$0x1]
      %v313 = vsel %vm293, 0, %v312
      %314 = vst [vmem:[#allocation2 + $0x50] sm:$0x1] %v313
      %v315 = vld [vmem:[#allocation2 + $0x5c] sm:$0x1]
      %v316 = vsel %vm293, 0, %v315
      %317 = vst [vmem:[#allocation2 + $0x5c] sm:$0x1] %v316
      %v318 = vld [vmem:[#allocation2 + $0x68] sm:$0x1]
      %v319 = vsel %vm293, 0, %v318
      %320 = vst [vmem:[#allocation2 + $0x68] sm:$0x1] %v319
      %v321 = vld [vmem:[#allocation2 + $0x74] sm:$0x1]
      %v322 = vsel %vm293, 0, %v321
      %323 = vst [vmem:[#allocation2 + $0x74] sm:$0x1] %v322
      %v324 = vld [vmem:[#allocation2 + $0x80] sm:$0x1]
      %v325 = vsel %vm293, 0, %v324
      %326 = vst [vmem:[#allocation2 + $0x80] sm:$0x1] %v325
      %v327 = vld [vmem:[#allocation2 + $0x8c] sm:$0x1]
      %v328 = vsel %vm293, 0, %v327
      %329 = vst [vmem:[#allocation2 + $0x8c] sm:$0x1] %v328
      %v330 = vld [vmem:[#allocation2 + $0x98] sm:$0x1]
      %v331 = vsel %vm293, 0, %v330
      %332 = vst [vmem:[#allocation2 + $0x98] sm:$0x1] %v331
      %v333 = vld [vmem:[#allocation2 + $0xa4] sm:$0x1]
      %v334 = vsel %vm293, 0, %v333
      %335 = vst [vmem:[#allocation2 + $0xa4] sm:$0x1] %v334
      %v336 = vld [vmem:[#allocation2 + $0xb0] sm:$0x1]
      %v337 = vsel %vm293, 0, %v336
      %338 = vst [vmem:[#allocation2 + $0xb0] sm:$0x1] %v337
      %v339 = vld [vmem:[#allocation2 + $0xbc] sm:$0x1]
      %v340 = vsel %vm293, 0, %v339
      %341 = vst [vmem:[#allocation2 + $0xbc] sm:$0x1] %v340
      %v342 = vld [vmem:[#allocation2 + $0xc8] sm:$0x1]
      %v343 = vsel %vm293, 0, %v342
      %344 = vst [vmem:[#allocation2 + $0xc8] sm:$0x1] %v343
      %v345 = vld [vmem:[#allocation2 + $0xd4] sm:$0x1]
      %v346 = vsel %vm293, 0, %v345
      %347 = vst [vmem:[#allocation2 + $0xd4] sm:$0x1] %v346
      %v348 = vld [vmem:[%s219] sm:$0xf]
      %v349 = vld [vmem:[%s219 + $0x4] sm:$0xf]
      %v350 = vld [vmem:[%s219 + $0x8] sm:$0xf]
      %v351 = vld [vmem:[%s219 + $0xc] sm:$0xf]
      %v352 = vld [vmem:[%s219 + $0x10] sm:$0xf]
      %v353 = vld [vmem:[%s219 + $0x14] sm:$0xf]
      %v354 = vld [vmem:[%s219 + $0x18] sm:$0xf]
      %v355 = vld [vmem:[%s219 + $0x1c] sm:$0xf]
      %v356 = vld [vmem:[%s219 + $0x20] sm:$0xf]
      %v357 = vld [vmem:[%s219 + $0x24] sm:$0xf]
      %v358 = vld [vmem:[%s219 + $0x28] sm:$0xf]
      %v359 = vld [vmem:[%s219 + $0x2c] sm:$0xf]
      %v360 = vld [vmem:[%s219 + $0x30] sm:$0xf]
      %v361 = vld [vmem:[%s219 + $0x34] sm:$0xf]
      %v362 = vld [vmem:[%s219 + $0x38] sm:$0xf]
      %v363 = vld [vmem:[%s219 + $0x3c] sm:$0xf]
      %v364 = vld [vmem:[%s219 + $0x40] sm:$0xf]
      %v365 = vld [vmem:[%s219 + $0x44] sm:$0xf]
      %v366 = vld [vmem:[%s219 + $0x48] sm:$0xf]
      %v367 = vld [vmem:[%s219 + $0x4c] sm:$0xf]
      %v368 = vld [vmem:[%s219 + $0x50] sm:$0xf]
      %v369 = vld [vmem:[%s219 + $0x54] sm:$0xf]
      %v370 = vld [vmem:[%s219 + $0x58] sm:$0xf]
      %v371 = vld [vmem:[%s219 + $0x5c] sm:$0xf]
      %v372 = vld [vmem:[%s219 + $0x60] sm:$0xf]
      %v373 = vld [vmem:[%s219 + $0x64] sm:$0xf]
      %v374 = vld [vmem:[%s219 + $0x68] sm:$0xf]
      %v375 = vld [vmem:[%s219 + $0x6c] sm:$0xf]
      %v376 = vld [vmem:[%s219 + $0x70] sm:$0xf]
      %v377 = vld [vmem:[%s219 + $0x74] sm:$0xf]
      %v378 = vld [vmem:[%s219 + $0x78] sm:$0xf]
      %v379 = vld [vmem:[%s219 + $0x7c] sm:$0xf]
      %vm380 = vsmask.f32 4368
      %vm381 = vmor %vm236, %vm380
      %v383 = vshrl.u32 %v348, 16
      %v385 = vrot.slane %v383, 7
      %v386 = vshll.u32 %v348, 16
      %v388 = vor.u32 %v385, %v386
      %v389 = vrot.slane %v385, 4
      %v391 = vshrl.u32 %v349, 16
      %v393 = vrot.slane %v391, 7
      %v394 = vshll.u32 %v349, 16
      %v396 = vor.u32 %v393, %v394
      %v397 = vsel %vm381, %v389, %v396
      %v398 = vrot.slane %v393, 4
      %v400 = vshrl.u32 %v350, 16
      %v402 = vrot.slane %v400, 7
      %v403 = vshll.u32 %v350, 16
      %v405 = vor.u32 %v402, %v403
      %v406 = vrot.slane %v402, 4
      %v408 = vshrl.u32 %v351, 16
      %v410 = vrot.slane %v408, 7
      %v411 = vshll.u32 %v351, 16
      %v413 = vor.u32 %v410, %v411
      %v414 = vsel %vm381, %v406, %v413
      %v415 = vrot.slane %v410, 4
      %v417 = vshrl.u32 %v352, 16
      %v419 = vrot.slane %v417, 7
      %v420 = vshll.u32 %v352, 16
      %v422 = vor.u32 %v419, %v420
      %v423 = vrot.slane %v419, 4
      %v425 = vshrl.u32 %v353, 16
      %v427 = vrot.slane %v425, 7
      %v428 = vshll.u32 %v353, 16
      %v430 = vor.u32 %v427, %v428
      %v431 = vsel %vm381, %v423, %v430
      %v432 = vrot.slane %v427, 4
      %v434 = vshrl.u32 %v354, 16
      %v436 = vrot.slane %v434, 7
      %v437 = vshll.u32 %v354, 16
      %v439 = vor.u32 %v436, %v437
      %v440 = vrot.slane %v436, 4
      %v442 = vshrl.u32 %v355, 16
      %v444 = vrot.slane %v442, 7
      %v445 = vshll.u32 %v355, 16
      %v447 = vor.u32 %v444, %v445
      %v448 = vsel %vm381, %v440, %v447
      %v449 = vrot.slane %v444, 4
      %v451 = vshrl.u32 %v356, 16
      %v453 = vrot.slane %v451, 7
      %v454 = vshll.u32 %v356, 16
      %v456 = vor.u32 %v453, %v454
      %v457 = vrot.slane %v453, 4
      %v459 = vshrl.u32 %v357, 16
      %v461 = vrot.slane %v459, 7
      %v462 = vshll.u32 %v357, 16
      %v464 = vor.u32 %v461, %v462
      %v465 = vsel %vm381, %v457, %v464
      %v466 = vrot.slane %v461, 4
      %v468 = vshrl.u32 %v358, 16
      %v470 = vrot.slane %v468, 7
      %v471 = vshll.u32 %v358, 16
      %v473 = vor.u32 %v470, %v471
      %v474 = vrot.slane %v470, 4
      %v476 = vshrl.u32 %v359, 16
      %v478 = vrot.slane %v476, 7
      %v479 = vshll.u32 %v359, 16
      %v481 = vor.u32 %v478, %v479
      %v482 = vsel %vm381, %v474, %v481
      %v483 = vrot.slane %v478, 4
      %v485 = vshrl.u32 %v360, 16
      %v487 = vrot.slane %v485, 7
      %v488 = vshll.u32 %v360, 16
      %v490 = vor.u32 %v487, %v488
      %v491 = vrot.slane %v487, 4
      %v493 = vshrl.u32 %v361, 16
      %v495 = vrot.slane %v493, 7
      %v496 = vshll.u32 %v361, 16
      %v498 = vor.u32 %v495, %v496
      %v499 = vsel %vm381, %v491, %v498
      %v500 = vrot.slane %v495, 4
      %v502 = vshrl.u32 %v362, 16
      %v504 = vrot.slane %v502, 7
      %v505 = vshll.u32 %v362, 16
      %v507 = vor.u32 %v504, %v505
      %v508 = vrot.slane %v504, 4
      %v510 = vshrl.u32 %v363, 16
      %v512 = vrot.slane %v510, 7
      %v513 = vshll.u32 %v363, 16
      %v515 = vor.u32 %v512, %v513
      %v516 = vsel %vm381, %v508, %v515
      %v517 = vrot.slane %v512, 4
      %v519 = vshrl.u32 %v364, 16
      %v521 = vrot.slane %v519, 7
      %v522 = vshll.u32 %v364, 16
      %v524 = vor.u32 %v521, %v522
      %v525 = vrot.slane %v521, 4
      %v527 = vshrl.u32 %v365, 16
      %v529 = vrot.slane %v527, 7
      %v530 = vshll.u32 %v365, 16
      %v532 = vor.u32 %v529, %v530
      %v533 = vsel %vm381, %v525, %v532
      %v534 = vrot.slane %v529, 4
      %v536 = vshrl.u32 %v366, 16
      %v538 = vrot.slane %v536, 7
      %v539 = vshll.u32 %v366, 16
      %v541 = vor.u32 %v538, %v539
      %v542 = vrot.slane %v538, 4
      %v544 = vshrl.u32 %v367, 16
      %v546 = vrot.slane %v544, 7
      %v547 = vshll.u32 %v367, 16
      %v549 = vor.u32 %v546, %v547
      %v550 = vsel %vm381, %v542, %v549
      %v551 = vrot.slane %v546, 4
      %v553 = vshrl.u32 %v368, 16
      %v555 = vrot.slane %v553, 7
      %v556 = vshll.u32 %v368, 16
      %v558 = vor.u32 %v555, %v556
      %v559 = vrot.slane %v555, 4
      %v561 = vshrl.u32 %v369, 16
      %v563 = vrot.slane %v561, 7
      %v564 = vshll.u32 %v369, 16
      %v566 = vor.u32 %v563, %v564
      %v567 = vsel %vm381, %v559, %v566
      %v568 = vrot.slane %v563, 4
      %v570 = vshrl.u32 %v370, 16
      %v572 = vrot.slane %v570, 7
      %v573 = vshll.u32 %v370, 16
      %v575 = vor.u32 %v572, %v573
      %v576 = vrot.slane %v572, 4
      %v578 = vshrl.u32 %v371, 16
      %v580 = vrot.slane %v578, 7
      %v581 = vshll.u32 %v371, 16
      %v583 = vor.u32 %v580, %v581
      %v584 = vsel %vm381, %v576, %v583
      %v585 = vrot.slane %v580, 4
      %v587 = vshrl.u32 %v372, 16
      %v589 = vrot.slane %v587, 7
      %v590 = vshll.u32 %v372, 16
      %v592 = vor.u32 %v589, %v590
      %v593 = vrot.slane %v589, 4
      %v595 = vshrl.u32 %v373, 16
      %v597 = vrot.slane %v595, 7
      %v598 = vshll.u32 %v373, 16
      %v600 = vor.u32 %v597, %v598
      %v601 = vsel %vm381, %v593, %v600
      %v602 = vrot.slane %v597, 4
      %v604 = vshrl.u32 %v374, 16
      %v606 = vrot.slane %v604, 7
      %v607 = vshll.u32 %v374, 16
      %v609 = vor.u32 %v606, %v607
      %v610 = vrot.slane %v606, 4
      %v612 = vshrl.u32 %v375, 16
      %v614 = vrot.slane %v612, 7
      %v615 = vshll.u32 %v375, 16
      %v617 = vor.u32 %v614, %v615
      %v618 = vsel %vm381, %v610, %v617
      %v619 = vrot.slane %v614, 4
      %v621 = vshrl.u32 %v376, 16
      %v623 = vrot.slane %v621, 7
      %v624 = vshll.u32 %v376, 16
      %v626 = vor.u32 %v623, %v624
      %v627 = vrot.slane %v623, 4
      %v629 = vshrl.u32 %v377, 16
      %v631 = vrot.slane %v629, 7
      %v632 = vshll.u32 %v377, 16
      %v634 = vor.u32 %v631, %v632
      %v635 = vsel %vm381, %v627, %v634
      %v636 = vrot.slane %v631, 4
      %v638 = vshrl.u32 %v378, 16
      %v640 = vrot.slane %v638, 7
      %v641 = vshll.u32 %v378, 16
      %v643 = vor.u32 %v640, %v641
      %v644 = vrot.slane %v640, 4
      %v646 = vshrl.u32 %v379, 16
      %v648 = vrot.slane %v646, 7
      %v649 = vshll.u32 %v379, 16
      %v651 = vor.u32 %v648, %v649
      %v652 = vsel %vm381, %v644, %v651
      %v653 = vrot.slane %v648, 4
      %s702 = scalar_lea.vmem [#allocation2], 12
      %vm703 = vcmask 27648
      %vm704 = vmand %vm703, %vm292
      %v705 = vld [vmem:[%s702] sm:$0xf]
      %v706 = vsel %vm704, %v388, %v705
      %707 = vst [vmem:[%s702] sm:$0xf] %v706
      %708 = vst.msk [vmem:[%s702 + $0x4] sm:$0xf] %vm226, %v397
      %v709 = vld [vmem:[%s702 + $0x8] sm:$0x1]
      %v710 = vsel %vm237, %v398, %v709
      %711 = vst [vmem:[%s702 + $0x8] sm:$0x1] %v710
      %v712 = vld [vmem:[%s702 + $0xc] sm:$0xf]
      %v713 = vsel %vm704, %v405, %v712
      %714 = vst [vmem:[%s702 + $0xc] sm:$0xf] %v713
      %715 = vst.msk [vmem:[%s702 + $0x10] sm:$0xf] %vm226, %v414
      %v716 = vld [vmem:[%s702 + $0x14] sm:$0x1]
      %v717 = vsel %vm237, %v415, %v716
      %718 = vst [vmem:[%s702 + $0x14] sm:$0x1] %v717
      %v719 = vld [vmem:[%s702 + $0x18] sm:$0xf]
      %v720 = vsel %vm704, %v422, %v719
      %721 = vst [vmem:[%s702 + $0x18] sm:$0xf] %v720
      %722 = vst.msk [vmem:[%s702 + $0x1c] sm:$0xf] %vm226, %v431
      %v723 = vld [vmem:[%s702 + $0x20] sm:$0x1]
      %v724 = vsel %vm237, %v432, %v723
      %725 = vst [vmem:[%s702 + $0x20] sm:$0x1] %v724
      %v726 = vld [vmem:[%s702 + $0x24] sm:$0xf]
      %v727 = vsel %vm704, %v439, %v726
      %728 = vst [vmem:[%s702 + $0x24] sm:$0xf] %v727
      %729 = vst.msk [vmem:[%s702 + $0x28] sm:$0xf] %vm226, %v448
      %v730 = vld [vmem:[%s702 + $0x2c] sm:$0x1]
      %v731 = vsel %vm237, %v449, %v730
      %732 = vst [vmem:[%s702 + $0x2c] sm:$0x1] %v731
      %v733 = vld [vmem:[%s702 + $0x30] sm:$0xf]
      %v734 = vsel %vm704, %v456, %v733
      %735 = vst [vmem:[%s702 + $0x30] sm:$0xf] %v734
      %736 = vst.msk [vmem:[%s702 + $0x34] sm:$0xf] %vm226, %v465
      %v737 = vld [vmem:[%s702 + $0x38] sm:$0x1]
      %v738 = vsel %vm237, %v466, %v737
      %739 = vst [vmem:[%s702 + $0x38] sm:$0x1] %v738
      %v740 = vld [vmem:[%s702 + $0x3c] sm:$0xf]
      %v741 = vsel %vm704, %v473, %v740
      %742 = vst [vmem:[%s702 + $0x3c] sm:$0xf] %v741
      %743 = vst.msk [vmem:[%s702 + $0x40] sm:$0xf] %vm226, %v482
      %v744 = vld [vmem:[%s702 + $0x44] sm:$0x1]
      %v745 = vsel %vm237, %v483, %v744
      %746 = vst [vmem:[%s702 + $0x44] sm:$0x1] %v745
      %v747 = vld [vmem:[%s702 + $0x48] sm:$0xf]
      %v748 = vsel %vm704, %v490, %v747
      %749 = vst [vmem:[%s702 + $0x48] sm:$0xf] %v748
      %750 = vst.msk [vmem:[%s702 + $0x4c] sm:$0xf] %vm226, %v499
      %v751 = vld [vmem:[%s702 + $0x50] sm:$0x1]
      %v752 = vsel %vm237, %v500, %v751
      %753 = vst [vmem:[%s702 + $0x50] sm:$0x1] %v752
      %v754 = vld [vmem:[%s702 + $0x54] sm:$0xf]
      %v755 = vsel %vm704, %v507, %v754
      %756 = vst [vmem:[%s702 + $0x54] sm:$0xf] %v755
      %757 = vst.msk [vmem:[%s702 + $0x58] sm:$0xf] %vm226, %v516
      %v758 = vld [vmem:[%s702 + $0x5c] sm:$0x1]
      %v759 = vsel %vm237, %v517, %v758
      %760 = vst [vmem:[%s702 + $0x5c] sm:$0x1] %v759
      %v761 = vld [vmem:[%s702 + $0x60] sm:$0xf]
      %v762 = vsel %vm704, %v524, %v761
      %763 = vst [vmem:[%s702 + $0x60] sm:$0xf] %v762
      %764 = vst.msk [vmem:[%s702 + $0x64] sm:$0xf] %vm226, %v533
      %v765 = vld [vmem:[%s702 + $0x68] sm:$0x1]
      %v766 = vsel %vm237, %v534, %v765
      %767 = vst [vmem:[%s702 + $0x68] sm:$0x1] %v766
      %v768 = vld [vmem:[%s702 + $0x6c] sm:$0xf]
      %v769 = vsel %vm704, %v541, %v768
      %770 = vst [vmem:[%s702 + $0x6c] sm:$0xf] %v769
      %771 = vst.msk [vmem:[%s702 + $0x70] sm:$0xf] %vm226, %v550
      %v772 = vld [vmem:[%s702 + $0x74] sm:$0x1]
      %v773 = vsel %vm237, %v551, %v772
      %774 = vst [vmem:[%s702 + $0x74] sm:$0x1] %v773
      %v775 = vld [vmem:[%s702 + $0x78] sm:$0xf]
      %v776 = vsel %vm704, %v558, %v775
      %777 = vst [vmem:[%s702 + $0x78] sm:$0xf] %v776
      %778 = vst.msk [vmem:[%s702 + $0x7c] sm:$0xf] %vm226, %v567
      %v779 = vld [vmem:[%s702 + $0x80] sm:$0x1]
      %v780 = vsel %vm237, %v568, %v779
      %781 = vst [vmem:[%s702 + $0x80] sm:$0x1] %v780
      %v782 = vld [vmem:[%s702 + $0x84] sm:$0xf]
      %v783 = vsel %vm704, %v575, %v782
      %784 = vst [vmem:[%s702 + $0x84] sm:$0xf] %v783
      %785 = vst.msk [vmem:[%s702 + $0x88] sm:$0xf] %vm226, %v584
      %v786 = vld [vmem:[%s702 + $0x8c] sm:$0x1]
      %v787 = vsel %vm237, %v585, %v786
      %788 = vst [vmem:[%s702 + $0x8c] sm:$0x1] %v787
      %v789 = vld [vmem:[%s702 + $0x90] sm:$0xf]
      %v790 = vsel %vm704, %v592, %v789
      %791 = vst [vmem:[%s702 + $0x90] sm:$0xf] %v790
      %792 = vst.msk [vmem:[%s702 + $0x94] sm:$0xf] %vm226, %v601
      %v793 = vld [vmem:[%s702 + $0x98] sm:$0x1]
      %v794 = vsel %vm237, %v602, %v793
      %795 = vst [vmem:[%s702 + $0x98] sm:$0x1] %v794
      %v796 = vld [vmem:[%s702 + $0x9c] sm:$0xf]
      %v797 = vsel %vm704, %v609, %v796
      %798 = vst [vmem:[%s702 + $0x9c] sm:$0xf] %v797
      %799 = vst.msk [vmem:[%s702 + $0xa0] sm:$0xf] %vm226, %v618
      %v800 = vld [vmem:[%s702 + $0xa4] sm:$0x1]
      %v801 = vsel %vm237, %v619, %v800
      %802 = vst [vmem:[%s702 + $0xa4] sm:$0x1] %v801
      %v803 = vld [vmem:[%s702 + $0xa8] sm:$0xf]
      %v804 = vsel %vm704, %v626, %v803
      %805 = vst [vmem:[%s702 + $0xa8] sm:$0xf] %v804
      %806 = vst.msk [vmem:[%s702 + $0xac] sm:$0xf] %vm226, %v635
      %v807 = vld [vmem:[%s702 + $0xb0] sm:$0x1]
      %v808 = vsel %vm237, %v636, %v807
      %809 = vst [vmem:[%s702 + $0xb0] sm:$0x1] %v808
      %v810 = vld [vmem:[%s702 + $0xb4] sm:$0xf]
      %v811 = vsel %vm704, %v643, %v810
      %812 = vst [vmem:[%s702 + $0xb4] sm:$0xf] %v811
      %813 = vst.msk [vmem:[%s702 + $0xb8] sm:$0xf] %vm226, %v652
      %v814 = vld [vmem:[%s702 + $0xbc] sm:$0x1]
      %v815 = vsel %vm237, %v653, %v814
      %816 = vst [vmem:[%s702 + $0xbc] sm:$0x1] %v815
      %v817 = vld [vmem:[#allocation2] sm:$0xf]
      %v818 = vld [vmem:[#allocation2 + $0x4] sm:$0xf]
      %v819 = vld [vmem:[#allocation2 + $0xc] sm:$0xf]
      %v820 = vld [vmem:[#allocation2 + $0x10] sm:$0xf]
      %v821 = vld [vmem:[#allocation2 + $0x18] sm:$0xf]
      %v822 = vld [vmem:[#allocation2 + $0x1c] sm:$0xf]
      %v823 = vld [vmem:[#allocation2 + $0x24] sm:$0xf]
      %v824 = vld [vmem:[#allocation2 + $0x28] sm:$0xf]
      %v825 = vld [vmem:[#allocation2 + $0x30] sm:$0xf]
      %v826 = vld [vmem:[#allocation2 + $0x34] sm:$0xf]
      %v827 = vld [vmem:[#allocation2 + $0x3c] sm:$0xf]
      %v828 = vld [vmem:[#allocation2 + $0x40] sm:$0xf]
      %v829 = vld [vmem:[#allocation2 + $0x48] sm:$0xf]
      %v830 = vld [vmem:[#allocation2 + $0x4c] sm:$0xf]
      %v831 = vld [vmem:[#allocation2 + $0x54] sm:$0xf]
      %v832 = vld [vmem:[#allocation2 + $0x58] sm:$0xf]
      %v833 = vld [vmem:[#allocation2 + $0x60] sm:$0xf]
      %v834 = vld [vmem:[#allocation2 + $0x64] sm:$0xf]
      %v835 = vld [vmem:[#allocation2 + $0x6c] sm:$0xf]
      %v836 = vld [vmem:[#allocation2 + $0x70] sm:$0xf]
      %v837 = vld [vmem:[#allocation2 + $0x78] sm:$0xf]
      %v838 = vld [vmem:[#allocation2 + $0x7c] sm:$0xf]
      %v839 = vld [vmem:[#allocation2 + $0x84] sm:$0xf]
      %v840 = vld [vmem:[#allocation2 + $0x88] sm:$0xf]
      %v841 = vld [vmem:[#allocation2 + $0x90] sm:$0xf]
      %v842 = vld [vmem:[#allocation2 + $0x94] sm:$0xf]
      %v843 = vld [vmem:[#allocation2 + $0x9c] sm:$0xf]
      %v844 = vld [vmem:[#allocation2 + $0xa0] sm:$0xf]
      %v845 = vld [vmem:[#allocation2 + $0xa8] sm:$0xf]
      %v846 = vld [vmem:[#allocation2 + $0xac] sm:$0xf]
      %v847 = vld [vmem:[#allocation2 + $0xb4] sm:$0xf]
      %v848 = vld [vmem:[#allocation2 + $0xb8] sm:$0xf]
      %v881 = vunpack.c.l.b16 %v817
      %v882 = vunpack.c.l.b16 %v818
      %v883 = vunpack.c.l.b16 %v819
      %v884 = vunpack.c.l.b16 %v820
      %v885 = vunpack.c.l.b16 %v821
      %v886 = vunpack.c.l.b16 %v822
      %v887 = vunpack.c.l.b16 %v823
      %v888 = vunpack.c.l.b16 %v824
      %v889 = vunpack.c.l.b16 %v825
      %v890 = vunpack.c.l.b16 %v826
      %v891 = vunpack.c.l.b16 %v827
      %v892 = vunpack.c.l.b16 %v828
      %v893 = vunpack.c.l.b16 %v829
      %v894 = vunpack.c.l.b16 %v830
      %v895 = vunpack.c.l.b16 %v831
      %v896 = vunpack.c.l.b16 %v832
      %v897 = vunpack.c.l.b16 %v833
      %v898 = vunpack.c.l.b16 %v834
      %v899 = vunpack.c.l.b16 %v835
      %v900 = vunpack.c.l.b16 %v836
      %v901 = vunpack.c.l.b16 %v837
      %v902 = vunpack.c.l.b16 %v838
      %v903 = vunpack.c.l.b16 %v839
      %v904 = vunpack.c.l.b16 %v840
      %v905 = vunpack.c.l.b16 %v841
      %v906 = vunpack.c.l.b16 %v842
      %v907 = vunpack.c.l.b16 %v843
      %v908 = vunpack.c.l.b16 %v844
      %v909 = vunpack.c.l.b16 %v845
      %v910 = vunpack.c.l.b16 %v846
      %v911 = vunpack.c.l.b16 %v847
      %v912 = vunpack.c.l.b16 %v848
      %v913 = vpack.c.b16 %v882, %v881
      %v914 = vpack.c.b16 %v884, %v883
      %v915 = vpack.c.b16 %v886, %v885
      %v916 = vpack.c.b16 %v888, %v887
      %v917 = vpack.c.b16 %v890, %v889
      %v918 = vpack.c.b16 %v892, %v891
      %v919 = vpack.c.b16 %v894, %v893
      %v920 = vpack.c.b16 %v896, %v895
      %v921 = vpack.c.b16 %v898, %v897
      %v922 = vpack.c.b16 %v900, %v899
      %v923 = vpack.c.b16 %v902, %v901
      %v924 = vpack.c.b16 %v904, %v903
      %v925 = vpack.c.b16 %v906, %v905
      %v926 = vpack.c.b16 %v908, %v907
      %v927 = vpack.c.b16 %v910, %v909
      %v928 = vpack.c.b16 %v912, %v911
      %vm945 = vcmask 31744
      %946 = vst.msk [vmem:[#allocation3] sm:$0xff] %vm945, %v913
      %947 = vst.msk [vmem:[#allocation3 + $0x8] sm:$0xff] %vm945, %v914
      %948 = vst.msk [vmem:[#allocation3 + $0x10] sm:$0xff] %vm945, %v915
      %949 = vst.msk [vmem:[#allocation3 + $0x18] sm:$0xff] %vm945, %v916
      %950 = vst.msk [vmem:[#allocation3 + $0x20] sm:$0xff] %vm945, %v917
      %951 = vst.msk [vmem:[#allocation3 + $0x28] sm:$0xff] %vm945, %v918
      %952 = vst.msk [vmem:[#allocation3 + $0x30] sm:$0xff] %vm945, %v919
      %953 = vst.msk [vmem:[#allocation3 + $0x38] sm:$0xff] %vm945, %v920
      %954 = vst.msk [vmem:[#allocation3 + $0x40] sm:$0xff] %vm945, %v921
      %955 = vst.msk [vmem:[#allocation3 + $0x48] sm:$0xff] %vm945, %v922
      %956 = vst.msk [vmem:[#allocation3 + $0x50] sm:$0xff] %vm945, %v923
      %957 = vst.msk [vmem:[#allocation3 + $0x58] sm:$0xff] %vm945, %v924
      %958 = vst.msk [vmem:[#allocation3 + $0x60] sm:$0xff] %vm945, %v925
      %959 = vst.msk [vmem:[#allocation3 + $0x68] sm:$0xff] %vm945, %v926
      %960 = vst.msk [vmem:[#allocation3 + $0x70] sm:$0xff] %vm945, %v927
      %961 = vst.msk [vmem:[#allocation3 + $0x78] sm:$0xff] %vm945, %v928
      %v962 = vld [vmem:[#allocation2] sm:$0xf]
      %v963 = vld [vmem:[#allocation2 + $0x4] sm:$0xf]
      %v964 = vld [vmem:[#allocation2 + $0x8] sm:$0x1]
      %v965 = vld [vmem:[#allocation2 + $0xc] sm:$0xf]
      %v966 = vld [vmem:[#allocation2 + $0x10] sm:$0xf]
      %v967 = vld [vmem:[#allocation2 + $0x14] sm:$0x1]
      %v968 = vld [vmem:[#allocation2 + $0x18] sm:$0xf]
      %v969 = vld [vmem:[#allocation2 + $0x1c] sm:$0xf]
      %v970 = vld [vmem:[#allocation2 + $0x20] sm:$0x1]
      %v971 = vld [vmem:[#allocation2 + $0x24] sm:$0xf]
      %v972 = vld [vmem:[#allocation2 + $0x28] sm:$0xf]
      %v973 = vld [vmem:[#allocation2 + $0x2c] sm:$0x1]
      %v974 = vld [vmem:[#allocation2 + $0x30] sm:$0xf]
      %v975 = vld [vmem:[#allocation2 + $0x34] sm:$0xf]
      %v976 = vld [vmem:[#allocation2 + $0x38] sm:$0x1]
      %v977 = vld [vmem:[#allocation2 + $0x3c] sm:$0xf]
      %v978 = vld [vmem:[#allocation2 + $0x40] sm:$0xf]
      %v979 = vld [vmem:[#allocation2 + $0x44] sm:$0x1]
      %v980 = vld [vmem:[#allocation2 + $0x48] sm:$0xf]
      %v981 = vld [vmem:[#allocation2 + $0x4c] sm:$0xf]
      %v982 = vld [vmem:[#allocation2 + $0x50] sm:$0x1]
      %v983 = vld [vmem:[#allocation2 + $0x54] sm:$0xf]
      %v984 = vld [vmem:[#allocation2 + $0x58] sm:$0xf]
      %v985 = vld [vmem:[#allocation2 + $0x5c] sm:$0x1]
      %v986 = vld [vmem:[#allocation2 + $0x60] sm:$0xf]
      %v987 = vld [vmem:[#allocation2 + $0x64] sm:$0xf]
      %v988 = vld [vmem:[#allocation2 + $0x68] sm:$0x1]
      %v989 = vld [vmem:[#allocation2 + $0x6c] sm:$0xf]
      %v990 = vld [vmem:[#allocation2 + $0x70] sm:$0xf]
      %v991 = vld [vmem:[#allocation2 + $0x74] sm:$0x1]
      %v992 = vld [vmem:[#allocation2 + $0x78] sm:$0xf]
      %v993 = vld [vmem:[#allocation2 + $0x7c] sm:$0xf]
      %v994 = vld [vmem:[#allocation2 + $0x80] sm:$0x1]
      %v995 = vld [vmem:[#allocation2 + $0x84] sm:$0xf]
      %v996 = vld [vmem:[#allocation2 + $0x88] sm:$0xf]
      %v997 = vld [vmem:[#allocation2 + $0x8c] sm:$0x1]
      %v998 = vld [vmem:[#allocation2 + $0x90] sm:$0xf]
      %v999 = vld [vmem:[#allocation2 + $0x94] sm:$0xf]
      %v1000 = vld [vmem:[#allocation2 + $0x98] sm:$0x1]
      %v1001 = vld [vmem:[#allocation2 + $0x9c] sm:$0xf]
      %v1002 = vld [vmem:[#allocation2 + $0xa0] sm:$0xf]
      %v1003 = vld [vmem:[#allocation2 + $0xa4] sm:$0x1]
      %v1004 = vld [vmem:[#allocation2 + $0xa8] sm:$0xf]
      %v1005 = vld [vmem:[#allocation2 + $0xac] sm:$0xf]
      %v1006 = vld [vmem:[#allocation2 + $0xb0] sm:$0x1]
      %v1007 = vld [vmem:[#allocation2 + $0xb4] sm:$0xf]
      %v1008 = vld [vmem:[#allocation2 + $0xb8] sm:$0xf]
      %v1009 = vld [vmem:[#allocation2 + $0xbc] sm:$0x1]
      %vm1010 = vsmask.f32 3328
      %vm1011 = vsmask.f32 7440
      %vm1012 = vmor %vm1010, %vm1011
      %v1014 = vshrl.u32 %v962, 16
      %v1016 = vrot.slane %v1014, 4
      %v1017 = vshll.u32 %v962, 16
      %v1019 = vrot.slane %v1017, 5
      %v1020 = vor.u32 %v1016, %v1019
      %v1021 = vrot.slane %v1020, 4
      %v1023 = vshll.u32 %v963, 16
      %v1025 = vrot.slane %v1023, 5
      %v1026 = vsel %vm1012, %v1021, %v1025
      %v1027 = vshrl.u32 %v963, 16
      %v1029 = vrot.slane %v1027, 4
      %v1030 = vor.u32 %v1029, %v1025
      %v1031 = vrot.slane %v1030, 4
      %v1033 = vshll.u32 %v964, 16
      %v1035 = vrot.slane %v1033, 5
      %v1036 = vsel %vm1012, %v1031, %v1035
      %v1038 = vshrl.u32 %v965, 16
      %v1040 = vrot.slane %v1038, 4
      %v1041 = vshll.u32 %v965, 16
      %v1043 = vrot.slane %v1041, 5
      %v1044 = vor.u32 %v1040, %v1043
      %v1045 = vrot.slane %v1044, 4
      %v1047 = vshll.u32 %v966, 16
      %v1049 = vrot.slane %v1047, 5
      %v1050 = vsel %vm1012, %v1045, %v1049
      %v1051 = vshrl.u32 %v966, 16
      %v1053 = vrot.slane %v1051, 4
      %v1054 = vor.u32 %v1053, %v1049
      %v1055 = vrot.slane %v1054, 4
      %v1057 = vshll.u32 %v967, 16
      %v1059 = vrot.slane %v1057, 5
      %v1060 = vsel %vm1012, %v1055, %v1059
      %v1062 = vshrl.u32 %v968, 16
      %v1064 = vrot.slane %v1062, 4
      %v1065 = vshll.u32 %v968, 16
      %v1067 = vrot.slane %v1065, 5
      %v1068 = vor.u32 %v1064, %v1067
      %v1069 = vrot.slane %v1068, 4
      %v1071 = vshll.u32 %v969, 16
      %v1073 = vrot.slane %v1071, 5
      %v1074 = vsel %vm1012, %v1069, %v1073
      %v1075 = vshrl.u32 %v969, 16
      %v1077 = vrot.slane %v1075, 4
      %v1078 = vor.u32 %v1077, %v1073
      %v1079 = vrot.slane %v1078, 4
      %v1081 = vshll.u32 %v970, 16
      %v1083 = vrot.slane %v1081, 5
      %v1084 = vsel %vm1012, %v1079, %v1083
      %v1086 = vshrl.u32 %v971, 16
      %v1088 = vrot.slane %v1086, 4
      %v1089 = vshll.u32 %v971, 16
      %v1091 = vrot.slane %v1089, 5
      %v1092 = vor.u32 %v1088, %v1091
      %v1093 = vrot.slane %v1092, 4
      %v1095 = vshll.u32 %v972, 16
      %v1097 = vrot.slane %v1095, 5
      %v1098 = vsel %vm1012, %v1093, %v1097
      %v1099 = vshrl.u32 %v972, 16
      %v1101 = vrot.slane %v1099, 4
      %v1102 = vor.u32 %v1101, %v1097
      %v1103 = vrot.slane %v1102, 4
      %v1105 = vshll.u32 %v973, 16
      %v1107 = vrot.slane %v1105, 5
      %v1108 = vsel %vm1012, %v1103, %v1107
      %v1110 = vshrl.u32 %v974, 16
      %v1112 = vrot.slane %v1110, 4
      %v1113 = vshll.u32 %v974, 16
      %v1115 = vrot.slane %v1113, 5
      %v1116 = vor.u32 %v1112, %v1115
      %v1117 = vrot.slane %v1116, 4
      %v1119 = vshll.u32 %v975, 16
      %v1121 = vrot.slane %v1119, 5
      %v1122 = vsel %vm1012, %v1117, %v1121
      %v1123 = vshrl.u32 %v975, 16
      %v1125 = vrot.slane %v1123, 4
      %v1126 = vor.u32 %v1125, %v1121
      %v1127 = vrot.slane %v1126, 4
      %v1129 = vshll.u32 %v976, 16
      %v1131 = vrot.slane %v1129, 5
      %v1132 = vsel %vm1012, %v1127, %v1131
      %v1134 = vshrl.u32 %v977, 16
      %v1136 = vrot.slane %v1134, 4
      %v1137 = vshll.u32 %v977, 16
      %v1139 = vrot.slane %v1137, 5
      %v1140 = vor.u32 %v1136, %v1139
      %v1141 = vrot.slane %v1140, 4
      %v1143 = vshll.u32 %v978, 16
      %v1145 = vrot.slane %v1143, 5
      %v1146 = vsel %vm1012, %v1141, %v1145
      %v1147 = vshrl.u32 %v978, 16
      %v1149 = vrot.slane %v1147, 4
      %v1150 = vor.u32 %v1149, %v1145
      %v1151 = vrot.slane %v1150, 4
      %v1153 = vshll.u32 %v979, 16
      %v1155 = vrot.slane %v1153, 5
      %v1156 = vsel %vm1012, %v1151, %v1155
      %v1158 = vshrl.u32 %v980, 16
      %v1160 = vrot.slane %v1158, 4
      %v1161 = vshll.u32 %v980, 16
      %v1163 = vrot.slane %v1161, 5
      %v1164 = vor.u32 %v1160, %v1163
      %v1165 = vrot.slane %v1164, 4
      %v1167 = vshll.u32 %v981, 16
      %v1169 = vrot.slane %v1167, 5
      %v1170 = vsel %vm1012, %v1165, %v1169
      %v1171 = vshrl.u32 %v981, 16
      %v1173 = vrot.slane %v1171, 4
      %v1174 = vor.u32 %v1173, %v1169
      %v1175 = vrot.slane %v1174, 4
      %v1177 = vshll.u32 %v982, 16
      %v1179 = vrot.slane %v1177, 5
      %v1180 = vsel %vm1012, %v1175, %v1179
      %v1182 = vshrl.u32 %v983, 16
      %v1184 = vrot.slane %v1182, 4
      %v1185 = vshll.u32 %v983, 16
      %v1187 = vrot.slane %v1185, 5
      %v1188 = vor.u32 %v1184, %v1187
      %v1189 = vrot.slane %v1188, 4
      %v1191 = vshll.u32 %v984, 16
      %v1193 = vrot.slane %v1191, 5
      %v1194 = vsel %vm1012, %v1189, %v1193
      %v1195 = vshrl.u32 %v984, 16
      %v1197 = vrot.slane %v1195, 4
      %v1198 = vor.u32 %v1197, %v1193
      %v1199 = vrot.slane %v1198, 4
      %v1201 = vshll.u32 %v985, 16
      %v1203 = vrot.slane %v1201, 5
      %v1204 = vsel %vm1012, %v1199, %v1203
      %v1206 = vshrl.u32 %v986, 16
      %v1208 = vrot.slane %v1206, 4
      %v1209 = vshll.u32 %v986, 16
      %v1211 = vrot.slane %v1209, 5
      %v1212 = vor.u32 %v1208, %v1211
      %v1213 = vrot.slane %v1212, 4
      %v1215 = vshll.u32 %v987, 16
      %v1217 = vrot.slane %v1215, 5
      %v1218 = vsel %vm1012, %v1213, %v1217
      %v1219 = vshrl.u32 %v987, 16
      %v1221 = vrot.slane %v1219, 4
      %v1222 = vor.u32 %v1221, %v1217
      %v1223 = vrot.slane %v1222, 4
      %v1225 = vshll.u32 %v988, 16
      %v1227 = vrot.slane %v1225, 5
      %v1228 = vsel %vm1012, %v1223, %v1227
      %v1230 = vshrl.u32 %v989, 16
      %v1232 = vrot.slane %v1230, 4
      %v1233 = vshll.u32 %v989, 16
      %v1235 = vrot.slane %v1233, 5
      %v1236 = vor.u32 %v1232, %v1235
      %v1237 = vrot.slane %v1236, 4
      %v1239 = vshll.u32 %v990, 16
      %v1241 = vrot.slane %v1239, 5
      %v1242 = vsel %vm1012, %v1237, %v1241
      %v1243 = vshrl.u32 %v990, 16
      %v1245 = vrot.slane %v1243, 4
      %v1246 = vor.u32 %v1245, %v1241
      %v1247 = vrot.slane %v1246, 4
      %v1249 = vshll.u32 %v991, 16
      %v1251 = vrot.slane %v1249, 5
      %v1252 = vsel %vm1012, %v1247, %v1251
      %v1254 = vshrl.u32 %v992, 16
      %v1256 = vrot.slane %v1254, 4
      %v1257 = vshll.u32 %v992, 16
      %v1259 = vrot.slane %v1257, 5
      %v1260 = vor.u32 %v1256, %v1259
      %v1261 = vrot.slane %v1260, 4
      %v1263 = vshll.u32 %v993, 16
      %v1265 = vrot.slane %v1263, 5
      %v1266 = vsel %vm1012, %v1261, %v1265
      %v1267 = vshrl.u32 %v993, 16
      %v1269 = vrot.slane %v1267, 4
      %v1270 = vor.u32 %v1269, %v1265
      %v1271 = vrot.slane %v1270, 4
      %v1273 = vshll.u32 %v994, 16
      %v1275 = vrot.slane %v1273, 5
      %v1276 = vsel %vm1012, %v1271, %v1275
      %v1278 = vshrl.u32 %v995, 16
      %v1280 = vrot.slane %v1278, 4
      %v1281 = vshll.u32 %v995, 16
      %v1283 = vrot.slane %v1281, 5
      %v1284 = vor.u32 %v1280, %v1283
      %v1285 = vrot.slane %v1284, 4
      %v1287 = vshll.u32 %v996, 16
      %v1289 = vrot.slane %v1287, 5
      %v1290 = vsel %vm1012, %v1285, %v1289
      %v1291 = vshrl.u32 %v996, 16
      %v1293 = vrot.slane %v1291, 4
      %v1294 = vor.u32 %v1293, %v1289
      %v1295 = vrot.slane %v1294, 4
      %v1297 = vshll.u32 %v997, 16
      %v1299 = vrot.slane %v1297, 5
      %v1300 = vsel %vm1012, %v1295, %v1299
      %v1302 = vshrl.u32 %v998, 16
      %v1304 = vrot.slane %v1302, 4
      %v1305 = vshll.u32 %v998, 16
      %v1307 = vrot.slane %v1305, 5
      %v1308 = vor.u32 %v1304, %v1307
      %v1309 = vrot.slane %v1308, 4
      %v1311 = vshll.u32 %v999, 16
      %v1313 = vrot.slane %v1311, 5
      %v1314 = vsel %vm1012, %v1309, %v1313
      %v1315 = vshrl.u32 %v999, 16
      %v1317 = vrot.slane %v1315, 4
      %v1318 = vor.u32 %v1317, %v1313
      %v1319 = vrot.slane %v1318, 4
      %v1321 = vshll.u32 %v1000, 16
      %v1323 = vrot.slane %v1321, 5
      %v1324 = vsel %vm1012, %v1319, %v1323
      %v1326 = vshrl.u32 %v1001, 16
      %v1328 = vrot.slane %v1326, 4
      %v1329 = vshll.u32 %v1001, 16
      %v1331 = vrot.slane %v1329, 5
      %v1332 = vor.u32 %v1328, %v1331
      %v1333 = vrot.slane %v1332, 4
      %v1335 = vshll.u32 %v1002, 16
      %v1337 = vrot.slane %v1335, 5
      %v1338 = vsel %vm1012, %v1333, %v1337
      %v1339 = vshrl.u32 %v1002, 16
      %v1341 = vrot.slane %v1339, 4
      %v1342 = vor.u32 %v1341, %v1337
      %v1343 = vrot.slane %v1342, 4
      %v1345 = vshll.u32 %v1003, 16
      %v1347 = vrot.slane %v1345, 5
      %v1348 = vsel %vm1012, %v1343, %v1347
      %v1350 = vshrl.u32 %v1004, 16
      %v1352 = vrot.slane %v1350, 4
      %v1353 = vshll.u32 %v1004, 16
      %v1355 = vrot.slane %v1353, 5
      %v1356 = vor.u32 %v1352, %v1355
      %v1357 = vrot.slane %v1356, 4
      %v1359 = vshll.u32 %v1005, 16
      %v1361 = vrot.slane %v1359, 5
      %v1362 = vsel %vm1012, %v1357, %v1361
      %v1363 = vshrl.u32 %v1005, 16
      %v1365 = vrot.slane %v1363, 4
      %v1366 = vor.u32 %v1365, %v1361
      %v1367 = vrot.slane %v1366, 4
      %v1369 = vshll.u32 %v1006, 16
      %v1371 = vrot.slane %v1369, 5
      %v1372 = vsel %vm1012, %v1367, %v1371
      %v1374 = vshrl.u32 %v1007, 16
      %v1376 = vrot.slane %v1374, 4
      %v1377 = vshll.u32 %v1007, 16
      %v1379 = vrot.slane %v1377, 5
      %v1380 = vor.u32 %v1376, %v1379
      %v1381 = vrot.slane %v1380, 4
      %v1383 = vshll.u32 %v1008, 16
      %v1385 = vrot.slane %v1383, 5
      %v1386 = vsel %vm1012, %v1381, %v1385
      %v1387 = vshrl.u32 %v1008, 16
      %v1389 = vrot.slane %v1387, 4
      %v1390 = vor.u32 %v1389, %v1385
      %v1391 = vrot.slane %v1390, 4
      %v1393 = vshll.u32 %v1009, 16
      %v1395 = vrot.slane %v1393, 5
      %v1396 = vsel %vm1012, %v1391, %v1395
      %v1397 = vunpack.c.l.b16 %v1026
      %v1398 = vunpack.c.l.b16 %v1036
      %v1399 = vunpack.c.l.b16 %v1050
      %v1400 = vunpack.c.l.b16 %v1060
      %v1401 = vunpack.c.l.b16 %v1074
      %v1402 = vunpack.c.l.b16 %v1084
      %v1403 = vunpack.c.l.b16 %v1098
      %v1404 = vunpack.c.l.b16 %v1108
      %v1405 = vunpack.c.l.b16 %v1122
      %v1406 = vunpack.c.l.b16 %v1132
      %v1407 = vunpack.c.l.b16 %v1146
      %v1408 = vunpack.c.l.b16 %v1156
      %v1409 = vunpack.c.l.b16 %v1170
      %v1410 = vunpack.c.l.b16 %v1180
      %v1411 = vunpack.c.l.b16 %v1194
      %v1412 = vunpack.c.l.b16 %v1204
      %v1413 = vunpack.c.l.b16 %v1218
      %v1414 = vunpack.c.l.b16 %v1228
      %v1415 = vunpack.c.l.b16 %v1242
      %v1416 = vunpack.c.l.b16 %v1252
      %v1417 = vunpack.c.l.b16 %v1266
      %v1418 = vunpack.c.l.b16 %v1276
      %v1419 = vunpack.c.l.b16 %v1290
      %v1420 = vunpack.c.l.b16 %v1300
      %v1421 = vunpack.c.l.b16 %v1314
      %v1422 = vunpack.c.l.b16 %v1324
      %v1423 = vunpack.c.l.b16 %v1338
      %v1424 = vunpack.c.l.b16 %v1348
      %v1425 = vunpack.c.l.b16 %v1362
      %v1426 = vunpack.c.l.b16 %v1372
      %v1427 = vunpack.c.l.b16 %v1386
      %v1428 = vunpack.c.l.b16 %v1396
      %v1429 = vpack.c.b16 %v1398, %v1397
      %v1430 = vpack.c.b16 %v1400, %v1399
      %v1431 = vpack.c.b16 %v1402, %v1401
      %v1432 = vpack.c.b16 %v1404, %v1403
      %v1433 = vpack.c.b16 %v1406, %v1405
      %v1434 = vpack.c.b16 %v1408, %v1407
      %v1435 = vpack.c.b16 %v1410, %v1409
      %v1436 = vpack.c.b16 %v1412, %v1411
      %v1437 = vpack.c.b16 %v1414, %v1413
      %v1438 = vpack.c.b16 %v1416, %v1415
      %v1439 = vpack.c.b16 %v1418, %v1417
      %v1440 = vpack.c.b16 %v1420, %v1419
      %v1441 = vpack.c.b16 %v1422, %v1421
      %v1442 = vpack.c.b16 %v1424, %v1423
      %v1443 = vpack.c.b16 %v1426, %v1425
      %v1444 = vpack.c.b16 %v1428, %v1427
      %1445 = vrot.lane.b32.xlu0 %v1429, 4
      %v1446 = vpop.permute.xlu0 %1445
      %1447 = vrot.lane.b32.xlu0 %v1430, 4
      %v1448 = vpop.permute.xlu0 %1447
      %1449 = vrot.lane.b32.xlu0 %v1431, 4
      %v1450 = vpop.permute.xlu0 %1449
      %1451 = vrot.lane.b32.xlu0 %v1432, 4
      %v1452 = vpop.permute.xlu0 %1451
      %1453 = vrot.lane.b32.xlu0 %v1433, 4
      %v1454 = vpop.permute.xlu0 %1453
      %1455 = vrot.lane.b32.xlu0 %v1434, 4
      %v1456 = vpop.permute.xlu0 %1455
      %1457 = vrot.lane.b32.xlu0 %v1435, 4
      %v1458 = vpop.permute.xlu0 %1457
      %1459 = vrot.lane.b32.xlu0 %v1436, 4
      %v1460 = vpop.permute.xlu0 %1459
      %1461 = vrot.lane.b32.xlu0 %v1437, 4
      %v1462 = vpop.permute.xlu0 %1461
      %1463 = vrot.lane.b32.xlu0 %v1438, 4
      %v1464 = vpop.permute.xlu0 %1463
      %1465 = vrot.lane.b32.xlu0 %v1439, 4
      %v1466 = vpop.permute.xlu0 %1465
      %1467 = vrot.lane.b32.xlu0 %v1440, 4
      %v1468 = vpop.permute.xlu0 %1467
      %1469 = vrot.lane.b32.xlu0 %v1441, 4
      %v1470 = vpop.permute.xlu0 %1469
      %1471 = vrot.lane.b32.xlu0 %v1442, 4
      %v1472 = vpop.permute.xlu0 %1471
      %1473 = vrot.lane.b32.xlu0 %v1443, 4
      %v1474 = vpop.permute.xlu0 %1473
      %1475 = vrot.lane.b32.xlu0 %v1444, 4
      %v1476 = vpop.permute.xlu0 %1475
      %vm1493 = vcmask 64544
      %1494 = vst.msk [vmem:[#allocation3] sm:$0xff] %vm1493, %v1446
      %1495 = vst.msk [vmem:[#allocation3 + $0x8] sm:$0xff] %vm1493, %v1448
      %1496 = vst.msk [vmem:[#allocation3 + $0x10] sm:$0xff] %vm1493, %v1450
      %1497 = vst.msk [vmem:[#allocation3 + $0x18] sm:$0xff] %vm1493, %v1452
      %1498 = vst.msk [vmem:[#allocation3 + $0x20] sm:$0xff] %vm1493, %v1454
      %1499 = vst.msk [vmem:[#allocation3 + $0x28] sm:$0xff] %vm1493, %v1456
      %1500 = vst.msk [vmem:[#allocation3 + $0x30] sm:$0xff] %vm1493, %v1458
      %1501 = vst.msk [vmem:[#allocation3 + $0x38] sm:$0xff] %vm1493, %v1460
      %1502 = vst.msk [vmem:[#allocation3 + $0x40] sm:$0xff] %vm1493, %v1462
      %1503 = vst.msk [vmem:[#allocation3 + $0x48] sm:$0xff] %vm1493, %v1464
      %1504 = vst.msk [vmem:[#allocation3 + $0x50] sm:$0xff] %vm1493, %v1466
      %1505 = vst.msk [vmem:[#allocation3 + $0x58] sm:$0xff] %vm1493, %v1468
      %1506 = vst.msk [vmem:[#allocation3 + $0x60] sm:$0xff] %vm1493, %v1470
      %1507 = vst.msk [vmem:[#allocation3 + $0x68] sm:$0xff] %vm1493, %v1472
      %1508 = vst.msk [vmem:[#allocation3 + $0x70] sm:$0xff] %vm1493, %v1474
      %1509 = vst.msk [vmem:[#allocation3 + $0x78] sm:$0xff] %vm1493, %v1476
      %v1510 = vld [vmem:[#allocation2] sm:$0xe]
      %v1511 = vld [vmem:[#allocation2 + $0x4] sm:$0xf]
      %v1512 = vld [vmem:[#allocation2 + $0x8] sm:$0x1]
      %v1513 = vld [vmem:[#allocation2 + $0xc] sm:$0xe]
      %v1514 = vld [vmem:[#allocation2 + $0x10] sm:$0xf]
      %v1515 = vld [vmem:[#allocation2 + $0x14] sm:$0x1]
      %v1516 = vld [vmem:[#allocation2 + $0x18] sm:$0xe]
      %v1517 = vld [vmem:[#allocation2 + $0x1c] sm:$0xf]
      %v1518 = vld [vmem:[#allocation2 + $0x20] sm:$0x1]
      %v1519 = vld [vmem:[#allocation2 + $0x24] sm:$0xe]
      %v1520 = vld [vmem:[#allocation2 + $0x28] sm:$0xf]
      %v1521 = vld [vmem:[#allocation2 + $0x2c] sm:$0x1]
      %v1522 = vld [vmem:[#allocation2 + $0x30] sm:$0xe]
      %v1523 = vld [vmem:[#allocation2 + $0x34] sm:$0xf]
      %v1524 = vld [vmem:[#allocation2 + $0x38] sm:$0x1]
      %v1525 = vld [vmem:[#allocation2 + $0x3c] sm:$0xe]
      %v1526 = vld [vmem:[#allocation2 + $0x40] sm:$0xf]
      %v1527 = vld [vmem:[#allocation2 + $0x44] sm:$0x1]
      %v1528 = vld [vmem:[#allocation2 + $0x48] sm:$0xe]
      %v1529 = vld [vmem:[#allocation2 + $0x4c] sm:$0xf]
      %v1530 = vld [vmem:[#allocation2 + $0x50] sm:$0x1]
      %v1531 = vld [vmem:[#allocation2 + $0x54] sm:$0xe]
      %v1532 = vld [vmem:[#allocation2 + $0x58] sm:$0xf]
      %v1533 = vld [vmem:[#allocation2 + $0x5c] sm:$0x1]
      %v1534 = vld [vmem:[#allocation2 + $0x60] sm:$0xe]
      %v1535 = vld [vmem:[#allocation2 + $0x64] sm:$0xf]
      %v1536 = vld [vmem:[#allocation2 + $0x68] sm:$0x1]
      %v1537 = vld [vmem:[#allocation2 + $0x6c] sm:$0xe]
      %v1538 = vld [vmem:[#allocation2 + $0x70] sm:$0xf]
      %v1539 = vld [vmem:[#allocation2 + $0x74] sm:$0x1]
      %v1540 = vld [vmem:[#allocation2 + $0x78] sm:$0xe]
      %v1541 = vld [vmem:[#allocation2 + $0x7c] sm:$0xf]
      %v1542 = vld [vmem:[#allocation2 + $0x80] sm:$0x1]
      %v1543 = vld [vmem:[#allocation2 + $0x84] sm:$0xe]
      %v1544 = vld [vmem:[#allocation2 + $0x88] sm:$0xf]
      %v1545 = vld [vmem:[#allocation2 + $0x8c] sm:$0x1]
      %v1546 = vld [vmem:[#allocation2 + $0x90] sm:$0xe]
      %v1547 = vld [vmem:[#allocation2 + $0x94] sm:$0xf]
      %v1548 = vld [vmem:[#allocation2 + $0x98] sm:$0x1]
      %v1549 = vld [vmem:[#allocation2 + $0x9c] sm:$0xe]
      %v1550 = vld [vmem:[#allocation2 + $0xa0] sm:$0xf]
      %v1551 = vld [vmem:[#allocation2 + $0xa4] sm:$0x1]
      %v1552 = vld [vmem:[#allocation2 + $0xa8] sm:$0xe]
      %v1553 = vld [vmem:[#allocation2 + $0xac] sm:$0xf]
      %v1554 = vld [vmem:[#allocation2 + $0xb0] sm:$0x1]
      %v1555 = vld [vmem:[#allocation2 + $0xb4] sm:$0xe]
      %v1556 = vld [vmem:[#allocation2 + $0xb8] sm:$0xf]
      %v1557 = vld [vmem:[#allocation2 + $0xbc] sm:$0x1]
      %vm1606 = vcmask 1042432
      %vm1607 = vcmask 1046532
      %vm1608 = vmor %vm1606, %vm1607
      %v1609 = vrot.slane %v1510, 5
      %v1610 = vrot.slane %v1609, 4
      %v1611 = vrot.slane %v1511, 5
      %v1612 = vsel %vm1608, %v1610, %v1611
      %v1613 = vrot.slane %v1611, 4
      %v1614 = vrot.slane %v1512, 5
      %v1615 = vsel %vm1608, %v1613, %v1614
      %v1616 = vrot.slane %v1513, 5
      %v1617 = vrot.slane %v1616, 4
      %v1618 = vrot.slane %v1514, 5
      %v1619 = vsel %vm1608, %v1617, %v1618
      %v1620 = vrot.slane %v1618, 4
      %v1621 = vrot.slane %v1515, 5
      %v1622 = vsel %vm1608, %v1620, %v1621
      %v1623 = vrot.slane %v1516, 5
      %v1624 = vrot.slane %v1623, 4
      %v1625 = vrot.slane %v1517, 5
      %v1626 = vsel %vm1608, %v1624, %v1625
      %v1627 = vrot.slane %v1625, 4
      %v1628 = vrot.slane %v1518, 5
      %v1629 = vsel %vm1608, %v1627, %v1628
      %v1630 = vrot.slane %v1519, 5
      %v1631 = vrot.slane %v1630, 4
      %v1632 = vrot.slane %v1520, 5
      %v1633 = vsel %vm1608, %v1631, %v1632
      %v1634 = vrot.slane %v1632, 4
      %v1635 = vrot.slane %v1521, 5
      %v1636 = vsel %vm1608, %v1634, %v1635
      %v1637 = vrot.slane %v1522, 5
      %v1638 = vrot.slane %v1637, 4
      %v1639 = vrot.slane %v1523, 5
      %v1640 = vsel %vm1608, %v1638, %v1639
      %v1641 = vrot.slane %v1639, 4
      %v1642 = vrot.slane %v1524, 5
      %v1643 = vsel %vm1608, %v1641, %v1642
      %v1644 = vrot.slane %v1525, 5
      %v1645 = vrot.slane %v1644, 4
      %v1646 = vrot.slane %v1526, 5
      %v1647 = vsel %vm1608, %v1645, %v1646
      %v1648 = vrot.slane %v1646, 4
      %v1649 = vrot.slane %v1527, 5
      %v1650 = vsel %vm1608, %v1648, %v1649
      %v1651 = vrot.slane %v1528, 5
      %v1652 = vrot.slane %v1651, 4
      %v1653 = vrot.slane %v1529, 5
      %v1654 = vsel %vm1608, %v1652, %v1653
      %v1655 = vrot.slane %v1653, 4
      %v1656 = vrot.slane %v1530, 5
      %v1657 = vsel %vm1608, %v1655, %v1656
      %v1658 = vrot.slane %v1531, 5
      %v1659 = vrot.slane %v1658, 4
      %v1660 = vrot.slane %v1532, 5
      %v1661 = vsel %vm1608, %v1659, %v1660
      %v1662 = vrot.slane %v1660, 4
      %v1663 = vrot.slane %v1533, 5
      %v1664 = vsel %vm1608, %v1662, %v1663
      %v1665 = vrot.slane %v1534, 5
      %v1666 = vrot.slane %v1665, 4
      %v1667 = vrot.slane %v1535, 5
      %v1668 = vsel %vm1608, %v1666, %v1667
      %v1669 = vrot.slane %v1667, 4
      %v1670 = vrot.slane %v1536, 5
      %v1671 = vsel %vm1608, %v1669, %v1670
      %v1672 = vrot.slane %v1537, 5
      %v1673 = vrot.slane %v1672, 4
      %v1674 = vrot.slane %v1538, 5
      %v1675 = vsel %vm1608, %v1673, %v1674
      %v1676 = vrot.slane %v1674, 4
      %v1677 = vrot.slane %v1539, 5
      %v1678 = vsel %vm1608, %v1676, %v1677
      %v1679 = vrot.slane %v1540, 5
      %v1680 = vrot.slane %v1679, 4
      %v1681 = vrot.slane %v1541, 5
      %v1682 = vsel %vm1608, %v1680, %v1681
      %v1683 = vrot.slane %v1681, 4
      %v1684 = vrot.slane %v1542, 5
      %v1685 = vsel %vm1608, %v1683, %v1684
      %v1686 = vrot.slane %v1543, 5
      %v1687 = vrot.slane %v1686, 4
      %v1688 = vrot.slane %v1544, 5
      %v1689 = vsel %vm1608, %v1687, %v1688
      %v1690 = vrot.slane %v1688, 4
      %v1691 = vrot.slane %v1545, 5
      %v1692 = vsel %vm1608, %v1690, %v1691
      %v1693 = vrot.slane %v1546, 5
      %v1694 = vrot.slane %v1693, 4
      %v1695 = vrot.slane %v1547, 5
      %v1696 = vsel %vm1608, %v1694, %v1695
      %v1697 = vrot.slane %v1695, 4
      %v1698 = vrot.slane %v1548, 5
      %v1699 = vsel %vm1608, %v1697, %v1698
      %v1700 = vrot.slane %v1549, 5
      %v1701 = vrot.slane %v1700, 4
      %v1702 = vrot.slane %v1550, 5
      %v1703 = vsel %vm1608, %v1701, %v1702
      %v1704 = vrot.slane %v1702, 4
      %v1705 = vrot.slane %v1551, 5
      %v1706 = vsel %vm1608, %v1704, %v1705
      %v1707 = vrot.slane %v1552, 5
      %v1708 = vrot.slane %v1707, 4
      %v1709 = vrot.slane %v1553, 5
      %v1710 = vsel %vm1608, %v1708, %v1709
      %v1711 = vrot.slane %v1709, 4
      %v1712 = vrot.slane %v1554, 5
      %v1713 = vsel %vm1608, %v1711, %v1712
      %v1714 = vrot.slane %v1555, 5
      %v1715 = vrot.slane %v1714, 4
      %v1716 = vrot.slane %v1556, 5
      %v1717 = vsel %vm1608, %v1715, %v1716
      %v1718 = vrot.slane %v1716, 4
      %v1719 = vrot.slane %v1557, 5
      %v1720 = vsel %vm1608, %v1718, %v1719
      %v1721 = vunpack.c.l.b16 %v1612
      %v1722 = vunpack.c.l.b16 %v1615
      %v1723 = vunpack.c.l.b16 %v1619
      %v1724 = vunpack.c.l.b16 %v1622
      %v1725 = vunpack.c.l.b16 %v1626
      %v1726 = vunpack.c.l.b16 %v1629
      %v1727 = vunpack.c.l.b16 %v1633
      %v1728 = vunpack.c.l.b16 %v1636
      %v1729 = vunpack.c.l.b16 %v1640
      %v1730 = vunpack.c.l.b16 %v1643
      %v1731 = vunpack.c.l.b16 %v1647
      %v1732 = vunpack.c.l.b16 %v1650
      %v1733 = vunpack.c.l.b16 %v1654
      %v1734 = vunpack.c.l.b16 %v1657
      %v1735 = vunpack.c.l.b16 %v1661
      %v1736 = vunpack.c.l.b16 %v1664
      %v1737 = vunpack.c.l.b16 %v1668
      %v1738 = vunpack.c.l.b16 %v1671
      %v1739 = vunpack.c.l.b16 %v1675
      %v1740 = vunpack.c.l.b16 %v1678
      %v1741 = vunpack.c.l.b16 %v1682
      %v1742 = vunpack.c.l.b16 %v1685
      %v1743 = vunpack.c.l.b16 %v1689
      %v1744 = vunpack.c.l.b16 %v1692
      %v1745 = vunpack.c.l.b16 %v1696
      %v1746 = vunpack.c.l.b16 %v1699
      %v1747 = vunpack.c.l.b16 %v1703
      %v1748 = vunpack.c.l.b16 %v1706
      %v1749 = vunpack.c.l.b16 %v1710
      %v1750 = vunpack.c.l.b16 %v1713
      %v1751 = vunpack.c.l.b16 %v1717
      %v1752 = vunpack.c.l.b16 %v1720
      %v1753 = vpack.c.b16 %v1722, %v1721
      %v1754 = vpack.c.b16 %v1724, %v1723
      %v1755 = vpack.c.b16 %v1726, %v1725
      %v1756 = vpack.c.b16 %v1728, %v1727
      %v1757 = vpack.c.b16 %v1730, %v1729
      %v1758 = vpack.c.b16 %v1732, %v1731
      %v1759 = vpack.c.b16 %v1734, %v1733
      %v1760 = vpack.c.b16 %v1736, %v1735
      %v1761 = vpack.c.b16 %v1738, %v1737
      %v1762 = vpack.c.b16 %v1740, %v1739
      %v1763 = vpack.c.b16 %v1742, %v1741
      %v1764 = vpack.c.b16 %v1744, %v1743
      %v1765 = vpack.c.b16 %v1746, %v1745
      %v1766 = vpack.c.b16 %v1748, %v1747
      %v1767 = vpack.c.b16 %v1750, %v1749
      %v1768 = vpack.c.b16 %v1752, %v1751
      %1769 = vrot.lane.b32.xlu0 %v1753, 8
      %v1770 = vpop.permute.xlu0 %1769
      %1771 = vrot.lane.b32.xlu0 %v1754, 8
      %v1772 = vpop.permute.xlu0 %1771
      %1773 = vrot.lane.b32.xlu0 %v1755, 8
      %v1774 = vpop.permute.xlu0 %1773
      %1775 = vrot.lane.b32.xlu0 %v1756, 8
      %v1776 = vpop.permute.xlu0 %1775
      %1777 = vrot.lane.b32.xlu0 %v1757, 8
      %v1778 = vpop.permute.xlu0 %1777
      %1779 = vrot.lane.b32.xlu0 %v1758, 8
      %v1780 = vpop.permute.xlu0 %1779
      %1781 = vrot.lane.b32.xlu0 %v1759, 8
      %v1782 = vpop.permute.xlu0 %1781
      %1783 = vrot.lane.b32.xlu0 %v1760, 8
      %v1784 = vpop.permute.xlu0 %1783
      %1785 = vrot.lane.b32.xlu0 %v1761, 8
      %v1786 = vpop.permute.xlu0 %1785
      %1787 = vrot.lane.b32.xlu0 %v1762, 8
      %v1788 = vpop.permute.xlu0 %1787
      %1789 = vrot.lane.b32.xlu0 %v1763, 8
      %v1790 = vpop.permute.xlu0 %1789
      %1791 = vrot.lane.b32.xlu0 %v1764, 8
      %v1792 = vpop.permute.xlu0 %1791
      %1793 = vrot.lane.b32.xlu0 %v1765, 8
      %v1794 = vpop.permute.xlu0 %1793
      %1795 = vrot.lane.b32.xlu0 %v1766, 8
      %v1796 = vpop.permute.xlu0 %1795
      %1797 = vrot.lane.b32.xlu0 %v1767, 8
      %v1798 = vpop.permute.xlu0 %1797
      %1799 = vrot.lane.b32.xlu0 %v1768, 8
      %v1800 = vpop.permute.xlu0 %1799
      %vm1817 = vcmask 97344
      %1818 = vst.msk [vmem:[#allocation3] sm:$0xff] %vm1817, %v1770
      %1819 = vst.msk [vmem:[#allocation3 + $0x8] sm:$0xff] %vm1817, %v1772
      %1820 = vst.msk [vmem:[#allocation3 + $0x10] sm:$0xff] %vm1817, %v1774
      %1821 = vst.msk [vmem:[#allocation3 + $0x18] sm:$0xff] %vm1817, %v1776
      %1822 = vst.msk [vmem:[#allocation3 + $0x20] sm:$0xff] %vm1817, %v1778
      %1823 = vst.msk [vmem:[#allocation3 + $0x28] sm:$0xff] %vm1817, %v1780
      %1824 = vst.msk [vmem:[#allocation3 + $0x30] sm:$0xff] %vm1817, %v1782
      %1825 = vst.msk [vmem:[#allocation3 + $0x38] sm:$0xff] %vm1817, %v1784
      %1826 = vst.msk [vmem:[#allocation3 + $0x40] sm:$0xff] %vm1817, %v1786
      %1827 = vst.msk [vmem:[#allocation3 + $0x48] sm:$0xff] %vm1817, %v1788
      %1828 = vst.msk [vmem:[#allocation3 + $0x50] sm:$0xff] %vm1817, %v1790
      %1829 = vst.msk [vmem:[#allocation3 + $0x58] sm:$0xff] %vm1817, %v1792
      %1830 = vst.msk [vmem:[#allocation3 + $0x60] sm:$0xff] %vm1817, %v1794
      %1831 = vst.msk [vmem:[#allocation3 + $0x68] sm:$0xff] %vm1817, %v1796
      %1832 = vst.msk [vmem:[#allocation3 + $0x70] sm:$0xff] %vm1817, %v1798
      %1833 = vst.msk [vmem:[#allocation3 + $0x78] sm:$0xff] %vm1817, %v1800
      %v1834 = vld [vmem:[%s702] sm:$0xf]
      %v1835 = vld [vmem:[%s702 + $0x4] sm:$0xf]
      %v1836 = vld [vmem:[%s702 + $0xc] sm:$0xf]
      %v1837 = vld [vmem:[%s702 + $0x10] sm:$0xf]
      %v1838 = vld [vmem:[%s702 + $0x18] sm:$0xf]
      %v1839 = vld [vmem:[%s702 + $0x1c] sm:$0xf]
      %v1840 = vld [vmem:[%s702 + $0x24] sm:$0xf]
      %v1841 = vld [vmem:[%s702 + $0x28] sm:$0xf]
      %v1842 = vld [vmem:[%s702 + $0x30] sm:$0xf]
      %v1843 = vld [vmem:[%s702 + $0x34] sm:$0xf]
      %v1844 = vld [vmem:[%s702 + $0x3c] sm:$0xf]
      %v1845 = vld [vmem:[%s702 + $0x40] sm:$0xf]
      %v1846 = vld [vmem:[%s702 + $0x48] sm:$0xf]
      %v1847 = vld [vmem:[%s702 + $0x4c] sm:$0xf]
      %v1848 = vld [vmem:[%s702 + $0x54] sm:$0xf]
      %v1849 = vld [vmem:[%s702 + $0x58] sm:$0xf]
      %v1850 = vld [vmem:[%s702 + $0x60] sm:$0xf]
      %v1851 = vld [vmem:[%s702 + $0x64] sm:$0xf]
      %v1852 = vld [vmem:[%s702 + $0x6c] sm:$0xf]
      %v1853 = vld [vmem:[%s702 + $0x70] sm:$0xf]
      %v1854 = vld [vmem:[%s702 + $0x78] sm:$0xf]
      %v1855 = vld [vmem:[%s702 + $0x7c] sm:$0xf]
      %v1856 = vld [vmem:[%s702 + $0x84] sm:$0xf]
      %v1857 = vld [vmem:[%s702 + $0x88] sm:$0xf]
      %v1858 = vld [vmem:[%s702 + $0x90] sm:$0xf]
      %v1859 = vld [vmem:[%s702 + $0x94] sm:$0xf]
      %v1860 = vld [vmem:[%s702 + $0x9c] sm:$0xf]
      %v1861 = vld [vmem:[%s702 + $0xa0] sm:$0xf]
      %v1862 = vld [vmem:[%s702 + $0xa8] sm:$0xf]
      %v1863 = vld [vmem:[%s702 + $0xac] sm:$0xf]
      %v1864 = vld [vmem:[%s702 + $0xb4] sm:$0xf]
      %v1865 = vld [vmem:[%s702 + $0xb8] sm:$0xf]
      %v1898 = vunpack.c.l.b16 %v1834
      %v1899 = vunpack.c.l.b16 %v1835
      %v1900 = vunpack.c.l.b16 %v1836
      %v1901 = vunpack.c.l.b16 %v1837
      %v1902 = vunpack.c.l.b16 %v1838
      %v1903 = vunpack.c.l.b16 %v1839
      %v1904 = vunpack.c.l.b16 %v1840
      %v1905 = vunpack.c.l.b16 %v1841
      %v1906 = vunpack.c.l.b16 %v1842
      %v1907 = vunpack.c.l.b16 %v1843
      %v1908 = vunpack.c.l.b16 %v1844
      %v1909 = vunpack.c.l.b16 %v1845
      %v1910 = vunpack.c.l.b16 %v1846
      %v1911 = vunpack.c.l.b16 %v1847
      %v1912 = vunpack.c.l.b16 %v1848
      %v1913 = vunpack.c.l.b16 %v1849
      %v1914 = vunpack.c.l.b16 %v1850
      %v1915 = vunpack.c.l.b16 %v1851
      %v1916 = vunpack.c.l.b16 %v1852
      %v1917 = vunpack.c.l.b16 %v1853
      %v1918 = vunpack.c.l.b16 %v1854
      %v1919 = vunpack.c.l.b16 %v1855
      %v1920 = vunpack.c.l.b16 %v1856
      %v1921 = vunpack.c.l.b16 %v1857
      %v1922 = vunpack.c.l.b16 %v1858
      %v1923 = vunpack.c.l.b16 %v1859
      %v1924 = vunpack.c.l.b16 %v1860
      %v1925 = vunpack.c.l.b16 %v1861
      %v1926 = vunpack.c.l.b16 %v1862
      %v1927 = vunpack.c.l.b16 %v1863
      %v1928 = vunpack.c.l.b16 %v1864
      %v1929 = vunpack.c.l.b16 %v1865
      %v1930 = vpack.c.b16 %v1899, %v1898
      %v1931 = vpack.c.b16 %v1901, %v1900
      %v1932 = vpack.c.b16 %v1903, %v1902
      %v1933 = vpack.c.b16 %v1905, %v1904
      %v1934 = vpack.c.b16 %v1907, %v1906
      %v1935 = vpack.c.b16 %v1909, %v1908
      %v1936 = vpack.c.b16 %v1911, %v1910
      %v1937 = vpack.c.b16 %v1913, %v1912
      %v1938 = vpack.c.b16 %v1915, %v1914
      %v1939 = vpack.c.b16 %v1917, %v1916
      %v1940 = vpack.c.b16 %v1919, %v1918
      %v1941 = vpack.c.b16 %v1921, %v1920
      %v1942 = vpack.c.b16 %v1923, %v1922
      %v1943 = vpack.c.b16 %v1925, %v1924
      %v1944 = vpack.c.b16 %v1927, %v1926
      %v1945 = vpack.c.b16 %v1929, %v1928
      %1946 = vrot.lane.b32.xlu0 %v1930, 12
      %v1947 = vpop.permute.xlu0 %1946
      %1948 = vrot.lane.b32.xlu0 %v1931, 12
      %v1949 = vpop.permute.xlu0 %1948
      %1950 = vrot.lane.b32.xlu0 %v1932, 12
      %v1951 = vpop.permute.xlu0 %1950
      %1952 = vrot.lane.b32.xlu0 %v1933, 12
      %v1953 = vpop.permute.xlu0 %1952
      %1954 = vrot.lane.b32.xlu0 %v1934, 12
      %v1955 = vpop.permute.xlu0 %1954
      %1956 = vrot.lane.b32.xlu0 %v1935, 12
      %v1957 = vpop.permute.xlu0 %1956
      %1958 = vrot.lane.b32.xlu0 %v1936, 12
      %v1959 = vpop.permute.xlu0 %1958
      %1960 = vrot.lane.b32.xlu0 %v1937, 12
      %v1961 = vpop.permute.xlu0 %1960
      %1962 = vrot.lane.b32.xlu0 %v1938, 12
      %v1963 = vpop.permute.xlu0 %1962
      %1964 = vrot.lane.b32.xlu0 %v1939, 12
      %v1965 = vpop.permute.xlu0 %1964
      %1966 = vrot.lane.b32.xlu0 %v1940, 12
      %v1967 = vpop.permute.xlu0 %1966
      %1968 = vrot.lane.b32.xlu0 %v1941, 12
      %v1969 = vpop.permute.xlu0 %1968
      %1970 = vrot.lane.b32.xlu0 %v1942, 12
      %v1971 = vpop.permute.xlu0 %1970
      %1972 = vrot.lane.b32.xlu0 %v1943, 12
      %v1973 = vpop.permute.xlu0 %1972
      %1974 = vrot.lane.b32.xlu0 %v1944, 12
      %v1975 = vpop.permute.xlu0 %1974
      %1976 = vrot.lane.b32.xlu0 %v1945, 12
      %v1977 = vpop.permute.xlu0 %1976
      %vm1994 = vcmask 130144
      %1995 = vst.msk [vmem:[#allocation3] sm:$0xff] %vm1994, %v1947
      %1996 = vst.msk [vmem:[#allocation3 + $0x8] sm:$0xff] %vm1994, %v1949
      %1997 = vst.msk [vmem:[#allocation3 + $0x10] sm:$0xff] %vm1994, %v1951
      %1998 = vst.msk [vmem:[#allocation3 + $0x18] sm:$0xff] %vm1994, %v1953
      %1999 = vst.msk [vmem:[#allocation3 + $0x20] sm:$0xff] %vm1994, %v1955
      %2000 = vst.msk [vmem:[#allocation3 + $0x28] sm:$0xff] %vm1994, %v1957
      %2001 = vst.msk [vmem:[#allocation3 + $0x30] sm:$0xff] %vm1994, %v1959
      %2002 = vst.msk [vmem:[#allocation3 + $0x38] sm:$0xff] %vm1994, %v1961
      %2003 = vst.msk [vmem:[#allocation3 + $0x40] sm:$0xff] %vm1994, %v1963
      %2004 = vst.msk [vmem:[#allocation3 + $0x48] sm:$0xff] %vm1994, %v1965
      %2005 = vst.msk [vmem:[#allocation3 + $0x50] sm:$0xff] %vm1994, %v1967
      %2006 = vst.msk [vmem:[#allocation3 + $0x58] sm:$0xff] %vm1994, %v1969
      %2007 = vst.msk [vmem:[#allocation3 + $0x60] sm:$0xff] %vm1994, %v1971
      %2008 = vst.msk [vmem:[#allocation3 + $0x68] sm:$0xff] %vm1994, %v1973
      %2009 = vst.msk [vmem:[#allocation3 + $0x70] sm:$0xff] %vm1994, %v1975
      %2010 = vst.msk [vmem:[#allocation3 + $0x78] sm:$0xff] %vm1994, %v1977
      %v2011 = vld [vmem:[%s702] sm:$0xf]
      %v2012 = vld [vmem:[%s702 + $0x4] sm:$0xf]
      %v2013 = vld [vmem:[%s702 + $0x8] sm:$0x1]
      %v2014 = vld [vmem:[%s702 + $0xc] sm:$0xf]
      %v2015 = vld [vmem:[%s702 + $0x10] sm:$0xf]
      %v2016 = vld [vmem:[%s702 + $0x14] sm:$0x1]
      %v2017 = vld [vmem:[%s702 + $0x18] sm:$0xf]
      %v2018 = vld [vmem:[%s702 + $0x1c] sm:$0xf]
      %v2019 = vld [vmem:[%s702 + $0x20] sm:$0x1]
      %v2020 = vld [vmem:[%s702 + $0x24] sm:$0xf]
      %v2021 = vld [vmem:[%s702 + $0x28] sm:$0xf]
      %v2022 = vld [vmem:[%s702 + $0x2c] sm:$0x1]
      %v2023 = vld [vmem:[%s702 + $0x30] sm:$0xf]
      %v2024 = vld [vmem:[%s702 + $0x34] sm:$0xf]
      %v2025 = vld [vmem:[%s702 + $0x38] sm:$0x1]
      %v2026 = vld [vmem:[%s702 + $0x3c] sm:$0xf]
      %v2027 = vld [vmem:[%s702 + $0x40] sm:$0xf]
      %v2028 = vld [vmem:[%s702 + $0x44] sm:$0x1]
      %v2029 = vld [vmem:[%s702 + $0x48] sm:$0xf]
      %v2030 = vld [vmem:[%s702 + $0x4c] sm:$0xf]
      %v2031 = vld [vmem:[%s702 + $0x50] sm:$0x1]
      %v2032 = vld [vmem:[%s702 + $0x54] sm:$0xf]
      %v2033 = vld [vmem:[%s702 + $0x58] sm:$0xf]
      %v2034 = vld [vmem:[%s702 + $0x5c] sm:$0x1]
      %v2035 = vld [vmem:[%s702 + $0x60] sm:$0xf]
      %v2036 = vld [vmem:[%s702 + $0x64] sm:$0xf]
      %v2037 = vld [vmem:[%s702 + $0x68] sm:$0x1]
      %v2038 = vld [vmem:[%s702 + $0x6c] sm:$0xf]
      %v2039 = vld [vmem:[%s702 + $0x70] sm:$0xf]
      %v2040 = vld [vmem:[%s702 + $0x74] sm:$0x1]
      %v2041 = vld [vmem:[%s702 + $0x78] sm:$0xf]
      %v2042 = vld [vmem:[%s702 + $0x7c] sm:$0xf]
      %v2043 = vld [vmem:[%s702 + $0x80] sm:$0x1]
      %v2044 = vld [vmem:[%s702 + $0x84] sm:$0xf]
      %v2045 = vld [vmem:[%s702 + $0x88] sm:$0xf]
      %v2046 = vld [vmem:[%s702 + $0x8c] sm:$0x1]
      %v2047 = vld [vmem:[%s702 + $0x90] sm:$0xf]
      %v2048 = vld [vmem:[%s702 + $0x94] sm:$0xf]
      %v2049 = vld [vmem:[%s702 + $0x98] sm:$0x1]
      %v2050 = vld [vmem:[%s702 + $0x9c] sm:$0xf]
      %v2051 = vld [vmem:[%s702 + $0xa0] sm:$0xf]
      %v2052 = vld [vmem:[%s702 + $0xa4] sm:$0x1]
      %v2053 = vld [vmem:[%s702 + $0xa8] sm:$0xf]
      %v2054 = vld [vmem:[%s702 + $0xac] sm:$0xf]
      %v2055 = vld [vmem:[%s702 + $0xb0] sm:$0x1]
      %v2056 = vld [vmem:[%s702 + $0xb4] sm:$0xf]
      %v2057 = vld [vmem:[%s702 + $0xb8] sm:$0xf]
      %v2058 = vld [vmem:[%s702 + $0xbc] sm:$0x1]
      %v2060 = vshrl.u32 %v2011, 16
      %v2062 = vrot.slane %v2060, 4
      %v2063 = vshll.u32 %v2011, 16
      %v2065 = vrot.slane %v2063, 5
      %v2066 = vor.u32 %v2062, %v2065
      %v2067 = vrot.slane %v2066, 4
      %v2069 = vshll.u32 %v2012, 16
      %v2071 = vrot.slane %v2069, 5
      %v2072 = vsel %vm1012, %v2067, %v2071
      %v2073 = vshrl.u32 %v2012, 16
      %v2075 = vrot.slane %v2073, 4
      %v2076 = vor.u32 %v2075, %v2071
      %v2077 = vrot.slane %v2076, 4
      %v2079 = vshll.u32 %v2013, 16
      %v2081 = vrot.slane %v2079, 5
      %v2082 = vsel %vm1012, %v2077, %v2081
      %v2084 = vshrl.u32 %v2014, 16
      %v2086 = vrot.slane %v2084, 4
      %v2087 = vshll.u32 %v2014, 16
      %v2089 = vrot.slane %v2087, 5
      %v2090 = vor.u32 %v2086, %v2089
      %v2091 = vrot.slane %v2090, 4
      %v2093 = vshll.u32 %v2015, 16
      %v2095 = vrot.slane %v2093, 5
      %v2096 = vsel %vm1012, %v2091, %v2095
      %v2097 = vshrl.u32 %v2015, 16
      %v2099 = vrot.slane %v2097, 4
      %v2100 = vor.u32 %v2099, %v2095
      %v2101 = vrot.slane %v2100, 4
      %v2103 = vshll.u32 %v2016, 16
      %v2105 = vrot.slane %v2103, 5
      %v2106 = vsel %vm1012, %v2101, %v2105
      %v2108 = vshrl.u32 %v2017, 16
      %v2110 = vrot.slane %v2108, 4
      %v2111 = vshll.u32 %v2017, 16
      %v2113 = vrot.slane %v2111, 5
      %v2114 = vor.u32 %v2110, %v2113
      %v2115 = vrot.slane %v2114, 4
      %v2117 = vshll.u32 %v2018, 16
      %v2119 = vrot.slane %v2117, 5
      %v2120 = vsel %vm1012, %v2115, %v2119
      %v2121 = vshrl.u32 %v2018, 16
      %v2123 = vrot.slane %v2121, 4
      %v2124 = vor.u32 %v2123, %v2119
      %v2125 = vrot.slane %v2124, 4
      %v2127 = vshll.u32 %v2019, 16
      %v2129 = vrot.slane %v2127, 5
      %v2130 = vsel %vm1012, %v2125, %v2129
      %v2132 = vshrl.u32 %v2020, 16
      %v2134 = vrot.slane %v2132, 4
      %v2135 = vshll.u32 %v2020, 16
      %v2137 = vrot.slane %v2135, 5
      %v2138 = vor.u32 %v2134, %v2137
      %v2139 = vrot.slane %v2138, 4
      %v2141 = vshll.u32 %v2021, 16
      %v2143 = vrot.slane %v2141, 5
      %v2144 = vsel %vm1012, %v2139, %v2143
      %v2145 = vshrl.u32 %v2021, 16
      %v2147 = vrot.slane %v2145, 4
      %v2148 = vor.u32 %v2147, %v2143
      %v2149 = vrot.slane %v2148, 4
      %v2151 = vshll.u32 %v2022, 16
      %v2153 = vrot.slane %v2151, 5
      %v2154 = vsel %vm1012, %v2149, %v2153
      %v2156 = vshrl.u32 %v2023, 16
      %v2158 = vrot.slane %v2156, 4
      %v2159 = vshll.u32 %v2023, 16
      %v2161 = vrot.slane %v2159, 5
      %v2162 = vor.u32 %v2158, %v2161
      %v2163 = vrot.slane %v2162, 4
      %v2165 = vshll.u32 %v2024, 16
      %v2167 = vrot.slane %v2165, 5
      %v2168 = vsel %vm1012, %v2163, %v2167
      %v2169 = vshrl.u32 %v2024, 16
      %v2171 = vrot.slane %v2169, 4
      %v2172 = vor.u32 %v2171, %v2167
      %v2173 = vrot.slane %v2172, 4
      %v2175 = vshll.u32 %v2025, 16
      %v2177 = vrot.slane %v2175, 5
      %v2178 = vsel %vm1012, %v2173, %v2177
      %v2180 = vshrl.u32 %v2026, 16
      %v2182 = vrot.slane %v2180, 4
      %v2183 = vshll.u32 %v2026, 16
      %v2185 = vrot.slane %v2183, 5
      %v2186 = vor.u32 %v2182, %v2185
      %v2187 = vrot.slane %v2186, 4
      %v2189 = vshll.u32 %v2027, 16
      %v2191 = vrot.slane %v2189, 5
      %v2192 = vsel %vm1012, %v2187, %v2191
      %v2193 = vshrl.u32 %v2027, 16
      %v2195 = vrot.slane %v2193, 4
      %v2196 = vor.u32 %v2195, %v2191
      %v2197 = vrot.slane %v2196, 4
      %v2199 = vshll.u32 %v2028, 16
      %v2201 = vrot.slane %v2199, 5
      %v2202 = vsel %vm1012, %v2197, %v2201
      %v2204 = vshrl.u32 %v2029, 16
      %v2206 = vrot.slane %v2204, 4
      %v2207 = vshll.u32 %v2029, 16
      %v2209 = vrot.slane %v2207, 5
      %v2210 = vor.u32 %v2206, %v2209
      %v2211 = vrot.slane %v2210, 4
      %v2213 = vshll.u32 %v2030, 16
      %v2215 = vrot.slane %v2213, 5
      %v2216 = vsel %vm1012, %v2211, %v2215
      %v2217 = vshrl.u32 %v2030, 16
      %v2219 = vrot.slane %v2217, 4
      %v2220 = vor.u32 %v2219, %v2215
      %v2221 = vrot.slane %v2220, 4
      %v2223 = vshll.u32 %v2031, 16
      %v2225 = vrot.slane %v2223, 5
      %v2226 = vsel %vm1012, %v2221, %v2225
      %v2228 = vshrl.u32 %v2032, 16
      %v2230 = vrot.slane %v2228, 4
      %v2231 = vshll.u32 %v2032, 16
      %v2233 = vrot.slane %v2231, 5
      %v2234 = vor.u32 %v2230, %v2233
      %v2235 = vrot.slane %v2234, 4
      %v2237 = vshll.u32 %v2033, 16
      %v2239 = vrot.slane %v2237, 5
      %v2240 = vsel %vm1012, %v2235, %v2239
      %v2241 = vshrl.u32 %v2033, 16
      %v2243 = vrot.slane %v2241, 4
      %v2244 = vor.u32 %v2243, %v2239
      %v2245 = vrot.slane %v2244, 4
      %v2247 = vshll.u32 %v2034, 16
      %v2249 = vrot.slane %v2247, 5
      %v2250 = vsel %vm1012, %v2245, %v2249
      %v2252 = vshrl.u32 %v2035, 16
      %v2254 = vrot.slane %v2252, 4
      %v2255 = vshll.u32 %v2035, 16
      %v2257 = vrot.slane %v2255, 5
      %v2258 = vor.u32 %v2254, %v2257
      %v2259 = vrot.slane %v2258, 4
      %v2261 = vshll.u32 %v2036, 16
      %v2263 = vrot.slane %v2261, 5
      %v2264 = vsel %vm1012, %v2259, %v2263
      %v2265 = vshrl.u32 %v2036, 16
      %v2267 = vrot.slane %v2265, 4
      %v2268 = vor.u32 %v2267, %v2263
      %v2269 = vrot.slane %v2268, 4
      %v2271 = vshll.u32 %v2037, 16
      %v2273 = vrot.slane %v2271, 5
      %v2274 = vsel %vm1012, %v2269, %v2273
      %v2276 = vshrl.u32 %v2038, 16
      %v2278 = vrot.slane %v2276, 4
      %v2279 = vshll.u32 %v2038, 16
      %v2281 = vrot.slane %v2279, 5
      %v2282 = vor.u32 %v2278, %v2281
      %v2283 = vrot.slane %v2282, 4
      %v2285 = vshll.u32 %v2039, 16
      %v2287 = vrot.slane %v2285, 5
      %v2288 = vsel %vm1012, %v2283, %v2287
      %v2289 = vshrl.u32 %v2039, 16
      %v2291 = vrot.slane %v2289, 4
      %v2292 = vor.u32 %v2291, %v2287
      %v2293 = vrot.slane %v2292, 4
      %v2295 = vshll.u32 %v2040, 16
      %v2297 = vrot.slane %v2295, 5
      %v2298 = vsel %vm1012, %v2293, %v2297
      %v2300 = vshrl.u32 %v2041, 16
      %v2302 = vrot.slane %v2300, 4
      %v2303 = vshll.u32 %v2041, 16
      %v2305 = vrot.slane %v2303, 5
      %v2306 = vor.u32 %v2302, %v2305
      %v2307 = vrot.slane %v2306, 4
      %v2309 = vshll.u32 %v2042, 16
      %v2311 = vrot.slane %v2309, 5
      %v2312 = vsel %vm1012, %v2307, %v2311
      %v2313 = vshrl.u32 %v2042, 16
      %v2315 = vrot.slane %v2313, 4
      %v2316 = vor.u32 %v2315, %v2311
      %v2317 = vrot.slane %v2316, 4
      %v2319 = vshll.u32 %v2043, 16
      %v2321 = vrot.slane %v2319, 5
      %v2322 = vsel %vm1012, %v2317, %v2321
      %v2324 = vshrl.u32 %v2044, 16
      %v2326 = vrot.slane %v2324, 4
      %v2327 = vshll.u32 %v2044, 16
      %v2329 = vrot.slane %v2327, 5
      %v2330 = vor.u32 %v2326, %v2329
      %v2331 = vrot.slane %v2330, 4
      %v2333 = vshll.u32 %v2045, 16
      %v2335 = vrot.slane %v2333, 5
      %v2336 = vsel %vm1012, %v2331, %v2335
      %v2337 = vshrl.u32 %v2045, 16
      %v2339 = vrot.slane %v2337, 4
      %v2340 = vor.u32 %v2339, %v2335
      %v2341 = vrot.slane %v2340, 4
      %v2343 = vshll.u32 %v2046, 16
      %v2345 = vrot.slane %v2343, 5
      %v2346 = vsel %vm1012, %v2341, %v2345
      %v2348 = vshrl.u32 %v2047, 16
      %v2350 = vrot.slane %v2348, 4
      %v2351 = vshll.u32 %v2047, 16
      %v2353 = vrot.slane %v2351, 5
      %v2354 = vor.u32 %v2350, %v2353
      %v2355 = vrot.slane %v2354, 4
      %v2357 = vshll.u32 %v2048, 16
      %v2359 = vrot.slane %v2357, 5
      %v2360 = vsel %vm1012, %v2355, %v2359
      %v2361 = vshrl.u32 %v2048, 16
      %v2363 = vrot.slane %v2361, 4
      %v2364 = vor.u32 %v2363, %v2359
      %v2365 = vrot.slane %v2364, 4
      %v2367 = vshll.u32 %v2049, 16
      %v2369 = vrot.slane %v2367, 5
      %v2370 = vsel %vm1012, %v2365, %v2369
      %v2372 = vshrl.u32 %v2050, 16
      %v2374 = vrot.slane %v2372, 4
      %v2375 = vshll.u32 %v2050, 16
      %v2377 = vrot.slane %v2375, 5
      %v2378 = vor.u32 %v2374, %v2377
      %v2379 = vrot.slane %v2378, 4
      %v2381 = vshll.u32 %v2051, 16
      %v2383 = vrot.slane %v2381, 5
      %v2384 = vsel %vm1012, %v2379, %v2383
      %v2385 = vshrl.u32 %v2051, 16
      %v2387 = vrot.slane %v2385, 4
      %v2388 = vor.u32 %v2387, %v2383
      %v2389 = vrot.slane %v2388, 4
      %v2391 = vshll.u32 %v2052, 16
      %v2393 = vrot.slane %v2391, 5
      %v2394 = vsel %vm1012, %v2389, %v2393
      %v2396 = vshrl.u32 %v2053, 16
      %v2398 = vrot.slane %v2396, 4
      %v2399 = vshll.u32 %v2053, 16
      %v2401 = vrot.slane %v2399, 5
      %v2402 = vor.u32 %v2398, %v2401
      %v2403 = vrot.slane %v2402, 4
      %v2405 = vshll.u32 %v2054, 16
      %v2407 = vrot.slane %v2405, 5
      %v2408 = vsel %vm1012, %v2403, %v2407
      %v2409 = vshrl.u32 %v2054, 16
      %v2411 = vrot.slane %v2409, 4
      %v2412 = vor.u32 %v2411, %v2407
      %v2413 = vrot.slane %v2412, 4
      %v2415 = vshll.u32 %v2055, 16
      %v2417 = vrot.slane %v2415, 5
      %v2418 = vsel %vm1012, %v2413, %v2417
      %v2420 = vshrl.u32 %v2056, 16
      %v2422 = vrot.slane %v2420, 4
      %v2423 = vshll.u32 %v2056, 16
      %v2425 = vrot.slane %v2423, 5
      %v2426 = vor.u32 %v2422, %v2425
      %v2427 = vrot.slane %v2426, 4
      %v2429 = vshll.u32 %v2057, 16
      %v2431 = vrot.slane %v2429, 5
      %v2432 = vsel %vm1012, %v2427, %v2431
      %v2433 = vshrl.u32 %v2057, 16
      %v2435 = vrot.slane %v2433, 4
      %v2436 = vor.u32 %v2435, %v2431
      %v2437 = vrot.slane %v2436, 4
      %v2439 = vshll.u32 %v2058, 16
      %v2441 = vrot.slane %v2439, 5
      %v2442 = vsel %vm1012, %v2437, %v2441
      %v2443 = vunpack.c.l.b16 %v2072
      %v2444 = vunpack.c.l.b16 %v2082
      %v2445 = vunpack.c.l.b16 %v2096
      %v2446 = vunpack.c.l.b16 %v2106
      %v2447 = vunpack.c.l.b16 %v2120
      %v2448 = vunpack.c.l.b16 %v2130
      %v2449 = vunpack.c.l.b16 %v2144
      %v2450 = vunpack.c.l.b16 %v2154
      %v2451 = vunpack.c.l.b16 %v2168
      %v2452 = vunpack.c.l.b16 %v2178
      %v2453 = vunpack.c.l.b16 %v2192
      %v2454 = vunpack.c.l.b16 %v2202
      %v2455 = vunpack.c.l.b16 %v2216
      %v2456 = vunpack.c.l.b16 %v2226
      %v2457 = vunpack.c.l.b16 %v2240
      %v2458 = vunpack.c.l.b16 %v2250
      %v2459 = vunpack.c.l.b16 %v2264
      %v2460 = vunpack.c.l.b16 %v2274
      %v2461 = vunpack.c.l.b16 %v2288
      %v2462 = vunpack.c.l.b16 %v2298
      %v2463 = vunpack.c.l.b16 %v2312
      %v2464 = vunpack.c.l.b16 %v2322
      %v2465 = vunpack.c.l.b16 %v2336
      %v2466 = vunpack.c.l.b16 %v2346
      %v2467 = vunpack.c.l.b16 %v2360
      %v2468 = vunpack.c.l.b16 %v2370
      %v2469 = vunpack.c.l.b16 %v2384
      %v2470 = vunpack.c.l.b16 %v2394
      %v2471 = vunpack.c.l.b16 %v2408
      %v2472 = vunpack.c.l.b16 %v2418
      %v2473 = vunpack.c.l.b16 %v2432
      %v2474 = vunpack.c.l.b16 %v2442
      %v2475 = vpack.c.b16 %v2444, %v2443
      %v2476 = vpack.c.b16 %v2446, %v2445
      %v2477 = vpack.c.b16 %v2448, %v2447
      %v2478 = vpack.c.b16 %v2450, %v2449
      %v2479 = vpack.c.b16 %v2452, %v2451
      %v2480 = vpack.c.b16 %v2454, %v2453
      %v2481 = vpack.c.b16 %v2456, %v2455
      %v2482 = vpack.c.b16 %v2458, %v2457
      %v2483 = vpack.c.b16 %v2460, %v2459
      %v2484 = vpack.c.b16 %v2462, %v2461
      %v2485 = vpack.c.b16 %v2464, %v2463
      %v2486 = vpack.c.b16 %v2466, %v2465
      %v2487 = vpack.c.b16 %v2468, %v2467
      %v2488 = vpack.c.b16 %v2470, %v2469
      %v2489 = vpack.c.b16 %v2472, %v2471
      %v2490 = vpack.c.b16 %v2474, %v2473
      %2491 = vrot.lane.b32.xlu0 %v2475, 16
      %v2492 = vpop.permute.xlu0 %2491
      %2493 = vrot.lane.b32.xlu0 %v2476, 16
      %v2494 = vpop.permute.xlu0 %2493
      %2495 = vrot.lane.b32.xlu0 %v2477, 16
      %v2496 = vpop.permute.xlu0 %2495
      %2497 = vrot.lane.b32.xlu0 %v2478, 16
      %v2498 = vpop.permute.xlu0 %2497
      %2499 = vrot.lane.b32.xlu0 %v2479, 16
      %v2500 = vpop.permute.xlu0 %2499
      %2501 = vrot.lane.b32.xlu0 %v2480, 16
      %v2502 = vpop.permute.xlu0 %2501
      %2503 = vrot.lane.b32.xlu0 %v2481, 16
      %v2504 = vpop.permute.xlu0 %2503
      %2505 = vrot.lane.b32.xlu0 %v2482, 16
      %v2506 = vpop.permute.xlu0 %2505
      %2507 = vrot.lane.b32.xlu0 %v2483, 16
      %v2508 = vpop.permute.xlu0 %2507
      %2509 = vrot.lane.b32.xlu0 %v2484, 16
      %v2510 = vpop.permute.xlu0 %2509
      %2511 = vrot.lane.b32.xlu0 %v2485, 16
      %v2512 = vpop.permute.xlu0 %2511
      %2513 = vrot.lane.b32.xlu0 %v2486, 16
      %v2514 = vpop.permute.xlu0 %2513
      %2515 = vrot.lane.b32.xlu0 %v2487, 16
      %v2516 = vpop.permute.xlu0 %2515
      %2517 = vrot.lane.b32.xlu0 %v2488, 16
      %v2518 = vpop.permute.xlu0 %2517
      %2519 = vrot.lane.b32.xlu0 %v2489, 16
      %v2520 = vpop.permute.xlu0 %2519
      %2521 = vrot.lane.b32.xlu0 %v2490, 16
      %v2522 = vpop.permute.xlu0 %2521
      %vm2539 = vcmask 162944
      %2540 = vst.msk [vmem:[#allocation3] sm:$0xff] %vm2539, %v2492
      %2541 = vst.msk [vmem:[#allocation3 + $0x8] sm:$0xff] %vm2539, %v2494
      %2542 = vst.msk [vmem:[#allocation3 + $0x10] sm:$0xff] %vm2539, %v2496
      %2543 = vst.msk [vmem:[#allocation3 + $0x18] sm:$0xff] %vm2539, %v2498
      %2544 = vst.msk [vmem:[#allocation3 + $0x20] sm:$0xff] %vm2539, %v2500
      %2545 = vst.msk [vmem:[#allocation3 + $0x28] sm:$0xff] %vm2539, %v2502
      %2546 = vst.msk [vmem:[#allocation3 + $0x30] sm:$0xff] %vm2539, %v2504
      %2547 = vst.msk [vmem:[#allocation3 + $0x38] sm:$0xff] %vm2539, %v2506
      %2548 = vst.msk [vmem:[#allocation3 + $0x40] sm:$0xff] %vm2539, %v2508
      %2549 = vst.msk [vmem:[#allocation3 + $0x48] sm:$0xff] %vm2539, %v2510
      %2550 = vst.msk [vmem:[#allocation3 + $0x50] sm:$0xff] %vm2539, %v2512
      %2551 = vst.msk [vmem:[#allocation3 + $0x58] sm:$0xff] %vm2539, %v2514
      %2552 = vst.msk [vmem:[#allocation3 + $0x60] sm:$0xff] %vm2539, %v2516
      %2553 = vst.msk [vmem:[#allocation3 + $0x68] sm:$0xff] %vm2539, %v2518
      %2554 = vst.msk [vmem:[#allocation3 + $0x70] sm:$0xff] %vm2539, %v2520
      %2555 = vst.msk [vmem:[#allocation3 + $0x78] sm:$0xff] %vm2539, %v2522
      %v2556 = vld [vmem:[%s702] sm:$0xe]
      %v2557 = vld [vmem:[%s702 + $0x4] sm:$0xf]
      %v2558 = vld [vmem:[%s702 + $0x8] sm:$0x1]
      %v2559 = vld [vmem:[%s702 + $0xc] sm:$0xe]
      %v2560 = vld [vmem:[%s702 + $0x10] sm:$0xf]
      %v2561 = vld [vmem:[%s702 + $0x14] sm:$0x1]
      %v2562 = vld [vmem:[%s702 + $0x18] sm:$0xe]
      %v2563 = vld [vmem:[%s702 + $0x1c] sm:$0xf]
      %v2564 = vld [vmem:[%s702 + $0x20] sm:$0x1]
      %v2565 = vld [vmem:[%s702 + $0x24] sm:$0xe]
      %v2566 = vld [vmem:[%s702 + $0x28] sm:$0xf]
      %v2567 = vld [vmem:[%s702 + $0x2c] sm:$0x1]
      %v2568 = vld [vmem:[%s702 + $0x30] sm:$0xe]
      %v2569 = vld [vmem:[%s702 + $0x34] sm:$0xf]
      %v2570 = vld [vmem:[%s702 + $0x38] sm:$0x1]
      %v2571 = vld [vmem:[%s702 + $0x3c] sm:$0xe]
      %v2572 = vld [vmem:[%s702 + $0x40] sm:$0xf]
      %v2573 = vld [vmem:[%s702 + $0x44] sm:$0x1]
      %v2574 = vld [vmem:[%s702 + $0x48] sm:$0xe]
      %v2575 = vld [vmem:[%s702 + $0x4c] sm:$0xf]
      %v2576 = vld [vmem:[%s702 + $0x50] sm:$0x1]
      %v2577 = vld [vmem:[%s702 + $0x54] sm:$0xe]
      %v2578 = vld [vmem:[%s702 + $0x58] sm:$0xf]
      %v2579 = vld [vmem:[%s702 + $0x5c] sm:$0x1]
      %v2580 = vld [vmem:[%s702 + $0x60] sm:$0xe]
      %v2581 = vld [vmem:[%s702 + $0x64] sm:$0xf]
      %v2582 = vld [vmem:[%s702 + $0x68] sm:$0x1]
      %v2583 = vld [vmem:[%s702 + $0x6c] sm:$0xe]
      %v2584 = vld [vmem:[%s702 + $0x70] sm:$0xf]
      %v2585 = vld [vmem:[%s702 + $0x74] sm:$0x1]
      %v2586 = vld [vmem:[%s702 + $0x78] sm:$0xe]
      %v2587 = vld [vmem:[%s702 + $0x7c] sm:$0xf]
      %v2588 = vld [vmem:[%s702 + $0x80] sm:$0x1]
      %v2589 = vld [vmem:[%s702 + $0x84] sm:$0xe]
      %v2590 = vld [vmem:[%s702 + $0x88] sm:$0xf]
      %v2591 = vld [vmem:[%s702 + $0x8c] sm:$0x1]
      %v2592 = vld [vmem:[%s702 + $0x90] sm:$0xe]
      %v2593 = vld [vmem:[%s702 + $0x94] sm:$0xf]
      %v2594 = vld [vmem:[%s702 + $0x98] sm:$0x1]
      %v2595 = vld [vmem:[%s702 + $0x9c] sm:$0xe]
      %v2596 = vld [vmem:[%s702 + $0xa0] sm:$0xf]
      %v2597 = vld [vmem:[%s702 + $0xa4] sm:$0x1]
      %v2598 = vld [vmem:[%s702 + $0xa8] sm:$0xe]
      %v2599 = vld [vmem:[%s702 + $0xac] sm:$0xf]
      %v2600 = vld [vmem:[%s702 + $0xb0] sm:$0x1]
      %v2601 = vld [vmem:[%s702 + $0xb4] sm:$0xe]
      %v2602 = vld [vmem:[%s702 + $0xb8] sm:$0xf]
      %v2603 = vld [vmem:[%s702 + $0xbc] sm:$0x1]
      %v2652 = vrot.slane %v2556, 5
      %v2653 = vrot.slane %v2652, 4
      %v2654 = vrot.slane %v2557, 5
      %v2655 = vsel %vm1608, %v2653, %v2654
      %v2656 = vrot.slane %v2654, 4
      %v2657 = vrot.slane %v2558, 5
      %v2658 = vsel %vm1608, %v2656, %v2657
      %v2659 = vrot.slane %v2559, 5
      %v2660 = vrot.slane %v2659, 4
      %v2661 = vrot.slane %v2560, 5
      %v2662 = vsel %vm1608, %v2660, %v2661
      %v2663 = vrot.slane %v2661, 4
      %v2664 = vrot.slane %v2561, 5
      %v2665 = vsel %vm1608, %v2663, %v2664
      %v2666 = vrot.slane %v2562, 5
      %v2667 = vrot.slane %v2666, 4
      %v2668 = vrot.slane %v2563, 5
      %v2669 = vsel %vm1608, %v2667, %v2668
      %v2670 = vrot.slane %v2668, 4
      %v2671 = vrot.slane %v2564, 5
      %v2672 = vsel %vm1608, %v2670, %v2671
      %v2673 = vrot.slane %v2565, 5
      %v2674 = vrot.slane %v2673, 4
      %v2675 = vrot.slane %v2566, 5
      %v2676 = vsel %vm1608, %v2674, %v2675
      %v2677 = vrot.slane %v2675, 4
      %v2678 = vrot.slane %v2567, 5
      %v2679 = vsel %vm1608, %v2677, %v2678
      %v2680 = vrot.slane %v2568, 5
      %v2681 = vrot.slane %v2680, 4
      %v2682 = vrot.slane %v2569, 5
      %v2683 = vsel %vm1608, %v2681, %v2682
      %v2684 = vrot.slane %v2682, 4
      %v2685 = vrot.slane %v2570, 5
      %v2686 = vsel %vm1608, %v2684, %v2685
      %v2687 = vrot.slane %v2571, 5
      %v2688 = vrot.slane %v2687, 4
      %v2689 = vrot.slane %v2572, 5
      %v2690 = vsel %vm1608, %v2688, %v2689
      %v2691 = vrot.slane %v2689, 4
      %v2692 = vrot.slane %v2573, 5
      %v2693 = vsel %vm1608, %v2691, %v2692
      %v2694 = vrot.slane %v2574, 5
      %v2695 = vrot.slane %v2694, 4
      %v2696 = vrot.slane %v2575, 5
      %v2697 = vsel %vm1608, %v2695, %v2696
      %v2698 = vrot.slane %v2696, 4
      %v2699 = vrot.slane %v2576, 5
      %v2700 = vsel %vm1608, %v2698, %v2699
      %v2701 = vrot.slane %v2577, 5
      %v2702 = vrot.slane %v2701, 4
      %v2703 = vrot.slane %v2578, 5
      %v2704 = vsel %vm1608, %v2702, %v2703
      %v2705 = vrot.slane %v2703, 4
      %v2706 = vrot.slane %v2579, 5
      %v2707 = vsel %vm1608, %v2705, %v2706
      %v2708 = vrot.slane %v2580, 5
      %v2709 = vrot.slane %v2708, 4
      %v2710 = vrot.slane %v2581, 5
      %v2711 = vsel %vm1608, %v2709, %v2710
      %v2712 = vrot.slane %v2710, 4
      %v2713 = vrot.slane %v2582, 5
      %v2714 = vsel %vm1608, %v2712, %v2713
      %v2715 = vrot.slane %v2583, 5
      %v2716 = vrot.slane %v2715, 4
      %v2717 = vrot.slane %v2584, 5
      %v2718 = vsel %vm1608, %v2716, %v2717
      %v2719 = vrot.slane %v2717, 4
      %v2720 = vrot.slane %v2585, 5
      %v2721 = vsel %vm1608, %v2719, %v2720
      %v2722 = vrot.slane %v2586, 5
      %v2723 = vrot.slane %v2722, 4
      %v2724 = vrot.slane %v2587, 5
      %v2725 = vsel %vm1608, %v2723, %v2724
      %v2726 = vrot.slane %v2724, 4
      %v2727 = vrot.slane %v2588, 5
      %v2728 = vsel %vm1608, %v2726, %v2727
      %v2729 = vrot.slane %v2589, 5
      %v2730 = vrot.slane %v2729, 4
      %v2731 = vrot.slane %v2590, 5
      %v2732 = vsel %vm1608, %v2730, %v2731
      %v2733 = vrot.slane %v2731, 4
      %v2734 = vrot.slane %v2591, 5
      %v2735 = vsel %vm1608, %v2733, %v2734
      %v2736 = vrot.slane %v2592, 5
      %v2737 = vrot.slane %v2736, 4
      %v2738 = vrot.slane %v2593, 5
      %v2739 = vsel %vm1608, %v2737, %v2738
      %v2740 = vrot.slane %v2738, 4
      %v2741 = vrot.slane %v2594, 5
      %v2742 = vsel %vm1608, %v2740, %v2741
      %v2743 = vrot.slane %v2595, 5
      %v2744 = vrot.slane %v2743, 4
      %v2745 = vrot.slane %v2596, 5
      %v2746 = vsel %vm1608, %v2744, %v2745
      %v2747 = vrot.slane %v2745, 4
      %v2748 = vrot.slane %v2597, 5
      %v2749 = vsel %vm1608, %v2747, %v2748
      %v2750 = vrot.slane %v2598, 5
      %v2751 = vrot.slane %v2750, 4
      %v2752 = vrot.slane %v2599, 5
      %v2753 = vsel %vm1608, %v2751, %v2752
      %v2754 = vrot.slane %v2752, 4
      %v2755 = vrot.slane %v2600, 5
      %v2756 = vsel %vm1608, %v2754, %v2755
      %v2757 = vrot.slane %v2601, 5
      %v2758 = vrot.slane %v2757, 4
      %v2759 = vrot.slane %v2602, 5
      %v2760 = vsel %vm1608, %v2758, %v2759
      %v2761 = vrot.slane %v2759, 4
      %v2762 = vrot.slane %v2603, 5
      %v2763 = vsel %vm1608, %v2761, %v2762
      %v2764 = vunpack.c.l.b16 %v2655
      %v2765 = vunpack.c.l.b16 %v2658
      %v2766 = vunpack.c.l.b16 %v2662
      %v2767 = vunpack.c.l.b16 %v2665
      %v2768 = vunpack.c.l.b16 %v2669
      %v2769 = vunpack.c.l.b16 %v2672
      %v2770 = vunpack.c.l.b16 %v2676
      %v2771 = vunpack.c.l.b16 %v2679
      %v2772 = vunpack.c.l.b16 %v2683
      %v2773 = vunpack.c.l.b16 %v2686
      %v2774 = vunpack.c.l.b16 %v2690
      %v2775 = vunpack.c.l.b16 %v2693
      %v2776 = vunpack.c.l.b16 %v2697
      %v2777 = vunpack.c.l.b16 %v2700
      %v2778 = vunpack.c.l.b16 %v2704
      %v2779 = vunpack.c.l.b16 %v2707
      %v2780 = vunpack.c.l.b16 %v2711
      %v2781 = vunpack.c.l.b16 %v2714
      %v2782 = vunpack.c.l.b16 %v2718
      %v2783 = vunpack.c.l.b16 %v2721
      %v2784 = vunpack.c.l.b16 %v2725
      %v2785 = vunpack.c.l.b16 %v2728
      %v2786 = vunpack.c.l.b16 %v2732
      %v2787 = vunpack.c.l.b16 %v2735
      %v2788 = vunpack.c.l.b16 %v2739
      %v2789 = vunpack.c.l.b16 %v2742
      %v2790 = vunpack.c.l.b16 %v2746
      %v2791 = vunpack.c.l.b16 %v2749
      %v2792 = vunpack.c.l.b16 %v2753
      %v2793 = vunpack.c.l.b16 %v2756
      %v2794 = vunpack.c.l.b16 %v2760
      %v2795 = vunpack.c.l.b16 %v2763
      %v2796 = vpack.c.b16 %v2765, %v2764
      %v2797 = vpack.c.b16 %v2767, %v2766
      %v2798 = vpack.c.b16 %v2769, %v2768
      %v2799 = vpack.c.b16 %v2771, %v2770
      %v2800 = vpack.c.b16 %v2773, %v2772
      %v2801 = vpack.c.b16 %v2775, %v2774
      %v2802 = vpack.c.b16 %v2777, %v2776
      %v2803 = vpack.c.b16 %v2779, %v2778
      %v2804 = vpack.c.b16 %v2781, %v2780
      %v2805 = vpack.c.b16 %v2783, %v2782
      %v2806 = vpack.c.b16 %v2785, %v2784
      %v2807 = vpack.c.b16 %v2787, %v2786
      %v2808 = vpack.c.b16 %v2789, %v2788
      %v2809 = vpack.c.b16 %v2791, %v2790
      %v2810 = vpack.c.b16 %v2793, %v2792
      %v2811 = vpack.c.b16 %v2795, %v2794
      %2812 = vrot.lane.b32.xlu0 %v2796, 20
      %v2813 = vpop.permute.xlu0 %2812
      %2814 = vrot.lane.b32.xlu0 %v2797, 20
      %v2815 = vpop.permute.xlu0 %2814
      %2816 = vrot.lane.b32.xlu0 %v2798, 20
      %v2817 = vpop.permute.xlu0 %2816
      %2818 = vrot.lane.b32.xlu0 %v2799, 20
      %v2819 = vpop.permute.xlu0 %2818
      %2820 = vrot.lane.b32.xlu0 %v2800, 20
      %v2821 = vpop.permute.xlu0 %2820
      %2822 = vrot.lane.b32.xlu0 %v2801, 20
      %v2823 = vpop.permute.xlu0 %2822
      %2824 = vrot.lane.b32.xlu0 %v2802, 20
      %v2825 = vpop.permute.xlu0 %2824
      %2826 = vrot.lane.b32.xlu0 %v2803, 20
      %v2827 = vpop.permute.xlu0 %2826
      %2828 = vrot.lane.b32.xlu0 %v2804, 20
      %v2829 = vpop.permute.xlu0 %2828
      %2830 = vrot.lane.b32.xlu0 %v2805, 20
      %v2831 = vpop.permute.xlu0 %2830
      %2832 = vrot.lane.b32.xlu0 %v2806, 20
      %v2833 = vpop.permute.xlu0 %2832
      %2834 = vrot.lane.b32.xlu0 %v2807, 20
      %v2835 = vpop.permute.xlu0 %2834
      %2836 = vrot.lane.b32.xlu0 %v2808, 20
      %v2837 = vpop.permute.xlu0 %2836
      %2838 = vrot.lane.b32.xlu0 %v2809, 20
      %v2839 = vpop.permute.xlu0 %2838
      %2840 = vrot.lane.b32.xlu0 %v2810, 20
      %v2841 = vpop.permute.xlu0 %2840
      %2842 = vrot.lane.b32.xlu0 %v2811, 20
      %v2843 = vpop.permute.xlu0 %2842
      %vm2860 = vcmask 195744
      %2861 = vst.msk [vmem:[#allocation3] sm:$0xff] %vm2860, %v2813
      %2862 = vst.msk [vmem:[#allocation3 + $0x8] sm:$0xff] %vm2860, %v2815
      %2863 = vst.msk [vmem:[#allocation3 + $0x10] sm:$0xff] %vm2860, %v2817
      %2864 = vst.msk [vmem:[#allocation3 + $0x18] sm:$0xff] %vm2860, %v2819
      %2865 = vst.msk [vmem:[#allocation3 + $0x20] sm:$0xff] %vm2860, %v2821
      %2866 = vst.msk [vmem:[#allocation3 + $0x28] sm:$0xff] %vm2860, %v2823
      %2867 = vst.msk [vmem:[#allocation3 + $0x30] sm:$0xff] %vm2860, %v2825
      %2868 = vst.msk [vmem:[#allocation3 + $0x38] sm:$0xff] %vm2860, %v2827
      %2869 = vst.msk [vmem:[#allocation3 + $0x40] sm:$0xff] %vm2860, %v2829
      %2870 = vst.msk [vmem:[#allocation3 + $0x48] sm:$0xff] %vm2860, %v2831
      %2871 = vst.msk [vmem:[#allocation3 + $0x50] sm:$0xff] %vm2860, %v2833
      %2872 = vst.msk [vmem:[#allocation3 + $0x58] sm:$0xff] %vm2860, %v2835
      %2873 = vst.msk [vmem:[#allocation3 + $0x60] sm:$0xff] %vm2860, %v2837
      %2874 = vst.msk [vmem:[#allocation3 + $0x68] sm:$0xff] %vm2860, %v2839
      %2875 = vst.msk [vmem:[#allocation3 + $0x70] sm:$0xff] %vm2860, %v2841
      %2876 = vst.msk [vmem:[#allocation3 + $0x78] sm:$0xff] %vm2860, %v2843
      %s2877 = scalar_lea.vmem [#allocation2], 24
      %v2878 = vld [vmem:[%s2877] sm:$0xf]
      %v2879 = vld [vmem:[%s2877 + $0x4] sm:$0xf]
      %v2880 = vld [vmem:[%s2877 + $0xc] sm:$0xf]
      %v2881 = vld [vmem:[%s2877 + $0x10] sm:$0xf]
      %v2882 = vld [vmem:[%s2877 + $0x18] sm:$0xf]
      %v2883 = vld [vmem:[%s2877 + $0x1c] sm:$0xf]
      %v2884 = vld [vmem:[%s2877 + $0x24] sm:$0xf]
      %v2885 = vld [vmem:[%s2877 + $0x28] sm:$0xf]
      %v2886 = vld [vmem:[%s2877 + $0x30] sm:$0xf]
      %v2887 = vld [vmem:[%s2877 + $0x34] sm:$0xf]
      %v2888 = vld [vmem:[%s2877 + $0x3c] sm:$0xf]
      %v2889 = vld [vmem:[%s2877 + $0x40] sm:$0xf]
      %v2890 = vld [vmem:[%s2877 + $0x48] sm:$0xf]
      %v2891 = vld [vmem:[%s2877 + $0x4c] sm:$0xf]
      %v2892 = vld [vmem:[%s2877 + $0x54] sm:$0xf]
      %v2893 = vld [vmem:[%s2877 + $0x58] sm:$0xf]
      %v2894 = vld [vmem:[%s2877 + $0x60] sm:$0xf]
      %v2895 = vld [vmem:[%s2877 + $0x64] sm:$0xf]
      %v2896 = vld [vmem:[%s2877 + $0x6c] sm:$0xf]
      %v2897 = vld [vmem:[%s2877 + $0x70] sm:$0xf]
      %v2898 = vld [vmem:[%s2877 + $0x78] sm:$0xf]
      %v2899 = vld [vmem:[%s2877 + $0x7c] sm:$0xf]
      %v2900 = vld [vmem:[%s2877 + $0x84] sm:$0xf]
      %v2901 = vld [vmem:[%s2877 + $0x88] sm:$0xf]
      %v2902 = vld [vmem:[%s2877 + $0x90] sm:$0xf]
      %v2903 = vld [vmem:[%s2877 + $0x94] sm:$0xf]
      %v2904 = vld [vmem:[%s2877 + $0x9c] sm:$0xf]
      %v2905 = vld [vmem:[%s2877 + $0xa0] sm:$0xf]
      %v2906 = vld [vmem:[%s2877 + $0xa8] sm:$0xf]
      %v2907 = vld [vmem:[%s2877 + $0xac] sm:$0xf]
      %v2908 = vld [vmem:[%s2877 + $0xb4] sm:$0xf]
      %v2909 = vld [vmem:[%s2877 + $0xb8] sm:$0xf]
      %v2942 = vunpack.c.l.b16 %v2878
      %v2943 = vunpack.c.l.b16 %v2879
      %v2944 = vunpack.c.l.b16 %v2880
      %v2945 = vunpack.c.l.b16 %v2881
      %v2946 = vunpack.c.l.b16 %v2882
      %v2947 = vunpack.c.l.b16 %v2883
      %v2948 = vunpack.c.l.b16 %v2884
      %v2949 = vunpack.c.l.b16 %v2885
      %v2950 = vunpack.c.l.b16 %v2886
      %v2951 = vunpack.c.l.b16 %v2887
      %v2952 = vunpack.c.l.b16 %v2888
      %v2953 = vunpack.c.l.b16 %v2889
      %v2954 = vunpack.c.l.b16 %v2890
      %v2955 = vunpack.c.l.b16 %v2891
      %v2956 = vunpack.c.l.b16 %v2892
      %v2957 = vunpack.c.l.b16 %v2893
      %v2958 = vunpack.c.l.b16 %v2894
      %v2959 = vunpack.c.l.b16 %v2895
      %v2960 = vunpack.c.l.b16 %v2896
      %v2961 = vunpack.c.l.b16 %v2897
      %v2962 = vunpack.c.l.b16 %v2898
      %v2963 = vunpack.c.l.b16 %v2899
      %v2964 = vunpack.c.l.b16 %v2900
      %v2965 = vunpack.c.l.b16 %v2901
      %v2966 = vunpack.c.l.b16 %v2902
      %v2967 = vunpack.c.l.b16 %v2903
      %v2968 = vunpack.c.l.b16 %v2904
      %v2969 = vunpack.c.l.b16 %v2905
      %v2970 = vunpack.c.l.b16 %v2906
      %v2971 = vunpack.c.l.b16 %v2907
      %v2972 = vunpack.c.l.b16 %v2908
      %v2973 = vunpack.c.l.b16 %v2909
      %v2974 = vpack.c.b16 %v2943, %v2942
      %v2975 = vpack.c.b16 %v2945, %v2944
      %v2976 = vpack.c.b16 %v2947, %v2946
      %v2977 = vpack.c.b16 %v2949, %v2948
      %v2978 = vpack.c.b16 %v2951, %v2950
      %v2979 = vpack.c.b16 %v2953, %v2952
      %v2980 = vpack.c.b16 %v2955, %v2954
      %v2981 = vpack.c.b16 %v2957, %v2956
      %v2982 = vpack.c.b16 %v2959, %v2958
      %v2983 = vpack.c.b16 %v2961, %v2960
      %v2984 = vpack.c.b16 %v2963, %v2962
      %v2985 = vpack.c.b16 %v2965, %v2964
      %v2986 = vpack.c.b16 %v2967, %v2966
      %v2987 = vpack.c.b16 %v2969, %v2968
      %v2988 = vpack.c.b16 %v2971, %v2970
      %v2989 = vpack.c.b16 %v2973, %v2972
      %2990 = vrot.lane.b32.xlu0 %v2974, 24
      %v2991 = vpop.permute.xlu0 %2990
      %2992 = vrot.lane.b32.xlu0 %v2975, 24
      %v2993 = vpop.permute.xlu0 %2992
      %2994 = vrot.lane.b32.xlu0 %v2976, 24
      %v2995 = vpop.permute.xlu0 %2994
      %2996 = vrot.lane.b32.xlu0 %v2977, 24
      %v2997 = vpop.permute.xlu0 %2996
      %2998 = vrot.lane.b32.xlu0 %v2978, 24
      %v2999 = vpop.permute.xlu0 %2998
      %3000 = vrot.lane.b32.xlu0 %v2979, 24
      %v3001 = vpop.permute.xlu0 %3000
      %3002 = vrot.lane.b32.xlu0 %v2980, 24
      %v3003 = vpop.permute.xlu0 %3002
      %3004 = vrot.lane.b32.xlu0 %v2981, 24
      %v3005 = vpop.permute.xlu0 %3004
      %3006 = vrot.lane.b32.xlu0 %v2982, 24
      %v3007 = vpop.permute.xlu0 %3006
      %3008 = vrot.lane.b32.xlu0 %v2983, 24
      %v3009 = vpop.permute.xlu0 %3008
      %3010 = vrot.lane.b32.xlu0 %v2984, 24
      %v3011 = vpop.permute.xlu0 %3010
      %3012 = vrot.lane.b32.xlu0 %v2985, 24
      %v3013 = vpop.permute.xlu0 %3012
      %3014 = vrot.lane.b32.xlu0 %v2986, 24
      %v3015 = vpop.permute.xlu0 %3014
      %3016 = vrot.lane.b32.xlu0 %v2987, 24
      %v3017 = vpop.permute.xlu0 %3016
      %3018 = vrot.lane.b32.xlu0 %v2988, 24
      %v3019 = vpop.permute.xlu0 %3018
      %3020 = vrot.lane.b32.xlu0 %v2989, 24
      %v3021 = vpop.permute.xlu0 %3020
      %vm3038 = vcmask 228544
      %3039 = vst.msk [vmem:[#allocation3] sm:$0xff] %vm3038, %v2991
      %3040 = vst.msk [vmem:[#allocation3 + $0x8] sm:$0xff] %vm3038, %v2993
      %3041 = vst.msk [vmem:[#allocation3 + $0x10] sm:$0xff] %vm3038, %v2995
      %3042 = vst.msk [vmem:[#allocation3 + $0x18] sm:$0xff] %vm3038, %v2997
      %3043 = vst.msk [vmem:[#allocation3 + $0x20] sm:$0xff] %vm3038, %v2999
      %3044 = vst.msk [vmem:[#allocation3 + $0x28] sm:$0xff] %vm3038, %v3001
      %3045 = vst.msk [vmem:[#allocation3 + $0x30] sm:$0xff] %vm3038, %v3003
      %3046 = vst.msk [vmem:[#allocation3 + $0x38] sm:$0xff] %vm3038, %v3005
      %3047 = vst.msk [vmem:[#allocation3 + $0x40] sm:$0xff] %vm3038, %v3007
      %3048 = vst.msk [vmem:[#allocation3 + $0x48] sm:$0xff] %vm3038, %v3009
      %3049 = vst.msk [vmem:[#allocation3 + $0x50] sm:$0xff] %vm3038, %v3011
      %3050 = vst.msk [vmem:[#allocation3 + $0x58] sm:$0xff] %vm3038, %v3013
      %3051 = vst.msk [vmem:[#allocation3 + $0x60] sm:$0xff] %vm3038, %v3015
      %3052 = vst.msk [vmem:[#allocation3 + $0x68] sm:$0xff] %vm3038, %v3017
      %3053 = vst.msk [vmem:[#allocation3 + $0x70] sm:$0xff] %vm3038, %v3019
      %3054 = vst.msk [vmem:[#allocation3 + $0x78] sm:$0xff] %vm3038, %v3021
      %v3055 = vld [vmem:[%s2877] sm:$0xf]
      %v3056 = vld [vmem:[%s2877 + $0x4] sm:$0xf]
      %v3057 = vld [vmem:[%s2877 + $0x8] sm:$0x1]
      %v3058 = vld [vmem:[%s2877 + $0xc] sm:$0xf]
      %v3059 = vld [vmem:[%s2877 + $0x10] sm:$0xf]
      %v3060 = vld [vmem:[%s2877 + $0x14] sm:$0x1]
      %v3061 = vld [vmem:[%s2877 + $0x18] sm:$0xf]
      %v3062 = vld [vmem:[%s2877 + $0x1c] sm:$0xf]
      %v3063 = vld [vmem:[%s2877 + $0x20] sm:$0x1]
      %v3064 = vld [vmem:[%s2877 + $0x24] sm:$0xf]
      %v3065 = vld [vmem:[%s2877 + $0x28] sm:$0xf]
      %v3066 = vld [vmem:[%s2877 + $0x2c] sm:$0x1]
      %v3067 = vld [vmem:[%s2877 + $0x30] sm:$0xf]
      %v3068 = vld [vmem:[%s2877 + $0x34] sm:$0xf]
      %v3069 = vld [vmem:[%s2877 + $0x38] sm:$0x1]
      %v3070 = vld [vmem:[%s2877 + $0x3c] sm:$0xf]
      %v3071 = vld [vmem:[%s2877 + $0x40] sm:$0xf]
      %v3072 = vld [vmem:[%s2877 + $0x44] sm:$0x1]
      %v3073 = vld [vmem:[%s2877 + $0x48] sm:$0xf]
      %v3074 = vld [vmem:[%s2877 + $0x4c] sm:$0xf]
      %v3075 = vld [vmem:[%s2877 + $0x50] sm:$0x1]
      %v3076 = vld [vmem:[%s2877 + $0x54] sm:$0xf]
      %v3077 = vld [vmem:[%s2877 + $0x58] sm:$0xf]
      %v3078 = vld [vmem:[%s2877 + $0x5c] sm:$0x1]
      %v3079 = vld [vmem:[%s2877 + $0x60] sm:$0xf]
      %v3080 = vld [vmem:[%s2877 + $0x64] sm:$0xf]
      %v3081 = vld [vmem:[%s2877 + $0x68] sm:$0x1]
      %v3082 = vld [vmem:[%s2877 + $0x6c] sm:$0xf]
      %v3083 = vld [vmem:[%s2877 + $0x70] sm:$0xf]
      %v3084 = vld [vmem:[%s2877 + $0x74] sm:$0x1]
      %v3085 = vld [vmem:[%s2877 + $0x78] sm:$0xf]
      %v3086 = vld [vmem:[%s2877 + $0x7c] sm:$0xf]
      %v3087 = vld [vmem:[%s2877 + $0x80] sm:$0x1]
      %v3088 = vld [vmem:[%s2877 + $0x84] sm:$0xf]
      %v3089 = vld [vmem:[%s2877 + $0x88] sm:$0xf]
      %v3090 = vld [vmem:[%s2877 + $0x8c] sm:$0x1]
      %v3091 = vld [vmem:[%s2877 + $0x90] sm:$0xf]
      %v3092 = vld [vmem:[%s2877 + $0x94] sm:$0xf]
      %v3093 = vld [vmem:[%s2877 + $0x98] sm:$0x1]
      %v3094 = vld [vmem:[%s2877 + $0x9c] sm:$0xf]
      %v3095 = vld [vmem:[%s2877 + $0xa0] sm:$0xf]
      %v3096 = vld [vmem:[%s2877 + $0xa4] sm:$0x1]
      %v3097 = vld [vmem:[%s2877 + $0xa8] sm:$0xf]
      %v3098 = vld [vmem:[%s2877 + $0xac] sm:$0xf]
      %v3099 = vld [vmem:[%s2877 + $0xb0] sm:$0x1]
      %v3100 = vld [vmem:[%s2877 + $0xb4] sm:$0xf]
      %v3101 = vld [vmem:[%s2877 + $0xb8] sm:$0xf]
      %v3102 = vld [vmem:[%s2877 + $0xbc] sm:$0x1]
      %v3104 = vshrl.u32 %v3055, 16
      %v3106 = vrot.slane %v3104, 4
      %v3107 = vshll.u32 %v3055, 16
      %v3109 = vrot.slane %v3107, 5
      %v3110 = vor.u32 %v3106, %v3109
      %v3111 = vrot.slane %v3110, 4
      %v3113 = vshll.u32 %v3056, 16
      %v3115 = vrot.slane %v3113, 5
      %v3116 = vsel %vm1012, %v3111, %v3115
      %v3117 = vshrl.u32 %v3056, 16
      %v3119 = vrot.slane %v3117, 4
      %v3120 = vor.u32 %v3119, %v3115
      %v3121 = vrot.slane %v3120, 4
      %v3123 = vshll.u32 %v3057, 16
      %v3125 = vrot.slane %v3123, 5
      %v3126 = vsel %vm1012, %v3121, %v3125
      %v3128 = vshrl.u32 %v3058, 16
      %v3130 = vrot.slane %v3128, 4
      %v3131 = vshll.u32 %v3058, 16
      %v3133 = vrot.slane %v3131, 5
      %v3134 = vor.u32 %v3130, %v3133
      %v3135 = vrot.slane %v3134, 4
      %v3137 = vshll.u32 %v3059, 16
      %v3139 = vrot.slane %v3137, 5
      %v3140 = vsel %vm1012, %v3135, %v3139
      %v3141 = vshrl.u32 %v3059, 16
      %v3143 = vrot.slane %v3141, 4
      %v3144 = vor.u32 %v3143, %v3139
      %v3145 = vrot.slane %v3144, 4
      %v3147 = vshll.u32 %v3060, 16
      %v3149 = vrot.slane %v3147, 5
      %v3150 = vsel %vm1012, %v3145, %v3149
      %v3152 = vshrl.u32 %v3061, 16
      %v3154 = vrot.slane %v3152, 4
      %v3155 = vshll.u32 %v3061, 16
      %v3157 = vrot.slane %v3155, 5
      %v3158 = vor.u32 %v3154, %v3157
      %v3159 = vrot.slane %v3158, 4
      %v3161 = vshll.u32 %v3062, 16
      %v3163 = vrot.slane %v3161, 5
      %v3164 = vsel %vm1012, %v3159, %v3163
      %v3165 = vshrl.u32 %v3062, 16
      %v3167 = vrot.slane %v3165, 4
      %v3168 = vor.u32 %v3167, %v3163
      %v3169 = vrot.slane %v3168, 4
      %v3171 = vshll.u32 %v3063, 16
      %v3173 = vrot.slane %v3171, 5
      %v3174 = vsel %vm1012, %v3169, %v3173
      %v3176 = vshrl.u32 %v3064, 16
      %v3178 = vrot.slane %v3176, 4
      %v3179 = vshll.u32 %v3064, 16
      %v3181 = vrot.slane %v3179, 5
      %v3182 = vor.u32 %v3178, %v3181
      %v3183 = vrot.slane %v3182, 4
      %v3185 = vshll.u32 %v3065, 16
      %v3187 = vrot.slane %v3185, 5
      %v3188 = vsel %vm1012, %v3183, %v3187
      %v3189 = vshrl.u32 %v3065, 16
      %v3191 = vrot.slane %v3189, 4
      %v3192 = vor.u32 %v3191, %v3187
      %v3193 = vrot.slane %v3192, 4
      %v3195 = vshll.u32 %v3066, 16
      %v3197 = vrot.slane %v3195, 5
      %v3198 = vsel %vm1012, %v3193, %v3197
      %v3200 = vshrl.u32 %v3067, 16
      %v3202 = vrot.slane %v3200, 4
      %v3203 = vshll.u32 %v3067, 16
      %v3205 = vrot.slane %v3203, 5
      %v3206 = vor.u32 %v3202, %v3205
      %v3207 = vrot.slane %v3206, 4
      %v3209 = vshll.u32 %v3068, 16
      %v3211 = vrot.slane %v3209, 5
      %v3212 = vsel %vm1012, %v3207, %v3211
      %v3213 = vshrl.u32 %v3068, 16
      %v3215 = vrot.slane %v3213, 4
      %v3216 = vor.u32 %v3215, %v3211
      %v3217 = vrot.slane %v3216, 4
      %v3219 = vshll.u32 %v3069, 16
      %v3221 = vrot.slane %v3219, 5
      %v3222 = vsel %vm1012, %v3217, %v3221
      %v3224 = vshrl.u32 %v3070, 16
      %v3226 = vrot.slane %v3224, 4
      %v3227 = vshll.u32 %v3070, 16
      %v3229 = vrot.slane %v3227, 5
      %v3230 = vor.u32 %v3226, %v3229
      %v3231 = vrot.slane %v3230, 4
      %v3233 = vshll.u32 %v3071, 16
      %v3235 = vrot.slane %v3233, 5
      %v3236 = vsel %vm1012, %v3231, %v3235
      %v3237 = vshrl.u32 %v3071, 16
      %v3239 = vrot.slane %v3237, 4
      %v3240 = vor.u32 %v3239, %v3235
      %v3241 = vrot.slane %v3240, 4
      %v3243 = vshll.u32 %v3072, 16
      %v3245 = vrot.slane %v3243, 5
      %v3246 = vsel %vm1012, %v3241, %v3245
      %v3248 = vshrl.u32 %v3073, 16
      %v3250 = vrot.slane %v3248, 4
      %v3251 = vshll.u32 %v3073, 16
      %v3253 = vrot.slane %v3251, 5
      %v3254 = vor.u32 %v3250, %v3253
      %v3255 = vrot.slane %v3254, 4
      %v3257 = vshll.u32 %v3074, 16
      %v3259 = vrot.slane %v3257, 5
      %v3260 = vsel %vm1012, %v3255, %v3259
      %v3261 = vshrl.u32 %v3074, 16
      %v3263 = vrot.slane %v3261, 4
      %v3264 = vor.u32 %v3263, %v3259
      %v3265 = vrot.slane %v3264, 4
      %v3267 = vshll.u32 %v3075, 16
      %v3269 = vrot.slane %v3267, 5
      %v3270 = vsel %vm1012, %v3265, %v3269
      %v3272 = vshrl.u32 %v3076, 16
      %v3274 = vrot.slane %v3272, 4
      %v3275 = vshll.u32 %v3076, 16
      %v3277 = vrot.slane %v3275, 5
      %v3278 = vor.u32 %v3274, %v3277
      %v3279 = vrot.slane %v3278, 4
      %v3281 = vshll.u32 %v3077, 16
      %v3283 = vrot.slane %v3281, 5
      %v3284 = vsel %vm1012, %v3279, %v3283
      %v3285 = vshrl.u32 %v3077, 16
      %v3287 = vrot.slane %v3285, 4
      %v3288 = vor.u32 %v3287, %v3283
      %v3289 = vrot.slane %v3288, 4
      %v3291 = vshll.u32 %v3078, 16
      %v3293 = vrot.slane %v3291, 5
      %v3294 = vsel %vm1012, %v3289, %v3293
      %v3296 = vshrl.u32 %v3079, 16
      %v3298 = vrot.slane %v3296, 4
      %v3299 = vshll.u32 %v3079, 16
      %v3301 = vrot.slane %v3299, 5
      %v3302 = vor.u32 %v3298, %v3301
      %v3303 = vrot.slane %v3302, 4
      %v3305 = vshll.u32 %v3080, 16
      %v3307 = vrot.slane %v3305, 5
      %v3308 = vsel %vm1012, %v3303, %v3307
      %v3309 = vshrl.u32 %v3080, 16
      %v3311 = vrot.slane %v3309, 4
      %v3312 = vor.u32 %v3311, %v3307
      %v3313 = vrot.slane %v3312, 4
      %v3315 = vshll.u32 %v3081, 16
      %v3317 = vrot.slane %v3315, 5
      %v3318 = vsel %vm1012, %v3313, %v3317
      %v3320 = vshrl.u32 %v3082, 16
      %v3322 = vrot.slane %v3320, 4
      %v3323 = vshll.u32 %v3082, 16
      %v3325 = vrot.slane %v3323, 5
      %v3326 = vor.u32 %v3322, %v3325
      %v3327 = vrot.slane %v3326, 4
      %v3329 = vshll.u32 %v3083, 16
      %v3331 = vrot.slane %v3329, 5
      %v3332 = vsel %vm1012, %v3327, %v3331
      %v3333 = vshrl.u32 %v3083, 16
      %v3335 = vrot.slane %v3333, 4
      %v3336 = vor.u32 %v3335, %v3331
      %v3337 = vrot.slane %v3336, 4
      %v3339 = vshll.u32 %v3084, 16
      %v3341 = vrot.slane %v3339, 5
      %v3342 = vsel %vm1012, %v3337, %v3341
      %v3344 = vshrl.u32 %v3085, 16
      %v3346 = vrot.slane %v3344, 4
      %v3347 = vshll.u32 %v3085, 16
      %v3349 = vrot.slane %v3347, 5
      %v3350 = vor.u32 %v3346, %v3349
      %v3351 = vrot.slane %v3350, 4
      %v3353 = vshll.u32 %v3086, 16
      %v3355 = vrot.slane %v3353, 5
      %v3356 = vsel %vm1012, %v3351, %v3355
      %v3357 = vshrl.u32 %v3086, 16
      %v3359 = vrot.slane %v3357, 4
      %v3360 = vor.u32 %v3359, %v3355
      %v3361 = vrot.slane %v3360, 4
      %v3363 = vshll.u32 %v3087, 16
      %v3365 = vrot.slane %v3363, 5
      %v3366 = vsel %vm1012, %v3361, %v3365
      %v3368 = vshrl.u32 %v3088, 16
      %v3370 = vrot.slane %v3368, 4
      %v3371 = vshll.u32 %v3088, 16
      %v3373 = vrot.slane %v3371, 5
      %v3374 = vor.u32 %v3370, %v3373
      %v3375 = vrot.slane %v3374, 4
      %v3377 = vshll.u32 %v3089, 16
      %v3379 = vrot.slane %v3377, 5
      %v3380 = vsel %vm1012, %v3375, %v3379
      %v3381 = vshrl.u32 %v3089, 16
      %v3383 = vrot.slane %v3381, 4
      %v3384 = vor.u32 %v3383, %v3379
      %v3385 = vrot.slane %v3384, 4
      %v3387 = vshll.u32 %v3090, 16
      %v3389 = vrot.slane %v3387, 5
      %v3390 = vsel %vm1012, %v3385, %v3389
      %v3392 = vshrl.u32 %v3091, 16
      %v3394 = vrot.slane %v3392, 4
      %v3395 = vshll.u32 %v3091, 16
      %v3397 = vrot.slane %v3395, 5
      %v3398 = vor.u32 %v3394, %v3397
      %v3399 = vrot.slane %v3398, 4
      %v3401 = vshll.u32 %v3092, 16
      %v3403 = vrot.slane %v3401, 5
      %v3404 = vsel %vm1012, %v3399, %v3403
      %v3405 = vshrl.u32 %v3092, 16
      %v3407 = vrot.slane %v3405, 4
      %v3408 = vor.u32 %v3407, %v3403
      %v3409 = vrot.slane %v3408, 4
      %v3411 = vshll.u32 %v3093, 16
      %v3413 = vrot.slane %v3411, 5
      %v3414 = vsel %vm1012, %v3409, %v3413
      %v3416 = vshrl.u32 %v3094, 16
      %v3418 = vrot.slane %v3416, 4
      %v3419 = vshll.u32 %v3094, 16
      %v3421 = vrot.slane %v3419, 5
      %v3422 = vor.u32 %v3418, %v3421
      %v3423 = vrot.slane %v3422, 4
      %v3425 = vshll.u32 %v3095, 16
      %v3427 = vrot.slane %v3425, 5
      %v3428 = vsel %vm1012, %v3423, %v3427
      %v3429 = vshrl.u32 %v3095, 16
      %v3431 = vrot.slane %v3429, 4
      %v3432 = vor.u32 %v3431, %v3427
      %v3433 = vrot.slane %v3432, 4
      %v3435 = vshll.u32 %v3096, 16
      %v3437 = vrot.slane %v3435, 5
      %v3438 = vsel %vm1012, %v3433, %v3437
      %v3440 = vshrl.u32 %v3097, 16
      %v3442 = vrot.slane %v3440, 4
      %v3443 = vshll.u32 %v3097, 16
      %v3445 = vrot.slane %v3443, 5
      %v3446 = vor.u32 %v3442, %v3445
      %v3447 = vrot.slane %v3446, 4
      %v3449 = vshll.u32 %v3098, 16
      %v3451 = vrot.slane %v3449, 5
      %v3452 = vsel %vm1012, %v3447, %v3451
      %v3453 = vshrl.u32 %v3098, 16
      %v3455 = vrot.slane %v3453, 4
      %v3456 = vor.u32 %v3455, %v3451
      %v3457 = vrot.slane %v3456, 4
      %v3459 = vshll.u32 %v3099, 16
      %v3461 = vrot.slane %v3459, 5
      %v3462 = vsel %vm1012, %v3457, %v3461
      %v3464 = vshrl.u32 %v3100, 16
      %v3466 = vrot.slane %v3464, 4
      %v3467 = vshll.u32 %v3100, 16
      %v3469 = vrot.slane %v3467, 5
      %v3470 = vor.u32 %v3466, %v3469
      %v3471 = vrot.slane %v3470, 4
      %v3473 = vshll.u32 %v3101, 16
      %v3475 = vrot.slane %v3473, 5
      %v3476 = vsel %vm1012, %v3471, %v3475
      %v3477 = vshrl.u32 %v3101, 16
      %v3479 = vrot.slane %v3477, 4
      %v3480 = vor.u32 %v3479, %v3475
      %v3481 = vrot.slane %v3480, 4
      %v3483 = vshll.u32 %v3102, 16
      %v3485 = vrot.slane %v3483, 5
      %v3486 = vsel %vm1012, %v3481, %v3485
      %v3487 = vunpack.c.l.b16 %v3116
      %v3488 = vunpack.c.l.b16 %v3126
      %v3489 = vunpack.c.l.b16 %v3140
      %v3490 = vunpack.c.l.b16 %v3150
      %v3491 = vunpack.c.l.b16 %v3164
      %v3492 = vunpack.c.l.b16 %v3174
      %v3493 = vunpack.c.l.b16 %v3188
      %v3494 = vunpack.c.l.b16 %v3198
      %v3495 = vunpack.c.l.b16 %v3212
      %v3496 = vunpack.c.l.b16 %v3222
      %v3497 = vunpack.c.l.b16 %v3236
      %v3498 = vunpack.c.l.b16 %v3246
      %v3499 = vunpack.c.l.b16 %v3260
      %v3500 = vunpack.c.l.b16 %v3270
      %v3501 = vunpack.c.l.b16 %v3284
      %v3502 = vunpack.c.l.b16 %v3294
      %v3503 = vunpack.c.l.b16 %v3308
      %v3504 = vunpack.c.l.b16 %v3318
      %v3505 = vunpack.c.l.b16 %v3332
      %v3506 = vunpack.c.l.b16 %v3342
      %v3507 = vunpack.c.l.b16 %v3356
      %v3508 = vunpack.c.l.b16 %v3366
      %v3509 = vunpack.c.l.b16 %v3380
      %v3510 = vunpack.c.l.b16 %v3390
      %v3511 = vunpack.c.l.b16 %v3404
      %v3512 = vunpack.c.l.b16 %v3414
      %v3513 = vunpack.c.l.b16 %v3428
      %v3514 = vunpack.c.l.b16 %v3438
      %v3515 = vunpack.c.l.b16 %v3452
      %v3516 = vunpack.c.l.b16 %v3462
      %v3517 = vunpack.c.l.b16 %v3476
      %v3518 = vunpack.c.l.b16 %v3486
      %v3519 = vpack.c.b16 %v3488, %v3487
      %v3520 = vpack.c.b16 %v3490, %v3489
      %v3521 = vpack.c.b16 %v3492, %v3491
      %v3522 = vpack.c.b16 %v3494, %v3493
      %v3523 = vpack.c.b16 %v3496, %v3495
      %v3524 = vpack.c.b16 %v3498, %v3497
      %v3525 = vpack.c.b16 %v3500, %v3499
      %v3526 = vpack.c.b16 %v3502, %v3501
      %v3527 = vpack.c.b16 %v3504, %v3503
      %v3528 = vpack.c.b16 %v3506, %v3505
      %v3529 = vpack.c.b16 %v3508, %v3507
      %v3530 = vpack.c.b16 %v3510, %v3509
      %v3531 = vpack.c.b16 %v3512, %v3511
      %v3532 = vpack.c.b16 %v3514, %v3513
      %v3533 = vpack.c.b16 %v3516, %v3515
      %v3534 = vpack.c.b16 %v3518, %v3517
      %3535 = vrot.lane.b32.xlu0 %v3519, 28
      %v3536 = vpop.permute.xlu0 %3535
      %3537 = vrot.lane.b32.xlu0 %v3520, 28
      %v3538 = vpop.permute.xlu0 %3537
      %3539 = vrot.lane.b32.xlu0 %v3521, 28
      %v3540 = vpop.permute.xlu0 %3539
      %3541 = vrot.lane.b32.xlu0 %v3522, 28
      %v3542 = vpop.permute.xlu0 %3541
      %3543 = vrot.lane.b32.xlu0 %v3523, 28
      %v3544 = vpop.permute.xlu0 %3543
      %3545 = vrot.lane.b32.xlu0 %v3524, 28
      %v3546 = vpop.permute.xlu0 %3545
      %3547 = vrot.lane.b32.xlu0 %v3525, 28
      %v3548 = vpop.permute.xlu0 %3547
      %3549 = vrot.lane.b32.xlu0 %v3526, 28
      %v3550 = vpop.permute.xlu0 %3549
      %3551 = vrot.lane.b32.xlu0 %v3527, 28
      %v3552 = vpop.permute.xlu0 %3551
      %3553 = vrot.lane.b32.xlu0 %v3528, 28
      %v3554 = vpop.permute.xlu0 %3553
      %3555 = vrot.lane.b32.xlu0 %v3529, 28
      %v3556 = vpop.permute.xlu0 %3555
      %3557 = vrot.lane.b32.xlu0 %v3530, 28
      %v3558 = vpop.permute.xlu0 %3557
      %3559 = vrot.lane.b32.xlu0 %v3531, 28
      %v3560 = vpop.permute.xlu0 %3559
      %3561 = vrot.lane.b32.xlu0 %v3532, 28
      %v3562 = vpop.permute.xlu0 %3561
      %3563 = vrot.lane.b32.xlu0 %v3533, 28
      %v3564 = vpop.permute.xlu0 %3563
      %3565 = vrot.lane.b32.xlu0 %v3534, 28
      %v3566 = vpop.permute.xlu0 %3565
      %vm3583 = vcmask 261344
      %3584 = vst.msk [vmem:[#allocation3] sm:$0xff] %vm3583, %v3536
      %3585 = vst.msk [vmem:[#allocation3 + $0x8] sm:$0xff] %vm3583, %v3538
      %3586 = vst.msk [vmem:[#allocation3 + $0x10] sm:$0xff] %vm3583, %v3540
      %3587 = vst.msk [vmem:[#allocation3 + $0x18] sm:$0xff] %vm3583, %v3542
      %3588 = vst.msk [vmem:[#allocation3 + $0x20] sm:$0xff] %vm3583, %v3544
      %3589 = vst.msk [vmem:[#allocation3 + $0x28] sm:$0xff] %vm3583, %v3546
      %3590 = vst.msk [vmem:[#allocation3 + $0x30] sm:$0xff] %vm3583, %v3548
      %3591 = vst.msk [vmem:[#allocation3 + $0x38] sm:$0xff] %vm3583, %v3550
      %3592 = vst.msk [vmem:[#allocation3 + $0x40] sm:$0xff] %vm3583, %v3552
      %3593 = vst.msk [vmem:[#allocation3 + $0x48] sm:$0xff] %vm3583, %v3554
      %3594 = vst.msk [vmem:[#allocation3 + $0x50] sm:$0xff] %vm3583, %v3556
      %3595 = vst.msk [vmem:[#allocation3 + $0x58] sm:$0xff] %vm3583, %v3558
      %3596 = vst.msk [vmem:[#allocation3 + $0x60] sm:$0xff] %vm3583, %v3560
      %3597 = vst.msk [vmem:[#allocation3 + $0x68] sm:$0xff] %vm3583, %v3562
      %3598 = vst.msk [vmem:[#allocation3 + $0x70] sm:$0xff] %vm3583, %v3564
      %3599 = vst.msk [vmem:[#allocation3 + $0x78] sm:$0xff] %vm3583, %v3566
      %v3600 = vld [vmem:[%s2877] sm:$0xe]
      %v3601 = vld [vmem:[%s2877 + $0x4] sm:$0xf]
      %v3602 = vld [vmem:[%s2877 + $0x8] sm:$0x1]
      %v3603 = vld [vmem:[%s2877 + $0xc] sm:$0xe]
      %v3604 = vld [vmem:[%s2877 + $0x10] sm:$0xf]
      %v3605 = vld [vmem:[%s2877 + $0x14] sm:$0x1]
      %v3606 = vld [vmem:[%s2877 + $0x18] sm:$0xe]
      %v3607 = vld [vmem:[%s2877 + $0x1c] sm:$0xf]
      %v3608 = vld [vmem:[%s2877 + $0x20] sm:$0x1]
      %v3609 = vld [vmem:[%s2877 + $0x24] sm:$0xe]
      %v3610 = vld [vmem:[%s2877 + $0x28] sm:$0xf]
      %v3611 = vld [vmem:[%s2877 + $0x2c] sm:$0x1]
      %v3612 = vld [vmem:[%s2877 + $0x30] sm:$0xe]
      %v3613 = vld [vmem:[%s2877 + $0x34] sm:$0xf]
      %v3614 = vld [vmem:[%s2877 + $0x38] sm:$0x1]
      %v3615 = vld [vmem:[%s2877 + $0x3c] sm:$0xe]
      %v3616 = vld [vmem:[%s2877 + $0x40] sm:$0xf]
      %v3617 = vld [vmem:[%s2877 + $0x44] sm:$0x1]
      %v3618 = vld [vmem:[%s2877 + $0x48] sm:$0xe]
      %v3619 = vld [vmem:[%s2877 + $0x4c] sm:$0xf]
      %v3620 = vld [vmem:[%s2877 + $0x50] sm:$0x1]
      %v3621 = vld [vmem:[%s2877 + $0x54] sm:$0xe]
      %v3622 = vld [vmem:[%s2877 + $0x58] sm:$0xf]
      %v3623 = vld [vmem:[%s2877 + $0x5c] sm:$0x1]
      %v3624 = vld [vmem:[%s2877 + $0x60] sm:$0xe]
      %v3625 = vld [vmem:[%s2877 + $0x64] sm:$0xf]
      %v3626 = vld [vmem:[%s2877 + $0x68] sm:$0x1]
      %v3627 = vld [vmem:[%s2877 + $0x6c] sm:$0xe]
      %v3628 = vld [vmem:[%s2877 + $0x70] sm:$0xf]
      %v3629 = vld [vmem:[%s2877 + $0x74] sm:$0x1]
      %v3630 = vld [vmem:[%s2877 + $0x78] sm:$0xe]
      %v3631 = vld [vmem:[%s2877 + $0x7c] sm:$0xf]
      %v3632 = vld [vmem:[%s2877 + $0x80] sm:$0x1]
      %v3633 = vld [vmem:[%s2877 + $0x84] sm:$0xe]
      %v3634 = vld [vmem:[%s2877 + $0x88] sm:$0xf]
      %v3635 = vld [vmem:[%s2877 + $0x8c] sm:$0x1]
      %v3636 = vld [vmem:[%s2877 + $0x90] sm:$0xe]
      %v3637 = vld [vmem:[%s2877 + $0x94] sm:$0xf]
      %v3638 = vld [vmem:[%s2877 + $0x98] sm:$0x1]
      %v3639 = vld [vmem:[%s2877 + $0x9c] sm:$0xe]
      %v3640 = vld [vmem:[%s2877 + $0xa0] sm:$0xf]
      %v3641 = vld [vmem:[%s2877 + $0xa4] sm:$0x1]
      %v3642 = vld [vmem:[%s2877 + $0xa8] sm:$0xe]
      %v3643 = vld [vmem:[%s2877 + $0xac] sm:$0xf]
      %v3644 = vld [vmem:[%s2877 + $0xb0] sm:$0x1]
      %v3645 = vld [vmem:[%s2877 + $0xb4] sm:$0xe]
      %v3646 = vld [vmem:[%s2877 + $0xb8] sm:$0xf]
      %v3647 = vld [vmem:[%s2877 + $0xbc] sm:$0x1]
      %v3696 = vrot.slane %v3600, 5
      %v3697 = vrot.slane %v3696, 4
      %v3698 = vrot.slane %v3601, 5
      %v3699 = vsel %vm1608, %v3697, %v3698
      %v3700 = vrot.slane %v3698, 4
      %v3701 = vrot.slane %v3602, 5
      %v3702 = vsel %vm1608, %v3700, %v3701
      %v3703 = vrot.slane %v3603, 5
      %v3704 = vrot.slane %v3703, 4
      %v3705 = vrot.slane %v3604, 5
      %v3706 = vsel %vm1608, %v3704, %v3705
      %v3707 = vrot.slane %v3705, 4
      %v3708 = vrot.slane %v3605, 5
      %v3709 = vsel %vm1608, %v3707, %v3708
      %v3710 = vrot.slane %v3606, 5
      %v3711 = vrot.slane %v3710, 4
      %v3712 = vrot.slane %v3607, 5
      %v3713 = vsel %vm1608, %v3711, %v3712
      %v3714 = vrot.slane %v3712, 4
      %v3715 = vrot.slane %v3608, 5
      %v3716 = vsel %vm1608, %v3714, %v3715
      %v3717 = vrot.slane %v3609, 5
      %v3718 = vrot.slane %v3717, 4
      %v3719 = vrot.slane %v3610, 5
      %v3720 = vsel %vm1608, %v3718, %v3719
      %v3721 = vrot.slane %v3719, 4
      %v3722 = vrot.slane %v3611, 5
      %v3723 = vsel %vm1608, %v3721, %v3722
      %v3724 = vrot.slane %v3612, 5
      %v3725 = vrot.slane %v3724, 4
      %v3726 = vrot.slane %v3613, 5
      %v3727 = vsel %vm1608, %v3725, %v3726
      %v3728 = vrot.slane %v3726, 4
      %v3729 = vrot.slane %v3614, 5
      %v3730 = vsel %vm1608, %v3728, %v3729
      %v3731 = vrot.slane %v3615, 5
      %v3732 = vrot.slane %v3731, 4
      %v3733 = vrot.slane %v3616, 5
      %v3734 = vsel %vm1608, %v3732, %v3733
      %v3735 = vrot.slane %v3733, 4
      %v3736 = vrot.slane %v3617, 5
      %v3737 = vsel %vm1608, %v3735, %v3736
      %v3738 = vrot.slane %v3618, 5
      %v3739 = vrot.slane %v3738, 4
      %v3740 = vrot.slane %v3619, 5
      %v3741 = vsel %vm1608, %v3739, %v3740
      %v3742 = vrot.slane %v3740, 4
      %v3743 = vrot.slane %v3620, 5
      %v3744 = vsel %vm1608, %v3742, %v3743
      %v3745 = vrot.slane %v3621, 5
      %v3746 = vrot.slane %v3745, 4
      %v3747 = vrot.slane %v3622, 5
      %v3748 = vsel %vm1608, %v3746, %v3747
      %v3749 = vrot.slane %v3747, 4
      %v3750 = vrot.slane %v3623, 5
      %v3751 = vsel %vm1608, %v3749, %v3750
      %v3752 = vrot.slane %v3624, 5
      %v3753 = vrot.slane %v3752, 4
      %v3754 = vrot.slane %v3625, 5
      %v3755 = vsel %vm1608, %v3753, %v3754
      %v3756 = vrot.slane %v3754, 4
      %v3757 = vrot.slane %v3626, 5
      %v3758 = vsel %vm1608, %v3756, %v3757
      %v3759 = vrot.slane %v3627, 5
      %v3760 = vrot.slane %v3759, 4
      %v3761 = vrot.slane %v3628, 5
      %v3762 = vsel %vm1608, %v3760, %v3761
      %v3763 = vrot.slane %v3761, 4
      %v3764 = vrot.slane %v3629, 5
      %v3765 = vsel %vm1608, %v3763, %v3764
      %v3766 = vrot.slane %v3630, 5
      %v3767 = vrot.slane %v3766, 4
      %v3768 = vrot.slane %v3631, 5
      %v3769 = vsel %vm1608, %v3767, %v3768
      %v3770 = vrot.slane %v3768, 4
      %v3771 = vrot.slane %v3632, 5
      %v3772 = vsel %vm1608, %v3770, %v3771
      %v3773 = vrot.slane %v3633, 5
      %v3774 = vrot.slane %v3773, 4
      %v3775 = vrot.slane %v3634, 5
      %v3776 = vsel %vm1608, %v3774, %v3775
      %v3777 = vrot.slane %v3775, 4
      %v3778 = vrot.slane %v3635, 5
      %v3779 = vsel %vm1608, %v3777, %v3778
      %v3780 = vrot.slane %v3636, 5
      %v3781 = vrot.slane %v3780, 4
      %v3782 = vrot.slane %v3637, 5
      %v3783 = vsel %vm1608, %v3781, %v3782
      %v3784 = vrot.slane %v3782, 4
      %v3785 = vrot.slane %v3638, 5
      %v3786 = vsel %vm1608, %v3784, %v3785
      %v3787 = vrot.slane %v3639, 5
      %v3788 = vrot.slane %v3787, 4
      %v3789 = vrot.slane %v3640, 5
      %v3790 = vsel %vm1608, %v3788, %v3789
      %v3791 = vrot.slane %v3789, 4
      %v3792 = vrot.slane %v3641, 5
      %v3793 = vsel %vm1608, %v3791, %v3792
      %v3794 = vrot.slane %v3642, 5
      %v3795 = vrot.slane %v3794, 4
      %v3796 = vrot.slane %v3643, 5
      %v3797 = vsel %vm1608, %v3795, %v3796
      %v3798 = vrot.slane %v3796, 4
      %v3799 = vrot.slane %v3644, 5
      %v3800 = vsel %vm1608, %v3798, %v3799
      %v3801 = vrot.slane %v3645, 5
      %v3802 = vrot.slane %v3801, 4
      %v3803 = vrot.slane %v3646, 5
      %v3804 = vsel %vm1608, %v3802, %v3803
      %v3805 = vrot.slane %v3803, 4
      %v3806 = vrot.slane %v3647, 5
      %v3807 = vsel %vm1608, %v3805, %v3806
      %v3808 = vunpack.c.l.b16 %v3699
      %v3809 = vunpack.c.l.b16 %v3702
      %v3810 = vunpack.c.l.b16 %v3706
      %v3811 = vunpack.c.l.b16 %v3709
      %v3812 = vunpack.c.l.b16 %v3713
      %v3813 = vunpack.c.l.b16 %v3716
      %v3814 = vunpack.c.l.b16 %v3720
      %v3815 = vunpack.c.l.b16 %v3723
      %v3816 = vunpack.c.l.b16 %v3727
      %v3817 = vunpack.c.l.b16 %v3730
      %v3818 = vunpack.c.l.b16 %v3734
      %v3819 = vunpack.c.l.b16 %v3737
      %v3820 = vunpack.c.l.b16 %v3741
      %v3821 = vunpack.c.l.b16 %v3744
      %v3822 = vunpack.c.l.b16 %v3748
      %v3823 = vunpack.c.l.b16 %v3751
      %v3824 = vunpack.c.l.b16 %v3755
      %v3825 = vunpack.c.l.b16 %v3758
      %v3826 = vunpack.c.l.b16 %v3762
      %v3827 = vunpack.c.l.b16 %v3765
      %v3828 = vunpack.c.l.b16 %v3769
      %v3829 = vunpack.c.l.b16 %v3772
      %v3830 = vunpack.c.l.b16 %v3776
      %v3831 = vunpack.c.l.b16 %v3779
      %v3832 = vunpack.c.l.b16 %v3783
      %v3833 = vunpack.c.l.b16 %v3786
      %v3834 = vunpack.c.l.b16 %v3790
      %v3835 = vunpack.c.l.b16 %v3793
      %v3836 = vunpack.c.l.b16 %v3797
      %v3837 = vunpack.c.l.b16 %v3800
      %v3838 = vunpack.c.l.b16 %v3804
      %v3839 = vunpack.c.l.b16 %v3807
      %v3840 = vpack.c.b16 %v3809, %v3808
      %v3841 = vpack.c.b16 %v3811, %v3810
      %v3842 = vpack.c.b16 %v3813, %v3812
      %v3843 = vpack.c.b16 %v3815, %v3814
      %v3844 = vpack.c.b16 %v3817, %v3816
      %v3845 = vpack.c.b16 %v3819, %v3818
      %v3846 = vpack.c.b16 %v3821, %v3820
      %v3847 = vpack.c.b16 %v3823, %v3822
      %v3848 = vpack.c.b16 %v3825, %v3824
      %v3849 = vpack.c.b16 %v3827, %v3826
      %v3850 = vpack.c.b16 %v3829, %v3828
      %v3851 = vpack.c.b16 %v3831, %v3830
      %v3852 = vpack.c.b16 %v3833, %v3832
      %v3853 = vpack.c.b16 %v3835, %v3834
      %v3854 = vpack.c.b16 %v3837, %v3836
      %v3855 = vpack.c.b16 %v3839, %v3838
      %3856 = vrot.lane.b32.xlu0 %v3840, 32
      %v3857 = vpop.permute.xlu0 %3856
      %3858 = vrot.lane.b32.xlu0 %v3841, 32
      %v3859 = vpop.permute.xlu0 %3858
      %3860 = vrot.lane.b32.xlu0 %v3842, 32
      %v3861 = vpop.permute.xlu0 %3860
      %3862 = vrot.lane.b32.xlu0 %v3843, 32
      %v3863 = vpop.permute.xlu0 %3862
      %3864 = vrot.lane.b32.xlu0 %v3844, 32
      %v3865 = vpop.permute.xlu0 %3864
      %3866 = vrot.lane.b32.xlu0 %v3845, 32
      %v3867 = vpop.permute.xlu0 %3866
      %3868 = vrot.lane.b32.xlu0 %v3846, 32
      %v3869 = vpop.permute.xlu0 %3868
      %3870 = vrot.lane.b32.xlu0 %v3847, 32
      %v3871 = vpop.permute.xlu0 %3870
      %3872 = vrot.lane.b32.xlu0 %v3848, 32
      %v3873 = vpop.permute.xlu0 %3872
      %3874 = vrot.lane.b32.xlu0 %v3849, 32
      %v3875 = vpop.permute.xlu0 %3874
      %3876 = vrot.lane.b32.xlu0 %v3850, 32
      %v3877 = vpop.permute.xlu0 %3876
      %3878 = vrot.lane.b32.xlu0 %v3851, 32
      %v3879 = vpop.permute.xlu0 %3878
      %3880 = vrot.lane.b32.xlu0 %v3852, 32
      %v3881 = vpop.permute.xlu0 %3880
      %3882 = vrot.lane.b32.xlu0 %v3853, 32
      %v3883 = vpop.permute.xlu0 %3882
      %3884 = vrot.lane.b32.xlu0 %v3854, 32
      %v3885 = vpop.permute.xlu0 %3884
      %3886 = vrot.lane.b32.xlu0 %v3855, 32
      %v3887 = vpop.permute.xlu0 %3886
      %vm3904 = vcmask 294144
      %3905 = vst.msk [vmem:[#allocation3] sm:$0xff] %vm3904, %v3857
      %3906 = vst.msk [vmem:[#allocation3 + $0x8] sm:$0xff] %vm3904, %v3859
      %3907 = vst.msk [vmem:[#allocation3 + $0x10] sm:$0xff] %vm3904, %v3861
      %3908 = vst.msk [vmem:[#allocation3 + $0x18] sm:$0xff] %vm3904, %v3863
      %3909 = vst.msk [vmem:[#allocation3 + $0x20] sm:$0xff] %vm3904, %v3865
      %3910 = vst.msk [vmem:[#allocation3 + $0x28] sm:$0xff] %vm3904, %v3867
      %3911 = vst.msk [vmem:[#allocation3 + $0x30] sm:$0xff] %vm3904, %v3869
      %3912 = vst.msk [vmem:[#allocation3 + $0x38] sm:$0xff] %vm3904, %v3871
      %3913 = vst.msk [vmem:[#allocation3 + $0x40] sm:$0xff] %vm3904, %v3873
      %3914 = vst.msk [vmem:[#allocation3 + $0x48] sm:$0xff] %vm3904, %v3875
      %3915 = vst.msk [vmem:[#allocation3 + $0x50] sm:$0xff] %vm3904, %v3877
      %3916 = vst.msk [vmem:[#allocation3 + $0x58] sm:$0xff] %vm3904, %v3879
      %3917 = vst.msk [vmem:[#allocation3 + $0x60] sm:$0xff] %vm3904, %v3881
      %3918 = vst.msk [vmem:[#allocation3 + $0x68] sm:$0xff] %vm3904, %v3883
      %3919 = vst.msk [vmem:[#allocation3 + $0x70] sm:$0xff] %vm3904, %v3885
      %3920 = vst.msk [vmem:[#allocation3 + $0x78] sm:$0xff] %vm3904, %v3887
      %v3921 = vld [vmem:[#allocation3] sm:$0xff]
      %v3922 = vld [vmem:[#allocation3 + $0x8] sm:$0xff]
      %v3923 = vld [vmem:[#allocation3 + $0x10] sm:$0xff]
      %v3924 = vld [vmem:[#allocation3 + $0x18] sm:$0xff]
      %v3925 = vld [vmem:[#allocation3 + $0x20] sm:$0xff]
      %v3926 = vld [vmem:[#allocation3 + $0x28] sm:$0xff]
      %v3927 = vld [vmem:[#allocation3 + $0x30] sm:$0xff]
      %v3928 = vld [vmem:[#allocation3 + $0x38] sm:$0xff]
      %v3929 = vld [vmem:[#allocation3 + $0x40] sm:$0xff]
      %v3930 = vld [vmem:[#allocation3 + $0x48] sm:$0xff]
      %v3931 = vld [vmem:[#allocation3 + $0x50] sm:$0xff]
      %v3932 = vld [vmem:[#allocation3 + $0x58] sm:$0xff]
      %v3933 = vld [vmem:[#allocation3 + $0x60] sm:$0xff]
      %v3934 = vld [vmem:[#allocation3 + $0x68] sm:$0xff]
      %v3935 = vld [vmem:[#allocation3 + $0x70] sm:$0xff]
      %v3936 = vld [vmem:[#allocation3 + $0x78] sm:$0xff]
      %v3937 = vld [vmem:[%s1] sm:$0xf]
      %v3938 = vld [vmem:[%s1 + $0x4] sm:$0xf]
      %v3939 = vld [vmem:[%s1 + $0x8] sm:$0xf]
      %v3940 = vld [vmem:[%s1 + $0xc] sm:$0xf]
      %v3941 = vld [vmem:[%s1 + $0x10] sm:$0x3]
      %v3942 = vld [vmem:[%s2] sm:$0x1]
      %v3944 = vlaneseq
      %v3945 = vshrl.u32 %v3944, 7
      %v3946 = vsub.s32 0, %v3945
      %v3947 = vrot.slane %v3942, %v3946
      %v3954 = vunpack.c.l.b16 %v3937
      %v3955 = vunpack.c.l.b16 %v3938
      %v3956 = vunpack.c.l.b16 %v3939
      %v3957 = vunpack.c.l.b16 %v3940
      %v3958 = vunpack.c.l.b16 %v3941
      %v3959 = vpack.c.b16 %v3955, %v3954
      %v3960 = vpack.c.b16 %v3957, %v3956
      %v3961 = vpack.c.b16 %v3958, %v3958
      %vm3964 = vcmask 293888
      %v3966 = vsel %vm3964, %v3921, 0
      %v3969 = vsel %vm3964, %v3922, 0
      %v3972 = vsel %vm3964, %v3923, 0
      %v3975 = vsel %vm3964, %v3924, 0
      %v3978 = vsel %vm3964, %v3925, 0
      %v3981 = vsel %vm3964, %v3926, 0
      %v3984 = vsel %vm3964, %v3927, 0
      %v3987 = vsel %vm3964, %v3928, 0
      %v3990 = vsel %vm3964, %v3929, 0
      %v3993 = vsel %vm3964, %v3930, 0
      %v3996 = vsel %vm3964, %v3931, 0
      %v3999 = vsel %vm3964, %v3932, 0
      %v4002 = vsel %vm3964, %v3933, 0
      %v4005 = vsel %vm3964, %v3934, 0
      %v4008 = vsel %vm3964, %v3935, 0
      %v4011 = vsel %vm3964, %v3936, 0
      %vm4013 = vcmask 1041408
      %v4015 = vsel %vm4013, %v3961, 0
      %4017 = vmatprep.subr.bf16.mxu0 0
      %4018 = vmatpush1.bf16.msra.mxu0 %v3959
      %4019 = vmatprep.subr.bf16.mxu0 0
      %4020 = vmatpush1.bf16.msra.mxu0 %v3960
      %4021 = vmatprep.subr.bf16.mxu0 0
      %4022 = vmatpush1.bf16.msra.mxu0 %v4015
      %4023 = vmatprep.subr.bf16.mxu0 0
      %4024 = vmatpush1.bf16.msra.mxu0 0
      %4025 = vmatprep.subr.bf16.mxu0 0
      %4026 = vmatpush1.bf16.msra.mxu0 0
      %4027 = vmatprep.subr.bf16.mxu0 0
      %4028 = vmatpush1.bf16.msra.mxu0 0
      %4029 = vmatprep.subr.bf16.mxu0 0
      %4030 = vmatpush1.bf16.msra.mxu0 0
      %4031 = vmatprep.subr.bf16.mxu0 0
      %4032 = vmatpush1.bf16.msra.mxu0 0
      %4033 = vmatprep.subr.bf16.mxu0 0
      %4034 = vmatpush1.bf16.msra.mxu0 0
      %4035 = vmatprep.subr.bf16.mxu0 0
      %4036 = vmatpush1.bf16.msra.mxu0 0
      %4037 = vmatprep.subr.bf16.mxu0 0
      %4038 = vmatpush1.bf16.msra.mxu0 0
      %4039 = vmatprep.subr.bf16.mxu0 0
      %4040 = vmatpush1.bf16.msra.mxu0 0
      %4041 = vmatprep.subr.bf16.mxu0 0
      %4042 = vmatpush1.bf16.msra.mxu0 0
      %4043 = vmatprep.subr.bf16.mxu0 0
      %4044 = vmatpush1.bf16.msra.mxu0 0
      %4045 = vmatprep.subr.bf16.mxu0 0
      %4046 = vmatpush1.bf16.msra.mxu0 0
      %4047 = vmatprep.subr.bf16.mxu0 0
      %4048 = vmatpush1.bf16.msra.mxu0 0
      %4049 = vmatprep.mubr.bf16.mxu0 0
      %4050 = vmatmul.mubr.bf16.gmra.mrb[0].mxu0 %v3966
      %v4051 = vpop.f32.mrb[0].mxu0
      %v4052 = vadd.f32 %v3947, %v4051
      %v4053 = vpop.f32.mrb[0].mxu0
      %v4054 = vpop.f32.mrb[0].mxu0
      %v4055 = vadd.f32 %v3947, %v4054
      %v4056 = vpop.f32.mrb[0].mxu0
      %4057 = vmatprep.mubr.bf16.mxu0 0
      %4058 = vmatmul.mubr.bf16.gmra.mrb[0].mxu0 %v3969
      %v4059 = vpop.f32.mrb[0].mxu0
      %v4060 = vadd.f32 %v3947, %v4059
      %v4061 = vpop.f32.mrb[0].mxu0
      %v4062 = vpop.f32.mrb[0].mxu0
      %v4063 = vadd.f32 %v3947, %v4062
      %v4064 = vpop.f32.mrb[0].mxu0
      %4065 = vmatprep.mubr.bf16.mxu0 0
      %4066 = vmatmul.mubr.bf16.gmra.mrb[0].mxu0 %v3972
      %v4067 = vpop.f32.mrb[0].mxu0
      %v4068 = vadd.f32 %v3947, %v4067
      %v4069 = vpop.f32.mrb[0].mxu0
      %v4070 = vpop.f32.mrb[0].mxu0
      %v4071 = vadd.f32 %v3947, %v4070
      %v4072 = vpop.f32.mrb[0].mxu0
      %4073 = vmatprep.mubr.bf16.mxu0 0
      %4074 = vmatmul.mubr.bf16.gmra.mrb[0].mxu0 %v3975
      %v4075 = vpop.f32.mrb[0].mxu0
      %v4076 = vadd.f32 %v3947, %v4075
      %v4077 = vpop.f32.mrb[0].mxu0
      %v4078 = vpop.f32.mrb[0].mxu0
      %v4079 = vadd.f32 %v3947, %v4078
      %v4080 = vpop.f32.mrb[0].mxu0
      %4081 = vmatprep.mubr.bf16.mxu0 0
      %4082 = vmatmul.mubr.bf16.gmra.mrb[0].mxu0 %v3978
      %v4083 = vpop.f32.mrb[0].mxu0
      %v4084 = vadd.f32 %v3947, %v4083
      %v4085 = vpop.f32.mrb[0].mxu0
      %v4086 = vpop.f32.mrb[0].mxu0
      %v4087 = vadd.f32 %v3947, %v4086
      %v4088 = vpop.f32.mrb[0].mxu0
      %4089 = vmatprep.mubr.bf16.mxu0 0
      %4090 = vmatmul.mubr.bf16.gmra.mrb[0].mxu0 %v3981
      %v4091 = vpop.f32.mrb[0].mxu0
      %v4092 = vadd.f32 %v3947, %v4091
      %v4093 = vpop.f32.mrb[0].mxu0
      %v4094 = vpop.f32.mrb[0].mxu0
      %v4095 = vadd.f32 %v3947, %v4094
      %v4096 = vpop.f32.mrb[0].mxu0
      %4097 = vmatprep.mubr.bf16.mxu0 0
      %4098 = vmatmul.mubr.bf16.gmra.mrb[0].mxu0 %v3984
      %v4099 = vpop.f32.mrb[0].mxu0
      %v4100 = vadd.f32 %v3947, %v4099
      %v4101 = vpop.f32.mrb[0].mxu0
      %v4102 = vpop.f32.mrb[0].mxu0
      %v4103 = vadd.f32 %v3947, %v4102
      %v4104 = vpop.f32.mrb[0].mxu0
      %4105 = vmatprep.mubr.bf16.mxu0 0
      %4106 = vmatmul.mubr.bf16.gmra.mrb[0].mxu0 %v3987
      %v4107 = vpop.f32.mrb[0].mxu0
      %v4108 = vadd.f32 %v3947, %v4107
      %v4109 = vpop.f32.mrb[0].mxu0
      %v4110 = vpop.f32.mrb[0].mxu0
      %v4111 = vadd.f32 %v3947, %v4110
      %v4112 = vpop.f32.mrb[0].mxu0
      %4113 = vmatprep.mubr.bf16.mxu0 0
      %4114 = vmatmul.mubr.bf16.gmra.mrb[0].mxu0 %v3990
      %v4115 = vpop.f32.mrb[0].mxu0
      %v4116 = vadd.f32 %v3947, %v4115
      %v4117 = vpop.f32.mrb[0].mxu0
      %v4118 = vpop.f32.mrb[0].mxu0
      %v4119 = vadd.f32 %v3947, %v4118
      %v4120 = vpop.f32.mrb[0].mxu0
      %4121 = vmatprep.mubr.bf16.mxu0 0
      %4122 = vmatmul.mubr.bf16.gmra.mrb[0].mxu0 %v3993
      %v4123 = vpop.f32.mrb[0].mxu0
      %v4124 = vadd.f32 %v3947, %v4123
      %v4125 = vpop.f32.mrb[0].mxu0
      %v4126 = vpop.f32.mrb[0].mxu0
      %v4127 = vadd.f32 %v3947, %v4126
      %v4128 = vpop.f32.mrb[0].mxu0
      %4129 = vmatprep.mubr.bf16.mxu0 0
      %4130 = vmatmul.mubr.bf16.gmra.mrb[0].mxu0 %v3996
      %v4131 = vpop.f32.mrb[0].mxu0
      %v4132 = vadd.f32 %v3947, %v4131
      %v4133 = vpop.f32.mrb[0].mxu0
      %v4134 = vpop.f32.mrb[0].mxu0
      %v4135 = vadd.f32 %v3947, %v4134
      %v4136 = vpop.f32.mrb[0].mxu0
      %4137 = vmatprep.mubr.bf16.mxu0 0
      %4138 = vmatmul.mubr.bf16.gmra.mrb[0].mxu0 %v3999
      %v4139 = vpop.f32.mrb[0].mxu0
      %v4140 = vadd.f32 %v3947, %v4139
      %v4141 = vpop.f32.mrb[0].mxu0
      %v4142 = vpop.f32.mrb[0].mxu0
      %v4143 = vadd.f32 %v3947, %v4142
      %v4144 = vpop.f32.mrb[0].mxu0
      %4145 = vmatprep.mubr.bf16.mxu0 0
      %4146 = vmatmul.mubr.bf16.gmra.mrb[0].mxu0 %v4002
      %v4147 = vpop.f32.mrb[0].mxu0
      %v4148 = vadd.f32 %v3947, %v4147
      %v4149 = vpop.f32.mrb[0].mxu0
      %v4150 = vpop.f32.mrb[0].mxu0
      %v4151 = vadd.f32 %v3947, %v4150
      %v4152 = vpop.f32.mrb[0].mxu0
      %4153 = vmatprep.mubr.bf16.mxu0 0
      %4154 = vmatmul.mubr.bf16.gmra.mrb[0].mxu0 %v4005
      %v4155 = vpop.f32.mrb[0].mxu0
      %v4156 = vadd.f32 %v3947, %v4155
      %v4157 = vpop.f32.mrb[0].mxu0
      %v4158 = vpop.f32.mrb[0].mxu0
      %v4159 = vadd.f32 %v3947, %v4158
      %v4160 = vpop.f32.mrb[0].mxu0
      %4161 = vmatprep.mubr.bf16.mxu0 0
      %4162 = vmatmul.mubr.bf16.gmra.mrb[0].mxu0 %v4008
      %v4163 = vpop.f32.mrb[0].mxu0
      %v4164 = vadd.f32 %v3947, %v4163
      %v4165 = vpop.f32.mrb[0].mxu0
      %v4166 = vpop.f32.mrb[0].mxu0
      %v4167 = vadd.f32 %v3947, %v4166
      %v4168 = vpop.f32.mrb[0].mxu0
      %4169 = vmatprep.mubr.bf16.mxu0 0
      %4170 = vmatmul.mubr.bf16.gmra.mrb[0].mxu0 %v4011
      %v4171 = vpop.f32.mrb[0].mxu0
      %v4172 = vadd.f32 %v3947, %v4171
      %v4173 = vpop.f32.mrb[0].mxu0
      %v4174 = vpop.f32.mrb[0].mxu0
      %v4175 = vadd.f32 %v3947, %v4174
      %v4176 = vpop.f32.mrb[0].mxu0
      %4177 = vdwg.mxu0
      %v4178 = vmax.f32 %v4052, 0.0
      %v4179 = vmax.f32 %v4055, 0.0
      %v4180 = vmax.f32 %v4060, 0.0
      %v4181 = vmax.f32 %v4063, 0.0
      %v4182 = vmax.f32 %v4068, 0.0
      %v4183 = vmax.f32 %v4071, 0.0
      %v4184 = vmax.f32 %v4076, 0.0
      %v4185 = vmax.f32 %v4079, 0.0
      %v4186 = vmax.f32 %v4084, 0.0
      %v4187 = vmax.f32 %v4087, 0.0
      %v4188 = vmax.f32 %v4092, 0.0
      %v4189 = vmax.f32 %v4095, 0.0
      %v4190 = vmax.f32 %v4100, 0.0
      %v4191 = vmax.f32 %v4103, 0.0
      %v4192 = vmax.f32 %v4108, 0.0
      %v4193 = vmax.f32 %v4111, 0.0
      %v4194 = vmax.f32 %v4116, 0.0
      %v4195 = vmax.f32 %v4119, 0.0
      %v4196 = vmax.f32 %v4124, 0.0
      %v4197 = vmax.f32 %v4127, 0.0
      %v4198 = vmax.f32 %v4132, 0.0
      %v4199 = vmax.f32 %v4135, 0.0
      %v4200 = vmax.f32 %v4140, 0.0
      %v4201 = vmax.f32 %v4143, 0.0
      %v4202 = vmax.f32 %v4148, 0.0
      %v4203 = vmax.f32 %v4151, 0.0
      %v4204 = vmax.f32 %v4156, 0.0
      %v4205 = vmax.f32 %v4159, 0.0
      %v4206 = vmax.f32 %v4164, 0.0
      %v4207 = vmax.f32 %v4167, 0.0
      %v4208 = vmax.f32 %v4172, 0.0
      %v4209 = vmax.f32 %v4175, 0.0
      %v4210 = vpack.c.bf16 %v4179, %v4178
      %v4211 = vpack.c.bf16 %v4181, %v4180
      %v4212 = vpack.c.bf16 %v4183, %v4182
      %v4213 = vpack.c.bf16 %v4185, %v4184
      %v4214 = vpack.c.bf16 %v4187, %v4186
      %v4215 = vpack.c.bf16 %v4189, %v4188
      %v4216 = vpack.c.bf16 %v4191, %v4190
      %v4217 = vpack.c.bf16 %v4193, %v4192
      %v4218 = vpack.c.bf16 %v4195, %v4194
      %v4219 = vpack.c.bf16 %v4197, %v4196
      %v4220 = vpack.c.bf16 %v4199, %v4198
      %v4221 = vpack.c.bf16 %v4201, %v4200
      %v4222 = vpack.c.bf16 %v4203, %v4202
      %v4223 = vpack.c.bf16 %v4205, %v4204
      %v4224 = vpack.c.bf16 %v4207, %v4206
      %v4225 = vpack.c.bf16 %v4209, %v4208
      %v4242 = vunpack.c.l.b16 %v4210
      %v4243 = vunpack.c.h.b16 %v4210
      %v4244 = vunpack.c.l.b16 %v4211
      %v4245 = vunpack.c.h.b16 %v4211
      %v4246 = vunpack.c.l.b16 %v4212
      %v4247 = vunpack.c.h.b16 %v4212
      %v4248 = vunpack.c.l.b16 %v4213
      %v4249 = vunpack.c.h.b16 %v4213
      %v4250 = vunpack.c.l.b16 %v4214
      %v4251 = vunpack.c.h.b16 %v4214
      %v4252 = vunpack.c.l.b16 %v4215
      %v4253 = vunpack.c.h.b16 %v4215
      %v4254 = vunpack.c.l.b16 %v4216
      %v4255 = vunpack.c.h.b16 %v4216
      %v4256 = vunpack.c.l.b16 %v4217
      %v4257 = vunpack.c.h.b16 %v4217
      %v4258 = vunpack.c.l.b16 %v4218
      %v4259 = vunpack.c.h.b16 %v4218
      %v4260 = vunpack.c.l.b16 %v4219
      %v4261 = vunpack.c.h.b16 %v4219
      %v4262 = vunpack.c.l.b16 %v4220
      %v4263 = vunpack.c.h.b16 %v4220
      %v4264 = vunpack.c.l.b16 %v4221
      %v4265 = vunpack.c.h.b16 %v4221
      %v4266 = vunpack.c.l.b16 %v4222
      %v4267 = vunpack.c.h.b16 %v4222
      %v4268 = vunpack.c.l.b16 %v4223
      %v4269 = vunpack.c.h.b16 %v4223
      %v4270 = vunpack.c.l.b16 %v4224
      %v4271 = vunpack.c.h.b16 %v4224
      %v4272 = vunpack.c.l.b16 %v4225
      %v4273 = vunpack.c.h.b16 %v4225
      %v4274 = vpack.c.b16 %v4242, %v4242
      %v4275 = vpack.c.b16 %v4243, %v4243
      %v4276 = vpack.c.b16 %v4244, %v4244
      %v4277 = vpack.c.b16 %v4245, %v4245
      %v4278 = vpack.c.b16 %v4246, %v4246
      %v4279 = vpack.c.b16 %v4247, %v4247
      %v4280 = vpack.c.b16 %v4248, %v4248
      %v4281 = vpack.c.b16 %v4249, %v4249
      %v4282 = vpack.c.b16 %v4250, %v4250
      %v4283 = vpack.c.b16 %v4251, %v4251
      %v4284 = vpack.c.b16 %v4252, %v4252
      %v4285 = vpack.c.b16 %v4253, %v4253
      %v4286 = vpack.c.b16 %v4254, %v4254
      %v4287 = vpack.c.b16 %v4255, %v4255
      %v4288 = vpack.c.b16 %v4256, %v4256
      %v4289 = vpack.c.b16 %v4257, %v4257
      %v4290 = vpack.c.b16 %v4258, %v4258
      %v4291 = vpack.c.b16 %v4259, %v4259
      %v4292 = vpack.c.b16 %v4260, %v4260
      %v4293 = vpack.c.b16 %v4261, %v4261
      %v4294 = vpack.c.b16 %v4262, %v4262
      %v4295 = vpack.c.b16 %v4263, %v4263
      %v4296 = vpack.c.b16 %v4264, %v4264
      %v4297 = vpack.c.b16 %v4265, %v4265
      %v4298 = vpack.c.b16 %v4266, %v4266
      %v4299 = vpack.c.b16 %v4267, %v4267
      %v4300 = vpack.c.b16 %v4268, %v4268
      %v4301 = vpack.c.b16 %v4269, %v4269
      %v4302 = vpack.c.b16 %v4270, %v4270
      %v4303 = vpack.c.b16 %v4271, %v4271
      %v4304 = vpack.c.b16 %v4272, %v4272
      %v4305 = vpack.c.b16 %v4273, %v4273
      %v4307 = vshrl.u32 %v4274, 16
      %v4309 = vrot.slane %v4307, 7
      %v4310 = vshll.u32 %v4274, 16
      %v4312 = vor.u32 %v4309, %v4310
      %v4313 = vrot.slane %v4309, 4
      %v4315 = vshrl.u32 %v4275, 16
      %v4317 = vrot.slane %v4315, 7
      %v4318 = vshll.u32 %v4275, 16
      %v4320 = vor.u32 %v4317, %v4318
      %v4321 = vsel %vm381, %v4313, %v4320
      %v4322 = vrot.slane %v4317, 4
      %v4324 = vshrl.u32 %v4276, 16
      %v4326 = vrot.slane %v4324, 7
      %v4327 = vshll.u32 %v4276, 16
      %v4329 = vor.u32 %v4326, %v4327
      %v4330 = vrot.slane %v4326, 4
      %v4332 = vshrl.u32 %v4277, 16
      %v4334 = vrot.slane %v4332, 7
      %v4335 = vshll.u32 %v4277, 16
      %v4337 = vor.u32 %v4334, %v4335
      %v4338 = vsel %vm381, %v4330, %v4337
      %v4339 = vrot.slane %v4334, 4
      %v4341 = vshrl.u32 %v4278, 16
      %v4343 = vrot.slane %v4341, 7
      %v4344 = vshll.u32 %v4278, 16
      %v4346 = vor.u32 %v4343, %v4344
      %v4347 = vrot.slane %v4343, 4
      %v4349 = vshrl.u32 %v4279, 16
      %v4351 = vrot.slane %v4349, 7
      %v4352 = vshll.u32 %v4279, 16
      %v4354 = vor.u32 %v4351, %v4352
      %v4355 = vsel %vm381, %v4347, %v4354
      %v4356 = vrot.slane %v4351, 4
      %v4358 = vshrl.u32 %v4280, 16
      %v4360 = vrot.slane %v4358, 7
      %v4361 = vshll.u32 %v4280, 16
      %v4363 = vor.u32 %v4360, %v4361
      %v4364 = vrot.slane %v4360, 4
      %v4366 = vshrl.u32 %v4281, 16
      %v4368 = vrot.slane %v4366, 7
      %v4369 = vshll.u32 %v4281, 16
      %v4371 = vor.u32 %v4368, %v4369
      %v4372 = vsel %vm381, %v4364, %v4371
      %v4373 = vrot.slane %v4368, 4
      %v4375 = vshrl.u32 %v4282, 16
      %v4377 = vrot.slane %v4375, 7
      %v4378 = vshll.u32 %v4282, 16
      %v4380 = vor.u32 %v4377, %v4378
      %v4381 = vrot.slane %v4377, 4
      %v4383 = vshrl.u32 %v4283, 16
      %v4385 = vrot.slane %v4383, 7
      %v4386 = vshll.u32 %v4283, 16
      %v4388 = vor.u32 %v4385, %v4386
      %v4389 = vsel %vm381, %v4381, %v4388
      %v4390 = vrot.slane %v4385, 4
      %v4392 = vshrl.u32 %v4284, 16
      %v4394 = vrot.slane %v4392, 7
      %v4395 = vshll.u32 %v4284, 16
      %v4397 = vor.u32 %v4394, %v4395
      %v4398 = vrot.slane %v4394, 4
      %v4400 = vshrl.u32 %v4285, 16
      %v4402 = vrot.slane %v4400, 7
      %v4403 = vshll.u32 %v4285, 16
      %v4405 = vor.u32 %v4402, %v4403
      %v4406 = vsel %vm381, %v4398, %v4405
      %v4407 = vrot.slane %v4402, 4
      %v4409 = vshrl.u32 %v4286, 16
      %v4411 = vrot.slane %v4409, 7
      %v4412 = vshll.u32 %v4286, 16
      %v4414 = vor.u32 %v4411, %v4412
      %v4415 = vrot.slane %v4411, 4
      %v4417 = vshrl.u32 %v4287, 16
      %v4419 = vrot.slane %v4417, 7
      %v4420 = vshll.u32 %v4287, 16
      %v4422 = vor.u32 %v4419, %v4420
      %v4423 = vsel %vm381, %v4415, %v4422
      %v4424 = vrot.slane %v4419, 4
      %v4426 = vshrl.u32 %v4288, 16
      %v4428 = vrot.slane %v4426, 7
      %v4429 = vshll.u32 %v4288, 16
      %v4431 = vor.u32 %v4428, %v4429
      %v4432 = vrot.slane %v4428, 4
      %v4434 = vshrl.u32 %v4289, 16
      %v4436 = vrot.slane %v4434, 7
      %v4437 = vshll.u32 %v4289, 16
      %v4439 = vor.u32 %v4436, %v4437
      %v4440 = vsel %vm381, %v4432, %v4439
      %v4441 = vrot.slane %v4436, 4
      %v4443 = vshrl.u32 %v4290, 16
      %v4445 = vrot.slane %v4443, 7
      %v4446 = vshll.u32 %v4290, 16
      %v4448 = vor.u32 %v4445, %v4446
      %v4449 = vrot.slane %v4445, 4
      %v4451 = vshrl.u32 %v4291, 16
      %v4453 = vrot.slane %v4451, 7
      %v4454 = vshll.u32 %v4291, 16
      %v4456 = vor.u32 %v4453, %v4454
      %v4457 = vsel %vm381, %v4449, %v4456
      %v4458 = vrot.slane %v4453, 4
      %v4460 = vshrl.u32 %v4292, 16
      %v4462 = vrot.slane %v4460, 7
      %v4463 = vshll.u32 %v4292, 16
      %v4465 = vor.u32 %v4462, %v4463
      %v4466 = vrot.slane %v4462, 4
      %v4468 = vshrl.u32 %v4293, 16
      %v4470 = vrot.slane %v4468, 7
      %v4471 = vshll.u32 %v4293, 16
      %v4473 = vor.u32 %v4470, %v4471
      %v4474 = vsel %vm381, %v4466, %v4473
      %v4475 = vrot.slane %v4470, 4
      %v4477 = vshrl.u32 %v4294, 16
      %v4479 = vrot.slane %v4477, 7
      %v4480 = vshll.u32 %v4294, 16
      %v4482 = vor.u32 %v4479, %v4480
      %v4483 = vrot.slane %v4479, 4
      %v4485 = vshrl.u32 %v4295, 16
      %v4487 = vrot.slane %v4485, 7
      %v4488 = vshll.u32 %v4295, 16
      %v4490 = vor.u32 %v4487, %v4488
      %v4491 = vsel %vm381, %v4483, %v4490
      %v4492 = vrot.slane %v4487, 4
      %v4494 = vshrl.u32 %v4296, 16
      %v4496 = vrot.slane %v4494, 7
      %v4497 = vshll.u32 %v4296, 16
      %v4499 = vor.u32 %v4496, %v4497
      %v4500 = vrot.slane %v4496, 4
      %v4502 = vshrl.u32 %v4297, 16
      %v4504 = vrot.slane %v4502, 7
      %v4505 = vshll.u32 %v4297, 16
      %v4507 = vor.u32 %v4504, %v4505
      %v4508 = vsel %vm381, %v4500, %v4507
      %v4509 = vrot.slane %v4504, 4
      %v4511 = vshrl.u32 %v4298, 16
      %v4513 = vrot.slane %v4511, 7
      %v4514 = vshll.u32 %v4298, 16
      %v4516 = vor.u32 %v4513, %v4514
      %v4517 = vrot.slane %v4513, 4
      %v4519 = vshrl.u32 %v4299, 16
      %v4521 = vrot.slane %v4519, 7
      %v4522 = vshll.u32 %v4299, 16
      %v4524 = vor.u32 %v4521, %v4522
      %v4525 = vsel %vm381, %v4517, %v4524
      %v4526 = vrot.slane %v4521, 4
      %v4528 = vshrl.u32 %v4300, 16
      %v4530 = vrot.slane %v4528, 7
      %v4531 = vshll.u32 %v4300, 16
      %v4533 = vor.u32 %v4530, %v4531
      %v4534 = vrot.slane %v4530, 4
      %v4536 = vshrl.u32 %v4301, 16
      %v4538 = vrot.slane %v4536, 7
      %v4539 = vshll.u32 %v4301, 16
      %v4541 = vor.u32 %v4538, %v4539
      %v4542 = vsel %vm381, %v4534, %v4541
      %v4543 = vrot.slane %v4538, 4
      %v4545 = vshrl.u32 %v4302, 16
      %v4547 = vrot.slane %v4545, 7
      %v4548 = vshll.u32 %v4302, 16
      %v4550 = vor.u32 %v4547, %v4548
      %v4551 = vrot.slane %v4547, 4
      %v4553 = vshrl.u32 %v4303, 16
      %v4555 = vrot.slane %v4553, 7
      %v4556 = vshll.u32 %v4303, 16
      %v4558 = vor.u32 %v4555, %v4556
      %v4559 = vsel %vm381, %v4551, %v4558
      %v4560 = vrot.slane %v4555, 4
      %v4562 = vshrl.u32 %v4304, 16
      %v4564 = vrot.slane %v4562, 7
      %v4565 = vshll.u32 %v4304, 16
      %v4567 = vor.u32 %v4564, %v4565
      %v4568 = vrot.slane %v4564, 4
      %v4570 = vshrl.u32 %v4305, 16
      %v4572 = vrot.slane %v4570, 7
      %v4573 = vshll.u32 %v4305, 16
      %v4575 = vor.u32 %v4572, %v4573
      %v4576 = vsel %vm381, %v4568, %v4575
      %v4577 = vrot.slane %v4572, 4
      %v4626 = vld [vmem:[%s702] sm:$0xf]
      %v4627 = vsel %vm704, %v4312, %v4626
      %4628 = vst [vmem:[%s702] sm:$0xf] %v4627
      %4629 = vst.msk [vmem:[%s702 + $0x4] sm:$0xf] %vm226, %v4321
      %v4630 = vld [vmem:[%s702 + $0x8] sm:$0x1]
      %v4631 = vsel %vm237, %v4322, %v4630
      %4632 = vst [vmem:[%s702 + $0x8] sm:$0x1] %v4631
      %v4633 = vld [vmem:[%s702 + $0xc] sm:$0xf]
      %v4634 = vsel %vm704, %v4329, %v4633
      %4635 = vst [vmem:[%s702 + $0xc] sm:$0xf] %v4634
      %4636 = vst.msk [vmem:[%s702 + $0x10] sm:$0xf] %vm226, %v4338
      %v4637 = vld [vmem:[%s702 + $0x14] sm:$0x1]
      %v4638 = vsel %vm237, %v4339, %v4637
      %4639 = vst [vmem:[%s702 + $0x14] sm:$0x1] %v4638
      %v4640 = vld [vmem:[%s702 + $0x18] sm:$0xf]
      %v4641 = vsel %vm704, %v4346, %v4640
      %4642 = vst [vmem:[%s702 + $0x18] sm:$0xf] %v4641
      %4643 = vst.msk [vmem:[%s702 + $0x1c] sm:$0xf] %vm226, %v4355
      %v4644 = vld [vmem:[%s702 + $0x20] sm:$0x1]
      %v4645 = vsel %vm237, %v4356, %v4644
      %4646 = vst [vmem:[%s702 + $0x20] sm:$0x1] %v4645
      %v4647 = vld [vmem:[%s702 + $0x24] sm:$0xf]
      %v4648 = vsel %vm704, %v4363, %v4647
      %4649 = vst [vmem:[%s702 + $0x24] sm:$0xf] %v4648
      %4650 = vst.msk [vmem:[%s702 + $0x28] sm:$0xf] %vm226, %v4372
      %v4651 = vld [vmem:[%s702 + $0x2c] sm:$0x1]
      %v4652 = vsel %vm237, %v4373, %v4651
      %4653 = vst [vmem:[%s702 + $0x2c] sm:$0x1] %v4652
      %v4654 = vld [vmem:[%s702 + $0x30] sm:$0xf]
      %v4655 = vsel %vm704, %v4380, %v4654
      %4656 = vst [vmem:[%s702 + $0x30] sm:$0xf] %v4655
      %4657 = vst.msk [vmem:[%s702 + $0x34] sm:$0xf] %vm226, %v4389
      %v4658 = vld [vmem:[%s702 + $0x38] sm:$0x1]
      %v4659 = vsel %vm237, %v4390, %v4658
      %4660 = vst [vmem:[%s702 + $0x38] sm:$0x1] %v4659
      %v4661 = vld [vmem:[%s702 + $0x3c] sm:$0xf]
      %v4662 = vsel %vm704, %v4397, %v4661
      %4663 = vst [vmem:[%s702 + $0x3c] sm:$0xf] %v4662
      %4664 = vst.msk [vmem:[%s702 + $0x40] sm:$0xf] %vm226, %v4406
      %v4665 = vld [vmem:[%s702 + $0x44] sm:$0x1]
      %v4666 = vsel %vm237, %v4407, %v4665
      %4667 = vst [vmem:[%s702 + $0x44] sm:$0x1] %v4666
      %v4668 = vld [vmem:[%s702 + $0x48] sm:$0xf]
      %v4669 = vsel %vm704, %v4414, %v4668
      %4670 = vst [vmem:[%s702 + $0x48] sm:$0xf] %v4669
      %4671 = vst.msk [vmem:[%s702 + $0x4c] sm:$0xf] %vm226, %v4423
      %v4672 = vld [vmem:[%s702 + $0x50] sm:$0x1]
      %v4673 = vsel %vm237, %v4424, %v4672
      %4674 = vst [vmem:[%s702 + $0x50] sm:$0x1] %v4673
      %v4675 = vld [vmem:[%s702 + $0x54] sm:$0xf]
      %v4676 = vsel %vm704, %v4431, %v4675
      %4677 = vst [vmem:[%s702 + $0x54] sm:$0xf] %v4676
      %4678 = vst.msk [vmem:[%s702 + $0x58] sm:$0xf] %vm226, %v4440
      %v4679 = vld [vmem:[%s702 + $0x5c] sm:$0x1]
      %v4680 = vsel %vm237, %v4441, %v4679
      %4681 = vst [vmem:[%s702 + $0x5c] sm:$0x1] %v4680
      %v4682 = vld [vmem:[%s702 + $0x60] sm:$0xf]
      %v4683 = vsel %vm704, %v4448, %v4682
      %4684 = vst [vmem:[%s702 + $0x60] sm:$0xf] %v4683
      %4685 = vst.msk [vmem:[%s702 + $0x64] sm:$0xf] %vm226, %v4457
      %v4686 = vld [vmem:[%s702 + $0x68] sm:$0x1]
      %v4687 = vsel %vm237, %v4458, %v4686
      %4688 = vst [vmem:[%s702 + $0x68] sm:$0x1] %v4687
      %v4689 = vld [vmem:[%s702 + $0x6c] sm:$0xf]
      %v4690 = vsel %vm704, %v4465, %v4689
      %4691 = vst [vmem:[%s702 + $0x6c] sm:$0xf] %v4690
      %4692 = vst.msk [vmem:[%s702 + $0x70] sm:$0xf] %vm226, %v4474
      %v4693 = vld [vmem:[%s702 + $0x74] sm:$0x1]
      %v4694 = vsel %vm237, %v4475, %v4693
      %4695 = vst [vmem:[%s702 + $0x74] sm:$0x1] %v4694
      %v4696 = vld [vmem:[%s702 + $0x78] sm:$0xf]
      %v4697 = vsel %vm704, %v4482, %v4696
      %4698 = vst [vmem:[%s702 + $0x78] sm:$0xf] %v4697
      %4699 = vst.msk [vmem:[%s702 + $0x7c] sm:$0xf] %vm226, %v4491
      %v4700 = vld [vmem:[%s702 + $0x80] sm:$0x1]
      %v4701 = vsel %vm237, %v4492, %v4700
      %4702 = vst [vmem:[%s702 + $0x80] sm:$0x1] %v4701
      %v4703 = vld [vmem:[%s702 + $0x84] sm:$0xf]
      %v4704 = vsel %vm704, %v4499, %v4703
      %4705 = vst [vmem:[%s702 + $0x84] sm:$0xf] %v4704
      %4706 = vst.msk [vmem:[%s702 + $0x88] sm:$0xf] %vm226, %v4508
      %v4707 = vld [vmem:[%s702 + $0x8c] sm:$0x1]
      %v4708 = vsel %vm237, %v4509, %v4707
      %4709 = vst [vmem:[%s702 + $0x8c] sm:$0x1] %v4708
      %v4710 = vld [vmem:[%s702 + $0x90] sm:$0xf]
      %v4711 = vsel %vm704, %v4516, %v4710
      %4712 = vst [vmem:[%s702 + $0x90] sm:$0xf] %v4711
      %4713 = vst.msk [vmem:[%s702 + $0x94] sm:$0xf] %vm226, %v4525
      %v4714 = vld [vmem:[%s702 + $0x98] sm:$0x1]
      %v4715 = vsel %vm237, %v4526, %v4714
      %4716 = vst [vmem:[%s702 + $0x98] sm:$0x1] %v4715
      %v4717 = vld [vmem:[%s702 + $0x9c] sm:$0xf]
      %v4718 = vsel %vm704, %v4533, %v4717
      %4719 = vst [vmem:[%s702 + $0x9c] sm:$0xf] %v4718
      %4720 = vst.msk [vmem:[%s702 + $0xa0] sm:$0xf] %vm226, %v4542
      %v4721 = vld [vmem:[%s702 + $0xa4] sm:$0x1]
      %v4722 = vsel %vm237, %v4543, %v4721
      %4723 = vst [vmem:[%s702 + $0xa4] sm:$0x1] %v4722
      %v4724 = vld [vmem:[%s702 + $0xa8] sm:$0xf]
      %v4725 = vsel %vm704, %v4550, %v4724
      %4726 = vst [vmem:[%s702 + $0xa8] sm:$0xf] %v4725
      %4727 = vst.msk [vmem:[%s702 + $0xac] sm:$0xf] %vm226, %v4559
      %v4728 = vld [vmem:[%s702 + $0xb0] sm:$0x1]
      %v4729 = vsel %vm237, %v4560, %v4728
      %4730 = vst [vmem:[%s702 + $0xb0] sm:$0x1] %v4729
      %v4731 = vld [vmem:[%s702 + $0xb4] sm:$0xf]
      %v4732 = vsel %vm704, %v4567, %v4731
      %4733 = vst [vmem:[%s702 + $0xb4] sm:$0xf] %v4732
      %4734 = vst.msk [vmem:[%s702 + $0xb8] sm:$0xf] %vm226, %v4576
      %v4735 = vld [vmem:[%s702 + $0xbc] sm:$0x1]
      %v4736 = vsel %vm237, %v4577, %v4735
      %4737 = vst [vmem:[%s702 + $0xbc] sm:$0x1] %v4736
      %v4738 = vunpack.c.l.bf16 %v348
      %v4739 = vunpack.c.l.bf16 %v349
      %v4740 = vunpack.c.l.bf16 %v350
      %v4741 = vunpack.c.l.bf16 %v351
      %v4742 = vunpack.c.l.bf16 %v352
      %v4743 = vunpack.c.l.bf16 %v353
      %v4744 = vunpack.c.l.bf16 %v354
      %v4745 = vunpack.c.l.bf16 %v355
      %v4746 = vunpack.c.l.bf16 %v356
      %v4747 = vunpack.c.l.bf16 %v357
      %v4748 = vunpack.c.l.bf16 %v358
      %v4749 = vunpack.c.l.bf16 %v359
      %v4750 = vunpack.c.l.bf16 %v360
      %v4751 = vunpack.c.l.bf16 %v361
      %v4752 = vunpack.c.l.bf16 %v362
      %v4753 = vunpack.c.l.bf16 %v363
      %v4754 = vunpack.c.l.bf16 %v364
      %v4755 = vunpack.c.l.bf16 %v365
      %v4756 = vunpack.c.l.bf16 %v366
      %v4757 = vunpack.c.l.bf16 %v367
      %v4758 = vunpack.c.l.bf16 %v368
      %v4759 = vunpack.c.l.bf16 %v369
      %v4760 = vunpack.c.l.bf16 %v370
      %v4761 = vunpack.c.l.bf16 %v371
      %v4762 = vunpack.c.l.bf16 %v372
      %v4763 = vunpack.c.l.bf16 %v373
      %v4764 = vunpack.c.l.bf16 %v374
      %v4765 = vunpack.c.l.bf16 %v375
      %v4766 = vunpack.c.l.bf16 %v376
      %v4767 = vunpack.c.l.bf16 %v377
      %v4768 = vunpack.c.l.bf16 %v378
      %v4769 = vunpack.c.l.bf16 %v379
      %v4770 = vld [vmem:[#allocation2] sm:$0xf]
      %v4771 = vld [vmem:[#allocation2 + $0x4] sm:$0xf]
      %v4772 = vld [vmem:[#allocation2 + $0xc] sm:$0xf]
      %v4773 = vld [vmem:[#allocation2 + $0x10] sm:$0xf]
      %v4774 = vld [vmem:[#allocation2 + $0x18] sm:$0xf]
      %v4775 = vld [vmem:[#allocation2 + $0x1c] sm:$0xf]
      %v4776 = vld [vmem:[#allocation2 + $0x24] sm:$0xf]
      %v4777 = vld [vmem:[#allocation2 + $0x28] sm:$0xf]
      %v4778 = vld [vmem:[#allocation2 + $0x30] sm:$0xf]
      %v4779 = vld [vmem:[#allocation2 + $0x34] sm:$0xf]
      %v4780 = vld [vmem:[#allocation2 + $0x3c] sm:$0xf]
      %v4781 = vld [vmem:[#allocation2 + $0x40] sm:$0xf]
      %v4782 = vld [vmem:[#allocation2 + $0x48] sm:$0xf]
      %v4783 = vld [vmem:[#allocation2 + $0x4c] sm:$0xf]
      %v4784 = vld [vmem:[#allocation2 + $0x54] sm:$0xf]
      %v4785 = vld [vmem:[#allocation2 + $0x58] sm:$0xf]
      %v4786 = vld [vmem:[#allocation2 + $0x60] sm:$0xf]
      %v4787 = vld [vmem:[#allocation2 + $0x64] sm:$0xf]
      %v4788 = vld [vmem:[#allocation2 + $0x6c] sm:$0xf]
      %v4789 = vld [vmem:[#allocation2 + $0x70] sm:$0xf]
      %v4790 = vld [vmem:[#allocation2 + $0x78] sm:$0xf]
      %v4791 = vld [vmem:[#allocation2 + $0x7c] sm:$0xf]
      %v4792 = vld [vmem:[#allocation2 + $0x84] sm:$0xf]
      %v4793 = vld [vmem:[#allocation2 + $0x88] sm:$0xf]
      %v4794 = vld [vmem:[#allocation2 + $0x90] sm:$0xf]
      %v4795 = vld [vmem:[#allocation2 + $0x94] sm:$0xf]
      %v4796 = vld [vmem:[#allocation2 + $0x9c] sm:$0xf]
      %v4797 = vld [vmem:[#allocation2 + $0xa0] sm:$0xf]
      %v4798 = vld [vmem:[#allocation2 + $0xa8] sm:$0xf]
      %v4799 = vld [vmem:[#allocation2 + $0xac] sm:$0xf]
      %v4800 = vld [vmem:[#allocation2 + $0xb4] sm:$0xf]
      %v4801 = vld [vmem:[#allocation2 + $0xb8] sm:$0xf]
      %v4834 = vunpack.c.l.b16 %v4770
      %v4835 = vunpack.c.l.b16 %v4771
      %v4836 = vunpack.c.l.b16 %v4772
      %v4837 = vunpack.c.l.b16 %v4773
      %v4838 = vunpack.c.l.b16 %v4774
      %v4839 = vunpack.c.l.b16 %v4775
      %v4840 = vunpack.c.l.b16 %v4776
      %v4841 = vunpack.c.l.b16 %v4777
      %v4842 = vunpack.c.l.b16 %v4778
      %v4843 = vunpack.c.l.b16 %v4779
      %v4844 = vunpack.c.l.b16 %v4780
      %v4845 = vunpack.c.l.b16 %v4781
      %v4846 = vunpack.c.l.b16 %v4782
      %v4847 = vunpack.c.l.b16 %v4783
      %v4848 = vunpack.c.l.b16 %v4784
      %v4849 = vunpack.c.l.b16 %v4785
      %v4850 = vunpack.c.l.b16 %v4786
      %v4851 = vunpack.c.l.b16 %v4787
      %v4852 = vunpack.c.l.b16 %v4788
      %v4853 = vunpack.c.l.b16 %v4789
      %v4854 = vunpack.c.l.b16 %v4790
      %v4855 = vunpack.c.l.b16 %v4791
      %v4856 = vunpack.c.l.b16 %v4792
      %v4857 = vunpack.c.l.b16 %v4793
      %v4858 = vunpack.c.l.b16 %v4794
      %v4859 = vunpack.c.l.b16 %v4795
      %v4860 = vunpack.c.l.b16 %v4796
      %v4861 = vunpack.c.l.b16 %v4797
      %v4862 = vunpack.c.l.b16 %v4798
      %v4863 = vunpack.c.l.b16 %v4799
      %v4864 = vunpack.c.l.b16 %v4800
      %v4865 = vunpack.c.l.b16 %v4801
      %v4866 = vpack.c.b16 %v4835, %v4834
      %v4867 = vpack.c.b16 %v4837, %v4836
      %v4868 = vpack.c.b16 %v4839, %v4838
      %v4869 = vpack.c.b16 %v4841, %v4840
      %v4870 = vpack.c.b16 %v4843, %v4842
      %v4871 = vpack.c.b16 %v4845, %v4844
      %v4872 = vpack.c.b16 %v4847, %v4846
      %v4873 = vpack.c.b16 %v4849, %v4848
      %v4874 = vpack.c.b16 %v4851, %v4850
      %v4875 = vpack.c.b16 %v4853, %v4852
      %v4876 = vpack.c.b16 %v4855, %v4854
      %v4877 = vpack.c.b16 %v4857, %v4856
      %v4878 = vpack.c.b16 %v4859, %v4858
      %v4879 = vpack.c.b16 %v4861, %v4860
      %v4880 = vpack.c.b16 %v4863, %v4862
      %v4881 = vpack.c.b16 %v4865, %v4864
      %4898 = vst.msk [vmem:[#allocation3] sm:$0xff] %vm945, %v4866
      %4899 = vst.msk [vmem:[#allocation3 + $0x8] sm:$0xff] %vm945, %v4867
      %4900 = vst.msk [vmem:[#allocation3 + $0x10] sm:$0xff] %vm945, %v4868
      %4901 = vst.msk [vmem:[#allocation3 + $0x18] sm:$0xff] %vm945, %v4869
      %4902 = vst.msk [vmem:[#allocation3 + $0x20] sm:$0xff] %vm945, %v4870
      %4903 = vst.msk [vmem:[#allocation3 + $0x28] sm:$0xff] %vm945, %v4871
      %4904 = vst.msk [vmem:[#allocation3 + $0x30] sm:$0xff] %vm945, %v4872
      %4905 = vst.msk [vmem:[#allocation3 + $0x38] sm:$0xff] %vm945, %v4873
      %4906 = vst.msk [vmem:[#allocation3 + $0x40] sm:$0xff] %vm945, %v4874
      %4907 = vst.msk [vmem:[#allocation3 + $0x48] sm:$0xff] %vm945, %v4875
      %4908 = vst.msk [vmem:[#allocation3 + $0x50] sm:$0xff] %vm945, %v4876
      %4909 = vst.msk [vmem:[#allocation3 + $0x58] sm:$0xff] %vm945, %v4877
      %4910 = vst.msk [vmem:[#allocation3 + $0x60] sm:$0xff] %vm945, %v4878
      %4911 = vst.msk [vmem:[#allocation3 + $0x68] sm:$0xff] %vm945, %v4879
      %4912 = vst.msk [vmem:[#allocation3 + $0x70] sm:$0xff] %vm945, %v4880
      %4913 = vst.msk [vmem:[#allocation3 + $0x78] sm:$0xff] %vm945, %v4881
      %v4914 = vld [vmem:[#allocation2] sm:$0xf]
      %v4915 = vld [vmem:[#allocation2 + $0x4] sm:$0xf]
      %v4916 = vld [vmem:[#allocation2 + $0x8] sm:$0x1]
      %v4917 = vld [vmem:[#allocation2 + $0xc] sm:$0xf]
      %v4918 = vld [vmem:[#allocation2 + $0x10] sm:$0xf]
      %v4919 = vld [vmem:[#allocation2 + $0x14] sm:$0x1]
      %v4920 = vld [vmem:[#allocation2 + $0x18] sm:$0xf]
      %v4921 = vld [vmem:[#allocation2 + $0x1c] sm:$0xf]
      %v4922 = vld [vmem:[#allocation2 + $0x20] sm:$0x1]
      %v4923 = vld [vmem:[#allocation2 + $0x24] sm:$0xf]
      %v4924 = vld [vmem:[#allocation2 + $0x28] sm:$0xf]
      %v4925 = vld [vmem:[#allocation2 + $0x2c] sm:$0x1]
      %v4926 = vld [vmem:[#allocation2 + $0x30] sm:$0xf]
      %v4927 = vld [vmem:[#allocation2 + $0x34] sm:$0xf]
      %v4928 = vld [vmem:[#allocation2 + $0x38] sm:$0x1]
      %v4929 = vld [vmem:[#allocation2 + $0x3c] sm:$0xf]
      %v4930 = vld [vmem:[#allocation2 + $0x40] sm:$0xf]
      %v4931 = vld [vmem:[#allocation2 + $0x44] sm:$0x1]
      %v4932 = vld [vmem:[#allocation2 + $0x48] sm:$0xf]
      %v4933 = vld [vmem:[#allocation2 + $0x4c] sm:$0xf]
      %v4934 = vld [vmem:[#allocation2 + $0x50] sm:$0x1]
      %v4935 = vld [vmem:[#allocation2 + $0x54] sm:$0xf]
      %v4936 = vld [vmem:[#allocation2 + $0x58] sm:$0xf]
      %v4937 = vld [vmem:[#allocation2 + $0x5c] sm:$0x1]
      %v4938 = vld [vmem:[#allocation2 + $0x60] sm:$0xf]
      %v4939 = vld [vmem:[#allocation2 + $0x64] sm:$0xf]
      %v4940 = vld [vmem:[#allocation2 + $0x68] sm:$0x1]
      %v4941 = vld [vmem:[#allocation2 + $0x6c] sm:$0xf]
      %v4942 = vld [vmem:[#allocation2 + $0x70] sm:$0xf]
      %v4943 = vld [vmem:[#allocation2 + $0x74] sm:$0x1]
      %v4944 = vld [vmem:[#allocation2 + $0x78] sm:$0xf]
      %v4945 = vld [vmem:[#allocation2 + $0x7c] sm:$0xf]
      %v4946 = vld [vmem:[#allocation2 + $0x80] sm:$0x1]
      %v4947 = vld [vmem:[#allocation2 + $0x84] sm:$0xf]
      %v4948 = vld [vmem:[#allocation2 + $0x88] sm:$0xf]
      %v4949 = vld [vmem:[#allocation2 + $0x8c] sm:$0x1]
      %v4950 = vld [vmem:[#allocation2 + $0x90] sm:$0xf]
      %v4951 = vld [vmem:[#allocation2 + $0x94] sm:$0xf]
      %v4952 = vld [vmem:[#allocation2 + $0x98] sm:$0x1]
      %v4953 = vld [vmem:[#allocation2 + $0x9c] sm:$0xf]
      %v4954 = vld [vmem:[#allocation2 + $0xa0] sm:$0xf]
      %v4955 = vld [vmem:[#allocation2 + $0xa4] sm:$0x1]
      %v4956 = vld [vmem:[#allocation2 + $0xa8] sm:$0xf]
      %v4957 = vld [vmem:[#allocation2 + $0xac] sm:$0xf]
      %v4958 = vld [vmem:[#allocation2 + $0xb0] sm:$0x1]
      %v4959 = vld [vmem:[#allocation2 + $0xb4] sm:$0xf]
      %v4960 = vld [vmem:[#allocation2 + $0xb8] sm:$0xf]
      %v4961 = vld [vmem:[#allocation2 + $0xbc] sm:$0x1]
      %v4963 = vshrl.u32 %v4914, 16
      %v4965 = vrot.slane %v4963, 4
      %v4966 = vshll.u32 %v4914, 16
      %v4968 = vrot.slane %v4966, 5
      %v4969 = vor.u32 %v4965, %v4968
      %v4970 = vrot.slane %v4969, 4
      %v4972 = vshll.u32 %v4915, 16
      %v4974 = vrot.slane %v4972, 5
      %v4975 = vsel %vm1012, %v4970, %v4974
      %v4976 = vshrl.u32 %v4915, 16
      %v4978 = vrot.slane %v4976, 4
      %v4979 = vor.u32 %v4978, %v4974
      %v4980 = vrot.slane %v4979, 4
      %v4982 = vshll.u32 %v4916, 16
      %v4984 = vrot.slane %v4982, 5
      %v4985 = vsel %vm1012, %v4980, %v4984
      %v4987 = vshrl.u32 %v4917, 16
      %v4989 = vrot.slane %v4987, 4
      %v4990 = vshll.u32 %v4917, 16
      %v4992 = vrot.slane %v4990, 5
      %v4993 = vor.u32 %v4989, %v4992
      %v4994 = vrot.slane %v4993, 4
      %v4996 = vshll.u32 %v4918, 16
      %v4998 = vrot.slane %v4996, 5
      %v4999 = vsel %vm1012, %v4994, %v4998
      %v5000 = vshrl.u32 %v4918, 16
      %v5002 = vrot.slane %v5000, 4
      %v5003 = vor.u32 %v5002, %v4998
      %v5004 = vrot.slane %v5003, 4
      %v5006 = vshll.u32 %v4919, 16
      %v5008 = vrot.slane %v5006, 5
      %v5009 = vsel %vm1012, %v5004, %v5008
      %v5011 = vshrl.u32 %v4920, 16
      %v5013 = vrot.slane %v5011, 4
      %v5014 = vshll.u32 %v4920, 16
      %v5016 = vrot.slane %v5014, 5
      %v5017 = vor.u32 %v5013, %v5016
      %v5018 = vrot.slane %v5017, 4
      %v5020 = vshll.u32 %v4921, 16
      %v5022 = vrot.slane %v5020, 5
      %v5023 = vsel %vm1012, %v5018, %v5022
      %v5024 = vshrl.u32 %v4921, 16
      %v5026 = vrot.slane %v5024, 4
      %v5027 = vor.u32 %v5026, %v5022
      %v5028 = vrot.slane %v5027, 4
      %v5030 = vshll.u32 %v4922, 16
      %v5032 = vrot.slane %v5030, 5
      %v5033 = vsel %vm1012, %v5028, %v5032
      %v5035 = vshrl.u32 %v4923, 16
      %v5037 = vrot.slane %v5035, 4
      %v5038 = vshll.u32 %v4923, 16
      %v5040 = vrot.slane %v5038, 5
      %v5041 = vor.u32 %v5037, %v5040
      %v5042 = vrot.slane %v5041, 4
      %v5044 = vshll.u32 %v4924, 16
      %v5046 = vrot.slane %v5044, 5
      %v5047 = vsel %vm1012, %v5042, %v5046
      %v5048 = vshrl.u32 %v4924, 16
      %v5050 = vrot.slane %v5048, 4
      %v5051 = vor.u32 %v5050, %v5046
      %v5052 = vrot.slane %v5051, 4
      %v5054 = vshll.u32 %v4925, 16
      %v5056 = vrot.slane %v5054, 5
      %v5057 = vsel %vm1012, %v5052, %v5056
      %v5059 = vshrl.u32 %v4926, 16
      %v5061 = vrot.slane %v5059, 4
      %v5062 = vshll.u32 %v4926, 16
      %v5064 = vrot.slane %v5062, 5
      %v5065 = vor.u32 %v5061, %v5064
      %v5066 = vrot.slane %v5065, 4
      %v5068 = vshll.u32 %v4927, 16
      %v5070 = vrot.slane %v5068, 5
      %v5071 = vsel %vm1012, %v5066, %v5070
      %v5072 = vshrl.u32 %v4927, 16
      %v5074 = vrot.slane %v5072, 4
      %v5075 = vor.u32 %v5074, %v5070
      %v5076 = vrot.slane %v5075, 4
      %v5078 = vshll.u32 %v4928, 16
      %v5080 = vrot.slane %v5078, 5
      %v5081 = vsel %vm1012, %v5076, %v5080
      %v5083 = vshrl.u32 %v4929, 16
      %v5085 = vrot.slane %v5083, 4
      %v5086 = vshll.u32 %v4929, 16
      %v5088 = vrot.slane %v5086, 5
      %v5089 = vor.u32 %v5085, %v5088
      %v5090 = vrot.slane %v5089, 4
      %v5092 = vshll.u32 %v4930, 16
      %v5094 = vrot.slane %v5092, 5
      %v5095 = vsel %vm1012, %v5090, %v5094
      %v5096 = vshrl.u32 %v4930, 16
      %v5098 = vrot.slane %v5096, 4
      %v5099 = vor.u32 %v5098, %v5094
      %v5100 = vrot.slane %v5099, 4
      %v5102 = vshll.u32 %v4931, 16
      %v5104 = vrot.slane %v5102, 5
      %v5105 = vsel %vm1012, %v5100, %v5104
      %v5107 = vshrl.u32 %v4932, 16
      %v5109 = vrot.slane %v5107, 4
      %v5110 = vshll.u32 %v4932, 16
      %v5112 = vrot.slane %v5110, 5
      %v5113 = vor.u32 %v5109, %v5112
      %v5114 = vrot.slane %v5113, 4
      %v5116 = vshll.u32 %v4933, 16
      %v5118 = vrot.slane %v5116, 5
      %v5119 = vsel %vm1012, %v5114, %v5118
      %v5120 = vshrl.u32 %v4933, 16
      %v5122 = vrot.slane %v5120, 4
      %v5123 = vor.u32 %v5122, %v5118
      %v5124 = vrot.slane %v5123, 4
      %v5126 = vshll.u32 %v4934, 16
      %v5128 = vrot.slane %v5126, 5
      %v5129 = vsel %vm1012, %v5124, %v5128
      %v5131 = vshrl.u32 %v4935, 16
      %v5133 = vrot.slane %v5131, 4
      %v5134 = vshll.u32 %v4935, 16
      %v5136 = vrot.slane %v5134, 5
      %v5137 = vor.u32 %v5133, %v5136
      %v5138 = vrot.slane %v5137, 4
      %v5140 = vshll.u32 %v4936, 16
      %v5142 = vrot.slane %v5140, 5
      %v5143 = vsel %vm1012, %v5138, %v5142
      %v5144 = vshrl.u32 %v4936, 16
      %v5146 = vrot.slane %v5144, 4
      %v5147 = vor.u32 %v5146, %v5142
      %v5148 = vrot.slane %v5147, 4
      %v5150 = vshll.u32 %v4937, 16
      %v5152 = vrot.slane %v5150, 5
      %v5153 = vsel %vm1012, %v5148, %v5152
      %v5155 = vshrl.u32 %v4938, 16
      %v5157 = vrot.slane %v5155, 4
      %v5158 = vshll.u32 %v4938, 16
      %v5160 = vrot.slane %v5158, 5
      %v5161 = vor.u32 %v5157, %v5160
      %v5162 = vrot.slane %v5161, 4
      %v5164 = vshll.u32 %v4939, 16
      %v5166 = vrot.slane %v5164, 5
      %v5167 = vsel %vm1012, %v5162, %v5166
      %v5168 = vshrl.u32 %v4939, 16
      %v5170 = vrot.slane %v5168, 4
      %v5171 = vor.u32 %v5170, %v5166
      %v5172 = vrot.slane %v5171, 4
      %v5174 = vshll.u32 %v4940, 16
      %v5176 = vrot.slane %v5174, 5
      %v5177 = vsel %vm1012, %v5172, %v5176
      %v5179 = vshrl.u32 %v4941, 16
      %v5181 = vrot.slane %v5179, 4
      %v5182 = vshll.u32 %v4941, 16
      %v5184 = vrot.slane %v5182, 5
      %v5185 = vor.u32 %v5181, %v5184
      %v5186 = vrot.slane %v5185, 4
      %v5188 = vshll.u32 %v4942, 16
      %v5190 = vrot.slane %v5188, 5
      %v5191 = vsel %vm1012, %v5186, %v5190
      %v5192 = vshrl.u32 %v4942, 16
      %v5194 = vrot.slane %v5192, 4
      %v5195 = vor.u32 %v5194, %v5190
      %v5196 = vrot.slane %v5195, 4
      %v5198 = vshll.u32 %v4943, 16
      %v5200 = vrot.slane %v5198, 5
      %v5201 = vsel %vm1012, %v5196, %v5200
      %v5203 = vshrl.u32 %v4944, 16
      %v5205 = vrot.slane %v5203, 4
      %v5206 = vshll.u32 %v4944, 16
      %v5208 = vrot.slane %v5206, 5
      %v5209 = vor.u32 %v5205, %v5208
      %v5210 = vrot.slane %v5209, 4
      %v5212 = vshll.u32 %v4945, 16
      %v5214 = vrot.slane %v5212, 5
      %v5215 = vsel %vm1012, %v5210, %v5214
      %v5216 = vshrl.u32 %v4945, 16
      %v5218 = vrot.slane %v5216, 4
      %v5219 = vor.u32 %v5218, %v5214
      %v5220 = vrot.slane %v5219, 4
      %v5222 = vshll.u32 %v4946, 16
      %v5224 = vrot.slane %v5222, 5
      %v5225 = vsel %vm1012, %v5220, %v5224
      %v5227 = vshrl.u32 %v4947, 16
      %v5229 = vrot.slane %v5227, 4
      %v5230 = vshll.u32 %v4947, 16
      %v5232 = vrot.slane %v5230, 5
      %v5233 = vor.u32 %v5229, %v5232
      %v5234 = vrot.slane %v5233, 4
      %v5236 = vshll.u32 %v4948, 16
      %v5238 = vrot.slane %v5236, 5
      %v5239 = vsel %vm1012, %v5234, %v5238
      %v5240 = vshrl.u32 %v4948, 16
      %v5242 = vrot.slane %v5240, 4
      %v5243 = vor.u32 %v5242, %v5238
      %v5244 = vrot.slane %v5243, 4
      %v5246 = vshll.u32 %v4949, 16
      %v5248 = vrot.slane %v5246, 5
      %v5249 = vsel %vm1012, %v5244, %v5248
      %v5251 = vshrl.u32 %v4950, 16
      %v5253 = vrot.slane %v5251, 4
      %v5254 = vshll.u32 %v4950, 16
      %v5256 = vrot.slane %v5254, 5
      %v5257 = vor.u32 %v5253, %v5256
      %v5258 = vrot.slane %v5257, 4
      %v5260 = vshll.u32 %v4951, 16
      %v5262 = vrot.slane %v5260, 5
      %v5263 = vsel %vm1012, %v5258, %v5262
      %v5264 = vshrl.u32 %v4951, 16
      %v5266 = vrot.slane %v5264, 4
      %v5267 = vor.u32 %v5266, %v5262
      %v5268 = vrot.slane %v5267, 4
      %v5270 = vshll.u32 %v4952, 16
      %v5272 = vrot.slane %v5270, 5
      %v5273 = vsel %vm1012, %v5268, %v5272
      %v5275 = vshrl.u32 %v4953, 16
      %v5277 = vrot.slane %v5275, 4
      %v5278 = vshll.u32 %v4953, 16
      %v5280 = vrot.slane %v5278, 5
      %v5281 = vor.u32 %v5277, %v5280
      %v5282 = vrot.slane %v5281, 4
      %v5284 = vshll.u32 %v4954, 16
      %v5286 = vrot.slane %v5284, 5
      %v5287 = vsel %vm1012, %v5282, %v5286
      %v5288 = vshrl.u32 %v4954, 16
      %v5290 = vrot.slane %v5288, 4
      %v5291 = vor.u32 %v5290, %v5286
      %v5292 = vrot.slane %v5291, 4
      %v5294 = vshll.u32 %v4955, 16
      %v5296 = vrot.slane %v5294, 5
      %v5297 = vsel %vm1012, %v5292, %v5296
      %v5299 = vshrl.u32 %v4956, 16
      %v5301 = vrot.slane %v5299, 4
      %v5302 = vshll.u32 %v4956, 16
      %v5304 = vrot.slane %v5302, 5
      %v5305 = vor.u32 %v5301, %v5304
      %v5306 = vrot.slane %v5305, 4
      %v5308 = vshll.u32 %v4957, 16
      %v5310 = vrot.slane %v5308, 5
      %v5311 = vsel %vm1012, %v5306, %v5310
      %v5312 = vshrl.u32 %v4957, 16
      %v5314 = vrot.slane %v5312, 4
      %v5315 = vor.u32 %v5314, %v5310
      %v5316 = vrot.slane %v5315, 4
      %v5318 = vshll.u32 %v4958, 16
      %v5320 = vrot.slane %v5318, 5
      %v5321 = vsel %vm1012, %v5316, %v5320
      %v5323 = vshrl.u32 %v4959, 16
      %v5325 = vrot.slane %v5323, 4
      %v5326 = vshll.u32 %v4959, 16
      %v5328 = vrot.slane %v5326, 5
      %v5329 = vor.u32 %v5325, %v5328
      %v5330 = vrot.slane %v5329, 4
      %v5332 = vshll.u32 %v4960, 16
      %v5334 = vrot.slane %v5332, 5
      %v5335 = vsel %vm1012, %v5330, %v5334
      %v5336 = vshrl.u32 %v4960, 16
      %v5338 = vrot.slane %v5336, 4
      %v5339 = vor.u32 %v5338, %v5334
      %v5340 = vrot.slane %v5339, 4
      %v5342 = vshll.u32 %v4961, 16
      %v5344 = vrot.slane %v5342, 5
      %v5345 = vsel %vm1012, %v5340, %v5344
      %v5346 = vunpack.c.l.b16 %v4975
      %v5347 = vunpack.c.l.b16 %v4985
      %v5348 = vunpack.c.l.b16 %v4999
      %v5349 = vunpack.c.l.b16 %v5009
      %v5350 = vunpack.c.l.b16 %v5023
      %v5351 = vunpack.c.l.b16 %v5033
      %v5352 = vunpack.c.l.b16 %v5047
      %v5353 = vunpack.c.l.b16 %v5057
      %v5354 = vunpack.c.l.b16 %v5071
      %v5355 = vunpack.c.l.b16 %v5081
      %v5356 = vunpack.c.l.b16 %v5095
      %v5357 = vunpack.c.l.b16 %v5105
      %v5358 = vunpack.c.l.b16 %v5119
      %v5359 = vunpack.c.l.b16 %v5129
      %v5360 = vunpack.c.l.b16 %v5143
      %v5361 = vunpack.c.l.b16 %v5153
      %v5362 = vunpack.c.l.b16 %v5167
      %v5363 = vunpack.c.l.b16 %v5177
      %v5364 = vunpack.c.l.b16 %v5191
      %v5365 = vunpack.c.l.b16 %v5201
      %v5366 = vunpack.c.l.b16 %v5215
      %v5367 = vunpack.c.l.b16 %v5225
      %v5368 = vunpack.c.l.b16 %v5239
      %v5369 = vunpack.c.l.b16 %v5249
      %v5370 = vunpack.c.l.b16 %v5263
      %v5371 = vunpack.c.l.b16 %v5273
      %v5372 = vunpack.c.l.b16 %v5287
      %v5373 = vunpack.c.l.b16 %v5297
      %v5374 = vunpack.c.l.b16 %v5311
      %v5375 = vunpack.c.l.b16 %v5321
      %v5376 = vunpack.c.l.b16 %v5335
      %v5377 = vunpack.c.l.b16 %v5345
      %v5378 = vpack.c.b16 %v5347, %v5346
      %v5379 = vpack.c.b16 %v5349, %v5348
      %v5380 = vpack.c.b16 %v5351, %v5350
      %v5381 = vpack.c.b16 %v5353, %v5352
      %v5382 = vpack.c.b16 %v5355, %v5354
      %v5383 = vpack.c.b16 %v5357, %v5356
      %v5384 = vpack.c.b16 %v5359, %v5358
      %v5385 = vpack.c.b16 %v5361, %v5360
      %v5386 = vpack.c.b16 %v5363, %v5362
      %v5387 = vpack.c.b16 %v5365, %v5364
      %v5388 = vpack.c.b16 %v5367, %v5366
      %v5389 = vpack.c.b16 %v5369, %v5368
      %v5390 = vpack.c.b16 %v5371, %v5370
      %v5391 = vpack.c.b16 %v5373, %v5372
      %v5392 = vpack.c.b16 %v5375, %v5374
      %v5393 = vpack.c.b16 %v5377, %v5376
      %5394 = vrot.lane.b32.xlu0 %v5378, 4
      %v5395 = vpop.permute.xlu0 %5394
      %5396 = vrot.lane.b32.xlu0 %v5379, 4
      %v5397 = vpop.permute.xlu0 %5396
      %5398 = vrot.lane.b32.xlu0 %v5380, 4
      %v5399 = vpop.permute.xlu0 %5398
      %5400 = vrot.lane.b32.xlu0 %v5381, 4
      %v5401 = vpop.permute.xlu0 %5400
      %5402 = vrot.lane.b32.xlu0 %v5382, 4
      %v5403 = vpop.permute.xlu0 %5402
      %5404 = vrot.lane.b32.xlu0 %v5383, 4
      %v5405 = vpop.permute.xlu0 %5404
      %5406 = vrot.lane.b32.xlu0 %v5384, 4
      %v5407 = vpop.permute.xlu0 %5406
      %5408 = vrot.lane.b32.xlu0 %v5385, 4
      %v5409 = vpop.permute.xlu0 %5408
      %5410 = vrot.lane.b32.xlu0 %v5386, 4
      %v5411 = vpop.permute.xlu0 %5410
      %5412 = vrot.lane.b32.xlu0 %v5387, 4
      %v5413 = vpop.permute.xlu0 %5412
      %5414 = vrot.lane.b32.xlu0 %v5388, 4
      %v5415 = vpop.permute.xlu0 %5414
      %5416 = vrot.lane.b32.xlu0 %v5389, 4
      %v5417 = vpop.permute.xlu0 %5416
      %5418 = vrot.lane.b32.xlu0 %v5390, 4
      %v5419 = vpop.permute.xlu0 %5418
      %5420 = vrot.lane.b32.xlu0 %v5391, 4
      %v5421 = vpop.permute.xlu0 %5420
      %5422 = vrot.lane.b32.xlu0 %v5392, 4
      %v5423 = vpop.permute.xlu0 %5422
      %5424 = vrot.lane.b32.xlu0 %v5393, 4
      %v5425 = vpop.permute.xlu0 %5424
      %5442 = vst.msk [vmem:[#allocation3] sm:$0xff] %vm1493, %v5395
      %5443 = vst.msk [vmem:[#allocation3 + $0x8] sm:$0xff] %vm1493, %v5397
      %5444 = vst.msk [vmem:[#allocation3 + $0x10] sm:$0xff] %vm1493, %v5399
      %5445 = vst.msk [vmem:[#allocation3 + $0x18] sm:$0xff] %vm1493, %v5401
      %5446 = vst.msk [vmem:[#allocation3 + $0x20] sm:$0xff] %vm1493, %v5403
      %5447 = vst.msk [vmem:[#allocation3 + $0x28] sm:$0xff] %vm1493, %v5405
      %5448 = vst.msk [vmem:[#allocation3 + $0x30] sm:$0xff] %vm1493, %v5407
      %5449 = vst.msk [vmem:[#allocation3 + $0x38] sm:$0xff] %vm1493, %v5409
      %5450 = vst.msk [vmem:[#allocation3 + $0x40] sm:$0xff] %vm1493, %v5411
      %5451 = vst.msk [vmem:[#allocation3 + $0x48] sm:$0xff] %vm1493, %v5413
      %5452 = vst.msk [vmem:[#allocation3 + $0x50] sm:$0xff] %vm1493, %v5415
      %5453 = vst.msk [vmem:[#allocation3 + $0x58] sm:$0xff] %vm1493, %v5417
      %5454 = vst.msk [vmem:[#allocation3 + $0x60] sm:$0xff] %vm1493, %v5419
      %5455 = vst.msk [vmem:[#allocation3 + $0x68] sm:$0xff] %vm1493, %v5421
      %5456 = vst.msk [vmem:[#allocation3 + $0x70] sm:$0xff] %vm1493, %v5423
      %5457 = vst.msk [vmem:[#allocation3 + $0x78] sm:$0xff] %vm1493, %v5425
      %v5458 = vld [vmem:[#allocation2] sm:$0xe]
      %v5459 = vld [vmem:[#allocation2 + $0x4] sm:$0xf]
      %v5460 = vld [vmem:[#allocation2 + $0x8] sm:$0x1]
      %v5461 = vld [vmem:[#allocation2 + $0xc] sm:$0xe]
      %v5462 = vld [vmem:[#allocation2 + $0x10] sm:$0xf]
      %v5463 = vld [vmem:[#allocation2 + $0x14] sm:$0x1]
      %v5464 = vld [vmem:[#allocation2 + $0x18] sm:$0xe]
      %v5465 = vld [vmem:[#allocation2 + $0x1c] sm:$0xf]
      %v5466 = vld [vmem:[#allocation2 + $0x20] sm:$0x1]
      %v5467 = vld [vmem:[#allocation2 + $0x24] sm:$0xe]
      %v5468 = vld [vmem:[#allocation2 + $0x28] sm:$0xf]
      %v5469 = vld [vmem:[#allocation2 + $0x2c] sm:$0x1]
      %v5470 = vld [vmem:[#allocation2 + $0x30] sm:$0xe]
      %v5471 = vld [vmem:[#allocation2 + $0x34] sm:$0xf]
      %v5472 = vld [vmem:[#allocation2 + $0x38] sm:$0x1]
      %v5473 = vld [vmem:[#allocation2 + $0x3c] sm:$0xe]
      %v5474 = vld [vmem:[#allocation2 + $0x40] sm:$0xf]
      %v5475 = vld [vmem:[#allocation2 + $0x44] sm:$0x1]
      %v5476 = vld [vmem:[#allocation2 + $0x48] sm:$0xe]
      %v5477 = vld [vmem:[#allocation2 + $0x4c] sm:$0xf]
      %v5478 = vld [vmem:[#allocation2 + $0x50] sm:$0x1]
      %v5479 = vld [vmem:[#allocation2 + $0x54] sm:$0xe]
      %v5480 = vld [vmem:[#allocation2 + $0x58] sm:$0xf]
      %v5481 = vld [vmem:[#allocation2 + $0x5c] sm:$0x1]
      %v5482 = vld [vmem:[#allocation2 + $0x60] sm:$0xe]
      %v5483 = vld [vmem:[#allocation2 + $0x64] sm:$0xf]
      %v5484 = vld [vmem:[#allocation2 + $0x68] sm:$0x1]
      %v5485 = vld [vmem:[#allocation2 + $0x6c] sm:$0xe]
      %v5486 = vld [vmem:[#allocation2 + $0x70] sm:$0xf]
      %v5487 = vld [vmem:[#allocation2 + $0x74] sm:$0x1]
      %v5488 = vld [vmem:[#allocation2 + $0x78] sm:$0xe]
      %v5489 = vld [vmem:[#allocation2 + $0x7c] sm:$0xf]
      %v5490 = vld [vmem:[#allocation2 + $0x80] sm:$0x1]
      %v5491 = vld [vmem:[#allocation2 + $0x84] sm:$0xe]
      %v5492 = vld [vmem:[#allocation2 + $0x88] sm:$0xf]
      %v5493 = vld [vmem:[#allocation2 + $0x8c] sm:$0x1]
      %v5494 = vld [vmem:[#allocation2 + $0x90] sm:$0xe]
      %v5495 = vld [vmem:[#allocation2 + $0x94] sm:$0xf]
      %v5496 = vld [vmem:[#allocation2 + $0x98] sm:$0x1]
      %v5497 = vld [vmem:[#allocation2 + $0x9c] sm:$0xe]
      %v5498 = vld [vmem:[#allocation2 + $0xa0] sm:$0xf]
      %v5499 = vld [vmem:[#allocation2 + $0xa4] sm:$0x1]
      %v5500 = vld [vmem:[#allocation2 + $0xa8] sm:$0xe]
      %v5501 = vld [vmem:[#allocation2 + $0xac] sm:$0xf]
      %v5502 = vld [vmem:[#allocation2 + $0xb0] sm:$0x1]
      %v5503 = vld [vmem:[#allocation2 + $0xb4] sm:$0xe]
      %v5504 = vld [vmem:[#allocation2 + $0xb8] sm:$0xf]
      %v5505 = vld [vmem:[#allocation2 + $0xbc] sm:$0x1]
      %v5554 = vrot.slane %v5458, 5
      %v5555 = vrot.slane %v5554, 4
      %v5556 = vrot.slane %v5459, 5
      %v5557 = vsel %vm1608, %v5555, %v5556
      %v5558 = vrot.slane %v5556, 4
      %v5559 = vrot.slane %v5460, 5
      %v5560 = vsel %vm1608, %v5558, %v5559
      %v5561 = vrot.slane %v5461, 5
      %v5562 = vrot.slane %v5561, 4
      %v5563 = vrot.slane %v5462, 5
      %v5564 = vsel %vm1608, %v5562, %v5563
      %v5565 = vrot.slane %v5563, 4
      %v5566 = vrot.slane %v5463, 5
      %v5567 = vsel %vm1608, %v5565, %v5566
      %v5568 = vrot.slane %v5464, 5
      %v5569 = vrot.slane %v5568, 4
      %v5570 = vrot.slane %v5465, 5
      %v5571 = vsel %vm1608, %v5569, %v5570
      %v5572 = vrot.slane %v5570, 4
      %v5573 = vrot.slane %v5466, 5
      %v5574 = vsel %vm1608, %v5572, %v5573
      %v5575 = vrot.slane %v5467, 5
      %v5576 = vrot.slane %v5575, 4
      %v5577 = vrot.slane %v5468, 5
      %v5578 = vsel %vm1608, %v5576, %v5577
      %v5579 = vrot.slane %v5577, 4
      %v5580 = vrot.slane %v5469, 5
      %v5581 = vsel %vm1608, %v5579, %v5580
      %v5582 = vrot.slane %v5470, 5
      %v5583 = vrot.slane %v5582, 4
      %v5584 = vrot.slane %v5471, 5
      %v5585 = vsel %vm1608, %v5583, %v5584
      %v5586 = vrot.slane %v5584, 4
      %v5587 = vrot.slane %v5472, 5
      %v5588 = vsel %vm1608, %v5586, %v5587
      %v5589 = vrot.slane %v5473, 5
      %v5590 = vrot.slane %v5589, 4
      %v5591 = vrot.slane %v5474, 5
      %v5592 = vsel %vm1608, %v5590, %v5591
      %v5593 = vrot.slane %v5591, 4
      %v5594 = vrot.slane %v5475, 5
      %v5595 = vsel %vm1608, %v5593, %v5594
      %v5596 = vrot.slane %v5476, 5
      %v5597 = vrot.slane %v5596, 4
      %v5598 = vrot.slane %v5477, 5
      %v5599 = vsel %vm1608, %v5597, %v5598
      %v5600 = vrot.slane %v5598, 4
      %v5601 = vrot.slane %v5478, 5
      %v5602 = vsel %vm1608, %v5600, %v5601
      %v5603 = vrot.slane %v5479, 5
      %v5604 = vrot.slane %v5603, 4
      %v5605 = vrot.slane %v5480, 5
      %v5606 = vsel %vm1608, %v5604, %v5605
      %v5607 = vrot.slane %v5605, 4
      %v5608 = vrot.slane %v5481, 5
      %v5609 = vsel %vm1608, %v5607, %v5608
      %v5610 = vrot.slane %v5482, 5
      %v5611 = vrot.slane %v5610, 4
      %v5612 = vrot.slane %v5483, 5
      %v5613 = vsel %vm1608, %v5611, %v5612
      %v5614 = vrot.slane %v5612, 4
      %v5615 = vrot.slane %v5484, 5
      %v5616 = vsel %vm1608, %v5614, %v5615
      %v5617 = vrot.slane %v5485, 5
      %v5618 = vrot.slane %v5617, 4
      %v5619 = vrot.slane %v5486, 5
      %v5620 = vsel %vm1608, %v5618, %v5619
      %v5621 = vrot.slane %v5619, 4
      %v5622 = vrot.slane %v5487, 5
      %v5623 = vsel %vm1608, %v5621, %v5622
      %v5624 = vrot.slane %v5488, 5
      %v5625 = vrot.slane %v5624, 4
      %v5626 = vrot.slane %v5489, 5
      %v5627 = vsel %vm1608, %v5625, %v5626
      %v5628 = vrot.slane %v5626, 4
      %v5629 = vrot.slane %v5490, 5
      %v5630 = vsel %vm1608, %v5628, %v5629
      %v5631 = vrot.slane %v5491, 5
      %v5632 = vrot.slane %v5631, 4
      %v5633 = vrot.slane %v5492, 5
      %v5634 = vsel %vm1608, %v5632, %v5633
      %v5635 = vrot.slane %v5633, 4
      %v5636 = vrot.slane %v5493, 5
      %v5637 = vsel %vm1608, %v5635, %v5636
      %v5638 = vrot.slane %v5494, 5
      %v5639 = vrot.slane %v5638, 4
      %v5640 = vrot.slane %v5495, 5
      %v5641 = vsel %vm1608, %v5639, %v5640
      %v5642 = vrot.slane %v5640, 4
      %v5643 = vrot.slane %v5496, 5
      %v5644 = vsel %vm1608, %v5642, %v5643
      %v5645 = vrot.slane %v5497, 5
      %v5646 = vrot.slane %v5645, 4
      %v5647 = vrot.slane %v5498, 5
      %v5648 = vsel %vm1608, %v5646, %v5647
      %v5649 = vrot.slane %v5647, 4
      %v5650 = vrot.slane %v5499, 5
      %v5651 = vsel %vm1608, %v5649, %v5650
      %v5652 = vrot.slane %v5500, 5
      %v5653 = vrot.slane %v5652, 4
      %v5654 = vrot.slane %v5501, 5
      %v5655 = vsel %vm1608, %v5653, %v5654
      %v5656 = vrot.slane %v5654, 4
      %v5657 = vrot.slane %v5502, 5
      %v5658 = vsel %vm1608, %v5656, %v5657
      %v5659 = vrot.slane %v5503, 5
      %v5660 = vrot.slane %v5659, 4
      %v5661 = vrot.slane %v5504, 5
      %v5662 = vsel %vm1608, %v5660, %v5661
      %v5663 = vrot.slane %v5661, 4
      %v5664 = vrot.slane %v5505, 5
      %v5665 = vsel %vm1608, %v5663, %v5664
      %v5666 = vunpack.c.l.b16 %v5557
      %v5667 = vunpack.c.l.b16 %v5560
      %v5668 = vunpack.c.l.b16 %v5564
      %v5669 = vunpack.c.l.b16 %v5567
      %v5670 = vunpack.c.l.b16 %v5571
      %v5671 = vunpack.c.l.b16 %v5574
      %v5672 = vunpack.c.l.b16 %v5578
      %v5673 = vunpack.c.l.b16 %v5581
      %v5674 = vunpack.c.l.b16 %v5585
      %v5675 = vunpack.c.l.b16 %v5588
      %v5676 = vunpack.c.l.b16 %v5592
      %v5677 = vunpack.c.l.b16 %v5595
      %v5678 = vunpack.c.l.b16 %v5599
      %v5679 = vunpack.c.l.b16 %v5602
      %v5680 = vunpack.c.l.b16 %v5606
      %v5681 = vunpack.c.l.b16 %v5609
      %v5682 = vunpack.c.l.b16 %v5613
      %v5683 = vunpack.c.l.b16 %v5616
      %v5684 = vunpack.c.l.b16 %v5620
      %v5685 = vunpack.c.l.b16 %v5623
      %v5686 = vunpack.c.l.b16 %v5627
      %v5687 = vunpack.c.l.b16 %v5630
      %v5688 = vunpack.c.l.b16 %v5634
      %v5689 = vunpack.c.l.b16 %v5637
      %v5690 = vunpack.c.l.b16 %v5641
      %v5691 = vunpack.c.l.b16 %v5644
      %v5692 = vunpack.c.l.b16 %v5648
      %v5693 = vunpack.c.l.b16 %v5651
      %v5694 = vunpack.c.l.b16 %v5655
      %v5695 = vunpack.c.l.b16 %v5658
      %v5696 = vunpack.c.l.b16 %v5662
      %v5697 = vunpack.c.l.b16 %v5665
      %v5698 = vpack.c.b16 %v5667, %v5666
      %v5699 = vpack.c.b16 %v5669, %v5668
      %v5700 = vpack.c.b16 %v5671, %v5670
      %v5701 = vpack.c.b16 %v5673, %v5672
      %v5702 = vpack.c.b16 %v5675, %v5674
      %v5703 = vpack.c.b16 %v5677, %v5676
      %v5704 = vpack.c.b16 %v5679, %v5678
      %v5705 = vpack.c.b16 %v5681, %v5680
      %v5706 = vpack.c.b16 %v5683, %v5682
      %v5707 = vpack.c.b16 %v5685, %v5684
      %v5708 = vpack.c.b16 %v5687, %v5686
      %v5709 = vpack.c.b16 %v5689, %v5688
      %v5710 = vpack.c.b16 %v5691, %v5690
      %v5711 = vpack.c.b16 %v5693, %v5692
      %v5712 = vpack.c.b16 %v5695, %v5694
      %v5713 = vpack.c.b16 %v5697, %v5696
      %5714 = vrot.lane.b32.xlu0 %v5698, 8
      %v5715 = vpop.permute.xlu0 %5714
      %5716 = vrot.lane.b32.xlu0 %v5699, 8
      %v5717 = vpop.permute.xlu0 %5716
      %5718 = vrot.lane.b32.xlu0 %v5700, 8
      %v5719 = vpop.permute.xlu0 %5718
      %5720 = vrot.lane.b32.xlu0 %v5701, 8
      %v5721 = vpop.permute.xlu0 %5720
      %5722 = vrot.lane.b32.xlu0 %v5702, 8
      %v5723 = vpop.permute.xlu0 %5722
      %5724 = vrot.lane.b32.xlu0 %v5703, 8
      %v5725 = vpop.permute.xlu0 %5724
      %5726 = vrot.lane.b32.xlu0 %v5704, 8
      %v5727 = vpop.permute.xlu0 %5726
      %5728 = vrot.lane.b32.xlu0 %v5705, 8
      %v5729 = vpop.permute.xlu0 %5728
      %5730 = vrot.lane.b32.xlu0 %v5706, 8
      %v5731 = vpop.permute.xlu0 %5730
      %5732 = vrot.lane.b32.xlu0 %v5707, 8
      %v5733 = vpop.permute.xlu0 %5732
      %5734 = vrot.lane.b32.xlu0 %v5708, 8
      %v5735 = vpop.permute.xlu0 %5734
      %5736 = vrot.lane.b32.xlu0 %v5709, 8
      %v5737 = vpop.permute.xlu0 %5736
      %5738 = vrot.lane.b32.xlu0 %v5710, 8
      %v5739 = vpop.permute.xlu0 %5738
      %5740 = vrot.lane.b32.xlu0 %v5711, 8
      %v5741 = vpop.permute.xlu0 %5740
      %5742 = vrot.lane.b32.xlu0 %v5712, 8
      %v5743 = vpop.permute.xlu0 %5742
      %5744 = vrot.lane.b32.xlu0 %v5713, 8
      %v5745 = vpop.permute.xlu0 %5744
      %5762 = vst.msk [vmem:[#allocation3] sm:$0xff] %vm1817, %v5715
      %5763 = vst.msk [vmem:[#allocation3 + $0x8] sm:$0xff] %vm1817, %v5717
      %5764 = vst.msk [vmem:[#allocation3 + $0x10] sm:$0xff] %vm1817, %v5719
      %5765 = vst.msk [vmem:[#allocation3 + $0x18] sm:$0xff] %vm1817, %v5721
      %5766 = vst.msk [vmem:[#allocation3 + $0x20] sm:$0xff] %vm1817, %v5723
      %5767 = vst.msk [vmem:[#allocation3 + $0x28] sm:$0xff] %vm1817, %v5725
      %5768 = vst.msk [vmem:[#allocation3 + $0x30] sm:$0xff] %vm1817, %v5727
      %5769 = vst.msk [vmem:[#allocation3 + $0x38] sm:$0xff] %vm1817, %v5729
      %5770 = vst.msk [vmem:[#allocation3 + $0x40] sm:$0xff] %vm1817, %v5731
      %5771 = vst.msk [vmem:[#allocation3 + $0x48] sm:$0xff] %vm1817, %v5733
      %5772 = vst.msk [vmem:[#allocation3 + $0x50] sm:$0xff] %vm1817, %v5735
      %5773 = vst.msk [vmem:[#allocation3 + $0x58] sm:$0xff] %vm1817, %v5737
      %5774 = vst.msk [vmem:[#allocation3 + $0x60] sm:$0xff] %vm1817, %v5739
      %5775 = vst.msk [vmem:[#allocation3 + $0x68] sm:$0xff] %vm1817, %v5741
      %5776 = vst.msk [vmem:[#allocation3 + $0x70] sm:$0xff] %vm1817, %v5743
      %5777 = vst.msk [vmem:[#allocation3 + $0x78] sm:$0xff] %vm1817, %v5745
      %v5778 = vld [vmem:[%s702] sm:$0xf]
      %v5779 = vld [vmem:[%s702 + $0x4] sm:$0xf]
      %v5780 = vld [vmem:[%s702 + $0xc] sm:$0xf]
      %v5781 = vld [vmem:[%s702 + $0x10] sm:$0xf]
      %v5782 = vld [vmem:[%s702 + $0x18] sm:$0xf]
      %v5783 = vld [vmem:[%s702 + $0x1c] sm:$0xf]
      %v5784 = vld [vmem:[%s702 + $0x24] sm:$0xf]
      %v5785 = vld [vmem:[%s702 + $0x28] sm:$0xf]
      %v5786 = vld [vmem:[%s702 + $0x30] sm:$0xf]
      %v5787 = vld [vmem:[%s702 + $0x34] sm:$0xf]
      %v5788 = vld [vmem:[%s702 + $0x3c] sm:$0xf]
      %v5789 = vld [vmem:[%s702 + $0x40] sm:$0xf]
      %v5790 = vld [vmem:[%s702 + $0x48] sm:$0xf]
      %v5791 = vld [vmem:[%s702 + $0x4c] sm:$0xf]
      %v5792 = vld [vmem:[%s702 + $0x54] sm:$0xf]
      %v5793 = vld [vmem:[%s702 + $0x58] sm:$0xf]
      %v5794 = vld [vmem:[%s702 + $0x60] sm:$0xf]
      %v5795 = vld [vmem:[%s702 + $0x64] sm:$0xf]
      %v5796 = vld [vmem:[%s702 + $0x6c] sm:$0xf]
      %v5797 = vld [vmem:[%s702 + $0x70] sm:$0xf]
      %v5798 = vld [vmem:[%s702 + $0x78] sm:$0xf]
      %v5799 = vld [vmem:[%s702 + $0x7c] sm:$0xf]
      %v5800 = vld [vmem:[%s702 + $0x84] sm:$0xf]
      %v5801 = vld [vmem:[%s702 + $0x88] sm:$0xf]
      %v5802 = vld [vmem:[%s702 + $0x90] sm:$0xf]
      %v5803 = vld [vmem:[%s702 + $0x94] sm:$0xf]
      %v5804 = vld [vmem:[%s702 + $0x9c] sm:$0xf]
      %v5805 = vld [vmem:[%s702 + $0xa0] sm:$0xf]
      %v5806 = vld [vmem:[%s702 + $0xa8] sm:$0xf]
      %v5807 = vld [vmem:[%s702 + $0xac] sm:$0xf]
      %v5808 = vld [vmem:[%s702 + $0xb4] sm:$0xf]
      %v5809 = vld [vmem:[%s702 + $0xb8] sm:$0xf]
      %v5842 = vunpack.c.l.b16 %v5778
      %v5843 = vunpack.c.l.b16 %v5779
      %v5844 = vunpack.c.l.b16 %v5780
      %v5845 = vunpack.c.l.b16 %v5781
      %v5846 = vunpack.c.l.b16 %v5782
      %v5847 = vunpack.c.l.b16 %v5783
      %v5848 = vunpack.c.l.b16 %v5784
      %v5849 = vunpack.c.l.b16 %v5785
      %v5850 = vunpack.c.l.b16 %v5786
      %v5851 = vunpack.c.l.b16 %v5787
      %v5852 = vunpack.c.l.b16 %v5788
      %v5853 = vunpack.c.l.b16 %v5789
      %v5854 = vunpack.c.l.b16 %v5790
      %v5855 = vunpack.c.l.b16 %v5791
      %v5856 = vunpack.c.l.b16 %v5792
      %v5857 = vunpack.c.l.b16 %v5793
      %v5858 = vunpack.c.l.b16 %v5794
      %v5859 = vunpack.c.l.b16 %v5795
      %v5860 = vunpack.c.l.b16 %v5796
      %v5861 = vunpack.c.l.b16 %v5797
      %v5862 = vunpack.c.l.b16 %v5798
      %v5863 = vunpack.c.l.b16 %v5799
      %v5864 = vunpack.c.l.b16 %v5800
      %v5865 = vunpack.c.l.b16 %v5801
      %v5866 = vunpack.c.l.b16 %v5802
      %v5867 = vunpack.c.l.b16 %v5803
      %v5868 = vunpack.c.l.b16 %v5804
      %v5869 = vunpack.c.l.b16 %v5805
      %v5870 = vunpack.c.l.b16 %v5806
      %v5871 = vunpack.c.l.b16 %v5807
      %v5872 = vunpack.c.l.b16 %v5808
      %v5873 = vunpack.c.l.b16 %v5809
      %v5874 = vpack.c.b16 %v5843, %v5842
      %v5875 = vpack.c.b16 %v5845, %v5844
      %v5876 = vpack.c.b16 %v5847, %v5846
      %v5877 = vpack.c.b16 %v5849, %v5848
      %v5878 = vpack.c.b16 %v5851, %v5850
      %v5879 = vpack.c.b16 %v5853, %v5852
      %v5880 = vpack.c.b16 %v5855, %v5854
      %v5881 = vpack.c.b16 %v5857, %v5856
      %v5882 = vpack.c.b16 %v5859, %v5858
      %v5883 = vpack.c.b16 %v5861, %v5860
      %v5884 = vpack.c.b16 %v5863, %v5862
      %v5885 = vpack.c.b16 %v5865, %v5864
      %v5886 = vpack.c.b16 %v5867, %v5866
      %v5887 = vpack.c.b16 %v5869, %v5868
      %v5888 = vpack.c.b16 %v5871, %v5870
      %v5889 = vpack.c.b16 %v5873, %v5872
      %5890 = vrot.lane.b32.xlu0 %v5874, 12
      %v5891 = vpop.permute.xlu0 %5890
      %5892 = vrot.lane.b32.xlu0 %v5875, 12
      %v5893 = vpop.permute.xlu0 %5892
      %5894 = vrot.lane.b32.xlu0 %v5876, 12
      %v5895 = vpop.permute.xlu0 %5894
      %5896 = vrot.lane.b32.xlu0 %v5877, 12
      %v5897 = vpop.permute.xlu0 %5896
      %5898 = vrot.lane.b32.xlu0 %v5878, 12
      %v5899 = vpop.permute.xlu0 %5898
      %5900 = vrot.lane.b32.xlu0 %v5879, 12
      %v5901 = vpop.permute.xlu0 %5900
      %5902 = vrot.lane.b32.xlu0 %v5880, 12
      %v5903 = vpop.permute.xlu0 %5902
      %5904 = vrot.lane.b32.xlu0 %v5881, 12
      %v5905 = vpop.permute.xlu0 %5904
      %5906 = vrot.lane.b32.xlu0 %v5882, 12
      %v5907 = vpop.permute.xlu0 %5906
      %5908 = vrot.lane.b32.xlu0 %v5883, 12
      %v5909 = vpop.permute.xlu0 %5908
      %5910 = vrot.lane.b32.xlu0 %v5884, 12
      %v5911 = vpop.permute.xlu0 %5910
      %5912 = vrot.lane.b32.xlu0 %v5885, 12
      %v5913 = vpop.permute.xlu0 %5912
      %5914 = vrot.lane.b32.xlu0 %v5886, 12
      %v5915 = vpop.permute.xlu0 %5914
      %5916 = vrot.lane.b32.xlu0 %v5887, 12
      %v5917 = vpop.permute.xlu0 %5916
      %5918 = vrot.lane.b32.xlu0 %v5888, 12
      %v5919 = vpop.permute.xlu0 %5918
      %5920 = vrot.lane.b32.xlu0 %v5889, 12
      %v5921 = vpop.permute.xlu0 %5920
      %5938 = vst.msk [vmem:[#allocation3] sm:$0xff] %vm1994, %v5891
      %5939 = vst.msk [vmem:[#allocation3 + $0x8] sm:$0xff] %vm1994, %v5893
      %5940 = vst.msk [vmem:[#allocation3 + $0x10] sm:$0xff] %vm1994, %v5895
      %5941 = vst.msk [vmem:[#allocation3 + $0x18] sm:$0xff] %vm1994, %v5897
      %5942 = vst.msk [vmem:[#allocation3 + $0x20] sm:$0xff] %vm1994, %v5899
      %5943 = vst.msk [vmem:[#allocation3 + $0x28] sm:$0xff] %vm1994, %v5901
      %5944 = vst.msk [vmem:[#allocation3 + $0x30] sm:$0xff] %vm1994, %v5903
      %5945 = vst.msk [vmem:[#allocation3 + $0x38] sm:$0xff] %vm1994, %v5905
      %5946 = vst.msk [vmem:[#allocation3 + $0x40] sm:$0xff] %vm1994, %v5907
      %5947 = vst.msk [vmem:[#allocation3 + $0x48] sm:$0xff] %vm1994, %v5909
      %5948 = vst.msk [vmem:[#allocation3 + $0x50] sm:$0xff] %vm1994, %v5911
      %5949 = vst.msk [vmem:[#allocation3 + $0x58] sm:$0xff] %vm1994, %v5913
      %5950 = vst.msk [vmem:[#allocation3 + $0x60] sm:$0xff] %vm1994, %v5915
      %5951 = vst.msk [vmem:[#allocation3 + $0x68] sm:$0xff] %vm1994, %v5917
      %5952 = vst.msk [vmem:[#allocation3 + $0x70] sm:$0xff] %vm1994, %v5919
      %5953 = vst.msk [vmem:[#allocation3 + $0x78] sm:$0xff] %vm1994, %v5921
      %v5954 = vld [vmem:[%s702] sm:$0xf]
      %v5955 = vld [vmem:[%s702 + $0x4] sm:$0xf]
      %v5956 = vld [vmem:[%s702 + $0x8] sm:$0x1]
      %v5957 = vld [vmem:[%s702 + $0xc] sm:$0xf]
      %v5958 = vld [vmem:[%s702 + $0x10] sm:$0xf]
      %v5959 = vld [vmem:[%s702 + $0x14] sm:$0x1]
      %v5960 = vld [vmem:[%s702 + $0x18] sm:$0xf]
      %v5961 = vld [vmem:[%s702 + $0x1c] sm:$0xf]
      %v5962 = vld [vmem:[%s702 + $0x20] sm:$0x1]
      %v5963 = vld [vmem:[%s702 + $0x24] sm:$0xf]
      %v5964 = vld [vmem:[%s702 + $0x28] sm:$0xf]
      %v5965 = vld [vmem:[%s702 + $0x2c] sm:$0x1]
      %v5966 = vld [vmem:[%s702 + $0x30] sm:$0xf]
      %v5967 = vld [vmem:[%s702 + $0x34] sm:$0xf]
      %v5968 = vld [vmem:[%s702 + $0x38] sm:$0x1]
      %v5969 = vld [vmem:[%s702 + $0x3c] sm:$0xf]
      %v5970 = vld [vmem:[%s702 + $0x40] sm:$0xf]
      %v5971 = vld [vmem:[%s702 + $0x44] sm:$0x1]
      %v5972 = vld [vmem:[%s702 + $0x48] sm:$0xf]
      %v5973 = vld [vmem:[%s702 + $0x4c] sm:$0xf]
      %v5974 = vld [vmem:[%s702 + $0x50] sm:$0x1]
      %v5975 = vld [vmem:[%s702 + $0x54] sm:$0xf]
      %v5976 = vld [vmem:[%s702 + $0x58] sm:$0xf]
      %v5977 = vld [vmem:[%s702 + $0x5c] sm:$0x1]
      %v5978 = vld [vmem:[%s702 + $0x60] sm:$0xf]
      %v5979 = vld [vmem:[%s702 + $0x64] sm:$0xf]
      %v5980 = vld [vmem:[%s702 + $0x68] sm:$0x1]
      %v5981 = vld [vmem:[%s702 + $0x6c] sm:$0xf]
      %v5982 = vld [vmem:[%s702 + $0x70] sm:$0xf]
      %v5983 = vld [vmem:[%s702 + $0x74] sm:$0x1]
      %v5984 = vld [vmem:[%s702 + $0x78] sm:$0xf]
      %v5985 = vld [vmem:[%s702 + $0x7c] sm:$0xf]
      %v5986 = vld [vmem:[%s702 + $0x80] sm:$0x1]
      %v5987 = vld [vmem:[%s702 + $0x84] sm:$0xf]
      %v5988 = vld [vmem:[%s702 + $0x88] sm:$0xf]
      %v5989 = vld [vmem:[%s702 + $0x8c] sm:$0x1]
      %v5990 = vld [vmem:[%s702 + $0x90] sm:$0xf]
      %v5991 = vld [vmem:[%s702 + $0x94] sm:$0xf]
      %v5992 = vld [vmem:[%s702 + $0x98] sm:$0x1]
      %v5993 = vld [vmem:[%s702 + $0x9c] sm:$0xf]
      %v5994 = vld [vmem:[%s702 + $0xa0] sm:$0xf]
      %v5995 = vld [vmem:[%s702 + $0xa4] sm:$0x1]
      %v5996 = vld [vmem:[%s702 + $0xa8] sm:$0xf]
      %v5997 = vld [vmem:[%s702 + $0xac] sm:$0xf]
      %v5998 = vld [vmem:[%s702 + $0xb0] sm:$0x1]
      %v5999 = vld [vmem:[%s702 + $0xb4] sm:$0xf]
      %v6000 = vld [vmem:[%s702 + $0xb8] sm:$0xf]
      %v6001 = vld [vmem:[%s702 + $0xbc] sm:$0x1]
      %v6003 = vshrl.u32 %v5954, 16
      %v6005 = vrot.slane %v6003, 4
      %v6006 = vshll.u32 %v5954, 16
      %v6008 = vrot.slane %v6006, 5
      %v6009 = vor.u32 %v6005, %v6008
      %v6010 = vrot.slane %v6009, 4
      %v6012 = vshll.u32 %v5955, 16
      %v6014 = vrot.slane %v6012, 5
      %v6015 = vsel %vm1012, %v6010, %v6014
      %v6016 = vshrl.u32 %v5955, 16
      %v6018 = vrot.slane %v6016, 4
      %v6019 = vor.u32 %v6018, %v6014
      %v6020 = vrot.slane %v6019, 4
      %v6022 = vshll.u32 %v5956, 16
      %v6024 = vrot.slane %v6022, 5
      %v6025 = vsel %vm1012, %v6020, %v6024
      %v6027 = vshrl.u32 %v5957, 16
      %v6029 = vrot.slane %v6027, 4
      %v6030 = vshll.u32 %v5957, 16
      %v6032 = vrot.slane %v6030, 5
      %v6033 = vor.u32 %v6029, %v6032
      %v6034 = vrot.slane %v6033, 4
      %v6036 = vshll.u32 %v5958, 16
      %v6038 = vrot.slane %v6036, 5
      %v6039 = vsel %vm1012, %v6034, %v6038
      %v6040 = vshrl.u32 %v5958, 16
      %v6042 = vrot.slane %v6040, 4
      %v6043 = vor.u32 %v6042, %v6038
      %v6044 = vrot.slane %v6043, 4
      %v6046 = vshll.u32 %v5959, 16
      %v6048 = vrot.slane %v6046, 5
      %v6049 = vsel %vm1012, %v6044, %v6048
      %v6051 = vshrl.u32 %v5960, 16
      %v6053 = vrot.slane %v6051, 4
      %v6054 = vshll.u32 %v5960, 16
      %v6056 = vrot.slane %v6054, 5
      %v6057 = vor.u32 %v6053, %v6056
      %v6058 = vrot.slane %v6057, 4
      %v6060 = vshll.u32 %v5961, 16
      %v6062 = vrot.slane %v6060, 5
      %v6063 = vsel %vm1012, %v6058, %v6062
      %v6064 = vshrl.u32 %v5961, 16
      %v6066 = vrot.slane %v6064, 4
      %v6067 = vor.u32 %v6066, %v6062
      %v6068 = vrot.slane %v6067, 4
      %v6070 = vshll.u32 %v5962, 16
      %v6072 = vrot.slane %v6070, 5
      %v6073 = vsel %vm1012, %v6068, %v6072
      %v6075 = vshrl.u32 %v5963, 16
      %v6077 = vrot.slane %v6075, 4
      %v6078 = vshll.u32 %v5963, 16
      %v6080 = vrot.slane %v6078, 5
      %v6081 = vor.u32 %v6077, %v6080
      %v6082 = vrot.slane %v6081, 4
      %v6084 = vshll.u32 %v5964, 16
      %v6086 = vrot.slane %v6084, 5
      %v6087 = vsel %vm1012, %v6082, %v6086
      %v6088 = vshrl.u32 %v5964, 16
      %v6090 = vrot.slane %v6088, 4
      %v6091 = vor.u32 %v6090, %v6086
      %v6092 = vrot.slane %v6091, 4
      %v6094 = vshll.u32 %v5965, 16
      %v6096 = vrot.slane %v6094, 5
      %v6097 = vsel %vm1012, %v6092, %v6096
      %v6099 = vshrl.u32 %v5966, 16
      %v6101 = vrot.slane %v6099, 4
      %v6102 = vshll.u32 %v5966, 16
      %v6104 = vrot.slane %v6102, 5
      %v6105 = vor.u32 %v6101, %v6104
      %v6106 = vrot.slane %v6105, 4
      %v6108 = vshll.u32 %v5967, 16
      %v6110 = vrot.slane %v6108, 5
      %v6111 = vsel %vm1012, %v6106, %v6110
      %v6112 = vshrl.u32 %v5967, 16
      %v6114 = vrot.slane %v6112, 4
      %v6115 = vor.u32 %v6114, %v6110
      %v6116 = vrot.slane %v6115, 4
      %v6118 = vshll.u32 %v5968, 16
      %v6120 = vrot.slane %v6118, 5
      %v6121 = vsel %vm1012, %v6116, %v6120
      %v6123 = vshrl.u32 %v5969, 16
      %v6125 = vrot.slane %v6123, 4
      %v6126 = vshll.u32 %v5969, 16
      %v6128 = vrot.slane %v6126, 5
      %v6129 = vor.u32 %v6125, %v6128
      %v6130 = vrot.slane %v6129, 4
      %v6132 = vshll.u32 %v5970, 16
      %v6134 = vrot.slane %v6132, 5
      %v6135 = vsel %vm1012, %v6130, %v6134
      %v6136 = vshrl.u32 %v5970, 16
      %v6138 = vrot.slane %v6136, 4
      %v6139 = vor.u32 %v6138, %v6134
      %v6140 = vrot.slane %v6139, 4
      %v6142 = vshll.u32 %v5971, 16
      %v6144 = vrot.slane %v6142, 5
      %v6145 = vsel %vm1012, %v6140, %v6144
      %v6147 = vshrl.u32 %v5972, 16
      %v6149 = vrot.slane %v6147, 4
      %v6150 = vshll.u32 %v5972, 16
      %v6152 = vrot.slane %v6150, 5
      %v6153 = vor.u32 %v6149, %v6152
      %v6154 = vrot.slane %v6153, 4
      %v6156 = vshll.u32 %v5973, 16
      %v6158 = vrot.slane %v6156, 5
      %v6159 = vsel %vm1012, %v6154, %v6158
      %v6160 = vshrl.u32 %v5973, 16
      %v6162 = vrot.slane %v6160, 4
      %v6163 = vor.u32 %v6162, %v6158
      %v6164 = vrot.slane %v6163, 4
      %v6166 = vshll.u32 %v5974, 16
      %v6168 = vrot.slane %v6166, 5
      %v6169 = vsel %vm1012, %v6164, %v6168
      %v6171 = vshrl.u32 %v5975, 16
      %v6173 = vrot.slane %v6171, 4
      %v6174 = vshll.u32 %v5975, 16
      %v6176 = vrot.slane %v6174, 5
      %v6177 = vor.u32 %v6173, %v6176
      %v6178 = vrot.slane %v6177, 4
      %v6180 = vshll.u32 %v5976, 16
      %v6182 = vrot.slane %v6180, 5
      %v6183 = vsel %vm1012, %v6178, %v6182
      %v6184 = vshrl.u32 %v5976, 16
      %v6186 = vrot.slane %v6184, 4
      %v6187 = vor.u32 %v6186, %v6182
      %v6188 = vrot.slane %v6187, 4
      %v6190 = vshll.u32 %v5977, 16
      %v6192 = vrot.slane %v6190, 5
      %v6193 = vsel %vm1012, %v6188, %v6192
      %v6195 = vshrl.u32 %v5978, 16
      %v6197 = vrot.slane %v6195, 4
      %v6198 = vshll.u32 %v5978, 16
      %v6200 = vrot.slane %v6198, 5
      %v6201 = vor.u32 %v6197, %v6200
      %v6202 = vrot.slane %v6201, 4
      %v6204 = vshll.u32 %v5979, 16
      %v6206 = vrot.slane %v6204, 5
      %v6207 = vsel %vm1012, %v6202, %v6206
      %v6208 = vshrl.u32 %v5979, 16
      %v6210 = vrot.slane %v6208, 4
      %v6211 = vor.u32 %v6210, %v6206
      %v6212 = vrot.slane %v6211, 4
      %v6214 = vshll.u32 %v5980, 16
      %v6216 = vrot.slane %v6214, 5
      %v6217 = vsel %vm1012, %v6212, %v6216
      %v6219 = vshrl.u32 %v5981, 16
      %v6221 = vrot.slane %v6219, 4
      %v6222 = vshll.u32 %v5981, 16
      %v6224 = vrot.slane %v6222, 5
      %v6225 = vor.u32 %v6221, %v6224
      %v6226 = vrot.slane %v6225, 4
      %v6228 = vshll.u32 %v5982, 16
      %v6230 = vrot.slane %v6228, 5
      %v6231 = vsel %vm1012, %v6226, %v6230
      %v6232 = vshrl.u32 %v5982, 16
      %v6234 = vrot.slane %v6232, 4
      %v6235 = vor.u32 %v6234, %v6230
      %v6236 = vrot.slane %v6235, 4
      %v6238 = vshll.u32 %v5983, 16
      %v6240 = vrot.slane %v6238, 5
      %v6241 = vsel %vm1012, %v6236, %v6240
      %v6243 = vshrl.u32 %v5984, 16
      %v6245 = vrot.slane %v6243, 4
      %v6246 = vshll.u32 %v5984, 16
      %v6248 = vrot.slane %v6246, 5
      %v6249 = vor.u32 %v6245, %v6248
      %v6250 = vrot.slane %v6249, 4
      %v6252 = vshll.u32 %v5985, 16
      %v6254 = vrot.slane %v6252, 5
      %v6255 = vsel %vm1012, %v6250, %v6254
      %v6256 = vshrl.u32 %v5985, 16
      %v6258 = vrot.slane %v6256, 4
      %v6259 = vor.u32 %v6258, %v6254
      %v6260 = vrot.slane %v6259, 4
      %v6262 = vshll.u32 %v5986, 16
      %v6264 = vrot.slane %v6262, 5
      %v6265 = vsel %vm1012, %v6260, %v6264
      %v6267 = vshrl.u32 %v5987, 16
      %v6269 = vrot.slane %v6267, 4
      %v6270 = vshll.u32 %v5987, 16
      %v6272 = vrot.slane %v6270, 5
      %v6273 = vor.u32 %v6269, %v6272
      %v6274 = vrot.slane %v6273, 4
      %v6276 = vshll.u32 %v5988, 16
      %v6278 = vrot.slane %v6276, 5
      %v6279 = vsel %vm1012, %v6274, %v6278
      %v6280 = vshrl.u32 %v5988, 16
      %v6282 = vrot.slane %v6280, 4
      %v6283 = vor.u32 %v6282, %v6278
      %v6284 = vrot.slane %v6283, 4
      %v6286 = vshll.u32 %v5989, 16
      %v6288 = vrot.slane %v6286, 5
      %v6289 = vsel %vm1012, %v6284, %v6288
      %v6291 = vshrl.u32 %v5990, 16
      %v6293 = vrot.slane %v6291, 4
      %v6294 = vshll.u32 %v5990, 16
      %v6296 = vrot.slane %v6294, 5
      %v6297 = vor.u32 %v6293, %v6296
      %v6298 = vrot.slane %v6297, 4
      %v6300 = vshll.u32 %v5991, 16
      %v6302 = vrot.slane %v6300, 5
      %v6303 = vsel %vm1012, %v6298, %v6302
      %v6304 = vshrl.u32 %v5991, 16
      %v6306 = vrot.slane %v6304, 4
      %v6307 = vor.u32 %v6306, %v6302
      %v6308 = vrot.slane %v6307, 4
      %v6310 = vshll.u32 %v5992, 16
      %v6312 = vrot.slane %v6310, 5
      %v6313 = vsel %vm1012, %v6308, %v6312
      %v6315 = vshrl.u32 %v5993, 16
      %v6317 = vrot.slane %v6315, 4
      %v6318 = vshll.u32 %v5993, 16
      %v6320 = vrot.slane %v6318, 5
      %v6321 = vor.u32 %v6317, %v6320
      %v6322 = vrot.slane %v6321, 4
      %v6324 = vshll.u32 %v5994, 16
      %v6326 = vrot.slane %v6324, 5
      %v6327 = vsel %vm1012, %v6322, %v6326
      %v6328 = vshrl.u32 %v5994, 16
      %v6330 = vrot.slane %v6328, 4
      %v6331 = vor.u32 %v6330, %v6326
      %v6332 = vrot.slane %v6331, 4
      %v6334 = vshll.u32 %v5995, 16
      %v6336 = vrot.slane %v6334, 5
      %v6337 = vsel %vm1012, %v6332, %v6336
      %v6339 = vshrl.u32 %v5996, 16
      %v6341 = vrot.slane %v6339, 4
      %v6342 = vshll.u32 %v5996, 16
      %v6344 = vrot.slane %v6342, 5
      %v6345 = vor.u32 %v6341, %v6344
      %v6346 = vrot.slane %v6345, 4
      %v6348 = vshll.u32 %v5997, 16
      %v6350 = vrot.slane %v6348, 5
      %v6351 = vsel %vm1012, %v6346, %v6350
      %v6352 = vshrl.u32 %v5997, 16
      %v6354 = vrot.slane %v6352, 4
      %v6355 = vor.u32 %v6354, %v6350
      %v6356 = vrot.slane %v6355, 4
      %v6358 = vshll.u32 %v5998, 16
      %v6360 = vrot.slane %v6358, 5
      %v6361 = vsel %vm1012, %v6356, %v6360
      %v6363 = vshrl.u32 %v5999, 16
      %v6365 = vrot.slane %v6363, 4
      %v6366 = vshll.u32 %v5999, 16
      %v6368 = vrot.slane %v6366, 5
      %v6369 = vor.u32 %v6365, %v6368
      %v6370 = vrot.slane %v6369, 4
      %v6372 = vshll.u32 %v6000, 16
      %v6374 = vrot.slane %v6372, 5
      %v6375 = vsel %vm1012, %v6370, %v6374
      %v6376 = vshrl.u32 %v6000, 16
      %v6378 = vrot.slane %v6376, 4
      %v6379 = vor.u32 %v6378, %v6374
      %v6380 = vrot.slane %v6379, 4
      %v6382 = vshll.u32 %v6001, 16
      %v6384 = vrot.slane %v6382, 5
      %v6385 = vsel %vm1012, %v6380, %v6384
      %v6386 = vunpack.c.l.b16 %v6015
      %v6387 = vunpack.c.l.b16 %v6025
      %v6388 = vunpack.c.l.b16 %v6039
      %v6389 = vunpack.c.l.b16 %v6049
      %v6390 = vunpack.c.l.b16 %v6063
      %v6391 = vunpack.c.l.b16 %v6073
      %v6392 = vunpack.c.l.b16 %v6087
      %v6393 = vunpack.c.l.b16 %v6097
      %v6394 = vunpack.c.l.b16 %v6111
      %v6395 = vunpack.c.l.b16 %v6121
      %v6396 = vunpack.c.l.b16 %v6135
      %v6397 = vunpack.c.l.b16 %v6145
      %v6398 = vunpack.c.l.b16 %v6159
      %v6399 = vunpack.c.l.b16 %v6169
      %v6400 = vunpack.c.l.b16 %v6183
      %v6401 = vunpack.c.l.b16 %v6193
      %v6402 = vunpack.c.l.b16 %v6207
      %v6403 = vunpack.c.l.b16 %v6217
      %v6404 = vunpack.c.l.b16 %v6231
      %v6405 = vunpack.c.l.b16 %v6241
      %v6406 = vunpack.c.l.b16 %v6255
      %v6407 = vunpack.c.l.b16 %v6265
      %v6408 = vunpack.c.l.b16 %v6279
      %v6409 = vunpack.c.l.b16 %v6289
      %v6410 = vunpack.c.l.b16 %v6303
      %v6411 = vunpack.c.l.b16 %v6313
      %v6412 = vunpack.c.l.b16 %v6327
      %v6413 = vunpack.c.l.b16 %v6337
      %v6414 = vunpack.c.l.b16 %v6351
      %v6415 = vunpack.c.l.b16 %v6361
      %v6416 = vunpack.c.l.b16 %v6375
      %v6417 = vunpack.c.l.b16 %v6385
      %v6418 = vpack.c.b16 %v6387, %v6386
      %v6419 = vpack.c.b16 %v6389, %v6388
      %v6420 = vpack.c.b16 %v6391, %v6390
      %v6421 = vpack.c.b16 %v6393, %v6392
      %v6422 = vpack.c.b16 %v6395, %v6394
      %v6423 = vpack.c.b16 %v6397, %v6396
      %v6424 = vpack.c.b16 %v6399, %v6398
      %v6425 = vpack.c.b16 %v6401, %v6400
      %v6426 = vpack.c.b16 %v6403, %v6402
      %v6427 = vpack.c.b16 %v6405, %v6404
      %v6428 = vpack.c.b16 %v6407, %v6406
      %v6429 = vpack.c.b16 %v6409, %v6408
      %v6430 = vpack.c.b16 %v6411, %v6410
      %v6431 = vpack.c.b16 %v6413, %v6412
      %v6432 = vpack.c.b16 %v6415, %v6414
      %v6433 = vpack.c.b16 %v6417, %v6416
      %6434 = vrot.lane.b32.xlu0 %v6418, 16
      %v6435 = vpop.permute.xlu0 %6434
      %6436 = vrot.lane.b32.xlu0 %v6419, 16
      %v6437 = vpop.permute.xlu0 %6436
      %6438 = vrot.lane.b32.xlu0 %v6420, 16
      %v6439 = vpop.permute.xlu0 %6438
      %6440 = vrot.lane.b32.xlu0 %v6421, 16
      %v6441 = vpop.permute.xlu0 %6440
      %6442 = vrot.lane.b32.xlu0 %v6422, 16
      %v6443 = vpop.permute.xlu0 %6442
      %6444 = vrot.lane.b32.xlu0 %v6423, 16
      %v6445 = vpop.permute.xlu0 %6444
      %6446 = vrot.lane.b32.xlu0 %v6424, 16
      %v6447 = vpop.permute.xlu0 %6446
      %6448 = vrot.lane.b32.xlu0 %v6425, 16
      %v6449 = vpop.permute.xlu0 %6448
      %6450 = vrot.lane.b32.xlu0 %v6426, 16
      %v6451 = vpop.permute.xlu0 %6450
      %6452 = vrot.lane.b32.xlu0 %v6427, 16
      %v6453 = vpop.permute.xlu0 %6452
      %6454 = vrot.lane.b32.xlu0 %v6428, 16
      %v6455 = vpop.permute.xlu0 %6454
      %6456 = vrot.lane.b32.xlu0 %v6429, 16
      %v6457 = vpop.permute.xlu0 %6456
      %6458 = vrot.lane.b32.xlu0 %v6430, 16
      %v6459 = vpop.permute.xlu0 %6458
      %6460 = vrot.lane.b32.xlu0 %v6431, 16
      %v6461 = vpop.permute.xlu0 %6460
      %6462 = vrot.lane.b32.xlu0 %v6432, 16
      %v6463 = vpop.permute.xlu0 %6462
      %6464 = vrot.lane.b32.xlu0 %v6433, 16
      %v6465 = vpop.permute.xlu0 %6464
      %6482 = vst.msk [vmem:[#allocation3] sm:$0xff] %vm2539, %v6435
      %6483 = vst.msk [vmem:[#allocation3 + $0x8] sm:$0xff] %vm2539, %v6437
      %6484 = vst.msk [vmem:[#allocation3 + $0x10] sm:$0xff] %vm2539, %v6439
      %6485 = vst.msk [vmem:[#allocation3 + $0x18] sm:$0xff] %vm2539, %v6441
      %6486 = vst.msk [vmem:[#allocation3 + $0x20] sm:$0xff] %vm2539, %v6443
      %6487 = vst.msk [vmem:[#allocation3 + $0x28] sm:$0xff] %vm2539, %v6445
      %6488 = vst.msk [vmem:[#allocation3 + $0x30] sm:$0xff] %vm2539, %v6447
      %6489 = vst.msk [vmem:[#allocation3 + $0x38] sm:$0xff] %vm2539, %v6449
      %6490 = vst.msk [vmem:[#allocation3 + $0x40] sm:$0xff] %vm2539, %v6451
      %6491 = vst.msk [vmem:[#allocation3 + $0x48] sm:$0xff] %vm2539, %v6453
      %6492 = vst.msk [vmem:[#allocation3 + $0x50] sm:$0xff] %vm2539, %v6455
      %6493 = vst.msk [vmem:[#allocation3 + $0x58] sm:$0xff] %vm2539, %v6457
      %6494 = vst.msk [vmem:[#allocation3 + $0x60] sm:$0xff] %vm2539, %v6459
      %6495 = vst.msk [vmem:[#allocation3 + $0x68] sm:$0xff] %vm2539, %v6461
      %6496 = vst.msk [vmem:[#allocation3 + $0x70] sm:$0xff] %vm2539, %v6463
      %6497 = vst.msk [vmem:[#allocation3 + $0x78] sm:$0xff] %vm2539, %v6465
      %v6498 = vld [vmem:[%s702] sm:$0xe]
      %v6499 = vld [vmem:[%s702 + $0x4] sm:$0xf]
      %v6500 = vld [vmem:[%s702 + $0x8] sm:$0x1]
      %v6501 = vld [vmem:[%s702 + $0xc] sm:$0xe]
      %v6502 = vld [vmem:[%s702 + $0x10] sm:$0xf]
      %v6503 = vld [vmem:[%s702 + $0x14] sm:$0x1]
      %v6504 = vld [vmem:[%s702 + $0x18] sm:$0xe]
      %v6505 = vld [vmem:[%s702 + $0x1c] sm:$0xf]
      %v6506 = vld [vmem:[%s702 + $0x20] sm:$0x1]
      %v6507 = vld [vmem:[%s702 + $0x24] sm:$0xe]
      %v6508 = vld [vmem:[%s702 + $0x28] sm:$0xf]
      %v6509 = vld [vmem:[%s702 + $0x2c] sm:$0x1]
      %v6510 = vld [vmem:[%s702 + $0x30] sm:$0xe]
      %v6511 = vld [vmem:[%s702 + $0x34] sm:$0xf]
      %v6512 = vld [vmem:[%s702 + $0x38] sm:$0x1]
      %v6513 = vld [vmem:[%s702 + $0x3c] sm:$0xe]
      %v6514 = vld [vmem:[%s702 + $0x40] sm:$0xf]
      %v6515 = vld [vmem:[%s702 + $0x44] sm:$0x1]
      %v6516 = vld [vmem:[%s702 + $0x48] sm:$0xe]
      %v6517 = vld [vmem:[%s702 + $0x4c] sm:$0xf]
      %v6518 = vld [vmem:[%s702 + $0x50] sm:$0x1]
      %v6519 = vld [vmem:[%s702 + $0x54] sm:$0xe]
      %v6520 = vld [vmem:[%s702 + $0x58] sm:$0xf]
      %v6521 = vld [vmem:[%s702 + $0x5c] sm:$0x1]
      %v6522 = vld [vmem:[%s702 + $0x60] sm:$0xe]
      %v6523 = vld [vmem:[%s702 + $0x64] sm:$0xf]
      %v6524 = vld [vmem:[%s702 + $0x68] sm:$0x1]
      %v6525 = vld [vmem:[%s702 + $0x6c] sm:$0xe]
      %v6526 = vld [vmem:[%s702 + $0x70] sm:$0xf]
      %v6527 = vld [vmem:[%s702 + $0x74] sm:$0x1]
      %v6528 = vld [vmem:[%s702 + $0x78] sm:$0xe]
      %v6529 = vld [vmem:[%s702 + $0x7c] sm:$0xf]
      %v6530 = vld [vmem:[%s702 + $0x80] sm:$0x1]
      %v6531 = vld [vmem:[%s702 + $0x84] sm:$0xe]
      %v6532 = vld [vmem:[%s702 + $0x88] sm:$0xf]
      %v6533 = vld [vmem:[%s702 + $0x8c] sm:$0x1]
      %v6534 = vld [vmem:[%s702 + $0x90] sm:$0xe]
      %v6535 = vld [vmem:[%s702 + $0x94] sm:$0xf]
      %v6536 = vld [vmem:[%s702 + $0x98] sm:$0x1]
      %v6537 = vld [vmem:[%s702 + $0x9c] sm:$0xe]
      %v6538 = vld [vmem:[%s702 + $0xa0] sm:$0xf]
      %v6539 = vld [vmem:[%s702 + $0xa4] sm:$0x1]
      %v6540 = vld [vmem:[%s702 + $0xa8] sm:$0xe]
      %v6541 = vld [vmem:[%s702 + $0xac] sm:$0xf]
      %v6542 = vld [vmem:[%s702 + $0xb0] sm:$0x1]
      %v6543 = vld [vmem:[%s702 + $0xb4] sm:$0xe]
      %v6544 = vld [vmem:[%s702 + $0xb8] sm:$0xf]
      %v6545 = vld [vmem:[%s702 + $0xbc] sm:$0x1]
      %v6594 = vrot.slane %v6498, 5
      %v6595 = vrot.slane %v6594, 4
      %v6596 = vrot.slane %v6499, 5
      %v6597 = vsel %vm1608, %v6595, %v6596
      %v6598 = vrot.slane %v6596, 4
      %v6599 = vrot.slane %v6500, 5
      %v6600 = vsel %vm1608, %v6598, %v6599
      %v6601 = vrot.slane %v6501, 5
      %v6602 = vrot.slane %v6601, 4
      %v6603 = vrot.slane %v6502, 5
      %v6604 = vsel %vm1608, %v6602, %v6603
      %v6605 = vrot.slane %v6603, 4
      %v6606 = vrot.slane %v6503, 5
      %v6607 = vsel %vm1608, %v6605, %v6606
      %v6608 = vrot.slane %v6504, 5
      %v6609 = vrot.slane %v6608, 4
      %v6610 = vrot.slane %v6505, 5
      %v6611 = vsel %vm1608, %v6609, %v6610
      %v6612 = vrot.slane %v6610, 4
      %v6613 = vrot.slane %v6506, 5
      %v6614 = vsel %vm1608, %v6612, %v6613
      %v6615 = vrot.slane %v6507, 5
      %v6616 = vrot.slane %v6615, 4
      %v6617 = vrot.slane %v6508, 5
      %v6618 = vsel %vm1608, %v6616, %v6617
      %v6619 = vrot.slane %v6617, 4
      %v6620 = vrot.slane %v6509, 5
      %v6621 = vsel %vm1608, %v6619, %v6620
      %v6622 = vrot.slane %v6510, 5
      %v6623 = vrot.slane %v6622, 4
      %v6624 = vrot.slane %v6511, 5
      %v6625 = vsel %vm1608, %v6623, %v6624
      %v6626 = vrot.slane %v6624, 4
      %v6627 = vrot.slane %v6512, 5
      %v6628 = vsel %vm1608, %v6626, %v6627
      %v6629 = vrot.slane %v6513, 5
      %v6630 = vrot.slane %v6629, 4
      %v6631 = vrot.slane %v6514, 5
      %v6632 = vsel %vm1608, %v6630, %v6631
      %v6633 = vrot.slane %v6631, 4
      %v6634 = vrot.slane %v6515, 5
      %v6635 = vsel %vm1608, %v6633, %v6634
      %v6636 = vrot.slane %v6516, 5
      %v6637 = vrot.slane %v6636, 4
      %v6638 = vrot.slane %v6517, 5
      %v6639 = vsel %vm1608, %v6637, %v6638
      %v6640 = vrot.slane %v6638, 4
      %v6641 = vrot.slane %v6518, 5
      %v6642 = vsel %vm1608, %v6640, %v6641
      %v6643 = vrot.slane %v6519, 5
      %v6644 = vrot.slane %v6643, 4
      %v6645 = vrot.slane %v6520, 5
      %v6646 = vsel %vm1608, %v6644, %v6645
      %v6647 = vrot.slane %v6645, 4
      %v6648 = vrot.slane %v6521, 5
      %v6649 = vsel %vm1608, %v6647, %v6648
      %v6650 = vrot.slane %v6522, 5
      %v6651 = vrot.slane %v6650, 4
      %v6652 = vrot.slane %v6523, 5
      %v6653 = vsel %vm1608, %v6651, %v6652
      %v6654 = vrot.slane %v6652, 4
      %v6655 = vrot.slane %v6524, 5
      %v6656 = vsel %vm1608, %v6654, %v6655
      %v6657 = vrot.slane %v6525, 5
      %v6658 = vrot.slane %v6657, 4
      %v6659 = vrot.slane %v6526, 5
      %v6660 = vsel %vm1608, %v6658, %v6659
      %v6661 = vrot.slane %v6659, 4
      %v6662 = vrot.slane %v6527, 5
      %v6663 = vsel %vm1608, %v6661, %v6662
      %v6664 = vrot.slane %v6528, 5
      %v6665 = vrot.slane %v6664, 4
      %v6666 = vrot.slane %v6529, 5
      %v6667 = vsel %vm1608, %v6665, %v6666
      %v6668 = vrot.slane %v6666, 4
      %v6669 = vrot.slane %v6530, 5
      %v6670 = vsel %vm1608, %v6668, %v6669
      %v6671 = vrot.slane %v6531, 5
      %v6672 = vrot.slane %v6671, 4
      %v6673 = vrot.slane %v6532, 5
      %v6674 = vsel %vm1608, %v6672, %v6673
      %v6675 = vrot.slane %v6673, 4
      %v6676 = vrot.slane %v6533, 5
      %v6677 = vsel %vm1608, %v6675, %v6676
      %v6678 = vrot.slane %v6534, 5
      %v6679 = vrot.slane %v6678, 4
      %v6680 = vrot.slane %v6535, 5
      %v6681 = vsel %vm1608, %v6679, %v6680
      %v6682 = vrot.slane %v6680, 4
      %v6683 = vrot.slane %v6536, 5
      %v6684 = vsel %vm1608, %v6682, %v6683
      %v6685 = vrot.slane %v6537, 5
      %v6686 = vrot.slane %v6685, 4
      %v6687 = vrot.slane %v6538, 5
      %v6688 = vsel %vm1608, %v6686, %v6687
      %v6689 = vrot.slane %v6687, 4
      %v6690 = vrot.slane %v6539, 5
      %v6691 = vsel %vm1608, %v6689, %v6690
      %v6692 = vrot.slane %v6540, 5
      %v6693 = vrot.slane %v6692, 4
      %v6694 = vrot.slane %v6541, 5
      %v6695 = vsel %vm1608, %v6693, %v6694
      %v6696 = vrot.slane %v6694, 4
      %v6697 = vrot.slane %v6542, 5
      %v6698 = vsel %vm1608, %v6696, %v6697
      %v6699 = vrot.slane %v6543, 5
      %v6700 = vrot.slane %v6699, 4
      %v6701 = vrot.slane %v6544, 5
      %v6702 = vsel %vm1608, %v6700, %v6701
      %v6703 = vrot.slane %v6701, 4
      %v6704 = vrot.slane %v6545, 5
      %v6705 = vsel %vm1608, %v6703, %v6704
      %v6706 = vunpack.c.l.b16 %v6597
      %v6707 = vunpack.c.l.b16 %v6600
      %v6708 = vunpack.c.l.b16 %v6604
      %v6709 = vunpack.c.l.b16 %v6607
      %v6710 = vunpack.c.l.b16 %v6611
      %v6711 = vunpack.c.l.b16 %v6614
      %v6712 = vunpack.c.l.b16 %v6618
      %v6713 = vunpack.c.l.b16 %v6621
      %v6714 = vunpack.c.l.b16 %v6625
      %v6715 = vunpack.c.l.b16 %v6628
      %v6716 = vunpack.c.l.b16 %v6632
      %v6717 = vunpack.c.l.b16 %v6635
      %v6718 = vunpack.c.l.b16 %v6639
      %v6719 = vunpack.c.l.b16 %v6642
      %v6720 = vunpack.c.l.b16 %v6646
      %v6721 = vunpack.c.l.b16 %v6649
      %v6722 = vunpack.c.l.b16 %v6653
      %v6723 = vunpack.c.l.b16 %v6656
      %v6724 = vunpack.c.l.b16 %v6660
      %v6725 = vunpack.c.l.b16 %v6663
      %v6726 = vunpack.c.l.b16 %v6667
      %v6727 = vunpack.c.l.b16 %v6670
      %v6728 = vunpack.c.l.b16 %v6674
      %v6729 = vunpack.c.l.b16 %v6677
      %v6730 = vunpack.c.l.b16 %v6681
      %v6731 = vunpack.c.l.b16 %v6684
      %v6732 = vunpack.c.l.b16 %v6688
      %v6733 = vunpack.c.l.b16 %v6691
      %v6734 = vunpack.c.l.b16 %v6695
      %v6735 = vunpack.c.l.b16 %v6698
      %v6736 = vunpack.c.l.b16 %v6702
      %v6737 = vunpack.c.l.b16 %v6705
      %v6738 = vpack.c.b16 %v6707, %v6706
      %v6739 = vpack.c.b16 %v6709, %v6708
      %v6740 = vpack.c.b16 %v6711, %v6710
      %v6741 = vpack.c.b16 %v6713, %v6712
      %v6742 = vpack.c.b16 %v6715, %v6714
      %v6743 = vpack.c.b16 %v6717, %v6716
      %v6744 = vpack.c.b16 %v6719, %v6718
      %v6745 = vpack.c.b16 %v6721, %v6720
      %v6746 = vpack.c.b16 %v6723, %v6722
      %v6747 = vpack.c.b16 %v6725, %v6724
      %v6748 = vpack.c.b16 %v6727, %v6726
      %v6749 = vpack.c.b16 %v6729, %v6728
      %v6750 = vpack.c.b16 %v6731, %v6730
      %v6751 = vpack.c.b16 %v6733, %v6732
      %v6752 = vpack.c.b16 %v6735, %v6734
      %v6753 = vpack.c.b16 %v6737, %v6736
      %6754 = vrot.lane.b32.xlu0 %v6738, 20
      %v6755 = vpop.permute.xlu0 %6754
      %6756 = vrot.lane.b32.xlu0 %v6739, 20
      %v6757 = vpop.permute.xlu0 %6756
      %6758 = vrot.lane.b32.xlu0 %v6740, 20
      %v6759 = vpop.permute.xlu0 %6758
      %6760 = vrot.lane.b32.xlu0 %v6741, 20
      %v6761 = vpop.permute.xlu0 %6760
      %6762 = vrot.lane.b32.xlu0 %v6742, 20
      %v6763 = vpop.permute.xlu0 %6762
      %6764 = vrot.lane.b32.xlu0 %v6743, 20
      %v6765 = vpop.permute.xlu0 %6764
      %6766 = vrot.lane.b32.xlu0 %v6744, 20
      %v6767 = vpop.permute.xlu0 %6766
      %6768 = vrot.lane.b32.xlu0 %v6745, 20
      %v6769 = vpop.permute.xlu0 %6768
      %6770 = vrot.lane.b32.xlu0 %v6746, 20
      %v6771 = vpop.permute.xlu0 %6770
      %6772 = vrot.lane.b32.xlu0 %v6747, 20
      %v6773 = vpop.permute.xlu0 %6772
      %6774 = vrot.lane.b32.xlu0 %v6748, 20
      %v6775 = vpop.permute.xlu0 %6774
      %6776 = vrot.lane.b32.xlu0 %v6749, 20
      %v6777 = vpop.permute.xlu0 %6776
      %6778 = vrot.lane.b32.xlu0 %v6750, 20
      %v6779 = vpop.permute.xlu0 %6778
      %6780 = vrot.lane.b32.xlu0 %v6751, 20
      %v6781 = vpop.permute.xlu0 %6780
      %6782 = vrot.lane.b32.xlu0 %v6752, 20
      %v6783 = vpop.permute.xlu0 %6782
      %6784 = vrot.lane.b32.xlu0 %v6753, 20
      %v6785 = vpop.permute.xlu0 %6784
      %6802 = vst.msk [vmem:[#allocation3] sm:$0xff] %vm2860, %v6755
      %6803 = vst.msk [vmem:[#allocation3 + $0x8] sm:$0xff] %vm2860, %v6757
      %6804 = vst.msk [vmem:[#allocation3 + $0x10] sm:$0xff] %vm2860, %v6759
      %6805 = vst.msk [vmem:[#allocation3 + $0x18] sm:$0xff] %vm2860, %v6761
      %6806 = vst.msk [vmem:[#allocation3 + $0x20] sm:$0xff] %vm2860, %v6763
      %6807 = vst.msk [vmem:[#allocation3 + $0x28] sm:$0xff] %vm2860, %v6765
      %6808 = vst.msk [vmem:[#allocation3 + $0x30] sm:$0xff] %vm2860, %v6767
      %6809 = vst.msk [vmem:[#allocation3 + $0x38] sm:$0xff] %vm2860, %v6769
      %6810 = vst.msk [vmem:[#allocation3 + $0x40] sm:$0xff] %vm2860, %v6771
      %6811 = vst.msk [vmem:[#allocation3 + $0x48] sm:$0xff] %vm2860, %v6773
      %6812 = vst.msk [vmem:[#allocation3 + $0x50] sm:$0xff] %vm2860, %v6775
      %6813 = vst.msk [vmem:[#allocation3 + $0x58] sm:$0xff] %vm2860, %v6777
      %6814 = vst.msk [vmem:[#allocation3 + $0x60] sm:$0xff] %vm2860, %v6779
      %6815 = vst.msk [vmem:[#allocation3 + $0x68] sm:$0xff] %vm2860, %v6781
      %6816 = vst.msk [vmem:[#allocation3 + $0x70] sm:$0xff] %vm2860, %v6783
      %6817 = vst.msk [vmem:[#allocation3 + $0x78] sm:$0xff] %vm2860, %v6785
      %v6818 = vld [vmem:[%s2877] sm:$0xf]
      %v6819 = vld [vmem:[%s2877 + $0x4] sm:$0xf]
      %v6820 = vld [vmem:[%s2877 + $0xc] sm:$0xf]
      %v6821 = vld [vmem:[%s2877 + $0x10] sm:$0xf]
      %v6822 = vld [vmem:[%s2877 + $0x18] sm:$0xf]
      %v6823 = vld [vmem:[%s2877 + $0x1c] sm:$0xf]
      %v6824 = vld [vmem:[%s2877 + $0x24] sm:$0xf]
      %v6825 = vld [vmem:[%s2877 + $0x28] sm:$0xf]
      %v6826 = vld [vmem:[%s2877 + $0x30] sm:$0xf]
      %v6827 = vld [vmem:[%s2877 + $0x34] sm:$0xf]
      %v6828 = vld [vmem:[%s2877 + $0x3c] sm:$0xf]
      %v6829 = vld [vmem:[%s2877 + $0x40] sm:$0xf]
      %v6830 = vld [vmem:[%s2877 + $0x48] sm:$0xf]
      %v6831 = vld [vmem:[%s2877 + $0x4c] sm:$0xf]
      %v6832 = vld [vmem:[%s2877 + $0x54] sm:$0xf]
      %v6833 = vld [vmem:[%s2877 + $0x58] sm:$0xf]
      %v6834 = vld [vmem:[%s2877 + $0x60] sm:$0xf]
      %v6835 = vld [vmem:[%s2877 + $0x64] sm:$0xf]
      %v6836 = vld [vmem:[%s2877 + $0x6c] sm:$0xf]
      %v6837 = vld [vmem:[%s2877 + $0x70] sm:$0xf]
      %v6838 = vld [vmem:[%s2877 + $0x78] sm:$0xf]
      %v6839 = vld [vmem:[%s2877 + $0x7c] sm:$0xf]
      %v6840 = vld [vmem:[%s2877 + $0x84] sm:$0xf]
      %v6841 = vld [vmem:[%s2877 + $0x88] sm:$0xf]
      %v6842 = vld [vmem:[%s2877 + $0x90] sm:$0xf]
      %v6843 = vld [vmem:[%s2877 + $0x94] sm:$0xf]
      %v6844 = vld [vmem:[%s2877 + $0x9c] sm:$0xf]
      %v6845 = vld [vmem:[%s2877 + $0xa0] sm:$0xf]
      %v6846 = vld [vmem:[%s2877 + $0xa8] sm:$0xf]
      %v6847 = vld [vmem:[%s2877 + $0xac] sm:$0xf]
      %v6848 = vld [vmem:[%s2877 + $0xb4] sm:$0xf]
      %v6849 = vld [vmem:[%s2877 + $0xb8] sm:$0xf]
      %v6882 = vunpack.c.l.b16 %v6818
      %v6883 = vunpack.c.l.b16 %v6819
      %v6884 = vunpack.c.l.b16 %v6820
      %v6885 = vunpack.c.l.b16 %v6821
      %v6886 = vunpack.c.l.b16 %v6822
      %v6887 = vunpack.c.l.b16 %v6823
      %v6888 = vunpack.c.l.b16 %v6824
      %v6889 = vunpack.c.l.b16 %v6825
      %v6890 = vunpack.c.l.b16 %v6826
      %v6891 = vunpack.c.l.b16 %v6827
      %v6892 = vunpack.c.l.b16 %v6828
      %v6893 = vunpack.c.l.b16 %v6829
      %v6894 = vunpack.c.l.b16 %v6830
      %v6895 = vunpack.c.l.b16 %v6831
      %v6896 = vunpack.c.l.b16 %v6832
      %v6897 = vunpack.c.l.b16 %v6833
      %v6898 = vunpack.c.l.b16 %v6834
      %v6899 = vunpack.c.l.b16 %v6835
      %v6900 = vunpack.c.l.b16 %v6836
      %v6901 = vunpack.c.l.b16 %v6837
      %v6902 = vunpack.c.l.b16 %v6838
      %v6903 = vunpack.c.l.b16 %v6839
      %v6904 = vunpack.c.l.b16 %v6840
      %v6905 = vunpack.c.l.b16 %v6841
      %v6906 = vunpack.c.l.b16 %v6842
      %v6907 = vunpack.c.l.b16 %v6843
      %v6908 = vunpack.c.l.b16 %v6844
      %v6909 = vunpack.c.l.b16 %v6845
      %v6910 = vunpack.c.l.b16 %v6846
      %v6911 = vunpack.c.l.b16 %v6847
      %v6912 = vunpack.c.l.b16 %v6848
      %v6913 = vunpack.c.l.b16 %v6849
      %v6914 = vpack.c.b16 %v6883, %v6882
      %v6915 = vpack.c.b16 %v6885, %v6884
      %v6916 = vpack.c.b16 %v6887, %v6886
      %v6917 = vpack.c.b16 %v6889, %v6888
      %v6918 = vpack.c.b16 %v6891, %v6890
      %v6919 = vpack.c.b16 %v6893, %v6892
      %v6920 = vpack.c.b16 %v6895, %v6894
      %v6921 = vpack.c.b16 %v6897, %v6896
      %v6922 = vpack.c.b16 %v6899, %v6898
      %v6923 = vpack.c.b16 %v6901, %v6900
      %v6924 = vpack.c.b16 %v6903, %v6902
      %v6925 = vpack.c.b16 %v6905, %v6904
      %v6926 = vpack.c.b16 %v6907, %v6906
      %v6927 = vpack.c.b16 %v6909, %v6908
      %v6928 = vpack.c.b16 %v6911, %v6910
      %v6929 = vpack.c.b16 %v6913, %v6912
      %6930 = vrot.lane.b32.xlu0 %v6914, 24
      %v6931 = vpop.permute.xlu0 %6930
      %6932 = vrot.lane.b32.xlu0 %v6915, 24
      %v6933 = vpop.permute.xlu0 %6932
      %6934 = vrot.lane.b32.xlu0 %v6916, 24
      %v6935 = vpop.permute.xlu0 %6934
      %6936 = vrot.lane.b32.xlu0 %v6917, 24
      %v6937 = vpop.permute.xlu0 %6936
      %6938 = vrot.lane.b32.xlu0 %v6918, 24
      %v6939 = vpop.permute.xlu0 %6938
      %6940 = vrot.lane.b32.xlu0 %v6919, 24
      %v6941 = vpop.permute.xlu0 %6940
      %6942 = vrot.lane.b32.xlu0 %v6920, 24
      %v6943 = vpop.permute.xlu0 %6942
      %6944 = vrot.lane.b32.xlu0 %v6921, 24
      %v6945 = vpop.permute.xlu0 %6944
      %6946 = vrot.lane.b32.xlu0 %v6922, 24
      %v6947 = vpop.permute.xlu0 %6946
      %6948 = vrot.lane.b32.xlu0 %v6923, 24
      %v6949 = vpop.permute.xlu0 %6948
      %6950 = vrot.lane.b32.xlu0 %v6924, 24
      %v6951 = vpop.permute.xlu0 %6950
      %6952 = vrot.lane.b32.xlu0 %v6925, 24
      %v6953 = vpop.permute.xlu0 %6952
      %6954 = vrot.lane.b32.xlu0 %v6926, 24
      %v6955 = vpop.permute.xlu0 %6954
      %6956 = vrot.lane.b32.xlu0 %v6927, 24
      %v6957 = vpop.permute.xlu0 %6956
      %6958 = vrot.lane.b32.xlu0 %v6928, 24
      %v6959 = vpop.permute.xlu0 %6958
      %6960 = vrot.lane.b32.xlu0 %v6929, 24
      %v6961 = vpop.permute.xlu0 %6960
      %6978 = vst.msk [vmem:[#allocation3] sm:$0xff] %vm3038, %v6931
      %6979 = vst.msk [vmem:[#allocation3 + $0x8] sm:$0xff] %vm3038, %v6933
      %6980 = vst.msk [vmem:[#allocation3 + $0x10] sm:$0xff] %vm3038, %v6935
      %6981 = vst.msk [vmem:[#allocation3 + $0x18] sm:$0xff] %vm3038, %v6937
      %6982 = vst.msk [vmem:[#allocation3 + $0x20] sm:$0xff] %vm3038, %v6939
      %6983 = vst.msk [vmem:[#allocation3 + $0x28] sm:$0xff] %vm3038, %v6941
      %6984 = vst.msk [vmem:[#allocation3 + $0x30] sm:$0xff] %vm3038, %v6943
      %6985 = vst.msk [vmem:[#allocation3 + $0x38] sm:$0xff] %vm3038, %v6945
      %6986 = vst.msk [vmem:[#allocation3 + $0x40] sm:$0xff] %vm3038, %v6947
      %6987 = vst.msk [vmem:[#allocation3 + $0x48] sm:$0xff] %vm3038, %v6949
      %6988 = vst.msk [vmem:[#allocation3 + $0x50] sm:$0xff] %vm3038, %v6951
      %6989 = vst.msk [vmem:[#allocation3 + $0x58] sm:$0xff] %vm3038, %v6953
      %6990 = vst.msk [vmem:[#allocation3 + $0x60] sm:$0xff] %vm3038, %v6955
      %6991 = vst.msk [vmem:[#allocation3 + $0x68] sm:$0xff] %vm3038, %v6957
      %6992 = vst.msk [vmem:[#allocation3 + $0x70] sm:$0xff] %vm3038, %v6959
      %6993 = vst.msk [vmem:[#allocation3 + $0x78] sm:$0xff] %vm3038, %v6961
      %v6994 = vld [vmem:[%s2877] sm:$0xf]
      %v6995 = vld [vmem:[%s2877 + $0x4] sm:$0xf]
      %v6996 = vld [vmem:[%s2877 + $0x8] sm:$0x1]
      %v6997 = vld [vmem:[%s2877 + $0xc] sm:$0xf]
      %v6998 = vld [vmem:[%s2877 + $0x10] sm:$0xf]
      %v6999 = vld [vmem:[%s2877 + $0x14] sm:$0x1]
      %v7000 = vld [vmem:[%s2877 + $0x18] sm:$0xf]
      %v7001 = vld [vmem:[%s2877 + $0x1c] sm:$0xf]
      %v7002 = vld [vmem:[%s2877 + $0x20] sm:$0x1]
      %v7003 = vld [vmem:[%s2877 + $0x24] sm:$0xf]
      %v7004 = vld [vmem:[%s2877 + $0x28] sm:$0xf]
      %v7005 = vld [vmem:[%s2877 + $0x2c] sm:$0x1]
      %v7006 = vld [vmem:[%s2877 + $0x30] sm:$0xf]
      %v7007 = vld [vmem:[%s2877 + $0x34] sm:$0xf]
      %v7008 = vld [vmem:[%s2877 + $0x38] sm:$0x1]
      %v7009 = vld [vmem:[%s2877 + $0x3c] sm:$0xf]
      %v7010 = vld [vmem:[%s2877 + $0x40] sm:$0xf]
      %v7011 = vld [vmem:[%s2877 + $0x44] sm:$0x1]
      %v7012 = vld [vmem:[%s2877 + $0x48] sm:$0xf]
      %v7013 = vld [vmem:[%s2877 + $0x4c] sm:$0xf]
      %v7014 = vld [vmem:[%s2877 + $0x50] sm:$0x1]
      %v7015 = vld [vmem:[%s2877 + $0x54] sm:$0xf]
      %v7016 = vld [vmem:[%s2877 + $0x58] sm:$0xf]
      %v7017 = vld [vmem:[%s2877 + $0x5c] sm:$0x1]
      %v7018 = vld [vmem:[%s2877 + $0x60] sm:$0xf]
      %v7019 = vld [vmem:[%s2877 + $0x64] sm:$0xf]
      %v7020 = vld [vmem:[%s2877 + $0x68] sm:$0x1]
      %v7021 = vld [vmem:[%s2877 + $0x6c] sm:$0xf]
      %v7022 = vld [vmem:[%s2877 + $0x70] sm:$0xf]
      %v7023 = vld [vmem:[%s2877 + $0x74] sm:$0x1]
      %v7024 = vld [vmem:[%s2877 + $0x78] sm:$0xf]
      %v7025 = vld [vmem:[%s2877 + $0x7c] sm:$0xf]
      %v7026 = vld [vmem:[%s2877 + $0x80] sm:$0x1]
      %v7027 = vld [vmem:[%s2877 + $0x84] sm:$0xf]
      %v7028 = vld [vmem:[%s2877 + $0x88] sm:$0xf]
      %v7029 = vld [vmem:[%s2877 + $0x8c] sm:$0x1]
      %v7030 = vld [vmem:[%s2877 + $0x90] sm:$0xf]
      %v7031 = vld [vmem:[%s2877 + $0x94] sm:$0xf]
      %v7032 = vld [vmem:[%s2877 + $0x98] sm:$0x1]
      %v7033 = vld [vmem:[%s2877 + $0x9c] sm:$0xf]
      %v7034 = vld [vmem:[%s2877 + $0xa0] sm:$0xf]
      %v7035 = vld [vmem:[%s2877 + $0xa4] sm:$0x1]
      %v7036 = vld [vmem:[%s2877 + $0xa8] sm:$0xf]
      %v7037 = vld [vmem:[%s2877 + $0xac] sm:$0xf]
      %v7038 = vld [vmem:[%s2877 + $0xb0] sm:$0x1]
      %v7039 = vld [vmem:[%s2877 + $0xb4] sm:$0xf]
      %v7040 = vld [vmem:[%s2877 + $0xb8] sm:$0xf]
      %v7041 = vld [vmem:[%s2877 + $0xbc] sm:$0x1]
      %v7043 = vshrl.u32 %v6994, 16
      %v7045 = vrot.slane %v7043, 4
      %v7046 = vshll.u32 %v6994, 16
      %v7048 = vrot.slane %v7046, 5
      %v7049 = vor.u32 %v7045, %v7048
      %v7050 = vrot.slane %v7049, 4
      %v7052 = vshll.u32 %v6995, 16
      %v7054 = vrot.slane %v7052, 5
      %v7055 = vsel %vm1012, %v7050, %v7054
      %v7056 = vshrl.u32 %v6995, 16
      %v7058 = vrot.slane %v7056, 4
      %v7059 = vor.u32 %v7058, %v7054
      %v7060 = vrot.slane %v7059, 4
      %v7062 = vshll.u32 %v6996, 16
      %v7064 = vrot.slane %v7062, 5
      %v7065 = vsel %vm1012, %v7060, %v7064
      %v7067 = vshrl.u32 %v6997, 16
      %v7069 = vrot.slane %v7067, 4
      %v7070 = vshll.u32 %v6997, 16
      %v7072 = vrot.slane %v7070, 5
      %v7073 = vor.u32 %v7069, %v7072
      %v7074 = vrot.slane %v7073, 4
      %v7076 = vshll.u32 %v6998, 16
      %v7078 = vrot.slane %v7076, 5
      %v7079 = vsel %vm1012, %v7074, %v7078
      %v7080 = vshrl.u32 %v6998, 16
      %v7082 = vrot.slane %v7080, 4
      %v7083 = vor.u32 %v7082, %v7078
      %v7084 = vrot.slane %v7083, 4
      %v7086 = vshll.u32 %v6999, 16
      %v7088 = vrot.slane %v7086, 5
      %v7089 = vsel %vm1012, %v7084, %v7088
      %v7091 = vshrl.u32 %v7000, 16
      %v7093 = vrot.slane %v7091, 4
      %v7094 = vshll.u32 %v7000, 16
      %v7096 = vrot.slane %v7094, 5
      %v7097 = vor.u32 %v7093, %v7096
      %v7098 = vrot.slane %v7097, 4
      %v7100 = vshll.u32 %v7001, 16
      %v7102 = vrot.slane %v7100, 5
      %v7103 = vsel %vm1012, %v7098, %v7102
      %v7104 = vshrl.u32 %v7001, 16
      %v7106 = vrot.slane %v7104, 4
      %v7107 = vor.u32 %v7106, %v7102
      %v7108 = vrot.slane %v7107, 4
      %v7110 = vshll.u32 %v7002, 16
      %v7112 = vrot.slane %v7110, 5
      %v7113 = vsel %vm1012, %v7108, %v7112
      %v7115 = vshrl.u32 %v7003, 16
      %v7117 = vrot.slane %v7115, 4
      %v7118 = vshll.u32 %v7003, 16
      %v7120 = vrot.slane %v7118, 5
      %v7121 = vor.u32 %v7117, %v7120
      %v7122 = vrot.slane %v7121, 4
      %v7124 = vshll.u32 %v7004, 16
      %v7126 = vrot.slane %v7124, 5
      %v7127 = vsel %vm1012, %v7122, %v7126
      %v7128 = vshrl.u32 %v7004, 16
      %v7130 = vrot.slane %v7128, 4
      %v7131 = vor.u32 %v7130, %v7126
      %v7132 = vrot.slane %v7131, 4
      %v7134 = vshll.u32 %v7005, 16
      %v7136 = vrot.slane %v7134, 5
      %v7137 = vsel %vm1012, %v7132, %v7136
      %v7139 = vshrl.u32 %v7006, 16
      %v7141 = vrot.slane %v7139, 4
      %v7142 = vshll.u32 %v7006, 16
      %v7144 = vrot.slane %v7142, 5
      %v7145 = vor.u32 %v7141, %v7144
      %v7146 = vrot.slane %v7145, 4
      %v7148 = vshll.u32 %v7007, 16
      %v7150 = vrot.slane %v7148, 5
      %v7151 = vsel %vm1012, %v7146, %v7150
      %v7152 = vshrl.u32 %v7007, 16
      %v7154 = vrot.slane %v7152, 4
      %v7155 = vor.u32 %v7154, %v7150
      %v7156 = vrot.slane %v7155, 4
      %v7158 = vshll.u32 %v7008, 16
      %v7160 = vrot.slane %v7158, 5
      %v7161 = vsel %vm1012, %v7156, %v7160
      %v7163 = vshrl.u32 %v7009, 16
      %v7165 = vrot.slane %v7163, 4
      %v7166 = vshll.u32 %v7009, 16
      %v7168 = vrot.slane %v7166, 5
      %v7169 = vor.u32 %v7165, %v7168
      %v7170 = vrot.slane %v7169, 4
      %v7172 = vshll.u32 %v7010, 16
      %v7174 = vrot.slane %v7172, 5
      %v7175 = vsel %vm1012, %v7170, %v7174
      %v7176 = vshrl.u32 %v7010, 16
      %v7178 = vrot.slane %v7176, 4
      %v7179 = vor.u32 %v7178, %v7174
      %v7180 = vrot.slane %v7179, 4
      %v7182 = vshll.u32 %v7011, 16
      %v7184 = vrot.slane %v7182, 5
      %v7185 = vsel %vm1012, %v7180, %v7184
      %v7187 = vshrl.u32 %v7012, 16
      %v7189 = vrot.slane %v7187, 4
      %v7190 = vshll.u32 %v7012, 16
      %v7192 = vrot.slane %v7190, 5
      %v7193 = vor.u32 %v7189, %v7192
      %v7194 = vrot.slane %v7193, 4
      %v7196 = vshll.u32 %v7013, 16
      %v7198 = vrot.slane %v7196, 5
      %v7199 = vsel %vm1012, %v7194, %v7198
      %v7200 = vshrl.u32 %v7013, 16
      %v7202 = vrot.slane %v7200, 4
      %v7203 = vor.u32 %v7202, %v7198
      %v7204 = vrot.slane %v7203, 4
      %v7206 = vshll.u32 %v7014, 16
      %v7208 = vrot.slane %v7206, 5
      %v7209 = vsel %vm1012, %v7204, %v7208
      %v7211 = vshrl.u32 %v7015, 16
      %v7213 = vrot.slane %v7211, 4
      %v7214 = vshll.u32 %v7015, 16
      %v7216 = vrot.slane %v7214, 5
      %v7217 = vor.u32 %v7213, %v7216
      %v7218 = vrot.slane %v7217, 4
      %v7220 = vshll.u32 %v7016, 16
      %v7222 = vrot.slane %v7220, 5
      %v7223 = vsel %vm1012, %v7218, %v7222
      %v7224 = vshrl.u32 %v7016, 16
      %v7226 = vrot.slane %v7224, 4
      %v7227 = vor.u32 %v7226, %v7222
      %v7228 = vrot.slane %v7227, 4
      %v7230 = vshll.u32 %v7017, 16
      %v7232 = vrot.slane %v7230, 5
      %v7233 = vsel %vm1012, %v7228, %v7232
      %v7235 = vshrl.u32 %v7018, 16
      %v7237 = vrot.slane %v7235, 4
      %v7238 = vshll.u32 %v7018, 16
      %v7240 = vrot.slane %v7238, 5
      %v7241 = vor.u32 %v7237, %v7240
      %v7242 = vrot.slane %v7241, 4
      %v7244 = vshll.u32 %v7019, 16
      %v7246 = vrot.slane %v7244, 5
      %v7247 = vsel %vm1012, %v7242, %v7246
      %v7248 = vshrl.u32 %v7019, 16
      %v7250 = vrot.slane %v7248, 4
      %v7251 = vor.u32 %v7250, %v7246
      %v7252 = vrot.slane %v7251, 4
      %v7254 = vshll.u32 %v7020, 16
      %v7256 = vrot.slane %v7254, 5
      %v7257 = vsel %vm1012, %v7252, %v7256
      %v7259 = vshrl.u32 %v7021, 16
      %v7261 = vrot.slane %v7259, 4
      %v7262 = vshll.u32 %v7021, 16
      %v7264 = vrot.slane %v7262, 5
      %v7265 = vor.u32 %v7261, %v7264
      %v7266 = vrot.slane %v7265, 4
      %v7268 = vshll.u32 %v7022, 16
      %v7270 = vrot.slane %v7268, 5
      %v7271 = vsel %vm1012, %v7266, %v7270
      %v7272 = vshrl.u32 %v7022, 16
      %v7274 = vrot.slane %v7272, 4
      %v7275 = vor.u32 %v7274, %v7270
      %v7276 = vrot.slane %v7275, 4
      %v7278 = vshll.u32 %v7023, 16
      %v7280 = vrot.slane %v7278, 5
      %v7281 = vsel %vm1012, %v7276, %v7280
      %v7283 = vshrl.u32 %v7024, 16
      %v7285 = vrot.slane %v7283, 4
      %v7286 = vshll.u32 %v7024, 16
      %v7288 = vrot.slane %v7286, 5
      %v7289 = vor.u32 %v7285, %v7288
      %v7290 = vrot.slane %v7289, 4
      %v7292 = vshll.u32 %v7025, 16
      %v7294 = vrot.slane %v7292, 5
      %v7295 = vsel %vm1012, %v7290, %v7294
      %v7296 = vshrl.u32 %v7025, 16
      %v7298 = vrot.slane %v7296, 4
      %v7299 = vor.u32 %v7298, %v7294
      %v7300 = vrot.slane %v7299, 4
      %v7302 = vshll.u32 %v7026, 16
      %v7304 = vrot.slane %v7302, 5
      %v7305 = vsel %vm1012, %v7300, %v7304
      %v7307 = vshrl.u32 %v7027, 16
      %v7309 = vrot.slane %v7307, 4
      %v7310 = vshll.u32 %v7027, 16
      %v7312 = vrot.slane %v7310, 5
      %v7313 = vor.u32 %v7309, %v7312
      %v7314 = vrot.slane %v7313, 4
      %v7316 = vshll.u32 %v7028, 16
      %v7318 = vrot.slane %v7316, 5
      %v7319 = vsel %vm1012, %v7314, %v7318
      %v7320 = vshrl.u32 %v7028, 16
      %v7322 = vrot.slane %v7320, 4
      %v7323 = vor.u32 %v7322, %v7318
      %v7324 = vrot.slane %v7323, 4
      %v7326 = vshll.u32 %v7029, 16
      %v7328 = vrot.slane %v7326, 5
      %v7329 = vsel %vm1012, %v7324, %v7328
      %v7331 = vshrl.u32 %v7030, 16
      %v7333 = vrot.slane %v7331, 4
      %v7334 = vshll.u32 %v7030, 16
      %v7336 = vrot.slane %v7334, 5
      %v7337 = vor.u32 %v7333, %v7336
      %v7338 = vrot.slane %v7337, 4
      %v7340 = vshll.u32 %v7031, 16
      %v7342 = vrot.slane %v7340, 5
      %v7343 = vsel %vm1012, %v7338, %v7342
      %v7344 = vshrl.u32 %v7031, 16
      %v7346 = vrot.slane %v7344, 4
      %v7347 = vor.u32 %v7346, %v7342
      %v7348 = vrot.slane %v7347, 4
      %v7350 = vshll.u32 %v7032, 16
      %v7352 = vrot.slane %v7350, 5
      %v7353 = vsel %vm1012, %v7348, %v7352
      %v7355 = vshrl.u32 %v7033, 16
      %v7357 = vrot.slane %v7355, 4
      %v7358 = vshll.u32 %v7033, 16
      %v7360 = vrot.slane %v7358, 5
      %v7361 = vor.u32 %v7357, %v7360
      %v7362 = vrot.slane %v7361, 4
      %v7364 = vshll.u32 %v7034, 16
      %v7366 = vrot.slane %v7364, 5
      %v7367 = vsel %vm1012, %v7362, %v7366
      %v7368 = vshrl.u32 %v7034, 16
      %v7370 = vrot.slane %v7368, 4
      %v7371 = vor.u32 %v7370, %v7366
      %v7372 = vrot.slane %v7371, 4
      %v7374 = vshll.u32 %v7035, 16
      %v7376 = vrot.slane %v7374, 5
      %v7377 = vsel %vm1012, %v7372, %v7376
      %v7379 = vshrl.u32 %v7036, 16
      %v7381 = vrot.slane %v7379, 4
      %v7382 = vshll.u32 %v7036, 16
      %v7384 = vrot.slane %v7382, 5
      %v7385 = vor.u32 %v7381, %v7384
      %v7386 = vrot.slane %v7385, 4
      %v7388 = vshll.u32 %v7037, 16
      %v7390 = vrot.slane %v7388, 5
      %v7391 = vsel %vm1012, %v7386, %v7390
      %v7392 = vshrl.u32 %v7037, 16
      %v7394 = vrot.slane %v7392, 4
      %v7395 = vor.u32 %v7394, %v7390
      %v7396 = vrot.slane %v7395, 4
      %v7398 = vshll.u32 %v7038, 16
      %v7400 = vrot.slane %v7398, 5
      %v7401 = vsel %vm1012, %v7396, %v7400
      %v7403 = vshrl.u32 %v7039, 16
      %v7405 = vrot.slane %v7403, 4
      %v7406 = vshll.u32 %v7039, 16
      %v7408 = vrot.slane %v7406, 5
      %v7409 = vor.u32 %v7405, %v7408
      %v7410 = vrot.slane %v7409, 4
      %v7412 = vshll.u32 %v7040, 16
      %v7414 = vrot.slane %v7412, 5
      %v7415 = vsel %vm1012, %v7410, %v7414
      %v7416 = vshrl.u32 %v7040, 16
      %v7418 = vrot.slane %v7416, 4
      %v7419 = vor.u32 %v7418, %v7414
      %v7420 = vrot.slane %v7419, 4
      %v7422 = vshll.u32 %v7041, 16
      %v7424 = vrot.slane %v7422, 5
      %v7425 = vsel %vm1012, %v7420, %v7424
      %v7426 = vunpack.c.l.b16 %v7055
      %v7427 = vunpack.c.l.b16 %v7065
      %v7428 = vunpack.c.l.b16 %v7079
      %v7429 = vunpack.c.l.b16 %v7089
      %v7430 = vunpack.c.l.b16 %v7103
      %v7431 = vunpack.c.l.b16 %v7113
      %v7432 = vunpack.c.l.b16 %v7127
      %v7433 = vunpack.c.l.b16 %v7137
      %v7434 = vunpack.c.l.b16 %v7151
      %v7435 = vunpack.c.l.b16 %v7161
      %v7436 = vunpack.c.l.b16 %v7175
      %v7437 = vunpack.c.l.b16 %v7185
      %v7438 = vunpack.c.l.b16 %v7199
      %v7439 = vunpack.c.l.b16 %v7209
      %v7440 = vunpack.c.l.b16 %v7223
      %v7441 = vunpack.c.l.b16 %v7233
      %v7442 = vunpack.c.l.b16 %v7247
      %v7443 = vunpack.c.l.b16 %v7257
      %v7444 = vunpack.c.l.b16 %v7271
      %v7445 = vunpack.c.l.b16 %v7281
      %v7446 = vunpack.c.l.b16 %v7295
      %v7447 = vunpack.c.l.b16 %v7305
      %v7448 = vunpack.c.l.b16 %v7319
      %v7449 = vunpack.c.l.b16 %v7329
      %v7450 = vunpack.c.l.b16 %v7343
      %v7451 = vunpack.c.l.b16 %v7353
      %v7452 = vunpack.c.l.b16 %v7367
      %v7453 = vunpack.c.l.b16 %v7377
      %v7454 = vunpack.c.l.b16 %v7391
      %v7455 = vunpack.c.l.b16 %v7401
      %v7456 = vunpack.c.l.b16 %v7415
      %v7457 = vunpack.c.l.b16 %v7425
      %v7458 = vpack.c.b16 %v7427, %v7426
      %v7459 = vpack.c.b16 %v7429, %v7428
      %v7460 = vpack.c.b16 %v7431, %v7430
      %v7461 = vpack.c.b16 %v7433, %v7432
      %v7462 = vpack.c.b16 %v7435, %v7434
      %v7463 = vpack.c.b16 %v7437, %v7436
      %v7464 = vpack.c.b16 %v7439, %v7438
      %v7465 = vpack.c.b16 %v7441, %v7440
      %v7466 = vpack.c.b16 %v7443, %v7442
      %v7467 = vpack.c.b16 %v7445, %v7444
      %v7468 = vpack.c.b16 %v7447, %v7446
      %v7469 = vpack.c.b16 %v7449, %v7448
      %v7470 = vpack.c.b16 %v7451, %v7450
      %v7471 = vpack.c.b16 %v7453, %v7452
      %v7472 = vpack.c.b16 %v7455, %v7454
      %v7473 = vpack.c.b16 %v7457, %v7456
      %7474 = vrot.lane.b32.xlu0 %v7458, 28
      %v7475 = vpop.permute.xlu0 %7474
      %7476 = vrot.lane.b32.xlu0 %v7459, 28
      %v7477 = vpop.permute.xlu0 %7476
      %7478 = vrot.lane.b32.xlu0 %v7460, 28
      %v7479 = vpop.permute.xlu0 %7478
      %7480 = vrot.lane.b32.xlu0 %v7461, 28
      %v7481 = vpop.permute.xlu0 %7480
      %7482 = vrot.lane.b32.xlu0 %v7462, 28
      %v7483 = vpop.permute.xlu0 %7482
      %7484 = vrot.lane.b32.xlu0 %v7463, 28
      %v7485 = vpop.permute.xlu0 %7484
      %7486 = vrot.lane.b32.xlu0 %v7464, 28
      %v7487 = vpop.permute.xlu0 %7486
      %7488 = vrot.lane.b32.xlu0 %v7465, 28
      %v7489 = vpop.permute.xlu0 %7488
      %7490 = vrot.lane.b32.xlu0 %v7466, 28
      %v7491 = vpop.permute.xlu0 %7490
      %7492 = vrot.lane.b32.xlu0 %v7467, 28
      %v7493 = vpop.permute.xlu0 %7492
      %7494 = vrot.lane.b32.xlu0 %v7468, 28
      %v7495 = vpop.permute.xlu0 %7494
      %7496 = vrot.lane.b32.xlu0 %v7469, 28
      %v7497 = vpop.permute.xlu0 %7496
      %7498 = vrot.lane.b32.xlu0 %v7470, 28
      %v7499 = vpop.permute.xlu0 %7498
      %7500 = vrot.lane.b32.xlu0 %v7471, 28
      %v7501 = vpop.permute.xlu0 %7500
      %7502 = vrot.lane.b32.xlu0 %v7472, 28
      %v7503 = vpop.permute.xlu0 %7502
      %7504 = vrot.lane.b32.xlu0 %v7473, 28
      %v7505 = vpop.permute.xlu0 %7504
      %7522 = vst.msk [vmem:[#allocation3] sm:$0xff] %vm3583, %v7475
      %7523 = vst.msk [vmem:[#allocation3 + $0x8] sm:$0xff] %vm3583, %v7477
      %7524 = vst.msk [vmem:[#allocation3 + $0x10] sm:$0xff] %vm3583, %v7479
      %7525 = vst.msk [vmem:[#allocation3 + $0x18] sm:$0xff] %vm3583, %v7481
      %7526 = vst.msk [vmem:[#allocation3 + $0x20] sm:$0xff] %vm3583, %v7483
      %7527 = vst.msk [vmem:[#allocation3 + $0x28] sm:$0xff] %vm3583, %v7485
      %7528 = vst.msk [vmem:[#allocation3 + $0x30] sm:$0xff] %vm3583, %v7487
      %7529 = vst.msk [vmem:[#allocation3 + $0x38] sm:$0xff] %vm3583, %v7489
      %7530 = vst.msk [vmem:[#allocation3 + $0x40] sm:$0xff] %vm3583, %v7491
      %7531 = vst.msk [vmem:[#allocation3 + $0x48] sm:$0xff] %vm3583, %v7493
      %7532 = vst.msk [vmem:[#allocation3 + $0x50] sm:$0xff] %vm3583, %v7495
      %7533 = vst.msk [vmem:[#allocation3 + $0x58] sm:$0xff] %vm3583, %v7497
      %7534 = vst.msk [vmem:[#allocation3 + $0x60] sm:$0xff] %vm3583, %v7499
      %7535 = vst.msk [vmem:[#allocation3 + $0x68] sm:$0xff] %vm3583, %v7501
      %7536 = vst.msk [vmem:[#allocation3 + $0x70] sm:$0xff] %vm3583, %v7503
      %7537 = vst.msk [vmem:[#allocation3 + $0x78] sm:$0xff] %vm3583, %v7505
      %v7538 = vld [vmem:[%s2877] sm:$0xe]
      %v7539 = vld [vmem:[%s2877 + $0x4] sm:$0xf]
      %v7540 = vld [vmem:[%s2877 + $0x8] sm:$0x1]
      %v7541 = vld [vmem:[%s2877 + $0xc] sm:$0xe]
      %v7542 = vld [vmem:[%s2877 + $0x10] sm:$0xf]
      %v7543 = vld [vmem:[%s2877 + $0x14] sm:$0x1]
      %v7544 = vld [vmem:[%s2877 + $0x18] sm:$0xe]
      %v7545 = vld [vmem:[%s2877 + $0x1c] sm:$0xf]
      %v7546 = vld [vmem:[%s2877 + $0x20] sm:$0x1]
      %v7547 = vld [vmem:[%s2877 + $0x24] sm:$0xe]
      %v7548 = vld [vmem:[%s2877 + $0x28] sm:$0xf]
      %v7549 = vld [vmem:[%s2877 + $0x2c] sm:$0x1]
      %v7550 = vld [vmem:[%s2877 + $0x30] sm:$0xe]
      %v7551 = vld [vmem:[%s2877 + $0x34] sm:$0xf]
      %v7552 = vld [vmem:[%s2877 + $0x38] sm:$0x1]
      %v7553 = vld [vmem:[%s2877 + $0x3c] sm:$0xe]
      %v7554 = vld [vmem:[%s2877 + $0x40] sm:$0xf]
      %v7555 = vld [vmem:[%s2877 + $0x44] sm:$0x1]
      %v7556 = vld [vmem:[%s2877 + $0x48] sm:$0xe]
      %v7557 = vld [vmem:[%s2877 + $0x4c] sm:$0xf]
      %v7558 = vld [vmem:[%s2877 + $0x50] sm:$0x1]
      %v7559 = vld [vmem:[%s2877 + $0x54] sm:$0xe]
      %v7560 = vld [vmem:[%s2877 + $0x58] sm:$0xf]
      %v7561 = vld [vmem:[%s2877 + $0x5c] sm:$0x1]
      %v7562 = vld [vmem:[%s2877 + $0x60] sm:$0xe]
      %v7563 = vld [vmem:[%s2877 + $0x64] sm:$0xf]
      %v7564 = vld [vmem:[%s2877 + $0x68] sm:$0x1]
      %v7565 = vld [vmem:[%s2877 + $0x6c] sm:$0xe]
      %v7566 = vld [vmem:[%s2877 + $0x70] sm:$0xf]
      %v7567 = vld [vmem:[%s2877 + $0x74] sm:$0x1]
      %v7568 = vld [vmem:[%s2877 + $0x78] sm:$0xe]
      %v7569 = vld [vmem:[%s2877 + $0x7c] sm:$0xf]
      %v7570 = vld [vmem:[%s2877 + $0x80] sm:$0x1]
      %v7571 = vld [vmem:[%s2877 + $0x84] sm:$0xe]
      %v7572 = vld [vmem:[%s2877 + $0x88] sm:$0xf]
      %v7573 = vld [vmem:[%s2877 + $0x8c] sm:$0x1]
      %v7574 = vld [vmem:[%s2877 + $0x90] sm:$0xe]
      %v7575 = vld [vmem:[%s2877 + $0x94] sm:$0xf]
      %v7576 = vld [vmem:[%s2877 + $0x98] sm:$0x1]
      %v7577 = vld [vmem:[%s2877 + $0x9c] sm:$0xe]
      %v7578 = vld [vmem:[%s2877 + $0xa0] sm:$0xf]
      %v7579 = vld [vmem:[%s2877 + $0xa4] sm:$0x1]
      %v7580 = vld [vmem:[%s2877 + $0xa8] sm:$0xe]
      %v7581 = vld [vmem:[%s2877 + $0xac] sm:$0xf]
      %v7582 = vld [vmem:[%s2877 + $0xb0] sm:$0x1]
      %v7583 = vld [vmem:[%s2877 + $0xb4] sm:$0xe]
      %v7584 = vld [vmem:[%s2877 + $0xb8] sm:$0xf]
      %v7585 = vld [vmem:[%s2877 + $0xbc] sm:$0x1]
      %v7634 = vrot.slane %v7538, 5
      %v7635 = vrot.slane %v7634, 4
      %v7636 = vrot.slane %v7539, 5
      %v7637 = vsel %vm1608, %v7635, %v7636
      %v7638 = vrot.slane %v7636, 4
      %v7639 = vrot.slane %v7540, 5
      %v7640 = vsel %vm1608, %v7638, %v7639
      %v7641 = vrot.slane %v7541, 5
      %v7642 = vrot.slane %v7641, 4
      %v7643 = vrot.slane %v7542, 5
      %v7644 = vsel %vm1608, %v7642, %v7643
      %v7645 = vrot.slane %v7643, 4
      %v7646 = vrot.slane %v7543, 5
      %v7647 = vsel %vm1608, %v7645, %v7646
      %v7648 = vrot.slane %v7544, 5
      %v7649 = vrot.slane %v7648, 4
      %v7650 = vrot.slane %v7545, 5
      %v7651 = vsel %vm1608, %v7649, %v7650
      %v7652 = vrot.slane %v7650, 4
      %v7653 = vrot.slane %v7546, 5
      %v7654 = vsel %vm1608, %v7652, %v7653
      %v7655 = vrot.slane %v7547, 5
      %v7656 = vrot.slane %v7655, 4
      %v7657 = vrot.slane %v7548, 5
      %v7658 = vsel %vm1608, %v7656, %v7657
      %v7659 = vrot.slane %v7657, 4
      %v7660 = vrot.slane %v7549, 5
      %v7661 = vsel %vm1608, %v7659, %v7660
      %v7662 = vrot.slane %v7550, 5
      %v7663 = vrot.slane %v7662, 4
      %v7664 = vrot.slane %v7551, 5
      %v7665 = vsel %vm1608, %v7663, %v7664
      %v7666 = vrot.slane %v7664, 4
      %v7667 = vrot.slane %v7552, 5
      %v7668 = vsel %vm1608, %v7666, %v7667
      %v7669 = vrot.slane %v7553, 5
      %v7670 = vrot.slane %v7669, 4
      %v7671 = vrot.slane %v7554, 5
      %v7672 = vsel %vm1608, %v7670, %v7671
      %v7673 = vrot.slane %v7671, 4
      %v7674 = vrot.slane %v7555, 5
      %v7675 = vsel %vm1608, %v7673, %v7674
      %v7676 = vrot.slane %v7556, 5
      %v7677 = vrot.slane %v7676, 4
      %v7678 = vrot.slane %v7557, 5
      %v7679 = vsel %vm1608, %v7677, %v7678
      %v7680 = vrot.slane %v7678, 4
      %v7681 = vrot.slane %v7558, 5
      %v7682 = vsel %vm1608, %v7680, %v7681
      %v7683 = vrot.slane %v7559, 5
      %v7684 = vrot.slane %v7683, 4
      %v7685 = vrot.slane %v7560, 5
      %v7686 = vsel %vm1608, %v7684, %v7685
      %v7687 = vrot.slane %v7685, 4
      %v7688 = vrot.slane %v7561, 5
      %v7689 = vsel %vm1608, %v7687, %v7688
      %v7690 = vrot.slane %v7562, 5
      %v7691 = vrot.slane %v7690, 4
      %v7692 = vrot.slane %v7563, 5
      %v7693 = vsel %vm1608, %v7691, %v7692
      %v7694 = vrot.slane %v7692, 4
      %v7695 = vrot.slane %v7564, 5
      %v7696 = vsel %vm1608, %v7694, %v7695
      %v7697 = vrot.slane %v7565, 5
      %v7698 = vrot.slane %v7697, 4
      %v7699 = vrot.slane %v7566, 5
      %v7700 = vsel %vm1608, %v7698, %v7699
      %v7701 = vrot.slane %v7699, 4
      %v7702 = vrot.slane %v7567, 5
      %v7703 = vsel %vm1608, %v7701, %v7702
      %v7704 = vrot.slane %v7568, 5
      %v7705 = vrot.slane %v7704, 4
      %v7706 = vrot.slane %v7569, 5
      %v7707 = vsel %vm1608, %v7705, %v7706
      %v7708 = vrot.slane %v7706, 4
      %v7709 = vrot.slane %v7570, 5
      %v7710 = vsel %vm1608, %v7708, %v7709
      %v7711 = vrot.slane %v7571, 5
      %v7712 = vrot.slane %v7711, 4
      %v7713 = vrot.slane %v7572, 5
      %v7714 = vsel %vm1608, %v7712, %v7713
      %v7715 = vrot.slane %v7713, 4
      %v7716 = vrot.slane %v7573, 5
      %v7717 = vsel %vm1608, %v7715, %v7716
      %v7718 = vrot.slane %v7574, 5
      %v7719 = vrot.slane %v7718, 4
      %v7720 = vrot.slane %v7575, 5
      %v7721 = vsel %vm1608, %v7719, %v7720
      %v7722 = vrot.slane %v7720, 4
      %v7723 = vrot.slane %v7576, 5
      %v7724 = vsel %vm1608, %v7722, %v7723
      %v7725 = vrot.slane %v7577, 5
      %v7726 = vrot.slane %v7725, 4
      %v7727 = vrot.slane %v7578, 5
      %v7728 = vsel %vm1608, %v7726, %v7727
      %v7729 = vrot.slane %v7727, 4
      %v7730 = vrot.slane %v7579, 5
      %v7731 = vsel %vm1608, %v7729, %v7730
      %v7732 = vrot.slane %v7580, 5
      %v7733 = vrot.slane %v7732, 4
      %v7734 = vrot.slane %v7581, 5
      %v7735 = vsel %vm1608, %v7733, %v7734
      %v7736 = vrot.slane %v7734, 4
      %v7737 = vrot.slane %v7582, 5
      %v7738 = vsel %vm1608, %v7736, %v7737
      %v7739 = vrot.slane %v7583, 5
      %v7740 = vrot.slane %v7739, 4
      %v7741 = vrot.slane %v7584, 5
      %v7742 = vsel %vm1608, %v7740, %v7741
      %v7743 = vrot.slane %v7741, 4
      %v7744 = vrot.slane %v7585, 5
      %v7745 = vsel %vm1608, %v7743, %v7744
      %v7746 = vunpack.c.l.b16 %v7637
      %v7747 = vunpack.c.l.b16 %v7640
      %v7748 = vunpack.c.l.b16 %v7644
      %v7749 = vunpack.c.l.b16 %v7647
      %v7750 = vunpack.c.l.b16 %v7651
      %v7751 = vunpack.c.l.b16 %v7654
      %v7752 = vunpack.c.l.b16 %v7658
      %v7753 = vunpack.c.l.b16 %v7661
      %v7754 = vunpack.c.l.b16 %v7665
      %v7755 = vunpack.c.l.b16 %v7668
      %v7756 = vunpack.c.l.b16 %v7672
      %v7757 = vunpack.c.l.b16 %v7675
      %v7758 = vunpack.c.l.b16 %v7679
      %v7759 = vunpack.c.l.b16 %v7682
      %v7760 = vunpack.c.l.b16 %v7686
      %v7761 = vunpack.c.l.b16 %v7689
      %v7762 = vunpack.c.l.b16 %v7693
      %v7763 = vunpack.c.l.b16 %v7696
      %v7764 = vunpack.c.l.b16 %v7700
      %v7765 = vunpack.c.l.b16 %v7703
      %v7766 = vunpack.c.l.b16 %v7707
      %v7767 = vunpack.c.l.b16 %v7710
      %v7768 = vunpack.c.l.b16 %v7714
      %v7769 = vunpack.c.l.b16 %v7717
      %v7770 = vunpack.c.l.b16 %v7721
      %v7771 = vunpack.c.l.b16 %v7724
      %v7772 = vunpack.c.l.b16 %v7728
      %v7773 = vunpack.c.l.b16 %v7731
      %v7774 = vunpack.c.l.b16 %v7735
      %v7775 = vunpack.c.l.b16 %v7738
      %v7776 = vunpack.c.l.b16 %v7742
      %v7777 = vunpack.c.l.b16 %v7745
      %v7778 = vpack.c.b16 %v7747, %v7746
      %v7779 = vpack.c.b16 %v7749, %v7748
      %v7780 = vpack.c.b16 %v7751, %v7750
      %v7781 = vpack.c.b16 %v7753, %v7752
      %v7782 = vpack.c.b16 %v7755, %v7754
      %v7783 = vpack.c.b16 %v7757, %v7756
      %v7784 = vpack.c.b16 %v7759, %v7758
      %v7785 = vpack.c.b16 %v7761, %v7760
      %v7786 = vpack.c.b16 %v7763, %v7762
      %v7787 = vpack.c.b16 %v7765, %v7764
      %v7788 = vpack.c.b16 %v7767, %v7766
      %v7789 = vpack.c.b16 %v7769, %v7768
      %v7790 = vpack.c.b16 %v7771, %v7770
      %v7791 = vpack.c.b16 %v7773, %v7772
      %v7792 = vpack.c.b16 %v7775, %v7774
      %v7793 = vpack.c.b16 %v7777, %v7776
      %7794 = vrot.lane.b32.xlu0 %v7778, 32
      %v7795 = vpop.permute.xlu0 %7794
      %7796 = vrot.lane.b32.xlu0 %v7779, 32
      %v7797 = vpop.permute.xlu0 %7796
      %7798 = vrot.lane.b32.xlu0 %v7780, 32
      %v7799 = vpop.permute.xlu0 %7798
      %7800 = vrot.lane.b32.xlu0 %v7781, 32
      %v7801 = vpop.permute.xlu0 %7800
      %7802 = vrot.lane.b32.xlu0 %v7782, 32
      %v7803 = vpop.permute.xlu0 %7802
      %7804 = vrot.lane.b32.xlu0 %v7783, 32
      %v7805 = vpop.permute.xlu0 %7804
      %7806 = vrot.lane.b32.xlu0 %v7784, 32
      %v7807 = vpop.permute.xlu0 %7806
      %7808 = vrot.lane.b32.xlu0 %v7785, 32
      %v7809 = vpop.permute.xlu0 %7808
      %7810 = vrot.lane.b32.xlu0 %v7786, 32
      %v7811 = vpop.permute.xlu0 %7810
      %7812 = vrot.lane.b32.xlu0 %v7787, 32
      %v7813 = vpop.permute.xlu0 %7812
      %7814 = vrot.lane.b32.xlu0 %v7788, 32
      %v7815 = vpop.permute.xlu0 %7814
      %7816 = vrot.lane.b32.xlu0 %v7789, 32
      %v7817 = vpop.permute.xlu0 %7816
      %7818 = vrot.lane.b32.xlu0 %v7790, 32
      %v7819 = vpop.permute.xlu0 %7818
      %7820 = vrot.lane.b32.xlu0 %v7791, 32
      %v7821 = vpop.permute.xlu0 %7820
      %7822 = vrot.lane.b32.xlu0 %v7792, 32
      %v7823 = vpop.permute.xlu0 %7822
      %7824 = vrot.lane.b32.xlu0 %v7793, 32
      %v7825 = vpop.permute.xlu0 %7824
      %7842 = vst.msk [vmem:[#allocation3] sm:$0xff] %vm3904, %v7795
      %7843 = vst.msk [vmem:[#allocation3 + $0x8] sm:$0xff] %vm3904, %v7797
      %7844 = vst.msk [vmem:[#allocation3 + $0x10] sm:$0xff] %vm3904, %v7799
      %7845 = vst.msk [vmem:[#allocation3 + $0x18] sm:$0xff] %vm3904, %v7801
      %7846 = vst.msk [vmem:[#allocation3 + $0x20] sm:$0xff] %vm3904, %v7803
      %7847 = vst.msk [vmem:[#allocation3 + $0x28] sm:$0xff] %vm3904, %v7805
      %7848 = vst.msk [vmem:[#allocation3 + $0x30] sm:$0xff] %vm3904, %v7807
      %7849 = vst.msk [vmem:[#allocation3 + $0x38] sm:$0xff] %vm3904, %v7809
      %7850 = vst.msk [vmem:[#allocation3 + $0x40] sm:$0xff] %vm3904, %v7811
      %7851 = vst.msk [vmem:[#allocation3 + $0x48] sm:$0xff] %vm3904, %v7813
      %7852 = vst.msk [vmem:[#allocation3 + $0x50] sm:$0xff] %vm3904, %v7815
      %7853 = vst.msk [vmem:[#allocation3 + $0x58] sm:$0xff] %vm3904, %v7817
      %7854 = vst.msk [vmem:[#allocation3 + $0x60] sm:$0xff] %vm3904, %v7819
      %7855 = vst.msk [vmem:[#allocation3 + $0x68] sm:$0xff] %vm3904, %v7821
      %7856 = vst.msk [vmem:[#allocation3 + $0x70] sm:$0xff] %vm3904, %v7823
      %7857 = vst.msk [vmem:[#allocation3 + $0x78] sm:$0xff] %vm3904, %v7825
      %v7858 = vld [vmem:[#allocation3] sm:$0xff]
      %v7859 = vld [vmem:[#allocation3 + $0x8] sm:$0xff]
      %v7860 = vld [vmem:[#allocation3 + $0x10] sm:$0xff]
      %v7861 = vld [vmem:[#allocation3 + $0x18] sm:$0xff]
      %v7862 = vld [vmem:[#allocation3 + $0x20] sm:$0xff]
      %v7863 = vld [vmem:[#allocation3 + $0x28] sm:$0xff]
      %v7864 = vld [vmem:[#allocation3 + $0x30] sm:$0xff]
      %v7865 = vld [vmem:[#allocation3 + $0x38] sm:$0xff]
      %v7866 = vld [vmem:[#allocation3 + $0x40] sm:$0xff]
      %v7867 = vld [vmem:[#allocation3 + $0x48] sm:$0xff]
      %v7868 = vld [vmem:[#allocation3 + $0x50] sm:$0xff]
      %v7869 = vld [vmem:[#allocation3 + $0x58] sm:$0xff]
      %v7870 = vld [vmem:[#allocation3 + $0x60] sm:$0xff]
      %v7871 = vld [vmem:[#allocation3 + $0x68] sm:$0xff]
      %v7872 = vld [vmem:[#allocation3 + $0x70] sm:$0xff]
      %v7873 = vld [vmem:[#allocation3 + $0x78] sm:$0xff]
      %v7874 = vld [vmem:[%s3] sm:$0xf]
      %v7875 = vld [vmem:[%s3 + $0x4] sm:$0xf]
      %v7876 = vld [vmem:[%s3 + $0x8] sm:$0xf]
      %v7877 = vld [vmem:[%s3 + $0xc] sm:$0xf]
      %v7878 = vld [vmem:[%s3 + $0x10] sm:$0x3]
      %v7879 = vld [vmem:[%s4] sm:$0x1]
      %v7881 = vlaneseq
      %v7882 = vshrl.u32 %v7881, 7
      %v7883 = vsub.s32 0, %v7882
      %v7884 = vrot.slane %v7879, %v7883
      %v7891 = vunpack.c.l.b16 %v7874
      %v7892 = vunpack.c.l.b16 %v7875
      %v7893 = vunpack.c.l.b16 %v7876
      %v7894 = vunpack.c.l.b16 %v7877
      %v7895 = vunpack.c.l.b16 %v7878
      %v7896 = vpack.c.b16 %v7892, %v7891
      %v7897 = vpack.c.b16 %v7894, %v7893
      %v7898 = vpack.c.b16 %v7895, %v7895
      %v7902 = vsel %vm3964, %v7858, 0
      %v7905 = vsel %vm3964, %v7859, 0
      %v7908 = vsel %vm3964, %v7860, 0
      %v7911 = vsel %vm3964, %v7861, 0
      %v7914 = vsel %vm3964, %v7862, 0
      %v7917 = vsel %vm3964, %v7863, 0
      %v7920 = vsel %vm3964, %v7864, 0
      %v7923 = vsel %vm3964, %v7865, 0
      %v7926 = vsel %vm3964, %v7866, 0
      %v7929 = vsel %vm3964, %v7867, 0
      %v7932 = vsel %vm3964, %v7868, 0
      %v7935 = vsel %vm3964, %v7869, 0
      %v7938 = vsel %vm3964, %v7870, 0
      %v7941 = vsel %vm3964, %v7871, 0
      %v7944 = vsel %vm3964, %v7872, 0
      %v7947 = vsel %vm3964, %v7873, 0
      %v7950 = vsel %vm4013, %v7898, 0
      %7952 = vmatprep.subr.bf16.mxu0 0
      %7953 = vmatpush1.bf16.msra.mxu0 %v7896
      %7954 = vmatprep.subr.bf16.mxu0 0
      %7955 = vmatpush1.bf16.msra.mxu0 %v7897
      %7956 = vmatprep.subr.bf16.mxu0 0
      %7957 = vmatpush1.bf16.msra.mxu0 %v7950
      %7958 = vmatprep.subr.bf16.mxu0 0
      %7959 = vmatpush1.bf16.msra.mxu0 0
      %7960 = vmatprep.subr.bf16.mxu0 0
      %7961 = vmatpush1.bf16.msra.mxu0 0
      %7962 = vmatprep.subr.bf16.mxu0 0
      %7963 = vmatpush1.bf16.msra.mxu0 0
      %7964 = vmatprep.subr.bf16.mxu0 0
      %7965 = vmatpush1.bf16.msra.mxu0 0
      %7966 = vmatprep.subr.bf16.mxu0 0
      %7967 = vmatpush1.bf16.msra.mxu0 0
      %7968 = vmatprep.subr.bf16.mxu0 0
      %7969 = vmatpush1.bf16.msra.mxu0 0
      %7970 = vmatprep.subr.bf16.mxu0 0
      %7971 = vmatpush1.bf16.msra.mxu0 0
      %7972 = vmatprep.subr.bf16.mxu0 0
      %7973 = vmatpush1.bf16.msra.mxu0 0
      %7974 = vmatprep.subr.bf16.mxu0 0
      %7975 = vmatpush1.bf16.msra.mxu0 0
      %7976 = vmatprep.subr.bf16.mxu0 0
      %7977 = vmatpush1.bf16.msra.mxu0 0
      %7978 = vmatprep.subr.bf16.mxu0 0
      %7979 = vmatpush1.bf16.msra.mxu0 0
      %7980 = vmatprep.subr.bf16.mxu0 0
      %7981 = vmatpush1.bf16.msra.mxu0 0
      %7982 = vmatprep.subr.bf16.mxu0 0
      %7983 = vmatpush1.bf16.msra.mxu0 0
      %7984 = vmatprep.mubr.bf16.mxu0 0
      %7985 = vmatmul.mubr.bf16.gmra.mrb[0].mxu0 %v7902
      %v7986 = vpop.f32.mrb[0].mxu0
      %v7987 = vadd.f32 %v7884, %v7986
      %v7988 = vpop.f32.mrb[0].mxu0
      %v7989 = vpop.f32.mrb[0].mxu0
      %v7990 = vadd.f32 %v7884, %v7989
      %v7991 = vpop.f32.mrb[0].mxu0
      %7992 = vmatprep.mubr.bf16.mxu0 0
      %7993 = vmatmul.mubr.bf16.gmra.mrb[0].mxu0 %v7905
      %v7994 = vpop.f32.mrb[0].mxu0
      %v7995 = vadd.f32 %v7884, %v7994
      %v7996 = vpop.f32.mrb[0].mxu0
      %v7997 = vpop.f32.mrb[0].mxu0
      %v7998 = vadd.f32 %v7884, %v7997
      %v7999 = vpop.f32.mrb[0].mxu0
      %8000 = vmatprep.mubr.bf16.mxu0 0
      %8001 = vmatmul.mubr.bf16.gmra.mrb[0].mxu0 %v7908
      %v8002 = vpop.f32.mrb[0].mxu0
      %v8003 = vadd.f32 %v7884, %v8002
      %v8004 = vpop.f32.mrb[0].mxu0
      %v8005 = vpop.f32.mrb[0].mxu0
      %v8006 = vadd.f32 %v7884, %v8005
      %v8007 = vpop.f32.mrb[0].mxu0
      %8008 = vmatprep.mubr.bf16.mxu0 0
      %8009 = vmatmul.mubr.bf16.gmra.mrb[0].mxu0 %v7911
      %v8010 = vpop.f32.mrb[0].mxu0
      %v8011 = vadd.f32 %v7884, %v8010
      %v8012 = vpop.f32.mrb[0].mxu0
      %v8013 = vpop.f32.mrb[0].mxu0
      %v8014 = vadd.f32 %v7884, %v8013
      %v8015 = vpop.f32.mrb[0].mxu0
      %8016 = vmatprep.mubr.bf16.mxu0 0
      %8017 = vmatmul.mubr.bf16.gmra.mrb[0].mxu0 %v7914
      %v8018 = vpop.f32.mrb[0].mxu0
      %v8019 = vadd.f32 %v7884, %v8018
      %v8020 = vpop.f32.mrb[0].mxu0
      %v8021 = vpop.f32.mrb[0].mxu0
      %v8022 = vadd.f32 %v7884, %v8021
      %v8023 = vpop.f32.mrb[0].mxu0
      %8024 = vmatprep.mubr.bf16.mxu0 0
      %8025 = vmatmul.mubr.bf16.gmra.mrb[0].mxu0 %v7917
      %v8026 = vpop.f32.mrb[0].mxu0
      %v8027 = vadd.f32 %v7884, %v8026
      %v8028 = vpop.f32.mrb[0].mxu0
      %v8029 = vpop.f32.mrb[0].mxu0
      %v8030 = vadd.f32 %v7884, %v8029
      %v8031 = vpop.f32.mrb[0].mxu0
      %8032 = vmatprep.mubr.bf16.mxu0 0
      %8033 = vmatmul.mubr.bf16.gmra.mrb[0].mxu0 %v7920
      %v8034 = vpop.f32.mrb[0].mxu0
      %v8035 = vadd.f32 %v7884, %v8034
      %v8036 = vpop.f32.mrb[0].mxu0
      %v8037 = vpop.f32.mrb[0].mxu0
      %v8038 = vadd.f32 %v7884, %v8037
      %v8039 = vpop.f32.mrb[0].mxu0
      %8040 = vmatprep.mubr.bf16.mxu0 0
      %8041 = vmatmul.mubr.bf16.gmra.mrb[0].mxu0 %v7923
      %v8042 = vpop.f32.mrb[0].mxu0
      %v8043 = vadd.f32 %v7884, %v8042
      %v8044 = vpop.f32.mrb[0].mxu0
      %v8045 = vpop.f32.mrb[0].mxu0
      %v8046 = vadd.f32 %v7884, %v8045
      %v8047 = vpop.f32.mrb[0].mxu0
      %8048 = vmatprep.mubr.bf16.mxu0 0
      %8049 = vmatmul.mubr.bf16.gmra.mrb[0].mxu0 %v7926
      %v8050 = vpop.f32.mrb[0].mxu0
      %v8051 = vadd.f32 %v7884, %v8050
      %v8052 = vpop.f32.mrb[0].mxu0
      %v8053 = vpop.f32.mrb[0].mxu0
      %v8054 = vadd.f32 %v7884, %v8053
      %v8055 = vpop.f32.mrb[0].mxu0
      %8056 = vmatprep.mubr.bf16.mxu0 0
      %8057 = vmatmul.mubr.bf16.gmra.mrb[0].mxu0 %v7929
      %v8058 = vpop.f32.mrb[0].mxu0
      %v8059 = vadd.f32 %v7884, %v8058
      %v8060 = vpop.f32.mrb[0].mxu0
      %v8061 = vpop.f32.mrb[0].mxu0
      %v8062 = vadd.f32 %v7884, %v8061
      %v8063 = vpop.f32.mrb[0].mxu0
      %8064 = vmatprep.mubr.bf16.mxu0 0
      %8065 = vmatmul.mubr.bf16.gmra.mrb[0].mxu0 %v7932
      %v8066 = vpop.f32.mrb[0].mxu0
      %v8067 = vadd.f32 %v7884, %v8066
      %v8068 = vpop.f32.mrb[0].mxu0
      %v8069 = vpop.f32.mrb[0].mxu0
      %v8070 = vadd.f32 %v7884, %v8069
      %v8071 = vpop.f32.mrb[0].mxu0
      %8072 = vmatprep.mubr.bf16.mxu0 0
      %8073 = vmatmul.mubr.bf16.gmra.mrb[0].mxu0 %v7935
      %v8074 = vpop.f32.mrb[0].mxu0
      %v8075 = vadd.f32 %v7884, %v8074
      %v8076 = vpop.f32.mrb[0].mxu0
      %v8077 = vpop.f32.mrb[0].mxu0
      %v8078 = vadd.f32 %v7884, %v8077
      %v8079 = vpop.f32.mrb[0].mxu0
      %8080 = vmatprep.mubr.bf16.mxu0 0
      %8081 = vmatmul.mubr.bf16.gmra.mrb[0].mxu0 %v7938
      %v8082 = vpop.f32.mrb[0].mxu0
      %v8083 = vadd.f32 %v7884, %v8082
      %v8084 = vpop.f32.mrb[0].mxu0
      %v8085 = vpop.f32.mrb[0].mxu0
      %v8086 = vadd.f32 %v7884, %v8085
      %v8087 = vpop.f32.mrb[0].mxu0
      %8088 = vmatprep.mubr.bf16.mxu0 0
      %8089 = vmatmul.mubr.bf16.gmra.mrb[0].mxu0 %v7941
      %v8090 = vpop.f32.mrb[0].mxu0
      %v8091 = vadd.f32 %v7884, %v8090
      %v8092 = vpop.f32.mrb[0].mxu0
      %v8093 = vpop.f32.mrb[0].mxu0
      %v8094 = vadd.f32 %v7884, %v8093
      %v8095 = vpop.f32.mrb[0].mxu0
      %8096 = vmatprep.mubr.bf16.mxu0 0
      %8097 = vmatmul.mubr.bf16.gmra.mrb[0].mxu0 %v7944
      %v8098 = vpop.f32.mrb[0].mxu0
      %v8099 = vadd.f32 %v7884, %v8098
      %v8100 = vpop.f32.mrb[0].mxu0
      %v8101 = vpop.f32.mrb[0].mxu0
      %v8102 = vadd.f32 %v7884, %v8101
      %v8103 = vpop.f32.mrb[0].mxu0
      %8104 = vmatprep.mubr.bf16.mxu0 0
      %8105 = vmatmul.mubr.bf16.gmra.mrb[0].mxu0 %v7947
      %v8106 = vpop.f32.mrb[0].mxu0
      %v8107 = vadd.f32 %v7884, %v8106
      %v8108 = vpop.f32.mrb[0].mxu0
      %v8109 = vpop.f32.mrb[0].mxu0
      %v8110 = vadd.f32 %v7884, %v8109
      %v8111 = vpop.f32.mrb[0].mxu0
      %8112 = vdwg.mxu0
      %v8113 = vadd.f32 %v7987, %v4738
      %v8114 = vadd.f32 %v7990, %v4739
      %v8115 = vadd.f32 %v7995, %v4740
      %v8116 = vadd.f32 %v7998, %v4741
      %v8117 = vadd.f32 %v8003, %v4742
      %v8118 = vadd.f32 %v8006, %v4743
      %v8119 = vadd.f32 %v8011, %v4744
      %v8120 = vadd.f32 %v8014, %v4745
      %v8121 = vadd.f32 %v8019, %v4746
      %v8122 = vadd.f32 %v8022, %v4747
      %v8123 = vadd.f32 %v8027, %v4748
      %v8124 = vadd.f32 %v8030, %v4749
      %v8125 = vadd.f32 %v8035, %v4750
      %v8126 = vadd.f32 %v8038, %v4751
      %v8127 = vadd.f32 %v8043, %v4752
      %v8128 = vadd.f32 %v8046, %v4753
      %v8129 = vadd.f32 %v8051, %v4754
      %v8130 = vadd.f32 %v8054, %v4755
      %v8131 = vadd.f32 %v8059, %v4756
      %v8132 = vadd.f32 %v8062, %v4757
      %v8133 = vadd.f32 %v8067, %v4758
      %v8134 = vadd.f32 %v8070, %v4759
      %v8135 = vadd.f32 %v8075, %v4760
      %v8136 = vadd.f32 %v8078, %v4761
      %v8137 = vadd.f32 %v8083, %v4762
      %v8138 = vadd.f32 %v8086, %v4763
      %v8139 = vadd.f32 %v8091, %v4764
      %v8140 = vadd.f32 %v8094, %v4765
      %v8141 = vadd.f32 %v8099, %v4766
      %v8142 = vadd.f32 %v8102, %v4767
      %v8143 = vadd.f32 %v8107, %v4768
      %v8144 = vadd.f32 %v8110, %v4769
      %v8145 = vmax.f32 %v8113, 0.0
      %v8146 = vmax.f32 %v8114, 0.0
      %v8147 = vmax.f32 %v8115, 0.0
      %v8148 = vmax.f32 %v8116, 0.0
      %v8149 = vmax.f32 %v8117, 0.0
      %v8150 = vmax.f32 %v8118, 0.0
      %v8151 = vmax.f32 %v8119, 0.0
      %v8152 = vmax.f32 %v8120, 0.0
      %v8153 = vmax.f32 %v8121, 0.0
      %v8154 = vmax.f32 %v8122, 0.0
      %v8155 = vmax.f32 %v8123, 0.0
      %v8156 = vmax.f32 %v8124, 0.0
      %v8157 = vmax.f32 %v8125, 0.0
      %v8158 = vmax.f32 %v8126, 0.0
      %v8159 = vmax.f32 %v8127, 0.0
      %v8160 = vmax.f32 %v8128, 0.0
      %v8161 = vmax.f32 %v8129, 0.0
      %v8162 = vmax.f32 %v8130, 0.0
      %v8163 = vmax.f32 %v8131, 0.0
      %v8164 = vmax.f32 %v8132, 0.0
      %v8165 = vmax.f32 %v8133, 0.0
      %v8166 = vmax.f32 %v8134, 0.0
      %v8167 = vmax.f32 %v8135, 0.0
      %v8168 = vmax.f32 %v8136, 0.0
      %v8169 = vmax.f32 %v8137, 0.0
      %v8170 = vmax.f32 %v8138, 0.0
      %v8171 = vmax.f32 %v8139, 0.0
      %v8172 = vmax.f32 %v8140, 0.0
      %v8173 = vmax.f32 %v8141, 0.0
      %v8174 = vmax.f32 %v8142, 0.0
      %v8175 = vmax.f32 %v8143, 0.0
      %v8176 = vmax.f32 %v8144, 0.0
      %v8177 = vpack.c.bf16 %v8146, %v8145
      %v8178 = vpack.c.bf16 %v8148, %v8147
      %v8179 = vpack.c.bf16 %v8150, %v8149
      %v8180 = vpack.c.bf16 %v8152, %v8151
      %v8181 = vpack.c.bf16 %v8154, %v8153
      %v8182 = vpack.c.bf16 %v8156, %v8155
      %v8183 = vpack.c.bf16 %v8158, %v8157
      %v8184 = vpack.c.bf16 %v8160, %v8159
      %v8185 = vpack.c.bf16 %v8162, %v8161
      %v8186 = vpack.c.bf16 %v8164, %v8163
      %v8187 = vpack.c.bf16 %v8166, %v8165
      %v8188 = vpack.c.bf16 %v8168, %v8167
      %v8189 = vpack.c.bf16 %v8170, %v8169
      %v8190 = vpack.c.bf16 %v8172, %v8171
      %v8191 = vpack.c.bf16 %v8174, %v8173
      %v8192 = vpack.c.bf16 %v8176, %v8175
      %v8209 = vunpack.c.l.b16 %v8177
      %v8210 = vunpack.c.h.b16 %v8177
      %v8211 = vunpack.c.l.b16 %v8178
      %v8212 = vunpack.c.h.b16 %v8178
      %v8213 = vunpack.c.l.b16 %v8179
      %v8214 = vunpack.c.h.b16 %v8179
      %v8215 = vunpack.c.l.b16 %v8180
      %v8216 = vunpack.c.h.b16 %v8180
      %v8217 = vunpack.c.l.b16 %v8181
      %v8218 = vunpack.c.h.b16 %v8181
      %v8219 = vunpack.c.l.b16 %v8182
      %v8220 = vunpack.c.h.b16 %v8182
      %v8221 = vunpack.c.l.b16 %v8183
      %v8222 = vunpack.c.h.b16 %v8183
      %v8223 = vunpack.c.l.b16 %v8184
      %v8224 = vunpack.c.h.b16 %v8184
      %v8225 = vunpack.c.l.b16 %v8185
      %v8226 = vunpack.c.h.b16 %v8185
      %v8227 = vunpack.c.l.b16 %v8186
      %v8228 = vunpack.c.h.b16 %v8186
      %v8229 = vunpack.c.l.b16 %v8187
      %v8230 = vunpack.c.h.b16 %v8187
      %v8231 = vunpack.c.l.b16 %v8188
      %v8232 = vunpack.c.h.b16 %v8188
      %v8233 = vunpack.c.l.b16 %v8189
      %v8234 = vunpack.c.h.b16 %v8189
      %v8235 = vunpack.c.l.b16 %v8190
      %v8236 = vunpack.c.h.b16 %v8190
      %v8237 = vunpack.c.l.b16 %v8191
      %v8238 = vunpack.c.h.b16 %v8191
      %v8239 = vunpack.c.l.b16 %v8192
      %v8240 = vunpack.c.h.b16 %v8192
      %v8241 = vpack.c.b16 %v8209, %v8209
      %v8242 = vpack.c.b16 %v8210, %v8210
      %v8243 = vpack.c.b16 %v8211, %v8211
      %v8244 = vpack.c.b16 %v8212, %v8212
      %v8245 = vpack.c.b16 %v8213, %v8213
      %v8246 = vpack.c.b16 %v8214, %v8214
      %v8247 = vpack.c.b16 %v8215, %v8215
      %v8248 = vpack.c.b16 %v8216, %v8216
      %v8249 = vpack.c.b16 %v8217, %v8217
      %v8250 = vpack.c.b16 %v8218, %v8218
      %v8251 = vpack.c.b16 %v8219, %v8219
      %v8252 = vpack.c.b16 %v8220, %v8220
      %v8253 = vpack.c.b16 %v8221, %v8221
      %v8254 = vpack.c.b16 %v8222, %v8222
      %v8255 = vpack.c.b16 %v8223, %v8223
      %v8256 = vpack.c.b16 %v8224, %v8224
      %v8257 = vpack.c.b16 %v8225, %v8225
      %v8258 = vpack.c.b16 %v8226, %v8226
      %v8259 = vpack.c.b16 %v8227, %v8227
      %v8260 = vpack.c.b16 %v8228, %v8228
      %v8261 = vpack.c.b16 %v8229, %v8229
      %v8262 = vpack.c.b16 %v8230, %v8230
      %v8263 = vpack.c.b16 %v8231, %v8231
      %v8264 = vpack.c.b16 %v8232, %v8232
      %v8265 = vpack.c.b16 %v8233, %v8233
      %v8266 = vpack.c.b16 %v8234, %v8234
      %v8267 = vpack.c.b16 %v8235, %v8235
      %v8268 = vpack.c.b16 %v8236, %v8236
      %v8269 = vpack.c.b16 %v8237, %v8237
      %v8270 = vpack.c.b16 %v8238, %v8238
      %v8271 = vpack.c.b16 %v8239, %v8239
      %v8272 = vpack.c.b16 %v8240, %v8240
      %8305 = vst.msk [vmem:[%s224] sm:$0xf] %vm226, %v8241
      %8306 = vst.msk [vmem:[%s224 + $0x4] sm:$0xf] %vm226, %v8242
      %8307 = vst.msk [vmem:[%s224 + $0x8] sm:$0xf] %vm226, %v8243
      %8308 = vst.msk [vmem:[%s224 + $0xc] sm:$0xf] %vm226, %v8244
      %8309 = vst.msk [vmem:[%s224 + $0x10] sm:$0xf] %vm226, %v8245
      %8310 = vst.msk [vmem:[%s224 + $0x14] sm:$0xf] %vm226, %v8246
      %8311 = vst.msk [vmem:[%s224 + $0x18] sm:$0xf] %vm226, %v8247
      %8312 = vst.msk [vmem:[%s224 + $0x1c] sm:$0xf] %vm226, %v8248
      %8313 = vst.msk [vmem:[%s224 + $0x20] sm:$0xf] %vm226, %v8249
      %8314 = vst.msk [vmem:[%s224 + $0x24] sm:$0xf] %vm226, %v8250
      %8315 = vst.msk [vmem:[%s224 + $0x28] sm:$0xf] %vm226, %v8251
      %8316 = vst.msk [vmem:[%s224 + $0x2c] sm:$0xf] %vm226, %v8252
      %8317 = vst.msk [vmem:[%s224 + $0x30] sm:$0xf] %vm226, %v8253
      %8318 = vst.msk [vmem:[%s224 + $0x34] sm:$0xf] %vm226, %v8254
      %8319 = vst.msk [vmem:[%s224 + $0x38] sm:$0xf] %vm226, %v8255
      %8320 = vst.msk [vmem:[%s224 + $0x3c] sm:$0xf] %vm226, %v8256
      %8321 = vst.msk [vmem:[%s224 + $0x40] sm:$0xf] %vm226, %v8257
      %8322 = vst.msk [vmem:[%s224 + $0x44] sm:$0xf] %vm226, %v8258
      %8323 = vst.msk [vmem:[%s224 + $0x48] sm:$0xf] %vm226, %v8259
      %8324 = vst.msk [vmem:[%s224 + $0x4c] sm:$0xf] %vm226, %v8260
      %8325 = vst.msk [vmem:[%s224 + $0x50] sm:$0xf] %vm226, %v8261
      %8326 = vst.msk [vmem:[%s224 + $0x54] sm:$0xf] %vm226, %v8262
      %8327 = vst.msk [vmem:[%s224 + $0x58] sm:$0xf] %vm226, %v8263
      %8328 = vst.msk [vmem:[%s224 + $0x5c] sm:$0xf] %vm226, %v8264
      %8329 = vst.msk [vmem:[%s224 + $0x60] sm:$0xf] %vm226, %v8265
      %8330 = vst.msk [vmem:[%s224 + $0x64] sm:$0xf] %vm226, %v8266
      %8331 = vst.msk [vmem:[%s224 + $0x68] sm:$0xf] %vm226, %v8267
      %8332 = vst.msk [vmem:[%s224 + $0x6c] sm:$0xf] %vm226, %v8268
      %8333 = vst.msk [vmem:[%s224 + $0x70] sm:$0xf] %vm226, %v8269
      %8334 = vst.msk [vmem:[%s224 + $0x74] sm:$0xf] %vm226, %v8270
      %8335 = vst.msk [vmem:[%s224 + $0x78] sm:$0xf] %vm226, %v8271
      %8336 = vst.msk [vmem:[%s224 + $0x7c] sm:$0xf] %vm226, %v8272
      %p8337 = scmp.lt.s32.totalorder %s16, 1
      %s8338 = scalar_select %p8337, %s16, 1
      %s8339 = smul.addr %s8338, 32
      %s8340 = smul.addr %s8339, 4
      %s8341 = scalar_lea.vmem %s5, %s8340
      // Predicated region
      $region41: #{basic_block_forward.1} parent=39 // pred_check
        %p8342 = pneg %p144
      $region42: #{basic_block_forward.1} parent=39 // pred_check_branch
        %8344 = sbr.rel (%p8342) target = $region44
      $region43: #{basic_block_forward.1} parent=39 // pred_region
        _
      $region44: #{basic_block_forward.1} parent=39 // pred_fallthru
        _
    $region40: #{basic_block_forward.1} parent=5 // pred_fallthru
      _
    %p8345 = scmp.le.s32.totalorder 2, %s11
    // Predicated region
    $region45: #{basic_block_forward.1} parent=5 // pred_check
      %p8346 = pneg %p8345
    $region46: #{basic_block_forward.1} parent=5 // pred_check_branch
      %8348 = sbr.rel (%p8346) target = $region48
    $region47: #{basic_block_forward.1} parent=5 // pred_region
      %s8349 = ssub.s32 %s11, 2
      // Predicated region
      $region49: #{basic_block_forward.1} parent=47 // pred_check
        %p8350 = pneg %p150
      $region50: #{basic_block_forward.1} parent=47 // pred_check_branch
        %8352 = sbr.rel (%p8350) target = $region52
      $region51: #{basic_block_forward.1} parent=47 // pred_region
        %p8353 = scmp.lt.s32.totalorder %s17, 1
        %s8354 = scalar_select %p8353, %s17, 1
        %s8355 = smul.addr %s8354, 32
        %s8356 = smul.addr %s8355, 4
        %s8357 = scalar_lea.vmem %s5, %s8356
      $region52: #{basic_block_forward.1} parent=47 // pred_fallthru
        _
    $region48: #{basic_block_forward.1} parent=5 // pred_fallthru
      _
  $region6: #{basic_block_forward.1} parent=0 // loop_footer
    %s15 = sadd.s32 1, %s11
  $region7: #{basic_block_forward.1} parent=0 // loop_footer_branch
    %10 = sbr.rel target = $region3
  $region8: #{basic_block_forward.1} parent=0 // loop_exit
    _

</llo_original>
